<compile_context>
chip_gen: v5e
topology: v5e:2x2
jax: 0.10.0
libtpu: 0.0.40
codegen_flags: <defaults>
</compile_context>

<pallas_src>
import jax
import jax.numpy as jnp
from jax.experimental import pallas as pl
from jax.experimental.pallas import tpu as pltpu


# -----------------------------------------------------------------------------
# Pallas kernel: conv1/conv2/conv3 (k=2, s=2) + FC + sigmoid, batch on lanes
# -----------------------------------------------------------------------------
def ntc_kernel(p1_ref, w1_ref, w2_ref, w3_ref, wf_ref,
               b1_ref, b2_ref, b3_ref, bf_ref, out_ref):
    TN = out_ref.shape[1]          # batch tile (lane-dense, multiple of 128)
    S1TN = p1_ref.shape[1]         # (D/2)^3 * TN
    S2TN = S1TN // 8               # (D/4)^3 * TN
    S3TN = S2TN // 8               # (D/8)^3 * TN
    S3 = S3TN // TN                # (D/8)^3
    act_dt = w1_ref.dtype          # compute dtype for MXU operands (bf16)
    bf = bf_ref[0, 0]              # scalar FC bias from SMEM

    # conv1: 1 -> C channels. Columns of p1 are ordered
    #   (lA lB lE | mA mB mE | tA tB tE | n)  slow -> fast,
    # rows are the 8 (p,q,r) conv1 taps -> one MXU matmul.
    h1 = jnp.maximum(
        jnp.dot(w1_ref[...], p1_ref[...], preferred_element_type=jnp.float32)
        + b1_ref[...], 0.0)

    # conv2: its taps (lA,lB,lE) are the 3 slowest column bits of h1 -> the 8
    # taps are contiguous, 128-aligned lane slices; stack them on sublanes.
    p2 = jnp.concatenate(
        [h1[:, t * S2TN:(t + 1) * S2TN] for t in range(8)], axis=0).astype(act_dt)
    h2 = jnp.maximum(
        jnp.dot(w2_ref[...], p2, preferred_element_type=jnp.float32)
        + b2_ref[...], 0.0)

    # conv3: same trick one level down (tap bits mA,mB,mE).
    p3 = jnp.concatenate(
        [h2[:, t * S3TN:(t + 1) * S3TN] for t in range(8)], axis=0).astype(act_dt)
    h3 = jnp.maximum(
        jnp.dot(w3_ref[...], p3, preferred_element_type=jnp.float32)
        + b3_ref[...], 0.0)

    # FC (Flatten + Linear(., 1)) as ONE matmul: stack the S3 spatial blocks
    # (each of width TN, 128-aligned) on sublanes -> (S3*C, TN).
    hf = jnp.concatenate(
        [h3[:, t * TN:(t + 1) * TN] for t in range(S3)], axis=0).astype(act_dt)
    logit = jnp.dot(wf_ref[...], hf, preferred_element_type=jnp.float32) + bf

    out_ref[...] = 1.0 / (1.0 + jnp.exp(-logit))    # (1, TN) lane-dense store


# -----------------------------------------------------------------------------
# Generation-aware scoped-VMEM limit (v7x: 64 MiB, v5e/v6e: 128 MiB physical)
# -----------------------------------------------------------------------------
def _pick_vmem_limit_bytes():
    cap = None
    try:
        cap = getattr(pltpu.get_tpu_info(), "vmem_capacity_bytes", None)
    except Exception:
        cap = None
    if not cap:
        cap = 64 * 1024 * 1024          # conservative fallback (v7x per-core)
    return int(min(100 * 1024 * 1024, (cap * 3) // 4))


# -----------------------------------------------------------------------------
# Wrapper: embedding gather + fused layout einsum, then one batch-tiled call
# -----------------------------------------------------------------------------
def ntc_forward_pallas(params, i_idx, j_idx, k_idx, *,
                       batch_tile=128, compute_dtype=jnp.bfloat16):
    N = i_idx.shape[0]
    D = params["user_emb"].shape[1]
    C = params["w1"].shape[0]
    TN = batch_tile
    assert D % 8 == 0, "latent_dim must be divisible by 8 (three stride-2 convs)"
    assert N % TN == 0, "batch must be a multiple of batch_tile"
    assert TN % 128 == 0, "batch_tile must be a multiple of 128 (lane-dense)"
    T = D // 8
    S1, S3 = (D // 2) ** 3, T ** 3
    G = N // TN
    f32 = jnp.float32

    ie = jnp.take(params["user_emb"], i_idx, axis=0).astype(f32)
    je = jnp.take(params["item_emb"], j_idx, axis=0).astype(f32)
    ke = jnp.take(params["time_emb"], k_idx, axis=0).astype(f32)

    # Per-axis tap factors: embedding index d = 8*t + 4*m + 2*l + p where
    # p -> conv1 tap, l -> conv2 tap, m -> conv3 tap, t -> conv3 output coord.
    def tap_factor(e):
        e = e.reshape(G, TN, T, 2, 2, 2)              # (g, n, t, m, l, tap)
        return jnp.transpose(e, (0, 5, 4, 3, 2, 1))   # (g, tap, l, m, t, n)

    A, B, E = tap_factor(ie), tap_factor(je), tap_factor(ke)

    # Rank-1 outer product emitted DIRECTLY in the kernel layout:
    #   rows = (p, q, r) conv1 taps
    #   cols = (g | lA lB lE | mA mB mE | tA tB tE | n)  slow -> fast
    # Single fused einsum, no (N, D, D, D) intermediate or 13-D transpose.
    p1 = jnp.einsum("gpuxen,gqvyfn,grwzin->pqrguvwxyzefin", A, B, E)
    p1 = p1.astype(compute_dtype).reshape(8, G * S1 * TN)

    # Conv / FC weights in matmul form (tiny, host-side layout plumbing).
    w1m = params["w1"].reshape(C, 8).astype(compute_dtype)                       # (C, 8)
    w2m = jnp.transpose(params["w2"], (0, 2, 3, 4, 1)).reshape(C, 8 * C).astype(compute_dtype)
    w3m = jnp.transpose(params["w3"], (0, 2, 3, 4, 1)).reshape(C, 8 * C).astype(compute_dtype)
    # FC weight reordered to match the sublane-stacked conv3 output:
    # hf row index is t*C + c; PyTorch flatten order is c*S3 + t.
    wfm = jnp.transpose(params["wf"].reshape(C, S3)).reshape(1, S3 * C).astype(compute_dtype)
    b1 = params["b1"].reshape(C, 1).astype(f32)
    b2 = params["b2"].reshape(C, 1).astype(f32)
    b3 = params["b3"].reshape(C, 1).astype(f32)
    bf = params["bf"].reshape(1, 1).astype(f32)

    def _full(shape):
        r = len(shape)
        return pl.BlockSpec(shape, lambda b: (0,) * r)   # resident, fetched once

    out = pl.pallas_call(
        ntc_kernel,
        out_shape=jax.ShapeDtypeStruct((1, N), f32),
        grid=(G,),
        in_specs=[
            pl.BlockSpec((8, S1 * TN), lambda b: (0, b)),       # conv1 patches
            _full((C, 8)),                                       # w1
            _full((C, 8 * C)),                                   # w2
            _full((C, 8 * C)),                                   # w3
            _full((1, S3 * C)),                                  # wf
            _full((C, 1)),                                       # b1
            _full((C, 1)),                                       # b2
            _full((C, 1)),                                       # b3
            pl.BlockSpec(memory_space=pltpu.MemorySpace.SMEM),   # fc bias scalar
        ],
        out_specs=pl.BlockSpec((1, TN), lambda b: (0, b)),       # lane-dense out
        compiler_params=pltpu.CompilerParams(
            dimension_semantics=("parallel",),
            vmem_limit_bytes=_pick_vmem_limit_bytes(),
        ),
    )(p1, w1m, w2m, w3m, wfm, b1, b2, b3, bf)
    return out.reshape(N, 1)


# -----------------------------------------------------------------------------
# Pure-JAX reference (plain XLA, f32, HIGHEST precision) for correctness check
# -----------------------------------------------------------------------------
def ntc_forward_reference(params, i_idx, j_idx, k_idx):
    hi = jax.lax.Precision.HIGHEST
    ie = params["user_emb"][i_idx]
    je = params["item_emb"][j_idx]
    ke = params["time_emb"][k_idx]
    x = jnp.einsum("ni,nj,nk->nijk", ie, je, ke)[:, None]          # (N,1,D,D,D)

    def conv_s2(x, w, b):
        acc = None
        for p in range(2):
            for q in range(2):
                for r in range(2):
                    xs = x[:, :, p::2, q::2, r::2]
                    term = jnp.einsum("ncdhw,kc->nkdhw", xs, w[:, :, p, q, r],
                                      precision=hi)
                    acc = term if acc is None else acc + term
        return jax.nn.relu(acc + b[None, :, None, None, None])

    h = conv_s2(x, params["w1"], params["b1"])
    h = conv_s2(h, params["w2"], params["b2"])
    h = conv_s2(h, params["w3"], params["b3"])
    flat = h.reshape(x.shape[0], -1)
    logits = jnp.matmul(flat, params["wf"].T, precision=hi) + params["bf"]
    return jax.nn.sigmoid(logits)


# -----------------------------------------------------------------------------
# Deterministic parameter init (shapes per NTC.__init__)
# -----------------------------------------------------------------------------
def init_params(key, num_user, num_item, num_time, latent_dim, channels):
    ks = jax.random.split(key, 11)

    def xavier(k, shape):
        bound = (6.0 / (shape[0] + shape[1])) ** 0.5
        return jax.random.uniform(k, shape, jnp.float32, -bound, bound)

    def conv_init(kw, kb, cout, cin):
        bound = 1.0 / ((cin * 8) ** 0.5)
        w = jax.random.uniform(kw, (cout, cin, 2, 2, 2), jnp.float32, -bound, bound)
        b = jax.random.uniform(kb, (cout,), jnp.float32, -bound, bound)
        return w, b

    D8 = latent_dim // 8
    fc_in = channels * D8 ** 3
    w1, b1 = conv_init(ks[3], ks[4], channels, 1)
    w2, b2 = conv_init(ks[5], ks[6], channels, channels)
    w3, b3 = conv_init(ks[7], ks[8], channels, channels)
    bound = 1.0 / (fc_in ** 0.5)
    wf = jax.random.uniform(ks[9], (1, fc_in), jnp.float32, -bound, bound)
    bf = jax.random.uniform(ks[10], (1,), jnp.float32, -bound, bound)
    return dict(
        user_emb=xavier(ks[0], (num_user, latent_dim)),
        item_emb=xavier(ks[1], (num_item, latent_dim)),
        time_emb=xavier(ks[2], (num_time, latent_dim)),
        w1=w1, b1=b1, w2=w2, b2=b2, w3=w3, b3=b3, wf=wf, bf=bf,
        history_prob=jnp.abs(jnp.float32(0.5)),   # unused on the default path
    )


if __name__ == "__main__":
    num_user, num_item, num_time = 20, 15, 10
    latent_dim, channels = 16, 8    # latent_dim must be divisible by 8
    N = 256                         # two lane-dense batch tiles of 128 -> grid=(2,)

    key = jax.random.PRNGKey(0)
    pkey, ikey, jkey, kkey = jax.random.split(key, 4)
    params = init_params(pkey, num_user, num_item, num_time, latent_dim, channels)

    i_idx = jax.random.randint(ikey, (N,), 0, num_user)
    j_idx = jax.random.randint(jkey, (N,), 0, num_item)
    k_idx = jax.random.randint(kkey, (N,), 0, num_time)

    out = jax.jit(ntc_forward_pallas)(params, i_idx, j_idx, k_idx)
    out = jax.block_until_ready(out)

    ref = ntc_forward_reference(params, i_idx, j_idx, k_idx)
    assert out.shape == (N, 1), out.shape
    # Tolerance covers the bf16 operands / f32 reference gap (measured errors
    # are ~1e-3); any layout / indexing bug would overshoot this by >10x.
    max_err = float(jnp.max(jnp.abs(out - ref)))
    assert max_err < 2e-2, (max_err, out[:4], ref[:4])
    print("KERNEL_OK")
</pallas_src>

<mosaic_0001>
module attributes {stable_mosaic.version = 11 : i64} {
  func.func @ntc_kernel(%arg0: i32, %arg1: memref<8x65536xbf16, #tpu.memory_space<vmem>>, %arg2: memref<8x8xbf16, #tpu.memory_space<vmem>>, %arg3: memref<8x64xbf16, #tpu.memory_space<vmem>>, %arg4: memref<8x64xbf16, #tpu.memory_space<vmem>>, %arg5: memref<1x64xbf16, #tpu.memory_space<vmem>>, %arg6: memref<8x1xf32, #tpu.memory_space<vmem>>, %arg7: memref<8x1xf32, #tpu.memory_space<vmem>>, %arg8: memref<8x1xf32, #tpu.memory_space<vmem>>, %arg9: memref<1x1xf32, #tpu.memory_space<smem>>, %arg10: memref<1x128xf32, #tpu.memory_space<vmem>>) attributes {dimension_semantics = [#tpu.dimension_semantics<parallel>], iteration_bounds = array<i64: 2>, scalar_prefetch = 0 : i64, scratch_operands = 0 : i64, tpu.core_type = #tpu.core_type<tc>, window_params = [{transform_indices = @transform_0, window_bounds = array<i64: 8, 65536>}, {pipeline_mode = #tpu.pipeline_mode<synchronous>, transform_indices = @transform_1, window_bounds = array<i64: 8, 8>}, {pipeline_mode = #tpu.pipeline_mode<synchronous>, transform_indices = @transform_2, window_bounds = array<i64: 8, 64>}, {pipeline_mode = #tpu.pipeline_mode<synchronous>, transform_indices = @transform_3, window_bounds = array<i64: 8, 64>}, {pipeline_mode = #tpu.pipeline_mode<synchronous>, transform_indices = @transform_4, window_bounds = array<i64: 1, 64>}, {pipeline_mode = #tpu.pipeline_mode<synchronous>, transform_indices = @transform_5, window_bounds = array<i64: 8, 1>}, {pipeline_mode = #tpu.pipeline_mode<synchronous>, transform_indices = @transform_6, window_bounds = array<i64: 8, 1>}, {pipeline_mode = #tpu.pipeline_mode<synchronous>, transform_indices = @transform_7, window_bounds = array<i64: 8, 1>}, {transform_indices = @transform_8, window_bounds = array<i64: 1, 1>}, {transform_indices = @transform_9, window_bounds = array<i64: 1, 128>}]} {
    %c0 = arith.constant 0 : index
    %c0_0 = arith.constant 0 : index
    %0 = memref.load %arg9[%c0, %c0_0] : memref<1x1xf32, #tpu.memory_space<smem>>
    %c0_1 = arith.constant 0 : index
    %c0_2 = arith.constant 0 : index
    %1 = vector.load %arg2[%c0_1, %c0_2] : memref<8x8xbf16, #tpu.memory_space<vmem>>, vector<8x8xbf16>
    %c0_3 = arith.constant 0 : index
    %c0_4 = arith.constant 0 : index
    %2 = vector.load %arg1[%c0_3, %c0_4] : memref<8x65536xbf16, #tpu.memory_space<vmem>>, vector<8x65536xbf16>
    %cst = arith.constant dense<0.000000e+00> : vector<8x65536xf32>
    %3 = tpu.matmul %1, %2, %cst {dimension_numbers = #tpu.dot_dimension_numbers<[1], [0], [0], [1], [0, 0, 1, 1], [], []>} : vector<8x8xbf16>, vector<8x65536xbf16>, vector<8x65536xf32> -> vector<8x65536xf32>
    %c0_5 = arith.constant 0 : index
    %c0_6 = arith.constant 0 : index
    %4 = vector.load %arg6[%c0_5, %c0_6] : memref<8x1xf32, #tpu.memory_space<vmem>>, vector<8x1xf32>
    %5 = vector.broadcast %4 : vector<8x1xf32> to vector<8x65536xf32>
    %6 = arith.addf %3, %5 : vector<8x65536xf32>
    %cst_7 = arith.constant 0.000000e+00 : f32
    %7 = vector.broadcast %cst_7 : f32 to vector<8x65536xf32>
    %8 = arith.maximumf %6, %7 : vector<8x65536xf32>
    %9 = vector.extract_strided_slice %8 {offsets = [0, 0], sizes = [8, 8192], strides = [1, 1]} : vector<8x65536xf32> to vector<8x8192xf32>
    %10 = vector.extract_strided_slice %8 {offsets = [0, 8192], sizes = [8, 8192], strides = [1, 1]} : vector<8x65536xf32> to vector<8x8192xf32>
    %11 = vector.extract_strided_slice %8 {offsets = [0, 16384], sizes = [8, 8192], strides = [1, 1]} : vector<8x65536xf32> to vector<8x8192xf32>
    %12 = vector.extract_strided_slice %8 {offsets = [0, 24576], sizes = [8, 8192], strides = [1, 1]} : vector<8x65536xf32> to vector<8x8192xf32>
    %13 = vector.extract_strided_slice %8 {offsets = [0, 32768], sizes = [8, 8192], strides = [1, 1]} : vector<8x65536xf32> to vector<8x8192xf32>
    %14 = vector.extract_strided_slice %8 {offsets = [0, 40960], sizes = [8, 8192], strides = [1, 1]} : vector<8x65536xf32> to vector<8x8192xf32>
    %15 = vector.extract_strided_slice %8 {offsets = [0, 49152], sizes = [8, 8192], strides = [1, 1]} : vector<8x65536xf32> to vector<8x8192xf32>
    %16 = vector.extract_strided_slice %8 {offsets = [0, 57344], sizes = [8, 8192], strides = [1, 1]} : vector<8x65536xf32> to vector<8x8192xf32>
    %17 = tpu.concatenate %9, %10, %11, %12, %13, %14, %15, %16 in 0 : vector<8x8192xf32>, vector<8x8192xf32>, vector<8x8192xf32>, vector<8x8192xf32>, vector<8x8192xf32>, vector<8x8192xf32>, vector<8x8192xf32>, vector<8x8192xf32> -> vector<64x8192xf32>
    %18 = arith.truncf %17 : vector<64x8192xf32> to vector<64x8192xbf16>
    %c0_8 = arith.constant 0 : index
    %c0_9 = arith.constant 0 : index
    %19 = vector.load %arg3[%c0_8, %c0_9] : memref<8x64xbf16, #tpu.memory_space<vmem>>, vector<8x64xbf16>
    %cst_10 = arith.constant dense<0.000000e+00> : vector<8x8192xf32>
    %20 = tpu.matmul %19, %18, %cst_10 {dimension_numbers = #tpu.dot_dimension_numbers<[1], [0], [0], [1], [0, 0, 1, 1], [], []>} : vector<8x64xbf16>, vector<64x8192xbf16>, vector<8x8192xf32> -> vector<8x8192xf32>
    %c0_11 = arith.constant 0 : index
    %c0_12 = arith.constant 0 : index
    %21 = vector.load %arg7[%c0_11, %c0_12] : memref<8x1xf32, #tpu.memory_space<vmem>>, vector<8x1xf32>
    %22 = vector.broadcast %21 : vector<8x1xf32> to vector<8x8192xf32>
    %23 = arith.addf %20, %22 : vector<8x8192xf32>
    %cst_13 = arith.constant 0.000000e+00 : f32
    %24 = vector.broadcast %cst_13 : f32 to vector<8x8192xf32>
    %25 = arith.maximumf %23, %24 : vector<8x8192xf32>
    %26 = vector.extract_strided_slice %25 {offsets = [0, 0], sizes = [8, 1024], strides = [1, 1]} : vector<8x8192xf32> to vector<8x1024xf32>
    %27 = vector.extract_strided_slice %25 {offsets = [0, 1024], sizes = [8, 1024], strides = [1, 1]} : vector<8x8192xf32> to vector<8x1024xf32>
    %28 = vector.extract_strided_slice %25 {offsets = [0, 2048], sizes = [8, 1024], strides = [1, 1]} : vector<8x8192xf32> to vector<8x1024xf32>
    %29 = vector.extract_strided_slice %25 {offsets = [0, 3072], sizes = [8, 1024], strides = [1, 1]} : vector<8x8192xf32> to vector<8x1024xf32>
    %30 = vector.extract_strided_slice %25 {offsets = [0, 4096], sizes = [8, 1024], strides = [1, 1]} : vector<8x8192xf32> to vector<8x1024xf32>
    %31 = vector.extract_strided_slice %25 {offsets = [0, 5120], sizes = [8, 1024], strides = [1, 1]} : vector<8x8192xf32> to vector<8x1024xf32>
    %32 = vector.extract_strided_slice %25 {offsets = [0, 6144], sizes = [8, 1024], strides = [1, 1]} : vector<8x8192xf32> to vector<8x1024xf32>
    %33 = vector.extract_strided_slice %25 {offsets = [0, 7168], sizes = [8, 1024], strides = [1, 1]} : vector<8x8192xf32> to vector<8x1024xf32>
    %34 = tpu.concatenate %26, %27, %28, %29, %30, %31, %32, %33 in 0 : vector<8x1024xf32>, vector<8x1024xf32>, vector<8x1024xf32>, vector<8x1024xf32>, vector<8x1024xf32>, vector<8x1024xf32>, vector<8x1024xf32>, vector<8x1024xf32> -> vector<64x1024xf32>
    %35 = arith.truncf %34 : vector<64x1024xf32> to vector<64x1024xbf16>
    %c0_14 = arith.constant 0 : index
    %c0_15 = arith.constant 0 : index
    %36 = vector.load %arg4[%c0_14, %c0_15] : memref<8x64xbf16, #tpu.memory_space<vmem>>, vector<8x64xbf16>
    %cst_16 = arith.constant dense<0.000000e+00> : vector<8x1024xf32>
    %37 = tpu.matmul %36, %35, %cst_16 {dimension_numbers = #tpu.dot_dimension_numbers<[1], [0], [0], [1], [0, 0, 1, 1], [], []>} : vector<8x64xbf16>, vector<64x1024xbf16>, vector<8x1024xf32> -> vector<8x1024xf32>
    %c0_17 = arith.constant 0 : index
    %c0_18 = arith.constant 0 : index
    %38 = vector.load %arg8[%c0_17, %c0_18] : memref<8x1xf32, #tpu.memory_space<vmem>>, vector<8x1xf32>
    %39 = vector.broadcast %38 : vector<8x1xf32> to vector<8x1024xf32>
    %40 = arith.addf %37, %39 : vector<8x1024xf32>
    %cst_19 = arith.constant 0.000000e+00 : f32
    %41 = vector.broadcast %cst_19 : f32 to vector<8x1024xf32>
    %42 = arith.maximumf %40, %41 : vector<8x1024xf32>
    %43 = vector.extract_strided_slice %42 {offsets = [0, 0], sizes = [8, 128], strides = [1, 1]} : vector<8x1024xf32> to vector<8x128xf32>
    %44 = vector.extract_strided_slice %42 {offsets = [0, 128], sizes = [8, 128], strides = [1, 1]} : vector<8x1024xf32> to vector<8x128xf32>
    %45 = vector.extract_strided_slice %42 {offsets = [0, 256], sizes = [8, 128], strides = [1, 1]} : vector<8x1024xf32> to vector<8x128xf32>
    %46 = vector.extract_strided_slice %42 {offsets = [0, 384], sizes = [8, 128], strides = [1, 1]} : vector<8x1024xf32> to vector<8x128xf32>
    %47 = vector.extract_strided_slice %42 {offsets = [0, 512], sizes = [8, 128], strides = [1, 1]} : vector<8x1024xf32> to vector<8x128xf32>
    %48 = vector.extract_strided_slice %42 {offsets = [0, 640], sizes = [8, 128], strides = [1, 1]} : vector<8x1024xf32> to vector<8x128xf32>
    %49 = vector.extract_strided_slice %42 {offsets = [0, 768], sizes = [8, 128], strides = [1, 1]} : vector<8x1024xf32> to vector<8x128xf32>
    %50 = vector.extract_strided_slice %42 {offsets = [0, 896], sizes = [8, 128], strides = [1, 1]} : vector<8x1024xf32> to vector<8x128xf32>
    %51 = tpu.concatenate %43, %44, %45, %46, %47, %48, %49, %50 in 0 : vector<8x128xf32>, vector<8x128xf32>, vector<8x128xf32>, vector<8x128xf32>, vector<8x128xf32>, vector<8x128xf32>, vector<8x128xf32>, vector<8x128xf32> -> vector<64x128xf32>
    %52 = arith.truncf %51 : vector<64x128xf32> to vector<64x128xbf16>
    %c0_20 = arith.constant 0 : index
    %c0_21 = arith.constant 0 : index
    %53 = vector.load %arg5[%c0_20, %c0_21] : memref<1x64xbf16, #tpu.memory_space<vmem>>, vector<1x64xbf16>
    %cst_22 = arith.constant dense<0.000000e+00> : vector<1x128xf32>
    %54 = tpu.matmul %53, %52, %cst_22 {dimension_numbers = #tpu.dot_dimension_numbers<[1], [0], [0], [1], [0, 0, 1, 1], [], []>} : vector<1x64xbf16>, vector<64x128xbf16>, vector<1x128xf32> -> vector<1x128xf32>
    %55 = vector.broadcast %0 : f32 to vector<1x128xf32>
    %56 = arith.addf %54, %55 : vector<1x128xf32>
    %cst_23 = arith.constant 0.000000e+00 : f32
    %57 = vector.broadcast %cst_23 : f32 to vector<1x128xf32>
    %58 = arith.subf %57, %56 : vector<1x128xf32>
    %59 = math.exp %58 : vector<1x128xf32>
    %cst_24 = arith.constant 1.000000e+00 : f32
    %60 = vector.broadcast %cst_24 : f32 to vector<1x128xf32>
    %61 = arith.addf %60, %59 : vector<1x128xf32>
    %cst_25 = arith.constant 1.000000e+00 : f32
    %62 = vector.broadcast %cst_25 : f32 to vector<1x128xf32>
    %63 = arith.divf %62, %61 : vector<1x128xf32>
    %c0_26 = arith.constant 0 : index
    %c0_27 = arith.constant 0 : index
    %64 = vector.load %arg10[%c0_26, %c0_27] : memref<1x128xf32, #tpu.memory_space<vmem>>, vector<1x128xf32>
    tpu.vector_store %arg10[%c0_26, %c0_27], %63 {strides = array<i32>} : memref<1x128xf32, #tpu.memory_space<vmem>>, vector<1x128xf32>,
    return
  }
  func.func @transform_0(%arg0: i32) -> (i32, i32) {
    %c0_i32 = arith.constant 0 : i32
    %c0_i32_0 = arith.constant 0 : i32
    return %c0_i32, %arg0 : i32, i32
  }
  func.func @transform_1(%arg0: i32) -> (i32, i32) {
    %c0_i32 = arith.constant 0 : i32
    %c0_i32_0 = arith.constant 0 : i32
    %c0_i32_1 = arith.constant 0 : i32
    return %c0_i32, %c0_i32_0 : i32, i32
  }
  func.func @transform_2(%arg0: i32) -> (i32, i32) {
    %c0_i32 = arith.constant 0 : i32
    %c0_i32_0 = arith.constant 0 : i32
    %c0_i32_1 = arith.constant 0 : i32
    return %c0_i32, %c0_i32_0 : i32, i32
  }
  func.func @transform_3(%arg0: i32) -> (i32, i32) {
    %c0_i32 = arith.constant 0 : i32
    %c0_i32_0 = arith.constant 0 : i32
    %c0_i32_1 = arith.constant 0 : i32
    return %c0_i32, %c0_i32_0 : i32, i32
  }
  func.func @transform_4(%arg0: i32) -> (i32, i32) {
    %c0_i32 = arith.constant 0 : i32
    %c0_i32_0 = arith.constant 0 : i32
    %c0_i32_1 = arith.constant 0 : i32
    return %c0_i32, %c0_i32_0 : i32, i32
  }
  func.func @transform_5(%arg0: i32) -> (i32, i32) {
    %c0_i32 = arith.constant 0 : i32
    %c0_i32_0 = arith.constant 0 : i32
    %c0_i32_1 = arith.constant 0 : i32
    return %c0_i32, %c0_i32_0 : i32, i32
  }
  func.func @transform_6(%arg0: i32) -> (i32, i32) {
    %c0_i32 = arith.constant 0 : i32
    %c0_i32_0 = arith.constant 0 : i32
    %c0_i32_1 = arith.constant 0 : i32
    return %c0_i32, %c0_i32_0 : i32, i32
  }
  func.func @transform_7(%arg0: i32) -> (i32, i32) {
    %c0_i32 = arith.constant 0 : i32
    %c0_i32_0 = arith.constant 0 : i32
    %c0_i32_1 = arith.constant 0 : i32
    return %c0_i32, %c0_i32_0 : i32, i32
  }
  func.func @transform_8(%arg0: i32) -> (i32, i32) {
    %c0_i32 = arith.constant 0 : i32
    %c0_i32_0 = arith.constant 0 : i32
    %c0_i32_1 = arith.constant 0 : i32
    return %c0_i32, %c0_i32_0 : i32, i32
  }
  func.func @transform_9(%arg0: i32) -> (i32, i32) {
    %c0_i32 = arith.constant 0 : i32
    %c0_i32_0 = arith.constant 0 : i32
    return %c0_i32, %arg0 : i32, i32
  }
}

</mosaic_0001>

<llo_original>
// kernel: ntc_forward_pallas.1
$region0: #{ntc_forward_pallas.1}
  #allocation0 [shape = 'u32[]', space=smem, size = 0x4, offset = 0x4, fixed_abs, tag = 'smem constant byte address 0x4 - core index']
  #allocation1 [shape = 'u32[72,128]{1,0:T(1,128)}', space=vmem, size = 0x9000, scoped, tag = 'internal scratch']
  #allocation2 [shape = 'f32[1,1]{1,0:T(1,128)S(6)}', space=smem, size = 0x200, scoped, tag = 'scoped memory for ntc_forward_pallas.1']
  %s0 = inlined_call_operand.vmem [shape: bf16[8,131072], index: 0, kind: input, shape index: {}]
  %s1 = inlined_call_operand.vmem [shape: bf16[8,8], index: 1, kind: input, shape index: {}]
  %s2 = inlined_call_operand.vmem [shape: bf16[8,64], index: 2, kind: input, shape index: {}]
  %s3 = inlined_call_operand.vmem [shape: bf16[8,64], index: 3, kind: input, shape index: {}]
  %s4 = inlined_call_operand.vmem [shape: bf16[1,64], index: 4, kind: input, shape index: {}]
  %s5 = inlined_call_operand.vmem [shape: f32[8,1], index: 5, kind: input, shape index: {}]
  %s6 = inlined_call_operand.vmem [shape: f32[8,1], index: 6, kind: input, shape index: {}]
  %s7 = inlined_call_operand.vmem [shape: f32[8,1], index: 7, kind: input, shape index: {}]
  %s8 = inlined_call_operand.<no memory space> [shape: f32[1,1], index: 8, kind: input, shape index: {}]
  %s9 = inlined_call_operand.hbm [shape: f32[1,256], index: 9, kind: output, shape index: {}]
  %s10 = sld [smem:[#allocation0]]
  $region69: #{ntc_forward_pallas.1} parent=0
    _
  %s12 = ssub.s32 1, %s10
  %s13 = scalar_select 0, %s12, %s10
  %14 = sst [smem:[#allocation2]] %s8
  $region1: #{ntc_forward_pallas.1} parent=0
    #allocation3 [shape = 'u8[1024]{0}', space=vmem, size = 0x400, scoped, tag = 'output window, operand 0']
    #allocation4 [shape = 's32[2]{0}', space=sflag, size = 0x8, scoped, tag = 'scoped memory for ntc_forward_pallas.1']
    %15 = vsyncpa [#allocation4], 0
    %s16 = scalar_lea.sflag [#allocation4], 1
    %17 = vsyncpa %s16, 0
    loop: start=0, step=1, limit=4
    $region2: #{ntc_forward_pallas.1} parent=1 // loop_pre_header
      _
    $region3: #{ntc_forward_pallas.1} parent=1 // loop_header
      %s19 = sphi 0, %s23
      %p20 = scmp.ge.s32.totalorder %s19, 4
      %s29 = sphi 0, %s31
      %s32 = sphi 0, %s29
      %s33 = sphi 0, %s32
      %s49 = sphi 0, %s33
      %s53 = sphi 0, %s53
      %s55 = sphi 0, %s53
      %s56 = sphi 0, %s55
      %s70 = sphi 0, %s56
      %s74 = sphi 0, %s74
      %s76 = sphi 0, %s74
      %s77 = sphi 0, %s76
      %s91 = sphi 0, %s77
      %s95 = sphi 0, %s95
      %s97 = sphi 0, %s95
      %s98 = sphi 0, %s97
      %s112 = sphi 0, %s98
      %s116 = sphi 0, %s116
      %s118 = sphi 0, %s116
      %s119 = sphi 0, %s118
      %s133 = sphi 0, %s119
      %s137 = sphi 0, %s137
      %s139 = sphi 0, %s137
      %s140 = sphi 0, %s139
      %s154 = sphi 0, %s140
      %s158 = sphi 0, %s158
      %s160 = sphi 0, %s158
      %s161 = sphi 0, %s160
      %s175 = sphi 0, %s161
      %s179 = sphi 0, %s179
      %s181 = sphi 0, %s179
      %s182 = sphi 0, %s181
      %s196 = sphi 0, %s182
      %s200 = sphi 0, %s200
      %s202 = sphi 0, %s200
      %s203 = sphi 0, %s202
      %s217 = sphi 0, %s203
      %s223 = sphi 0, %s225
      %s226 = sphi 0, %s223
      %s227 = sphi 0, %s226
      %s243 = sphi 0, %s227
    $region4: #{ntc_forward_pallas.1} parent=1 // loop_header_branch
      %22 = sbr.rel (%p20) target = $region8
    $region5: #{ntc_forward_pallas.1} parent=1 // loop_body
      %s24 = ssub.s32 %s19, 1
      %s25 = ssub.s32 %s19, 2
      %s26 = sadd.s32 %s19, 1
      %s27 = ssub.s32 %s19, %s26
      %p28 = scmp.eq.s32.totalorder %s27, 0
      %s30 = sadd.s32 %s29, 1
      %s31 = scalar_select %p28, %s29, %s30
      %p34 = pneg %p28
      %p35 = scmp.eq.s32.totalorder %s19, 1
      %p36 = por %p34, %p35
      %p37 = scmp.ne.s32.totalorder %s29, %s32
      %p38 = scmp.eq.s32.totalorder %s19, 0
      %p39 = por %p37, %p38
      %p40 = scmp.ne.s32.totalorder %s29, %s32
      %p41 = scmp.eq.s32.totalorder %s24, 1
      %p42 = por %p40, %p41
      %p43 = scmp.ne.s32.totalorder %s32, %s33
      %p44 = scmp.eq.s32.totalorder %s24, 0
      %p45 = por %p43, %p44
      %p46 = scmp.ne.s32.totalorder %s32, %s33
      %p47 = scmp.eq.s32.totalorder %s25, 1
      %p48 = por %p46, %p47
      %p50 = scmp.ne.s32.totalorder %s33, %s49
      %p51 = scmp.eq.s32.totalorder %s25, 0
      %p52 = por %p50, %p51
      %s54 = sadd.s32 %s53, 1
      %p57 = scmp.eq.s32.totalorder %s19, 1
      %p58 = scmp.ne.s32.totalorder %s53, %s55
      %p59 = scmp.eq.s32.totalorder %s19, 0
      %p60 = por %p58, %p59
      %p61 = scmp.ne.s32.totalorder %s53, %s55
      %p62 = scmp.eq.s32.totalorder %s24, 1
      %p63 = por %p61, %p62
      %p64 = scmp.ne.s32.totalorder %s55, %s56
      %p65 = scmp.eq.s32.totalorder %s24, 0
      %p66 = por %p64, %p65
      %p67 = scmp.ne.s32.totalorder %s55, %s56
      %p68 = scmp.eq.s32.totalorder %s25, 1
      %p69 = por %p67, %p68
      %p71 = scmp.ne.s32.totalorder %s56, %s70
      %p72 = scmp.eq.s32.totalorder %s25, 0
      %p73 = por %p71, %p72
      %s75 = sadd.s32 %s74, 1
      %p78 = scmp.eq.s32.totalorder %s19, 1
      %p79 = scmp.ne.s32.totalorder %s74, %s76
      %p80 = scmp.eq.s32.totalorder %s19, 0
      %p81 = por %p79, %p80
      %p82 = scmp.ne.s32.totalorder %s74, %s76
      %p83 = scmp.eq.s32.totalorder %s24, 1
      %p84 = por %p82, %p83
      %p85 = scmp.ne.s32.totalorder %s76, %s77
      %p86 = scmp.eq.s32.totalorder %s24, 0
      %p87 = por %p85, %p86
      %p88 = scmp.ne.s32.totalorder %s76, %s77
      %p89 = scmp.eq.s32.totalorder %s25, 1
      %p90 = por %p88, %p89
      %p92 = scmp.ne.s32.totalorder %s77, %s91
      %p93 = scmp.eq.s32.totalorder %s25, 0
      %p94 = por %p92, %p93
      %s96 = sadd.s32 %s95, 1
      %p99 = scmp.eq.s32.totalorder %s19, 1
      %p100 = scmp.ne.s32.totalorder %s95, %s97
      %p101 = scmp.eq.s32.totalorder %s19, 0
      %p102 = por %p100, %p101
      %p103 = scmp.ne.s32.totalorder %s95, %s97
      %p104 = scmp.eq.s32.totalorder %s24, 1
      %p105 = por %p103, %p104
      %p106 = scmp.ne.s32.totalorder %s97, %s98
      %p107 = scmp.eq.s32.totalorder %s24, 0
      %p108 = por %p106, %p107
      %p109 = scmp.ne.s32.totalorder %s97, %s98
      %p110 = scmp.eq.s32.totalorder %s25, 1
      %p111 = por %p109, %p110
      %p113 = scmp.ne.s32.totalorder %s98, %s112
      %p114 = scmp.eq.s32.totalorder %s25, 0
      %p115 = por %p113, %p114
      %s117 = sadd.s32 %s116, 1
      %p120 = scmp.eq.s32.totalorder %s19, 1
      %p121 = scmp.ne.s32.totalorder %s116, %s118
      %p122 = scmp.eq.s32.totalorder %s19, 0
      %p123 = por %p121, %p122
      %p124 = scmp.ne.s32.totalorder %s116, %s118
      %p125 = scmp.eq.s32.totalorder %s24, 1
      %p126 = por %p124, %p125
      %p127 = scmp.ne.s32.totalorder %s118, %s119
      %p128 = scmp.eq.s32.totalorder %s24, 0
      %p129 = por %p127, %p128
      %p130 = scmp.ne.s32.totalorder %s118, %s119
      %p131 = scmp.eq.s32.totalorder %s25, 1
      %p132 = por %p130, %p131
      %p134 = scmp.ne.s32.totalorder %s119, %s133
      %p135 = scmp.eq.s32.totalorder %s25, 0
      %p136 = por %p134, %p135
      %s138 = sadd.s32 %s137, 1
      %p141 = scmp.eq.s32.totalorder %s19, 1
      %p142 = scmp.ne.s32.totalorder %s137, %s139
      %p143 = scmp.eq.s32.totalorder %s19, 0
      %p144 = por %p142, %p143
      %p145 = scmp.ne.s32.totalorder %s137, %s139
      %p146 = scmp.eq.s32.totalorder %s24, 1
      %p147 = por %p145, %p146
      %p148 = scmp.ne.s32.totalorder %s139, %s140
      %p149 = scmp.eq.s32.totalorder %s24, 0
      %p150 = por %p148, %p149
      %p151 = scmp.ne.s32.totalorder %s139, %s140
      %p152 = scmp.eq.s32.totalorder %s25, 1
      %p153 = por %p151, %p152
      %p155 = scmp.ne.s32.totalorder %s140, %s154
      %p156 = scmp.eq.s32.totalorder %s25, 0
      %p157 = por %p155, %p156
      %s159 = sadd.s32 %s158, 1
      %p162 = scmp.eq.s32.totalorder %s19, 1
      %p163 = scmp.ne.s32.totalorder %s158, %s160
      %p164 = scmp.eq.s32.totalorder %s19, 0
      %p165 = por %p163, %p164
      %p166 = scmp.ne.s32.totalorder %s158, %s160
      %p167 = scmp.eq.s32.totalorder %s24, 1
      %p168 = por %p166, %p167
      %p169 = scmp.ne.s32.totalorder %s160, %s161
      %p170 = scmp.eq.s32.totalorder %s24, 0
      %p171 = por %p169, %p170
      %p172 = scmp.ne.s32.totalorder %s160, %s161
      %p173 = scmp.eq.s32.totalorder %s25, 1
      %p174 = por %p172, %p173
      %p176 = scmp.ne.s32.totalorder %s161, %s175
      %p177 = scmp.eq.s32.totalorder %s25, 0
      %p178 = por %p176, %p177
      %s180 = sadd.s32 %s179, 1
      %p183 = scmp.eq.s32.totalorder %s19, 1
      %p184 = scmp.ne.s32.totalorder %s179, %s181
      %p185 = scmp.eq.s32.totalorder %s19, 0
      %p186 = por %p184, %p185
      %p187 = scmp.ne.s32.totalorder %s179, %s181
      %p188 = scmp.eq.s32.totalorder %s24, 1
      %p189 = por %p187, %p188
      %p190 = scmp.ne.s32.totalorder %s181, %s182
      %p191 = scmp.eq.s32.totalorder %s24, 0
      %p192 = por %p190, %p191
      %p193 = scmp.ne.s32.totalorder %s181, %s182
      %p194 = scmp.eq.s32.totalorder %s25, 1
      %p195 = por %p193, %p194
      %p197 = scmp.ne.s32.totalorder %s182, %s196
      %p198 = scmp.eq.s32.totalorder %s25, 0
      %p199 = por %p197, %p198
      %s201 = sadd.s32 %s200, 1
      %p204 = scmp.eq.s32.totalorder %s19, 1
      %p205 = scmp.ne.s32.totalorder %s200, %s202
      %p206 = scmp.eq.s32.totalorder %s19, 0
      %p207 = por %p205, %p206
      %p208 = scmp.ne.s32.totalorder %s200, %s202
      %p209 = scmp.eq.s32.totalorder %s24, 1
      %p210 = por %p208, %p209
      %p211 = scmp.ne.s32.totalorder %s202, %s203
      %p212 = scmp.eq.s32.totalorder %s24, 0
      %p213 = por %p211, %p212
      %p214 = scmp.ne.s32.totalorder %s202, %s203
      %p215 = scmp.eq.s32.totalorder %s25, 1
      %p216 = por %p214, %p215
      %p218 = scmp.ne.s32.totalorder %s203, %s217
      %p219 = scmp.eq.s32.totalorder %s25, 0
      %p220 = por %p218, %p219
      %s221 = ssub.s32 %s19, %s26
      %p222 = scmp.eq.s32.totalorder %s221, 0
      %s224 = sadd.s32 %s223, 1
      %s225 = scalar_select %p222, %s223, %s224
      %p228 = pneg %p222
      %p229 = scmp.eq.s32.totalorder %s19, 1
      %p230 = por %p228, %p229
      %p231 = scmp.ne.s32.totalorder %s223, %s226
      %p232 = scmp.eq.s32.totalorder %s19, 0
      %p233 = por %p231, %p232
      %p234 = scmp.ne.s32.totalorder %s223, %s226
      %p235 = scmp.eq.s32.totalorder %s24, 1
      %p236 = por %p234, %p235
      %p237 = scmp.ne.s32.totalorder %s226, %s227
      %p238 = scmp.eq.s32.totalorder %s24, 0
      %p239 = por %p237, %p238
      %p240 = scmp.ne.s32.totalorder %s226, %s227
      %p241 = scmp.eq.s32.totalorder %s25, 1
      %p242 = por %p240, %p241
      %p244 = scmp.ne.s32.totalorder %s227, %s243
      %p245 = scmp.eq.s32.totalorder %s25, 0
      %p246 = por %p244, %p245
      %p247 = scmp.le.s32.totalorder 1, %s19
      %p248 = scmp.lt.s32.totalorder %s19, 3
      %p249 = pnand %p247, %p248
      %p250 = pneg %p249
      // Predicated region
      $region9: #{ntc_forward_pallas.1} parent=5 // pred_check
        _
      $region10: #{ntc_forward_pallas.1} parent=5 // pred_check_branch
        %252 = sbr.rel (%p249) target = $region12
      $region11: #{ntc_forward_pallas.1} parent=5 // pred_region
        %s253 = ssub.s32 %s19, 1
        // Predicated region
        $region13: #{ntc_forward_pallas.1} parent=11 // pred_check
          %p254 = pneg %p66
        $region14: #{ntc_forward_pallas.1} parent=11 // pred_check_branch
          %256 = sbr.rel (%p254) target = $region16
        $region15: #{ntc_forward_pallas.1} parent=11 // pred_region
          _
        $region16: #{ntc_forward_pallas.1} parent=11 // pred_fallthru
          _
        // Predicated region
        $region17: #{ntc_forward_pallas.1} parent=11 // pred_check
          %p257 = pneg %p87
        $region18: #{ntc_forward_pallas.1} parent=11 // pred_check_branch
          %259 = sbr.rel (%p257) target = $region20
        $region19: #{ntc_forward_pallas.1} parent=11 // pred_region
          _
        $region20: #{ntc_forward_pallas.1} parent=11 // pred_fallthru
          _
        // Predicated region
        $region21: #{ntc_forward_pallas.1} parent=11 // pred_check
          %p260 = pneg %p108
        $region22: #{ntc_forward_pallas.1} parent=11 // pred_check_branch
          %262 = sbr.rel (%p260) target = $region24
        $region23: #{ntc_forward_pallas.1} parent=11 // pred_region
          _
        $region24: #{ntc_forward_pallas.1} parent=11 // pred_fallthru
          _
        // Predicated region
        $region25: #{ntc_forward_pallas.1} parent=11 // pred_check
          %p263 = pneg %p129
        $region26: #{ntc_forward_pallas.1} parent=11 // pred_check_branch
          %265 = sbr.rel (%p263) target = $region28
        $region27: #{ntc_forward_pallas.1} parent=11 // pred_region
          _
        $region28: #{ntc_forward_pallas.1} parent=11 // pred_fallthru
          _
        // Predicated region
        $region29: #{ntc_forward_pallas.1} parent=11 // pred_check
          %p266 = pneg %p150
        $region30: #{ntc_forward_pallas.1} parent=11 // pred_check_branch
          %268 = sbr.rel (%p266) target = $region32
        $region31: #{ntc_forward_pallas.1} parent=11 // pred_region
          _
        $region32: #{ntc_forward_pallas.1} parent=11 // pred_fallthru
          _
        // Predicated region
        $region33: #{ntc_forward_pallas.1} parent=11 // pred_check
          %p269 = pneg %p171
        $region34: #{ntc_forward_pallas.1} parent=11 // pred_check_branch
          %271 = sbr.rel (%p269) target = $region36
        $region35: #{ntc_forward_pallas.1} parent=11 // pred_region
          _
        $region36: #{ntc_forward_pallas.1} parent=11 // pred_fallthru
          _
        // Predicated region
        $region37: #{ntc_forward_pallas.1} parent=11 // pred_check
          %p272 = pneg %p192
        $region38: #{ntc_forward_pallas.1} parent=11 // pred_check_branch
          %274 = sbr.rel (%p272) target = $region40
        $region39: #{ntc_forward_pallas.1} parent=11 // pred_region
          _
        $region40: #{ntc_forward_pallas.1} parent=11 // pred_fallthru
          _
        // Predicated region
        $region41: #{ntc_forward_pallas.1} parent=11 // pred_check
          %p275 = pneg %p213
        $region42: #{ntc_forward_pallas.1} parent=11 // pred_check_branch
          %277 = sbr.rel (%p275) target = $region44
        $region43: #{ntc_forward_pallas.1} parent=11 // pred_region
          _
        $region44: #{ntc_forward_pallas.1} parent=11 // pred_fallthru
          _
      $region12: #{ntc_forward_pallas.1} parent=5 // pred_fallthru
        _
      %p278 = scmp.lt.s32.totalorder %s19, 2
      // Predicated region
      $region45: #{ntc_forward_pallas.1} parent=5 // pred_check
        %p279 = pneg %p278
      $region46: #{ntc_forward_pallas.1} parent=5 // pred_check_branch
        %281 = sbr.rel (%p279) target = $region48
      $region47: #{ntc_forward_pallas.1} parent=5 // pred_region
        // Predicated region
        $region49: #{ntc_forward_pallas.1} parent=47 // pred_check
          %p282 = pneg %p39
        $region50: #{ntc_forward_pallas.1} parent=47 // pred_check_branch
          %284 = sbr.rel (%p282) target = $region52
        $region51: #{ntc_forward_pallas.1} parent=47 // pred_region
          %s285 = smul.u32 512, %s19
          %p286 = scmp.lt.s32.totalorder %s285, 1023
          %s287 = scalar_select %p286, %s285, 1023
          %s288 = smul.addr %s287, 4
          %s289 = scalar_lea.vmem %s0, %s288
          %s290 = smul.u32 512, %s19
        $region52: #{ntc_forward_pallas.1} parent=47 // pred_fallthru
          _
      $region48: #{ntc_forward_pallas.1} parent=5 // pred_fallthru
        _
      %p291 = scmp.le.s32.totalorder 1, %s19
      %p292 = scmp.lt.s32.totalorder %s19, 3
      %p293 = pnand %p291, %p292
      %p294 = pneg %p293
      // Predicated region
      $region53: #{ntc_forward_pallas.1} parent=5 // pred_check
        _
      $region54: #{ntc_forward_pallas.1} parent=5 // pred_check_branch
        %296 = sbr.rel (%p293) target = $region56
      $region55: #{ntc_forward_pallas.1} parent=5 // pred_region
        %s297 = ssub.s32 %s19, 1
        %s298 = smul.u32 512, %s24
        %p299 = scmp.lt.s32.totalorder %s298, 1023
        %s300 = scalar_select %p299, %s298, 1023
        %s301 = smul.addr %s300, 4
        %s302 = scalar_lea.vmem %s0, %s301
        %p303 = pneg %p45
        %p304 = pneg %p42
        %p305 = pneg %p66
        %p306 = pneg %p63
        %p307 = pneg %p87
        %p308 = pneg %p84
        %p309 = pneg %p108
        %p310 = pneg %p105
        %p311 = pneg %p129
        %p312 = pneg %p126
        %p313 = pneg %p150
        %p314 = pneg %p147
        %p315 = pneg %p171
        %p316 = pneg %p168
        %p317 = pneg %p192
        %p318 = pneg %p189
        %p319 = pneg %p213
        %p320 = pneg %p210
        %p321 = pneg %p239
        %p322 = pneg %p236
        %s323 = sand.u32 %s226, 1
        %s324 = scalar_lea.sflag [#allocation4], %s323
        %s325 = sand.u32 %s226, 1
        %s326 = scalar_lea.vmem [#allocation3], %s325
        %s327 = smul.u32 512, %s24
        %p328 = scmp.lt.s32.totalorder %s327, 1023
        %s329 = scalar_select %p328, %s327, 1023
        %s330 = smul.addr %s329, 4
        %s331 = scalar_lea.vmem %s0, %s330
        %s332 = smul.u32 512, %s24
        %s334 = sld [smem:[#allocation2]]
        %v335 = vld [vmem:[%s1] sm:$0xf]
        %v336 = vld [vmem:[%s331] sm:$0xff]
        %v337 = vld [vmem:[%s331 + $0x8] sm:$0xff]
        %v338 = vld [vmem:[%s331 + $0x10] sm:$0xff]
        %v339 = vld [vmem:[%s331 + $0x18] sm:$0xff]
        %v340 = vld [vmem:[%s331 + $0x20] sm:$0xff]
        %v341 = vld [vmem:[%s331 + $0x28] sm:$0xff]
        %v342 = vld [vmem:[%s331 + $0x30] sm:$0xff]
        %v343 = vld [vmem:[%s331 + $0x38] sm:$0xff]
        %v344 = vld [vmem:[%s331 + $0x40] sm:$0xff]
        %v345 = vld [vmem:[%s331 + $0x48] sm:$0xff]
        %v346 = vld [vmem:[%s331 + $0x50] sm:$0xff]
        %v347 = vld [vmem:[%s331 + $0x58] sm:$0xff]
        %v348 = vld [vmem:[%s331 + $0x60] sm:$0xff]
        %v349 = vld [vmem:[%s331 + $0x68] sm:$0xff]
        %v350 = vld [vmem:[%s331 + $0x70] sm:$0xff]
        %v351 = vld [vmem:[%s331 + $0x78] sm:$0xff]
        %v352 = vld [vmem:[%s331 + $0x80] sm:$0xff]
        %v353 = vld [vmem:[%s331 + $0x88] sm:$0xff]
        %v354 = vld [vmem:[%s331 + $0x90] sm:$0xff]
        %v355 = vld [vmem:[%s331 + $0x98] sm:$0xff]
        %v356 = vld [vmem:[%s331 + $0xa0] sm:$0xff]
        %v357 = vld [vmem:[%s331 + $0xa8] sm:$0xff]
        %v358 = vld [vmem:[%s331 + $0xb0] sm:$0xff]
        %v359 = vld [vmem:[%s331 + $0xb8] sm:$0xff]
        %v360 = vld [vmem:[%s331 + $0xc0] sm:$0xff]
        %v361 = vld [vmem:[%s331 + $0xc8] sm:$0xff]
        %v362 = vld [vmem:[%s331 + $0xd0] sm:$0xff]
        %v363 = vld [vmem:[%s331 + $0xd8] sm:$0xff]
        %v364 = vld [vmem:[%s331 + $0xe0] sm:$0xff]
        %v365 = vld [vmem:[%s331 + $0xe8] sm:$0xff]
        %v366 = vld [vmem:[%s331 + $0xf0] sm:$0xff]
        %v367 = vld [vmem:[%s331 + $0xf8] sm:$0xff]
        %v368 = vld [vmem:[%s331 + $0x100] sm:$0xff]
        %v369 = vld [vmem:[%s331 + $0x108] sm:$0xff]
        %v370 = vld [vmem:[%s331 + $0x110] sm:$0xff]
        %v371 = vld [vmem:[%s331 + $0x118] sm:$0xff]
        %v372 = vld [vmem:[%s331 + $0x120] sm:$0xff]
        %v373 = vld [vmem:[%s331 + $0x128] sm:$0xff]
        %v374 = vld [vmem:[%s331 + $0x130] sm:$0xff]
        %v375 = vld [vmem:[%s331 + $0x138] sm:$0xff]
        %v376 = vld [vmem:[%s331 + $0x140] sm:$0xff]
        %v377 = vld [vmem:[%s331 + $0x148] sm:$0xff]
        %v378 = vld [vmem:[%s331 + $0x150] sm:$0xff]
        %v379 = vld [vmem:[%s331 + $0x158] sm:$0xff]
        %v380 = vld [vmem:[%s331 + $0x160] sm:$0xff]
        %v381 = vld [vmem:[%s331 + $0x168] sm:$0xff]
        %v382 = vld [vmem:[%s331 + $0x170] sm:$0xff]
        %v383 = vld [vmem:[%s331 + $0x178] sm:$0xff]
        %v384 = vld [vmem:[%s331 + $0x180] sm:$0xff]
        %v385 = vld [vmem:[%s331 + $0x188] sm:$0xff]
        %v386 = vld [vmem:[%s331 + $0x190] sm:$0xff]
        %v387 = vld [vmem:[%s331 + $0x198] sm:$0xff]
        %v388 = vld [vmem:[%s331 + $0x1a0] sm:$0xff]
        %v389 = vld [vmem:[%s331 + $0x1a8] sm:$0xff]
        %v390 = vld [vmem:[%s331 + $0x1b0] sm:$0xff]
        %v391 = vld [vmem:[%s331 + $0x1b8] sm:$0xff]
        %v392 = vld [vmem:[%s331 + $0x1c0] sm:$0xff]
        %v393 = vld [vmem:[%s331 + $0x1c8] sm:$0xff]
        %v394 = vld [vmem:[%s331 + $0x1d0] sm:$0xff]
        %v395 = vld [vmem:[%s331 + $0x1d8] sm:$0xff]
        %v396 = vld [vmem:[%s331 + $0x1e0] sm:$0xff]
        %v397 = vld [vmem:[%s331 + $0x1e8] sm:$0xff]
        %v398 = vld [vmem:[%s331 + $0x1f0] sm:$0xff]
        %v399 = vld [vmem:[%s331 + $0x1f8] sm:$0xff]
        %v400 = vld [vmem:[%s331 + $0x200] sm:$0xff]
        %v401 = vld [vmem:[%s331 + $0x208] sm:$0xff]
        %v402 = vld [vmem:[%s331 + $0x210] sm:$0xff]
        %v403 = vld [vmem:[%s331 + $0x218] sm:$0xff]
        %v404 = vld [vmem:[%s331 + $0x220] sm:$0xff]
        %v405 = vld [vmem:[%s331 + $0x228] sm:$0xff]
        %v406 = vld [vmem:[%s331 + $0x230] sm:$0xff]
        %v407 = vld [vmem:[%s331 + $0x238] sm:$0xff]
        %v408 = vld [vmem:[%s331 + $0x240] sm:$0xff]
        %v409 = vld [vmem:[%s331 + $0x248] sm:$0xff]
        %v410 = vld [vmem:[%s331 + $0x250] sm:$0xff]
        %v411 = vld [vmem:[%s331 + $0x258] sm:$0xff]
        %v412 = vld [vmem:[%s331 + $0x260] sm:$0xff]
        %v413 = vld [vmem:[%s331 + $0x268] sm:$0xff]
        %v414 = vld [vmem:[%s331 + $0x270] sm:$0xff]
        %v415 = vld [vmem:[%s331 + $0x278] sm:$0xff]
        %v416 = vld [vmem:[%s331 + $0x280] sm:$0xff]
        %v417 = vld [vmem:[%s331 + $0x288] sm:$0xff]
        %v418 = vld [vmem:[%s331 + $0x290] sm:$0xff]
        %v419 = vld [vmem:[%s331 + $0x298] sm:$0xff]
        %v420 = vld [vmem:[%s331 + $0x2a0] sm:$0xff]
        %v421 = vld [vmem:[%s331 + $0x2a8] sm:$0xff]
        %v422 = vld [vmem:[%s331 + $0x2b0] sm:$0xff]
        %v423 = vld [vmem:[%s331 + $0x2b8] sm:$0xff]
        %v424 = vld [vmem:[%s331 + $0x2c0] sm:$0xff]
        %v425 = vld [vmem:[%s331 + $0x2c8] sm:$0xff]
        %v426 = vld [vmem:[%s331 + $0x2d0] sm:$0xff]
        %v427 = vld [vmem:[%s331 + $0x2d8] sm:$0xff]
        %v428 = vld [vmem:[%s331 + $0x2e0] sm:$0xff]
        %v429 = vld [vmem:[%s331 + $0x2e8] sm:$0xff]
        %v430 = vld [vmem:[%s331 + $0x2f0] sm:$0xff]
        %v431 = vld [vmem:[%s331 + $0x2f8] sm:$0xff]
        %v432 = vld [vmem:[%s331 + $0x300] sm:$0xff]
        %v433 = vld [vmem:[%s331 + $0x308] sm:$0xff]
        %v434 = vld [vmem:[%s331 + $0x310] sm:$0xff]
        %v435 = vld [vmem:[%s331 + $0x318] sm:$0xff]
        %v436 = vld [vmem:[%s331 + $0x320] sm:$0xff]
        %v437 = vld [vmem:[%s331 + $0x328] sm:$0xff]
        %v438 = vld [vmem:[%s331 + $0x330] sm:$0xff]
        %v439 = vld [vmem:[%s331 + $0x338] sm:$0xff]
        %v440 = vld [vmem:[%s331 + $0x340] sm:$0xff]
        %v441 = vld [vmem:[%s331 + $0x348] sm:$0xff]
        %v442 = vld [vmem:[%s331 + $0x350] sm:$0xff]
        %v443 = vld [vmem:[%s331 + $0x358] sm:$0xff]
        %v444 = vld [vmem:[%s331 + $0x360] sm:$0xff]
        %v445 = vld [vmem:[%s331 + $0x368] sm:$0xff]
        %v446 = vld [vmem:[%s331 + $0x370] sm:$0xff]
        %v447 = vld [vmem:[%s331 + $0x378] sm:$0xff]
        %v448 = vld [vmem:[%s331 + $0x380] sm:$0xff]
        %v449 = vld [vmem:[%s331 + $0x388] sm:$0xff]
        %v450 = vld [vmem:[%s331 + $0x390] sm:$0xff]
        %v451 = vld [vmem:[%s331 + $0x398] sm:$0xff]
        %v452 = vld [vmem:[%s331 + $0x3a0] sm:$0xff]
        %v453 = vld [vmem:[%s331 + $0x3a8] sm:$0xff]
        %v454 = vld [vmem:[%s331 + $0x3b0] sm:$0xff]
        %v455 = vld [vmem:[%s331 + $0x3b8] sm:$0xff]
        %v456 = vld [vmem:[%s331 + $0x3c0] sm:$0xff]
        %v457 = vld [vmem:[%s331 + $0x3c8] sm:$0xff]
        %v458 = vld [vmem:[%s331 + $0x3d0] sm:$0xff]
        %v459 = vld [vmem:[%s331 + $0x3d8] sm:$0xff]
        %v460 = vld [vmem:[%s331 + $0x3e0] sm:$0xff]
        %v461 = vld [vmem:[%s331 + $0x3e8] sm:$0xff]
        %v462 = vld [vmem:[%s331 + $0x3f0] sm:$0xff]
        %v463 = vld [vmem:[%s331 + $0x3f8] sm:$0xff]
        %v464 = vld [vmem:[%s331 + $0x400] sm:$0xff]
        %v465 = vld [vmem:[%s331 + $0x408] sm:$0xff]
        %v466 = vld [vmem:[%s331 + $0x410] sm:$0xff]
        %v467 = vld [vmem:[%s331 + $0x418] sm:$0xff]
        %v468 = vld [vmem:[%s331 + $0x420] sm:$0xff]
        %v469 = vld [vmem:[%s331 + $0x428] sm:$0xff]
        %v470 = vld [vmem:[%s331 + $0x430] sm:$0xff]
        %v471 = vld [vmem:[%s331 + $0x438] sm:$0xff]
        %v472 = vld [vmem:[%s331 + $0x440] sm:$0xff]
        %v473 = vld [vmem:[%s331 + $0x448] sm:$0xff]
        %v474 = vld [vmem:[%s331 + $0x450] sm:$0xff]
        %v475 = vld [vmem:[%s331 + $0x458] sm:$0xff]
        %v476 = vld [vmem:[%s331 + $0x460] sm:$0xff]
        %v477 = vld [vmem:[%s331 + $0x468] sm:$0xff]
        %v478 = vld [vmem:[%s331 + $0x470] sm:$0xff]
        %v479 = vld [vmem:[%s331 + $0x478] sm:$0xff]
        %v480 = vld [vmem:[%s331 + $0x480] sm:$0xff]
        %v481 = vld [vmem:[%s331 + $0x488] sm:$0xff]
        %v482 = vld [vmem:[%s331 + $0x490] sm:$0xff]
        %v483 = vld [vmem:[%s331 + $0x498] sm:$0xff]
        %v484 = vld [vmem:[%s331 + $0x4a0] sm:$0xff]
        %v485 = vld [vmem:[%s331 + $0x4a8] sm:$0xff]
        %v486 = vld [vmem:[%s331 + $0x4b0] sm:$0xff]
        %v487 = vld [vmem:[%s331 + $0x4b8] sm:$0xff]
        %v488 = vld [vmem:[%s331 + $0x4c0] sm:$0xff]
        %v489 = vld [vmem:[%s331 + $0x4c8] sm:$0xff]
        %v490 = vld [vmem:[%s331 + $0x4d0] sm:$0xff]
        %v491 = vld [vmem:[%s331 + $0x4d8] sm:$0xff]
        %v492 = vld [vmem:[%s331 + $0x4e0] sm:$0xff]
        %v493 = vld [vmem:[%s331 + $0x4e8] sm:$0xff]
        %v494 = vld [vmem:[%s331 + $0x4f0] sm:$0xff]
        %v495 = vld [vmem:[%s331 + $0x4f8] sm:$0xff]
        %v496 = vld [vmem:[%s331 + $0x500] sm:$0xff]
        %v497 = vld [vmem:[%s331 + $0x508] sm:$0xff]
        %v498 = vld [vmem:[%s331 + $0x510] sm:$0xff]
        %v499 = vld [vmem:[%s331 + $0x518] sm:$0xff]
        %v500 = vld [vmem:[%s331 + $0x520] sm:$0xff]
        %v501 = vld [vmem:[%s331 + $0x528] sm:$0xff]
        %v502 = vld [vmem:[%s331 + $0x530] sm:$0xff]
        %v503 = vld [vmem:[%s331 + $0x538] sm:$0xff]
        %v504 = vld [vmem:[%s331 + $0x540] sm:$0xff]
        %v505 = vld [vmem:[%s331 + $0x548] sm:$0xff]
        %v506 = vld [vmem:[%s331 + $0x550] sm:$0xff]
        %v507 = vld [vmem:[%s331 + $0x558] sm:$0xff]
        %v508 = vld [vmem:[%s331 + $0x560] sm:$0xff]
        %v509 = vld [vmem:[%s331 + $0x568] sm:$0xff]
        %v510 = vld [vmem:[%s331 + $0x570] sm:$0xff]
        %v511 = vld [vmem:[%s331 + $0x578] sm:$0xff]
        %v512 = vld [vmem:[%s331 + $0x580] sm:$0xff]
        %v513 = vld [vmem:[%s331 + $0x588] sm:$0xff]
        %v514 = vld [vmem:[%s331 + $0x590] sm:$0xff]
        %v515 = vld [vmem:[%s331 + $0x598] sm:$0xff]
        %v516 = vld [vmem:[%s331 + $0x5a0] sm:$0xff]
        %v517 = vld [vmem:[%s331 + $0x5a8] sm:$0xff]
        %v518 = vld [vmem:[%s331 + $0x5b0] sm:$0xff]
        %v519 = vld [vmem:[%s331 + $0x5b8] sm:$0xff]
        %v520 = vld [vmem:[%s331 + $0x5c0] sm:$0xff]
        %v521 = vld [vmem:[%s331 + $0x5c8] sm:$0xff]
        %v522 = vld [vmem:[%s331 + $0x5d0] sm:$0xff]
        %v523 = vld [vmem:[%s331 + $0x5d8] sm:$0xff]
        %v524 = vld [vmem:[%s331 + $0x5e0] sm:$0xff]
        %v525 = vld [vmem:[%s331 + $0x5e8] sm:$0xff]
        %v526 = vld [vmem:[%s331 + $0x5f0] sm:$0xff]
        %v527 = vld [vmem:[%s331 + $0x5f8] sm:$0xff]
        %v528 = vld [vmem:[%s331 + $0x600] sm:$0xff]
        %v529 = vld [vmem:[%s331 + $0x608] sm:$0xff]
        %v530 = vld [vmem:[%s331 + $0x610] sm:$0xff]
        %v531 = vld [vmem:[%s331 + $0x618] sm:$0xff]
        %v532 = vld [vmem:[%s331 + $0x620] sm:$0xff]
        %v533 = vld [vmem:[%s331 + $0x628] sm:$0xff]
        %v534 = vld [vmem:[%s331 + $0x630] sm:$0xff]
        %v535 = vld [vmem:[%s331 + $0x638] sm:$0xff]
        %v536 = vld [vmem:[%s331 + $0x640] sm:$0xff]
        %v537 = vld [vmem:[%s331 + $0x648] sm:$0xff]
        %v538 = vld [vmem:[%s331 + $0x650] sm:$0xff]
        %v539 = vld [vmem:[%s331 + $0x658] sm:$0xff]
        %v540 = vld [vmem:[%s331 + $0x660] sm:$0xff]
        %v541 = vld [vmem:[%s331 + $0x668] sm:$0xff]
        %v542 = vld [vmem:[%s331 + $0x670] sm:$0xff]
        %v543 = vld [vmem:[%s331 + $0x678] sm:$0xff]
        %v544 = vld [vmem:[%s331 + $0x680] sm:$0xff]
        %v545 = vld [vmem:[%s331 + $0x688] sm:$0xff]
        %v546 = vld [vmem:[%s331 + $0x690] sm:$0xff]
        %v547 = vld [vmem:[%s331 + $0x698] sm:$0xff]
        %v548 = vld [vmem:[%s331 + $0x6a0] sm:$0xff]
        %v549 = vld [vmem:[%s331 + $0x6a8] sm:$0xff]
        %v550 = vld [vmem:[%s331 + $0x6b0] sm:$0xff]
        %v551 = vld [vmem:[%s331 + $0x6b8] sm:$0xff]
        %v552 = vld [vmem:[%s331 + $0x6c0] sm:$0xff]
        %v553 = vld [vmem:[%s331 + $0x6c8] sm:$0xff]
        %v554 = vld [vmem:[%s331 + $0x6d0] sm:$0xff]
        %v555 = vld [vmem:[%s331 + $0x6d8] sm:$0xff]
        %v556 = vld [vmem:[%s331 + $0x6e0] sm:$0xff]
        %v557 = vld [vmem:[%s331 + $0x6e8] sm:$0xff]
        %v558 = vld [vmem:[%s331 + $0x6f0] sm:$0xff]
        %v559 = vld [vmem:[%s331 + $0x6f8] sm:$0xff]
        %v560 = vld [vmem:[%s331 + $0x700] sm:$0xff]
        %v561 = vld [vmem:[%s331 + $0x708] sm:$0xff]
        %v562 = vld [vmem:[%s331 + $0x710] sm:$0xff]
        %v563 = vld [vmem:[%s331 + $0x718] sm:$0xff]
        %v564 = vld [vmem:[%s331 + $0x720] sm:$0xff]
        %v565 = vld [vmem:[%s331 + $0x728] sm:$0xff]
        %v566 = vld [vmem:[%s331 + $0x730] sm:$0xff]
        %v567 = vld [vmem:[%s331 + $0x738] sm:$0xff]
        %v568 = vld [vmem:[%s331 + $0x740] sm:$0xff]
        %v569 = vld [vmem:[%s331 + $0x748] sm:$0xff]
        %v570 = vld [vmem:[%s331 + $0x750] sm:$0xff]
        %v571 = vld [vmem:[%s331 + $0x758] sm:$0xff]
        %v572 = vld [vmem:[%s331 + $0x760] sm:$0xff]
        %v573 = vld [vmem:[%s331 + $0x768] sm:$0xff]
        %v574 = vld [vmem:[%s331 + $0x770] sm:$0xff]
        %v575 = vld [vmem:[%s331 + $0x778] sm:$0xff]
        %v576 = vld [vmem:[%s331 + $0x780] sm:$0xff]
        %v577 = vld [vmem:[%s331 + $0x788] sm:$0xff]
        %v578 = vld [vmem:[%s331 + $0x790] sm:$0xff]
        %v579 = vld [vmem:[%s331 + $0x798] sm:$0xff]
        %v580 = vld [vmem:[%s331 + $0x7a0] sm:$0xff]
        %v581 = vld [vmem:[%s331 + $0x7a8] sm:$0xff]
        %v582 = vld [vmem:[%s331 + $0x7b0] sm:$0xff]
        %v583 = vld [vmem:[%s331 + $0x7b8] sm:$0xff]
        %v584 = vld [vmem:[%s331 + $0x7c0] sm:$0xff]
        %v585 = vld [vmem:[%s331 + $0x7c8] sm:$0xff]
        %v586 = vld [vmem:[%s331 + $0x7d0] sm:$0xff]
        %v587 = vld [vmem:[%s331 + $0x7d8] sm:$0xff]
        %v588 = vld [vmem:[%s331 + $0x7e0] sm:$0xff]
        %v589 = vld [vmem:[%s331 + $0x7e8] sm:$0xff]
        %v590 = vld [vmem:[%s331 + $0x7f0] sm:$0xff]
        %v591 = vld [vmem:[%s331 + $0x7f8] sm:$0xff]
        %v592 = vld [vmem:[%s5] sm:$0xff]
        %594 = vset.pattern.permute.xlu0 0
        %595 = vperm.xlu0 %594, %v592
        %v596 = vpop.permute.xlu0 %595
        %v854 = vunpack.c.l.b16 %v336
        %v855 = vunpack.c.h.b16 %v336
        %v856 = vunpack.c.l.b16 %v337
        %v857 = vunpack.c.h.b16 %v337
        %v858 = vunpack.c.l.b16 %v338
        %v859 = vunpack.c.h.b16 %v338
        %v860 = vunpack.c.l.b16 %v339
        %v861 = vunpack.c.h.b16 %v339
        %v862 = vunpack.c.l.b16 %v340
        %v863 = vunpack.c.h.b16 %v340
        %v864 = vunpack.c.l.b16 %v341
        %v865 = vunpack.c.h.b16 %v341
        %v866 = vunpack.c.l.b16 %v342
        %v867 = vunpack.c.h.b16 %v342
        %v868 = vunpack.c.l.b16 %v343
        %v869 = vunpack.c.h.b16 %v343
        %v870 = vunpack.c.l.b16 %v344
        %v871 = vunpack.c.h.b16 %v344
        %v872 = vunpack.c.l.b16 %v345
        %v873 = vunpack.c.h.b16 %v345
        %v874 = vunpack.c.l.b16 %v346
        %v875 = vunpack.c.h.b16 %v346
        %v876 = vunpack.c.l.b16 %v347
        %v877 = vunpack.c.h.b16 %v347
        %v878 = vunpack.c.l.b16 %v348
        %v879 = vunpack.c.h.b16 %v348
        %v880 = vunpack.c.l.b16 %v349
        %v881 = vunpack.c.h.b16 %v349
        %v882 = vunpack.c.l.b16 %v350
        %v883 = vunpack.c.h.b16 %v350
        %v884 = vunpack.c.l.b16 %v351
        %v885 = vunpack.c.h.b16 %v351
        %v886 = vunpack.c.l.b16 %v352
        %v887 = vunpack.c.h.b16 %v352
        %v888 = vunpack.c.l.b16 %v353
        %v889 = vunpack.c.h.b16 %v353
        %v890 = vunpack.c.l.b16 %v354
        %v891 = vunpack.c.h.b16 %v354
        %v892 = vunpack.c.l.b16 %v355
        %v893 = vunpack.c.h.b16 %v355
        %v894 = vunpack.c.l.b16 %v356
        %v895 = vunpack.c.h.b16 %v356
        %v896 = vunpack.c.l.b16 %v357
        %v897 = vunpack.c.h.b16 %v357
        %v898 = vunpack.c.l.b16 %v358
        %v899 = vunpack.c.h.b16 %v358
        %v900 = vunpack.c.l.b16 %v359
        %v901 = vunpack.c.h.b16 %v359
        %v902 = vunpack.c.l.b16 %v360
        %v903 = vunpack.c.h.b16 %v360
        %v904 = vunpack.c.l.b16 %v361
        %v905 = vunpack.c.h.b16 %v361
        %v906 = vunpack.c.l.b16 %v362
        %v907 = vunpack.c.h.b16 %v362
        %v908 = vunpack.c.l.b16 %v363
        %v909 = vunpack.c.h.b16 %v363
        %v910 = vunpack.c.l.b16 %v364
        %v911 = vunpack.c.h.b16 %v364
        %v912 = vunpack.c.l.b16 %v365
        %v913 = vunpack.c.h.b16 %v365
        %v914 = vunpack.c.l.b16 %v366
        %v915 = vunpack.c.h.b16 %v366
        %v916 = vunpack.c.l.b16 %v367
        %v917 = vunpack.c.h.b16 %v367
        %v918 = vunpack.c.l.b16 %v368
        %v919 = vunpack.c.h.b16 %v368
        %v920 = vunpack.c.l.b16 %v369
        %v921 = vunpack.c.h.b16 %v369
        %v922 = vunpack.c.l.b16 %v370
        %v923 = vunpack.c.h.b16 %v370
        %v924 = vunpack.c.l.b16 %v371
        %v925 = vunpack.c.h.b16 %v371
        %v926 = vunpack.c.l.b16 %v372
        %v927 = vunpack.c.h.b16 %v372
        %v928 = vunpack.c.l.b16 %v373
        %v929 = vunpack.c.h.b16 %v373
        %v930 = vunpack.c.l.b16 %v374
        %v931 = vunpack.c.h.b16 %v374
        %v932 = vunpack.c.l.b16 %v375
        %v933 = vunpack.c.h.b16 %v375
        %v934 = vunpack.c.l.b16 %v376
        %v935 = vunpack.c.h.b16 %v376
        %v936 = vunpack.c.l.b16 %v377
        %v937 = vunpack.c.h.b16 %v377
        %v938 = vunpack.c.l.b16 %v378
        %v939 = vunpack.c.h.b16 %v378
        %v940 = vunpack.c.l.b16 %v379
        %v941 = vunpack.c.h.b16 %v379
        %v942 = vunpack.c.l.b16 %v380
        %v943 = vunpack.c.h.b16 %v380
        %v944 = vunpack.c.l.b16 %v381
        %v945 = vunpack.c.h.b16 %v381
        %v946 = vunpack.c.l.b16 %v382
        %v947 = vunpack.c.h.b16 %v382
        %v948 = vunpack.c.l.b16 %v383
        %v949 = vunpack.c.h.b16 %v383
        %v950 = vunpack.c.l.b16 %v384
        %v951 = vunpack.c.h.b16 %v384
        %v952 = vunpack.c.l.b16 %v385
        %v953 = vunpack.c.h.b16 %v385
        %v954 = vunpack.c.l.b16 %v386
        %v955 = vunpack.c.h.b16 %v386
        %v956 = vunpack.c.l.b16 %v387
        %v957 = vunpack.c.h.b16 %v387
        %v958 = vunpack.c.l.b16 %v388
        %v959 = vunpack.c.h.b16 %v388
        %v960 = vunpack.c.l.b16 %v389
        %v961 = vunpack.c.h.b16 %v389
        %v962 = vunpack.c.l.b16 %v390
        %v963 = vunpack.c.h.b16 %v390
        %v964 = vunpack.c.l.b16 %v391
        %v965 = vunpack.c.h.b16 %v391
        %v966 = vunpack.c.l.b16 %v392
        %v967 = vunpack.c.h.b16 %v392
        %v968 = vunpack.c.l.b16 %v393
        %v969 = vunpack.c.h.b16 %v393
        %v970 = vunpack.c.l.b16 %v394
        %v971 = vunpack.c.h.b16 %v394
        %v972 = vunpack.c.l.b16 %v395
        %v973 = vunpack.c.h.b16 %v395
        %v974 = vunpack.c.l.b16 %v396
        %v975 = vunpack.c.h.b16 %v396
        %v976 = vunpack.c.l.b16 %v397
        %v977 = vunpack.c.h.b16 %v397
        %v978 = vunpack.c.l.b16 %v398
        %v979 = vunpack.c.h.b16 %v398
        %v980 = vunpack.c.l.b16 %v399
        %v981 = vunpack.c.h.b16 %v399
        %v982 = vunpack.c.l.b16 %v400
        %v983 = vunpack.c.h.b16 %v400
        %v984 = vunpack.c.l.b16 %v401
        %v985 = vunpack.c.h.b16 %v401
        %v986 = vunpack.c.l.b16 %v402
        %v987 = vunpack.c.h.b16 %v402
        %v988 = vunpack.c.l.b16 %v403
        %v989 = vunpack.c.h.b16 %v403
        %v990 = vunpack.c.l.b16 %v404
        %v991 = vunpack.c.h.b16 %v404
        %v992 = vunpack.c.l.b16 %v405
        %v993 = vunpack.c.h.b16 %v405
        %v994 = vunpack.c.l.b16 %v406
        %v995 = vunpack.c.h.b16 %v406
        %v996 = vunpack.c.l.b16 %v407
        %v997 = vunpack.c.h.b16 %v407
        %v998 = vunpack.c.l.b16 %v408
        %v999 = vunpack.c.h.b16 %v408
        %v1000 = vunpack.c.l.b16 %v409
        %v1001 = vunpack.c.h.b16 %v409
        %v1002 = vunpack.c.l.b16 %v410
        %v1003 = vunpack.c.h.b16 %v410
        %v1004 = vunpack.c.l.b16 %v411
        %v1005 = vunpack.c.h.b16 %v411
        %v1006 = vunpack.c.l.b16 %v412
        %v1007 = vunpack.c.h.b16 %v412
        %v1008 = vunpack.c.l.b16 %v413
        %v1009 = vunpack.c.h.b16 %v413
        %v1010 = vunpack.c.l.b16 %v414
        %v1011 = vunpack.c.h.b16 %v414
        %v1012 = vunpack.c.l.b16 %v415
        %v1013 = vunpack.c.h.b16 %v415
        %v1014 = vunpack.c.l.b16 %v416
        %v1015 = vunpack.c.h.b16 %v416
        %v1016 = vunpack.c.l.b16 %v417
        %v1017 = vunpack.c.h.b16 %v417
        %v1018 = vunpack.c.l.b16 %v418
        %v1019 = vunpack.c.h.b16 %v418
        %v1020 = vunpack.c.l.b16 %v419
        %v1021 = vunpack.c.h.b16 %v419
        %v1022 = vunpack.c.l.b16 %v420
        %v1023 = vunpack.c.h.b16 %v420
        %v1024 = vunpack.c.l.b16 %v421
        %v1025 = vunpack.c.h.b16 %v421
        %v1026 = vunpack.c.l.b16 %v422
        %v1027 = vunpack.c.h.b16 %v422
        %v1028 = vunpack.c.l.b16 %v423
        %v1029 = vunpack.c.h.b16 %v423
        %v1030 = vunpack.c.l.b16 %v424
        %v1031 = vunpack.c.h.b16 %v424
        %v1032 = vunpack.c.l.b16 %v425
        %v1033 = vunpack.c.h.b16 %v425
        %v1034 = vunpack.c.l.b16 %v426
        %v1035 = vunpack.c.h.b16 %v426
        %v1036 = vunpack.c.l.b16 %v427
        %v1037 = vunpack.c.h.b16 %v427
        %v1038 = vunpack.c.l.b16 %v428
        %v1039 = vunpack.c.h.b16 %v428
        %v1040 = vunpack.c.l.b16 %v429
        %v1041 = vunpack.c.h.b16 %v429
        %v1042 = vunpack.c.l.b16 %v430
        %v1043 = vunpack.c.h.b16 %v430
        %v1044 = vunpack.c.l.b16 %v431
        %v1045 = vunpack.c.h.b16 %v431
        %v1046 = vunpack.c.l.b16 %v432
        %v1047 = vunpack.c.h.b16 %v432
        %v1048 = vunpack.c.l.b16 %v433
        %v1049 = vunpack.c.h.b16 %v433
        %v1050 = vunpack.c.l.b16 %v434
        %v1051 = vunpack.c.h.b16 %v434
        %v1052 = vunpack.c.l.b16 %v435
        %v1053 = vunpack.c.h.b16 %v435
        %v1054 = vunpack.c.l.b16 %v436
        %v1055 = vunpack.c.h.b16 %v436
        %v1056 = vunpack.c.l.b16 %v437
        %v1057 = vunpack.c.h.b16 %v437
        %v1058 = vunpack.c.l.b16 %v438
        %v1059 = vunpack.c.h.b16 %v438
        %v1060 = vunpack.c.l.b16 %v439
        %v1061 = vunpack.c.h.b16 %v439
        %v1062 = vunpack.c.l.b16 %v440
        %v1063 = vunpack.c.h.b16 %v440
        %v1064 = vunpack.c.l.b16 %v441
        %v1065 = vunpack.c.h.b16 %v441
        %v1066 = vunpack.c.l.b16 %v442
        %v1067 = vunpack.c.h.b16 %v442
        %v1068 = vunpack.c.l.b16 %v443
        %v1069 = vunpack.c.h.b16 %v443
        %v1070 = vunpack.c.l.b16 %v444
        %v1071 = vunpack.c.h.b16 %v444
        %v1072 = vunpack.c.l.b16 %v445
        %v1073 = vunpack.c.h.b16 %v445
        %v1074 = vunpack.c.l.b16 %v446
        %v1075 = vunpack.c.h.b16 %v446
        %v1076 = vunpack.c.l.b16 %v447
        %v1077 = vunpack.c.h.b16 %v447
        %v1078 = vunpack.c.l.b16 %v448
        %v1079 = vunpack.c.h.b16 %v448
        %v1080 = vunpack.c.l.b16 %v449
        %v1081 = vunpack.c.h.b16 %v449
        %v1082 = vunpack.c.l.b16 %v450
        %v1083 = vunpack.c.h.b16 %v450
        %v1084 = vunpack.c.l.b16 %v451
        %v1085 = vunpack.c.h.b16 %v451
        %v1086 = vunpack.c.l.b16 %v452
        %v1087 = vunpack.c.h.b16 %v452
        %v1088 = vunpack.c.l.b16 %v453
        %v1089 = vunpack.c.h.b16 %v453
        %v1090 = vunpack.c.l.b16 %v454
        %v1091 = vunpack.c.h.b16 %v454
        %v1092 = vunpack.c.l.b16 %v455
        %v1093 = vunpack.c.h.b16 %v455
        %v1094 = vunpack.c.l.b16 %v456
        %v1095 = vunpack.c.h.b16 %v456
        %v1096 = vunpack.c.l.b16 %v457
        %v1097 = vunpack.c.h.b16 %v457
        %v1098 = vunpack.c.l.b16 %v458
        %v1099 = vunpack.c.h.b16 %v458
        %v1100 = vunpack.c.l.b16 %v459
        %v1101 = vunpack.c.h.b16 %v459
        %v1102 = vunpack.c.l.b16 %v460
        %v1103 = vunpack.c.h.b16 %v460
        %v1104 = vunpack.c.l.b16 %v461
        %v1105 = vunpack.c.h.b16 %v461
        %v1106 = vunpack.c.l.b16 %v462
        %v1107 = vunpack.c.h.b16 %v462
        %v1108 = vunpack.c.l.b16 %v463
        %v1109 = vunpack.c.h.b16 %v463
        %v1110 = vunpack.c.l.b16 %v464
        %v1111 = vunpack.c.h.b16 %v464
        %v1112 = vunpack.c.l.b16 %v465
        %v1113 = vunpack.c.h.b16 %v465
        %v1114 = vunpack.c.l.b16 %v466
        %v1115 = vunpack.c.h.b16 %v466
        %v1116 = vunpack.c.l.b16 %v467
        %v1117 = vunpack.c.h.b16 %v467
        %v1118 = vunpack.c.l.b16 %v468
        %v1119 = vunpack.c.h.b16 %v468
        %v1120 = vunpack.c.l.b16 %v469
        %v1121 = vunpack.c.h.b16 %v469
        %v1122 = vunpack.c.l.b16 %v470
        %v1123 = vunpack.c.h.b16 %v470
        %v1124 = vunpack.c.l.b16 %v471
        %v1125 = vunpack.c.h.b16 %v471
        %v1126 = vunpack.c.l.b16 %v472
        %v1127 = vunpack.c.h.b16 %v472
        %v1128 = vunpack.c.l.b16 %v473
        %v1129 = vunpack.c.h.b16 %v473
        %v1130 = vunpack.c.l.b16 %v474
        %v1131 = vunpack.c.h.b16 %v474
        %v1132 = vunpack.c.l.b16 %v475
        %v1133 = vunpack.c.h.b16 %v475
        %v1134 = vunpack.c.l.b16 %v476
        %v1135 = vunpack.c.h.b16 %v476
        %v1136 = vunpack.c.l.b16 %v477
        %v1137 = vunpack.c.h.b16 %v477
        %v1138 = vunpack.c.l.b16 %v478
        %v1139 = vunpack.c.h.b16 %v478
        %v1140 = vunpack.c.l.b16 %v479
        %v1141 = vunpack.c.h.b16 %v479
        %v1142 = vunpack.c.l.b16 %v480
        %v1143 = vunpack.c.h.b16 %v480
        %v1144 = vunpack.c.l.b16 %v481
        %v1145 = vunpack.c.h.b16 %v481
        %v1146 = vunpack.c.l.b16 %v482
        %v1147 = vunpack.c.h.b16 %v482
        %v1148 = vunpack.c.l.b16 %v483
        %v1149 = vunpack.c.h.b16 %v483
        %v1150 = vunpack.c.l.b16 %v484
        %v1151 = vunpack.c.h.b16 %v484
        %v1152 = vunpack.c.l.b16 %v485
        %v1153 = vunpack.c.h.b16 %v485
        %v1154 = vunpack.c.l.b16 %v486
        %v1155 = vunpack.c.h.b16 %v486
        %v1156 = vunpack.c.l.b16 %v487
        %v1157 = vunpack.c.h.b16 %v487
        %v1158 = vunpack.c.l.b16 %v488
        %v1159 = vunpack.c.h.b16 %v488
        %v1160 = vunpack.c.l.b16 %v489
        %v1161 = vunpack.c.h.b16 %v489
        %v1162 = vunpack.c.l.b16 %v490
        %v1163 = vunpack.c.h.b16 %v490
        %v1164 = vunpack.c.l.b16 %v491
        %v1165 = vunpack.c.h.b16 %v491
        %v1166 = vunpack.c.l.b16 %v492
        %v1167 = vunpack.c.h.b16 %v492
        %v1168 = vunpack.c.l.b16 %v493
        %v1169 = vunpack.c.h.b16 %v493
        %v1170 = vunpack.c.l.b16 %v494
        %v1171 = vunpack.c.h.b16 %v494
        %v1172 = vunpack.c.l.b16 %v495
        %v1173 = vunpack.c.h.b16 %v495
        %v1174 = vunpack.c.l.b16 %v496
        %v1175 = vunpack.c.h.b16 %v496
        %v1176 = vunpack.c.l.b16 %v497
        %v1177 = vunpack.c.h.b16 %v497
        %v1178 = vunpack.c.l.b16 %v498
        %v1179 = vunpack.c.h.b16 %v498
        %v1180 = vunpack.c.l.b16 %v499
        %v1181 = vunpack.c.h.b16 %v499
        %v1182 = vunpack.c.l.b16 %v500
        %v1183 = vunpack.c.h.b16 %v500
        %v1184 = vunpack.c.l.b16 %v501
        %v1185 = vunpack.c.h.b16 %v501
        %v1186 = vunpack.c.l.b16 %v502
        %v1187 = vunpack.c.h.b16 %v502
        %v1188 = vunpack.c.l.b16 %v503
        %v1189 = vunpack.c.h.b16 %v503
        %v1190 = vunpack.c.l.b16 %v504
        %v1191 = vunpack.c.h.b16 %v504
        %v1192 = vunpack.c.l.b16 %v505
        %v1193 = vunpack.c.h.b16 %v505
        %v1194 = vunpack.c.l.b16 %v506
        %v1195 = vunpack.c.h.b16 %v506
        %v1196 = vunpack.c.l.b16 %v507
        %v1197 = vunpack.c.h.b16 %v507
        %v1198 = vunpack.c.l.b16 %v508
        %v1199 = vunpack.c.h.b16 %v508
        %v1200 = vunpack.c.l.b16 %v509
        %v1201 = vunpack.c.h.b16 %v509
        %v1202 = vunpack.c.l.b16 %v510
        %v1203 = vunpack.c.h.b16 %v510
        %v1204 = vunpack.c.l.b16 %v511
        %v1205 = vunpack.c.h.b16 %v511
        %v1206 = vunpack.c.l.b16 %v512
        %v1207 = vunpack.c.h.b16 %v512
        %v1208 = vunpack.c.l.b16 %v513
        %v1209 = vunpack.c.h.b16 %v513
        %v1210 = vunpack.c.l.b16 %v514
        %v1211 = vunpack.c.h.b16 %v514
        %v1212 = vunpack.c.l.b16 %v515
        %v1213 = vunpack.c.h.b16 %v515
        %v1214 = vunpack.c.l.b16 %v516
        %v1215 = vunpack.c.h.b16 %v516
        %v1216 = vunpack.c.l.b16 %v517
        %v1217 = vunpack.c.h.b16 %v517
        %v1218 = vunpack.c.l.b16 %v518
        %v1219 = vunpack.c.h.b16 %v518
        %v1220 = vunpack.c.l.b16 %v519
        %v1221 = vunpack.c.h.b16 %v519
        %v1222 = vunpack.c.l.b16 %v520
        %v1223 = vunpack.c.h.b16 %v520
        %v1224 = vunpack.c.l.b16 %v521
        %v1225 = vunpack.c.h.b16 %v521
        %v1226 = vunpack.c.l.b16 %v522
        %v1227 = vunpack.c.h.b16 %v522
        %v1228 = vunpack.c.l.b16 %v523
        %v1229 = vunpack.c.h.b16 %v523
        %v1230 = vunpack.c.l.b16 %v524
        %v1231 = vunpack.c.h.b16 %v524
        %v1232 = vunpack.c.l.b16 %v525
        %v1233 = vunpack.c.h.b16 %v525
        %v1234 = vunpack.c.l.b16 %v526
        %v1235 = vunpack.c.h.b16 %v526
        %v1236 = vunpack.c.l.b16 %v527
        %v1237 = vunpack.c.h.b16 %v527
        %v1238 = vunpack.c.l.b16 %v528
        %v1239 = vunpack.c.h.b16 %v528
        %v1240 = vunpack.c.l.b16 %v529
        %v1241 = vunpack.c.h.b16 %v529
        %v1242 = vunpack.c.l.b16 %v530
        %v1243 = vunpack.c.h.b16 %v530
        %v1244 = vunpack.c.l.b16 %v531
        %v1245 = vunpack.c.h.b16 %v531
        %v1246 = vunpack.c.l.b16 %v532
        %v1247 = vunpack.c.h.b16 %v532
        %v1248 = vunpack.c.l.b16 %v533
        %v1249 = vunpack.c.h.b16 %v533
        %v1250 = vunpack.c.l.b16 %v534
        %v1251 = vunpack.c.h.b16 %v534
        %v1252 = vunpack.c.l.b16 %v535
        %v1253 = vunpack.c.h.b16 %v535
        %v1254 = vunpack.c.l.b16 %v536
        %v1255 = vunpack.c.h.b16 %v536
        %v1256 = vunpack.c.l.b16 %v537
        %v1257 = vunpack.c.h.b16 %v537
        %v1258 = vunpack.c.l.b16 %v538
        %v1259 = vunpack.c.h.b16 %v538
        %v1260 = vunpack.c.l.b16 %v539
        %v1261 = vunpack.c.h.b16 %v539
        %v1262 = vunpack.c.l.b16 %v540
        %v1263 = vunpack.c.h.b16 %v540
        %v1264 = vunpack.c.l.b16 %v541
        %v1265 = vunpack.c.h.b16 %v541
        %v1266 = vunpack.c.l.b16 %v542
        %v1267 = vunpack.c.h.b16 %v542
        %v1268 = vunpack.c.l.b16 %v543
        %v1269 = vunpack.c.h.b16 %v543
        %v1270 = vunpack.c.l.b16 %v544
        %v1271 = vunpack.c.h.b16 %v544
        %v1272 = vunpack.c.l.b16 %v545
        %v1273 = vunpack.c.h.b16 %v545
        %v1274 = vunpack.c.l.b16 %v546
        %v1275 = vunpack.c.h.b16 %v546
        %v1276 = vunpack.c.l.b16 %v547
        %v1277 = vunpack.c.h.b16 %v547
        %v1278 = vunpack.c.l.b16 %v548
        %v1279 = vunpack.c.h.b16 %v548
        %v1280 = vunpack.c.l.b16 %v549
        %v1281 = vunpack.c.h.b16 %v549
        %v1282 = vunpack.c.l.b16 %v550
        %v1283 = vunpack.c.h.b16 %v550
        %v1284 = vunpack.c.l.b16 %v551
        %v1285 = vunpack.c.h.b16 %v551
        %v1286 = vunpack.c.l.b16 %v552
        %v1287 = vunpack.c.h.b16 %v552
        %v1288 = vunpack.c.l.b16 %v553
        %v1289 = vunpack.c.h.b16 %v553
        %v1290 = vunpack.c.l.b16 %v554
        %v1291 = vunpack.c.h.b16 %v554
        %v1292 = vunpack.c.l.b16 %v555
        %v1293 = vunpack.c.h.b16 %v555
        %v1294 = vunpack.c.l.b16 %v556
        %v1295 = vunpack.c.h.b16 %v556
        %v1296 = vunpack.c.l.b16 %v557
        %v1297 = vunpack.c.h.b16 %v557
        %v1298 = vunpack.c.l.b16 %v558
        %v1299 = vunpack.c.h.b16 %v558
        %v1300 = vunpack.c.l.b16 %v559
        %v1301 = vunpack.c.h.b16 %v559
        %v1302 = vunpack.c.l.b16 %v560
        %v1303 = vunpack.c.h.b16 %v560
        %v1304 = vunpack.c.l.b16 %v561
        %v1305 = vunpack.c.h.b16 %v561
        %v1306 = vunpack.c.l.b16 %v562
        %v1307 = vunpack.c.h.b16 %v562
        %v1308 = vunpack.c.l.b16 %v563
        %v1309 = vunpack.c.h.b16 %v563
        %v1310 = vunpack.c.l.b16 %v564
        %v1311 = vunpack.c.h.b16 %v564
        %v1312 = vunpack.c.l.b16 %v565
        %v1313 = vunpack.c.h.b16 %v565
        %v1314 = vunpack.c.l.b16 %v566
        %v1315 = vunpack.c.h.b16 %v566
        %v1316 = vunpack.c.l.b16 %v567
        %v1317 = vunpack.c.h.b16 %v567
        %v1318 = vunpack.c.l.b16 %v568
        %v1319 = vunpack.c.h.b16 %v568
        %v1320 = vunpack.c.l.b16 %v569
        %v1321 = vunpack.c.h.b16 %v569
        %v1322 = vunpack.c.l.b16 %v570
        %v1323 = vunpack.c.h.b16 %v570
        %v1324 = vunpack.c.l.b16 %v571
        %v1325 = vunpack.c.h.b16 %v571
        %v1326 = vunpack.c.l.b16 %v572
        %v1327 = vunpack.c.h.b16 %v572
        %v1328 = vunpack.c.l.b16 %v573
        %v1329 = vunpack.c.h.b16 %v573
        %v1330 = vunpack.c.l.b16 %v574
        %v1331 = vunpack.c.h.b16 %v574
        %v1332 = vunpack.c.l.b16 %v575
        %v1333 = vunpack.c.h.b16 %v575
        %v1334 = vunpack.c.l.b16 %v576
        %v1335 = vunpack.c.h.b16 %v576
        %v1336 = vunpack.c.l.b16 %v577
        %v1337 = vunpack.c.h.b16 %v577
        %v1338 = vunpack.c.l.b16 %v578
        %v1339 = vunpack.c.h.b16 %v578
        %v1340 = vunpack.c.l.b16 %v579
        %v1341 = vunpack.c.h.b16 %v579
        %v1342 = vunpack.c.l.b16 %v580
        %v1343 = vunpack.c.h.b16 %v580
        %v1344 = vunpack.c.l.b16 %v581
        %v1345 = vunpack.c.h.b16 %v581
        %v1346 = vunpack.c.l.b16 %v582
        %v1347 = vunpack.c.h.b16 %v582
        %v1348 = vunpack.c.l.b16 %v583
        %v1349 = vunpack.c.h.b16 %v583
        %v1350 = vunpack.c.l.b16 %v584
        %v1351 = vunpack.c.h.b16 %v584
        %v1352 = vunpack.c.l.b16 %v585
        %v1353 = vunpack.c.h.b16 %v585
        %v1354 = vunpack.c.l.b16 %v586
        %v1355 = vunpack.c.h.b16 %v586
        %v1356 = vunpack.c.l.b16 %v587
        %v1357 = vunpack.c.h.b16 %v587
        %v1358 = vunpack.c.l.b16 %v588
        %v1359 = vunpack.c.h.b16 %v588
        %v1360 = vunpack.c.l.b16 %v589
        %v1361 = vunpack.c.h.b16 %v589
        %v1362 = vunpack.c.l.b16 %v590
        %v1363 = vunpack.c.h.b16 %v590
        %v1364 = vunpack.c.l.b16 %v591
        %v1365 = vunpack.c.h.b16 %v591
        %v1366 = vpack.c.b16 %v854, %v854
        %v1367 = vpack.c.b16 %v855, %v855
        %v1368 = vpack.c.b16 %v856, %v856
        %v1369 = vpack.c.b16 %v857, %v857
        %v1370 = vpack.c.b16 %v858, %v858
        %v1371 = vpack.c.b16 %v859, %v859
        %v1372 = vpack.c.b16 %v860, %v860
        %v1373 = vpack.c.b16 %v861, %v861
        %v1374 = vpack.c.b16 %v862, %v862
        %v1375 = vpack.c.b16 %v863, %v863
        %v1376 = vpack.c.b16 %v864, %v864
        %v1377 = vpack.c.b16 %v865, %v865
        %v1378 = vpack.c.b16 %v866, %v866
        %v1379 = vpack.c.b16 %v867, %v867
        %v1380 = vpack.c.b16 %v868, %v868
        %v1381 = vpack.c.b16 %v869, %v869
        %v1382 = vpack.c.b16 %v870, %v870
        %v1383 = vpack.c.b16 %v871, %v871
        %v1384 = vpack.c.b16 %v872, %v872
        %v1385 = vpack.c.b16 %v873, %v873
        %v1386 = vpack.c.b16 %v874, %v874
        %v1387 = vpack.c.b16 %v875, %v875
        %v1388 = vpack.c.b16 %v876, %v876
        %v1389 = vpack.c.b16 %v877, %v877
        %v1390 = vpack.c.b16 %v878, %v878
        %v1391 = vpack.c.b16 %v879, %v879
        %v1392 = vpack.c.b16 %v880, %v880
        %v1393 = vpack.c.b16 %v881, %v881
        %v1394 = vpack.c.b16 %v882, %v882
        %v1395 = vpack.c.b16 %v883, %v883
        %v1396 = vpack.c.b16 %v884, %v884
        %v1397 = vpack.c.b16 %v885, %v885
        %v1398 = vpack.c.b16 %v886, %v886
        %v1399 = vpack.c.b16 %v887, %v887
        %v1400 = vpack.c.b16 %v888, %v888
        %v1401 = vpack.c.b16 %v889, %v889
        %v1402 = vpack.c.b16 %v890, %v890
        %v1403 = vpack.c.b16 %v891, %v891
        %v1404 = vpack.c.b16 %v892, %v892
        %v1405 = vpack.c.b16 %v893, %v893
        %v1406 = vpack.c.b16 %v894, %v894
        %v1407 = vpack.c.b16 %v895, %v895
        %v1408 = vpack.c.b16 %v896, %v896
        %v1409 = vpack.c.b16 %v897, %v897
        %v1410 = vpack.c.b16 %v898, %v898
        %v1411 = vpack.c.b16 %v899, %v899
        %v1412 = vpack.c.b16 %v900, %v900
        %v1413 = vpack.c.b16 %v901, %v901
        %v1414 = vpack.c.b16 %v902, %v902
        %v1415 = vpack.c.b16 %v903, %v903
        %v1416 = vpack.c.b16 %v904, %v904
        %v1417 = vpack.c.b16 %v905, %v905
        %v1418 = vpack.c.b16 %v906, %v906
        %v1419 = vpack.c.b16 %v907, %v907
        %v1420 = vpack.c.b16 %v908, %v908
        %v1421 = vpack.c.b16 %v909, %v909
        %v1422 = vpack.c.b16 %v910, %v910
        %v1423 = vpack.c.b16 %v911, %v911
        %v1424 = vpack.c.b16 %v912, %v912
        %v1425 = vpack.c.b16 %v913, %v913
        %v1426 = vpack.c.b16 %v914, %v914
        %v1427 = vpack.c.b16 %v915, %v915
        %v1428 = vpack.c.b16 %v916, %v916
        %v1429 = vpack.c.b16 %v917, %v917
        %v1430 = vpack.c.b16 %v918, %v918
        %v1431 = vpack.c.b16 %v919, %v919
        %v1432 = vpack.c.b16 %v920, %v920
        %v1433 = vpack.c.b16 %v921, %v921
        %v1434 = vpack.c.b16 %v922, %v922
        %v1435 = vpack.c.b16 %v923, %v923
        %v1436 = vpack.c.b16 %v924, %v924
        %v1437 = vpack.c.b16 %v925, %v925
        %v1438 = vpack.c.b16 %v926, %v926
        %v1439 = vpack.c.b16 %v927, %v927
        %v1440 = vpack.c.b16 %v928, %v928
        %v1441 = vpack.c.b16 %v929, %v929
        %v1442 = vpack.c.b16 %v930, %v930
        %v1443 = vpack.c.b16 %v931, %v931
        %v1444 = vpack.c.b16 %v932, %v932
        %v1445 = vpack.c.b16 %v933, %v933
        %v1446 = vpack.c.b16 %v934, %v934
        %v1447 = vpack.c.b16 %v935, %v935
        %v1448 = vpack.c.b16 %v936, %v936
        %v1449 = vpack.c.b16 %v937, %v937
        %v1450 = vpack.c.b16 %v938, %v938
        %v1451 = vpack.c.b16 %v939, %v939
        %v1452 = vpack.c.b16 %v940, %v940
        %v1453 = vpack.c.b16 %v941, %v941
        %v1454 = vpack.c.b16 %v942, %v942
        %v1455 = vpack.c.b16 %v943, %v943
        %v1456 = vpack.c.b16 %v944, %v944
        %v1457 = vpack.c.b16 %v945, %v945
        %v1458 = vpack.c.b16 %v946, %v946
        %v1459 = vpack.c.b16 %v947, %v947
        %v1460 = vpack.c.b16 %v948, %v948
        %v1461 = vpack.c.b16 %v949, %v949
        %v1462 = vpack.c.b16 %v950, %v950
        %v1463 = vpack.c.b16 %v951, %v951
        %v1464 = vpack.c.b16 %v952, %v952
        %v1465 = vpack.c.b16 %v953, %v953
        %v1466 = vpack.c.b16 %v954, %v954
        %v1467 = vpack.c.b16 %v955, %v955
        %v1468 = vpack.c.b16 %v956, %v956
        %v1469 = vpack.c.b16 %v957, %v957
        %v1470 = vpack.c.b16 %v958, %v958
        %v1471 = vpack.c.b16 %v959, %v959
        %v1472 = vpack.c.b16 %v960, %v960
        %v1473 = vpack.c.b16 %v961, %v961
        %v1474 = vpack.c.b16 %v962, %v962
        %v1475 = vpack.c.b16 %v963, %v963
        %v1476 = vpack.c.b16 %v964, %v964
        %v1477 = vpack.c.b16 %v965, %v965
        %v1478 = vpack.c.b16 %v966, %v966
        %v1479 = vpack.c.b16 %v967, %v967
        %v1480 = vpack.c.b16 %v968, %v968
        %v1481 = vpack.c.b16 %v969, %v969
        %v1482 = vpack.c.b16 %v970, %v970
        %v1483 = vpack.c.b16 %v971, %v971
        %v1484 = vpack.c.b16 %v972, %v972
        %v1485 = vpack.c.b16 %v973, %v973
        %v1486 = vpack.c.b16 %v974, %v974
        %v1487 = vpack.c.b16 %v975, %v975
        %v1488 = vpack.c.b16 %v976, %v976
        %v1489 = vpack.c.b16 %v977, %v977
        %v1490 = vpack.c.b16 %v978, %v978
        %v1491 = vpack.c.b16 %v979, %v979
        %v1492 = vpack.c.b16 %v980, %v980
        %v1493 = vpack.c.b16 %v981, %v981
        %v1494 = vpack.c.b16 %v982, %v982
        %v1495 = vpack.c.b16 %v983, %v983
        %v1496 = vpack.c.b16 %v984, %v984
        %v1497 = vpack.c.b16 %v985, %v985
        %v1498 = vpack.c.b16 %v986, %v986
        %v1499 = vpack.c.b16 %v987, %v987
        %v1500 = vpack.c.b16 %v988, %v988
        %v1501 = vpack.c.b16 %v989, %v989
        %v1502 = vpack.c.b16 %v990, %v990
        %v1503 = vpack.c.b16 %v991, %v991
        %v1504 = vpack.c.b16 %v992, %v992
        %v1505 = vpack.c.b16 %v993, %v993
        %v1506 = vpack.c.b16 %v994, %v994
        %v1507 = vpack.c.b16 %v995, %v995
        %v1508 = vpack.c.b16 %v996, %v996
        %v1509 = vpack.c.b16 %v997, %v997
        %v1510 = vpack.c.b16 %v998, %v998
        %v1511 = vpack.c.b16 %v999, %v999
        %v1512 = vpack.c.b16 %v1000, %v1000
        %v1513 = vpack.c.b16 %v1001, %v1001
        %v1514 = vpack.c.b16 %v1002, %v1002
        %v1515 = vpack.c.b16 %v1003, %v1003
        %v1516 = vpack.c.b16 %v1004, %v1004
        %v1517 = vpack.c.b16 %v1005, %v1005
        %v1518 = vpack.c.b16 %v1006, %v1006
        %v1519 = vpack.c.b16 %v1007, %v1007
        %v1520 = vpack.c.b16 %v1008, %v1008
        %v1521 = vpack.c.b16 %v1009, %v1009
        %v1522 = vpack.c.b16 %v1010, %v1010
        %v1523 = vpack.c.b16 %v1011, %v1011
        %v1524 = vpack.c.b16 %v1012, %v1012
        %v1525 = vpack.c.b16 %v1013, %v1013
        %v1526 = vpack.c.b16 %v1014, %v1014
        %v1527 = vpack.c.b16 %v1015, %v1015
        %v1528 = vpack.c.b16 %v1016, %v1016
        %v1529 = vpack.c.b16 %v1017, %v1017
        %v1530 = vpack.c.b16 %v1018, %v1018
        %v1531 = vpack.c.b16 %v1019, %v1019
        %v1532 = vpack.c.b16 %v1020, %v1020
        %v1533 = vpack.c.b16 %v1021, %v1021
        %v1534 = vpack.c.b16 %v1022, %v1022
        %v1535 = vpack.c.b16 %v1023, %v1023
        %v1536 = vpack.c.b16 %v1024, %v1024
        %v1537 = vpack.c.b16 %v1025, %v1025
        %v1538 = vpack.c.b16 %v1026, %v1026
        %v1539 = vpack.c.b16 %v1027, %v1027
        %v1540 = vpack.c.b16 %v1028, %v1028
        %v1541 = vpack.c.b16 %v1029, %v1029
        %v1542 = vpack.c.b16 %v1030, %v1030
        %v1543 = vpack.c.b16 %v1031, %v1031
        %v1544 = vpack.c.b16 %v1032, %v1032
        %v1545 = vpack.c.b16 %v1033, %v1033
        %v1546 = vpack.c.b16 %v1034, %v1034
        %v1547 = vpack.c.b16 %v1035, %v1035
        %v1548 = vpack.c.b16 %v1036, %v1036
        %v1549 = vpack.c.b16 %v1037, %v1037
        %v1550 = vpack.c.b16 %v1038, %v1038
        %v1551 = vpack.c.b16 %v1039, %v1039
        %v1552 = vpack.c.b16 %v1040, %v1040
        %v1553 = vpack.c.b16 %v1041, %v1041
        %v1554 = vpack.c.b16 %v1042, %v1042
        %v1555 = vpack.c.b16 %v1043, %v1043
        %v1556 = vpack.c.b16 %v1044, %v1044
        %v1557 = vpack.c.b16 %v1045, %v1045
        %v1558 = vpack.c.b16 %v1046, %v1046
        %v1559 = vpack.c.b16 %v1047, %v1047
        %v1560 = vpack.c.b16 %v1048, %v1048
        %v1561 = vpack.c.b16 %v1049, %v1049
        %v1562 = vpack.c.b16 %v1050, %v1050
        %v1563 = vpack.c.b16 %v1051, %v1051
        %v1564 = vpack.c.b16 %v1052, %v1052
        %v1565 = vpack.c.b16 %v1053, %v1053
        %v1566 = vpack.c.b16 %v1054, %v1054
        %v1567 = vpack.c.b16 %v1055, %v1055
        %v1568 = vpack.c.b16 %v1056, %v1056
        %v1569 = vpack.c.b16 %v1057, %v1057
        %v1570 = vpack.c.b16 %v1058, %v1058
        %v1571 = vpack.c.b16 %v1059, %v1059
        %v1572 = vpack.c.b16 %v1060, %v1060
        %v1573 = vpack.c.b16 %v1061, %v1061
        %v1574 = vpack.c.b16 %v1062, %v1062
        %v1575 = vpack.c.b16 %v1063, %v1063
        %v1576 = vpack.c.b16 %v1064, %v1064
        %v1577 = vpack.c.b16 %v1065, %v1065
        %v1578 = vpack.c.b16 %v1066, %v1066
        %v1579 = vpack.c.b16 %v1067, %v1067
        %v1580 = vpack.c.b16 %v1068, %v1068
        %v1581 = vpack.c.b16 %v1069, %v1069
        %v1582 = vpack.c.b16 %v1070, %v1070
        %v1583 = vpack.c.b16 %v1071, %v1071
        %v1584 = vpack.c.b16 %v1072, %v1072
        %v1585 = vpack.c.b16 %v1073, %v1073
        %v1586 = vpack.c.b16 %v1074, %v1074
        %v1587 = vpack.c.b16 %v1075, %v1075
        %v1588 = vpack.c.b16 %v1076, %v1076
        %v1589 = vpack.c.b16 %v1077, %v1077
        %v1590 = vpack.c.b16 %v1078, %v1078
        %v1591 = vpack.c.b16 %v1079, %v1079
        %v1592 = vpack.c.b16 %v1080, %v1080
        %v1593 = vpack.c.b16 %v1081, %v1081
        %v1594 = vpack.c.b16 %v1082, %v1082
        %v1595 = vpack.c.b16 %v1083, %v1083
        %v1596 = vpack.c.b16 %v1084, %v1084
        %v1597 = vpack.c.b16 %v1085, %v1085
        %v1598 = vpack.c.b16 %v1086, %v1086
        %v1599 = vpack.c.b16 %v1087, %v1087
        %v1600 = vpack.c.b16 %v1088, %v1088
        %v1601 = vpack.c.b16 %v1089, %v1089
        %v1602 = vpack.c.b16 %v1090, %v1090
        %v1603 = vpack.c.b16 %v1091, %v1091
        %v1604 = vpack.c.b16 %v1092, %v1092
        %v1605 = vpack.c.b16 %v1093, %v1093
        %v1606 = vpack.c.b16 %v1094, %v1094
        %v1607 = vpack.c.b16 %v1095, %v1095
        %v1608 = vpack.c.b16 %v1096, %v1096
        %v1609 = vpack.c.b16 %v1097, %v1097
        %v1610 = vpack.c.b16 %v1098, %v1098
        %v1611 = vpack.c.b16 %v1099, %v1099
        %v1612 = vpack.c.b16 %v1100, %v1100
        %v1613 = vpack.c.b16 %v1101, %v1101
        %v1614 = vpack.c.b16 %v1102, %v1102
        %v1615 = vpack.c.b16 %v1103, %v1103
        %v1616 = vpack.c.b16 %v1104, %v1104
        %v1617 = vpack.c.b16 %v1105, %v1105
        %v1618 = vpack.c.b16 %v1106, %v1106
        %v1619 = vpack.c.b16 %v1107, %v1107
        %v1620 = vpack.c.b16 %v1108, %v1108
        %v1621 = vpack.c.b16 %v1109, %v1109
        %v1622 = vpack.c.b16 %v1110, %v1110
        %v1623 = vpack.c.b16 %v1111, %v1111
        %v1624 = vpack.c.b16 %v1112, %v1112
        %v1625 = vpack.c.b16 %v1113, %v1113
        %v1626 = vpack.c.b16 %v1114, %v1114
        %v1627 = vpack.c.b16 %v1115, %v1115
        %v1628 = vpack.c.b16 %v1116, %v1116
        %v1629 = vpack.c.b16 %v1117, %v1117
        %v1630 = vpack.c.b16 %v1118, %v1118
        %v1631 = vpack.c.b16 %v1119, %v1119
        %v1632 = vpack.c.b16 %v1120, %v1120
        %v1633 = vpack.c.b16 %v1121, %v1121
        %v1634 = vpack.c.b16 %v1122, %v1122
        %v1635 = vpack.c.b16 %v1123, %v1123
        %v1636 = vpack.c.b16 %v1124, %v1124
        %v1637 = vpack.c.b16 %v1125, %v1125
        %v1638 = vpack.c.b16 %v1126, %v1126
        %v1639 = vpack.c.b16 %v1127, %v1127
        %v1640 = vpack.c.b16 %v1128, %v1128
        %v1641 = vpack.c.b16 %v1129, %v1129
        %v1642 = vpack.c.b16 %v1130, %v1130
        %v1643 = vpack.c.b16 %v1131, %v1131
        %v1644 = vpack.c.b16 %v1132, %v1132
        %v1645 = vpack.c.b16 %v1133, %v1133
        %v1646 = vpack.c.b16 %v1134, %v1134
        %v1647 = vpack.c.b16 %v1135, %v1135
        %v1648 = vpack.c.b16 %v1136, %v1136
        %v1649 = vpack.c.b16 %v1137, %v1137
        %v1650 = vpack.c.b16 %v1138, %v1138
        %v1651 = vpack.c.b16 %v1139, %v1139
        %v1652 = vpack.c.b16 %v1140, %v1140
        %v1653 = vpack.c.b16 %v1141, %v1141
        %v1654 = vpack.c.b16 %v1142, %v1142
        %v1655 = vpack.c.b16 %v1143, %v1143
        %v1656 = vpack.c.b16 %v1144, %v1144
        %v1657 = vpack.c.b16 %v1145, %v1145
        %v1658 = vpack.c.b16 %v1146, %v1146
        %v1659 = vpack.c.b16 %v1147, %v1147
        %v1660 = vpack.c.b16 %v1148, %v1148
        %v1661 = vpack.c.b16 %v1149, %v1149
        %v1662 = vpack.c.b16 %v1150, %v1150
        %v1663 = vpack.c.b16 %v1151, %v1151
        %v1664 = vpack.c.b16 %v1152, %v1152
        %v1665 = vpack.c.b16 %v1153, %v1153
        %v1666 = vpack.c.b16 %v1154, %v1154
        %v1667 = vpack.c.b16 %v1155, %v1155
        %v1668 = vpack.c.b16 %v1156, %v1156
        %v1669 = vpack.c.b16 %v1157, %v1157
        %v1670 = vpack.c.b16 %v1158, %v1158
        %v1671 = vpack.c.b16 %v1159, %v1159
        %v1672 = vpack.c.b16 %v1160, %v1160
        %v1673 = vpack.c.b16 %v1161, %v1161
        %v1674 = vpack.c.b16 %v1162, %v1162
        %v1675 = vpack.c.b16 %v1163, %v1163
        %v1676 = vpack.c.b16 %v1164, %v1164
        %v1677 = vpack.c.b16 %v1165, %v1165
        %v1678 = vpack.c.b16 %v1166, %v1166
        %v1679 = vpack.c.b16 %v1167, %v1167
        %v1680 = vpack.c.b16 %v1168, %v1168
        %v1681 = vpack.c.b16 %v1169, %v1169
        %v1682 = vpack.c.b16 %v1170, %v1170
        %v1683 = vpack.c.b16 %v1171, %v1171
        %v1684 = vpack.c.b16 %v1172, %v1172
        %v1685 = vpack.c.b16 %v1173, %v1173
        %v1686 = vpack.c.b16 %v1174, %v1174
        %v1687 = vpack.c.b16 %v1175, %v1175
        %v1688 = vpack.c.b16 %v1176, %v1176
        %v1689 = vpack.c.b16 %v1177, %v1177
        %v1690 = vpack.c.b16 %v1178, %v1178
        %v1691 = vpack.c.b16 %v1179, %v1179
        %v1692 = vpack.c.b16 %v1180, %v1180
        %v1693 = vpack.c.b16 %v1181, %v1181
        %v1694 = vpack.c.b16 %v1182, %v1182
        %v1695 = vpack.c.b16 %v1183, %v1183
        %v1696 = vpack.c.b16 %v1184, %v1184
        %v1697 = vpack.c.b16 %v1185, %v1185
        %v1698 = vpack.c.b16 %v1186, %v1186
        %v1699 = vpack.c.b16 %v1187, %v1187
        %v1700 = vpack.c.b16 %v1188, %v1188
        %v1701 = vpack.c.b16 %v1189, %v1189
        %v1702 = vpack.c.b16 %v1190, %v1190
        %v1703 = vpack.c.b16 %v1191, %v1191
        %v1704 = vpack.c.b16 %v1192, %v1192
        %v1705 = vpack.c.b16 %v1193, %v1193
        %v1706 = vpack.c.b16 %v1194, %v1194
        %v1707 = vpack.c.b16 %v1195, %v1195
        %v1708 = vpack.c.b16 %v1196, %v1196
        %v1709 = vpack.c.b16 %v1197, %v1197
        %v1710 = vpack.c.b16 %v1198, %v1198
        %v1711 = vpack.c.b16 %v1199, %v1199
        %v1712 = vpack.c.b16 %v1200, %v1200
        %v1713 = vpack.c.b16 %v1201, %v1201
        %v1714 = vpack.c.b16 %v1202, %v1202
        %v1715 = vpack.c.b16 %v1203, %v1203
        %v1716 = vpack.c.b16 %v1204, %v1204
        %v1717 = vpack.c.b16 %v1205, %v1205
        %v1718 = vpack.c.b16 %v1206, %v1206
        %v1719 = vpack.c.b16 %v1207, %v1207
        %v1720 = vpack.c.b16 %v1208, %v1208
        %v1721 = vpack.c.b16 %v1209, %v1209
        %v1722 = vpack.c.b16 %v1210, %v1210
        %v1723 = vpack.c.b16 %v1211, %v1211
        %v1724 = vpack.c.b16 %v1212, %v1212
        %v1725 = vpack.c.b16 %v1213, %v1213
        %v1726 = vpack.c.b16 %v1214, %v1214
        %v1727 = vpack.c.b16 %v1215, %v1215
        %v1728 = vpack.c.b16 %v1216, %v1216
        %v1729 = vpack.c.b16 %v1217, %v1217
        %v1730 = vpack.c.b16 %v1218, %v1218
        %v1731 = vpack.c.b16 %v1219, %v1219
        %v1732 = vpack.c.b16 %v1220, %v1220
        %v1733 = vpack.c.b16 %v1221, %v1221
        %v1734 = vpack.c.b16 %v1222, %v1222
        %v1735 = vpack.c.b16 %v1223, %v1223
        %v1736 = vpack.c.b16 %v1224, %v1224
        %v1737 = vpack.c.b16 %v1225, %v1225
        %v1738 = vpack.c.b16 %v1226, %v1226
        %v1739 = vpack.c.b16 %v1227, %v1227
        %v1740 = vpack.c.b16 %v1228, %v1228
        %v1741 = vpack.c.b16 %v1229, %v1229
        %v1742 = vpack.c.b16 %v1230, %v1230
        %v1743 = vpack.c.b16 %v1231, %v1231
        %v1744 = vpack.c.b16 %v1232, %v1232
        %v1745 = vpack.c.b16 %v1233, %v1233
        %v1746 = vpack.c.b16 %v1234, %v1234
        %v1747 = vpack.c.b16 %v1235, %v1235
        %v1748 = vpack.c.b16 %v1236, %v1236
        %v1749 = vpack.c.b16 %v1237, %v1237
        %v1750 = vpack.c.b16 %v1238, %v1238
        %v1751 = vpack.c.b16 %v1239, %v1239
        %v1752 = vpack.c.b16 %v1240, %v1240
        %v1753 = vpack.c.b16 %v1241, %v1241
        %v1754 = vpack.c.b16 %v1242, %v1242
        %v1755 = vpack.c.b16 %v1243, %v1243
        %v1756 = vpack.c.b16 %v1244, %v1244
        %v1757 = vpack.c.b16 %v1245, %v1245
        %v1758 = vpack.c.b16 %v1246, %v1246
        %v1759 = vpack.c.b16 %v1247, %v1247
        %v1760 = vpack.c.b16 %v1248, %v1248
        %v1761 = vpack.c.b16 %v1249, %v1249
        %v1762 = vpack.c.b16 %v1250, %v1250
        %v1763 = vpack.c.b16 %v1251, %v1251
        %v1764 = vpack.c.b16 %v1252, %v1252
        %v1765 = vpack.c.b16 %v1253, %v1253
        %v1766 = vpack.c.b16 %v1254, %v1254
        %v1767 = vpack.c.b16 %v1255, %v1255
        %v1768 = vpack.c.b16 %v1256, %v1256
        %v1769 = vpack.c.b16 %v1257, %v1257
        %v1770 = vpack.c.b16 %v1258, %v1258
        %v1771 = vpack.c.b16 %v1259, %v1259
        %v1772 = vpack.c.b16 %v1260, %v1260
        %v1773 = vpack.c.b16 %v1261, %v1261
        %v1774 = vpack.c.b16 %v1262, %v1262
        %v1775 = vpack.c.b16 %v1263, %v1263
        %v1776 = vpack.c.b16 %v1264, %v1264
        %v1777 = vpack.c.b16 %v1265, %v1265
        %v1778 = vpack.c.b16 %v1266, %v1266
        %v1779 = vpack.c.b16 %v1267, %v1267
        %v1780 = vpack.c.b16 %v1268, %v1268
        %v1781 = vpack.c.b16 %v1269, %v1269
        %v1782 = vpack.c.b16 %v1270, %v1270
        %v1783 = vpack.c.b16 %v1271, %v1271
        %v1784 = vpack.c.b16 %v1272, %v1272
        %v1785 = vpack.c.b16 %v1273, %v1273
        %v1786 = vpack.c.b16 %v1274, %v1274
        %v1787 = vpack.c.b16 %v1275, %v1275
        %v1788 = vpack.c.b16 %v1276, %v1276
        %v1789 = vpack.c.b16 %v1277, %v1277
        %v1790 = vpack.c.b16 %v1278, %v1278
        %v1791 = vpack.c.b16 %v1279, %v1279
        %v1792 = vpack.c.b16 %v1280, %v1280
        %v1793 = vpack.c.b16 %v1281, %v1281
        %v1794 = vpack.c.b16 %v1282, %v1282
        %v1795 = vpack.c.b16 %v1283, %v1283
        %v1796 = vpack.c.b16 %v1284, %v1284
        %v1797 = vpack.c.b16 %v1285, %v1285
        %v1798 = vpack.c.b16 %v1286, %v1286
        %v1799 = vpack.c.b16 %v1287, %v1287
        %v1800 = vpack.c.b16 %v1288, %v1288
        %v1801 = vpack.c.b16 %v1289, %v1289
        %v1802 = vpack.c.b16 %v1290, %v1290
        %v1803 = vpack.c.b16 %v1291, %v1291
        %v1804 = vpack.c.b16 %v1292, %v1292
        %v1805 = vpack.c.b16 %v1293, %v1293
        %v1806 = vpack.c.b16 %v1294, %v1294
        %v1807 = vpack.c.b16 %v1295, %v1295
        %v1808 = vpack.c.b16 %v1296, %v1296
        %v1809 = vpack.c.b16 %v1297, %v1297
        %v1810 = vpack.c.b16 %v1298, %v1298
        %v1811 = vpack.c.b16 %v1299, %v1299
        %v1812 = vpack.c.b16 %v1300, %v1300
        %v1813 = vpack.c.b16 %v1301, %v1301
        %v1814 = vpack.c.b16 %v1302, %v1302
        %v1815 = vpack.c.b16 %v1303, %v1303
        %v1816 = vpack.c.b16 %v1304, %v1304
        %v1817 = vpack.c.b16 %v1305, %v1305
        %v1818 = vpack.c.b16 %v1306, %v1306
        %v1819 = vpack.c.b16 %v1307, %v1307
        %v1820 = vpack.c.b16 %v1308, %v1308
        %v1821 = vpack.c.b16 %v1309, %v1309
        %v1822 = vpack.c.b16 %v1310, %v1310
        %v1823 = vpack.c.b16 %v1311, %v1311
        %v1824 = vpack.c.b16 %v1312, %v1312
        %v1825 = vpack.c.b16 %v1313, %v1313
        %v1826 = vpack.c.b16 %v1314, %v1314
        %v1827 = vpack.c.b16 %v1315, %v1315
        %v1828 = vpack.c.b16 %v1316, %v1316
        %v1829 = vpack.c.b16 %v1317, %v1317
        %v1830 = vpack.c.b16 %v1318, %v1318
        %v1831 = vpack.c.b16 %v1319, %v1319
        %v1832 = vpack.c.b16 %v1320, %v1320
        %v1833 = vpack.c.b16 %v1321, %v1321
        %v1834 = vpack.c.b16 %v1322, %v1322
        %v1835 = vpack.c.b16 %v1323, %v1323
        %v1836 = vpack.c.b16 %v1324, %v1324
        %v1837 = vpack.c.b16 %v1325, %v1325
        %v1838 = vpack.c.b16 %v1326, %v1326
        %v1839 = vpack.c.b16 %v1327, %v1327
        %v1840 = vpack.c.b16 %v1328, %v1328
        %v1841 = vpack.c.b16 %v1329, %v1329
        %v1842 = vpack.c.b16 %v1330, %v1330
        %v1843 = vpack.c.b16 %v1331, %v1331
        %v1844 = vpack.c.b16 %v1332, %v1332
        %v1845 = vpack.c.b16 %v1333, %v1333
        %v1846 = vpack.c.b16 %v1334, %v1334
        %v1847 = vpack.c.b16 %v1335, %v1335
        %v1848 = vpack.c.b16 %v1336, %v1336
        %v1849 = vpack.c.b16 %v1337, %v1337
        %v1850 = vpack.c.b16 %v1338, %v1338
        %v1851 = vpack.c.b16 %v1339, %v1339
        %v1852 = vpack.c.b16 %v1340, %v1340
        %v1853 = vpack.c.b16 %v1341, %v1341
        %v1854 = vpack.c.b16 %v1342, %v1342
        %v1855 = vpack.c.b16 %v1343, %v1343
        %v1856 = vpack.c.b16 %v1344, %v1344
        %v1857 = vpack.c.b16 %v1345, %v1345
        %v1858 = vpack.c.b16 %v1346, %v1346
        %v1859 = vpack.c.b16 %v1347, %v1347
        %v1860 = vpack.c.b16 %v1348, %v1348
        %v1861 = vpack.c.b16 %v1349, %v1349
        %v1862 = vpack.c.b16 %v1350, %v1350
        %v1863 = vpack.c.b16 %v1351, %v1351
        %v1864 = vpack.c.b16 %v1352, %v1352
        %v1865 = vpack.c.b16 %v1353, %v1353
        %v1866 = vpack.c.b16 %v1354, %v1354
        %v1867 = vpack.c.b16 %v1355, %v1355
        %v1868 = vpack.c.b16 %v1356, %v1356
        %v1869 = vpack.c.b16 %v1357, %v1357
        %v1870 = vpack.c.b16 %v1358, %v1358
        %v1871 = vpack.c.b16 %v1359, %v1359
        %v1872 = vpack.c.b16 %v1360, %v1360
        %v1873 = vpack.c.b16 %v1361, %v1361
        %v1874 = vpack.c.b16 %v1362, %v1362
        %v1875 = vpack.c.b16 %v1363, %v1363
        %v1876 = vpack.c.b16 %v1364, %v1364
        %v1877 = vpack.c.b16 %v1365, %v1365
        %vm1878 = vcmask 64512
        %v1880 = vsel %vm1878, %v335, 0
        %vm1882 = vcmask 1043456
        %v1884 = vsel %vm1882, %v1366, 0
        %v1887 = vsel %vm1882, %v1367, 0
        %v1890 = vsel %vm1882, %v1368, 0
        %v1893 = vsel %vm1882, %v1369, 0
        %v1896 = vsel %vm1882, %v1370, 0
        %v1899 = vsel %vm1882, %v1371, 0
        %v1902 = vsel %vm1882, %v1372, 0
        %v1905 = vsel %vm1882, %v1373, 0
        %v1908 = vsel %vm1882, %v1374, 0
        %v1911 = vsel %vm1882, %v1375, 0
        %v1914 = vsel %vm1882, %v1376, 0
        %v1917 = vsel %vm1882, %v1377, 0
        %v1920 = vsel %vm1882, %v1378, 0
        %v1923 = vsel %vm1882, %v1379, 0
        %v1926 = vsel %vm1882, %v1380, 0
        %v1929 = vsel %vm1882, %v1381, 0
        %v1932 = vsel %vm1882, %v1382, 0
        %v1935 = vsel %vm1882, %v1383, 0
        %v1938 = vsel %vm1882, %v1384, 0
        %v1941 = vsel %vm1882, %v1385, 0
        %v1944 = vsel %vm1882, %v1386, 0
        %v1947 = vsel %vm1882, %v1387, 0
        %v1950 = vsel %vm1882, %v1388, 0
        %v1953 = vsel %vm1882, %v1389, 0
        %v1956 = vsel %vm1882, %v1390, 0
        %v1959 = vsel %vm1882, %v1391, 0
        %v1962 = vsel %vm1882, %v1392, 0
        %v1965 = vsel %vm1882, %v1393, 0
        %v1968 = vsel %vm1882, %v1394, 0
        %v1971 = vsel %vm1882, %v1395, 0
        %v1974 = vsel %vm1882, %v1396, 0
        %v1977 = vsel %vm1882, %v1397, 0
        %v1980 = vsel %vm1882, %v1398, 0
        %v1983 = vsel %vm1882, %v1399, 0
        %v1986 = vsel %vm1882, %v1400, 0
        %v1989 = vsel %vm1882, %v1401, 0
        %v1992 = vsel %vm1882, %v1402, 0
        %v1995 = vsel %vm1882, %v1403, 0
        %v1998 = vsel %vm1882, %v1404, 0
        %v2001 = vsel %vm1882, %v1405, 0
        %v2004 = vsel %vm1882, %v1406, 0
        %v2007 = vsel %vm1882, %v1407, 0
        %v2010 = vsel %vm1882, %v1408, 0
        %v2013 = vsel %vm1882, %v1409, 0
        %v2016 = vsel %vm1882, %v1410, 0
        %v2019 = vsel %vm1882, %v1411, 0
        %v2022 = vsel %vm1882, %v1412, 0
        %v2025 = vsel %vm1882, %v1413, 0
        %v2028 = vsel %vm1882, %v1414, 0
        %v2031 = vsel %vm1882, %v1415, 0
        %v2034 = vsel %vm1882, %v1416, 0
        %v2037 = vsel %vm1882, %v1417, 0
        %v2040 = vsel %vm1882, %v1418, 0
        %v2043 = vsel %vm1882, %v1419, 0
        %v2046 = vsel %vm1882, %v1420, 0
        %v2049 = vsel %vm1882, %v1421, 0
        %v2052 = vsel %vm1882, %v1422, 0
        %v2055 = vsel %vm1882, %v1423, 0
        %v2058 = vsel %vm1882, %v1424, 0
        %v2061 = vsel %vm1882, %v1425, 0
        %v2064 = vsel %vm1882, %v1426, 0
        %v2067 = vsel %vm1882, %v1427, 0
        %v2070 = vsel %vm1882, %v1428, 0
        %v2073 = vsel %vm1882, %v1429, 0
        %v2076 = vsel %vm1882, %v1430, 0
        %v2079 = vsel %vm1882, %v1431, 0
        %v2082 = vsel %vm1882, %v1432, 0
        %v2085 = vsel %vm1882, %v1433, 0
        %v2088 = vsel %vm1882, %v1434, 0
        %v2091 = vsel %vm1882, %v1435, 0
        %v2094 = vsel %vm1882, %v1436, 0
        %v2097 = vsel %vm1882, %v1437, 0
        %v2100 = vsel %vm1882, %v1438, 0
        %v2103 = vsel %vm1882, %v1439, 0
        %v2106 = vsel %vm1882, %v1440, 0
        %v2109 = vsel %vm1882, %v1441, 0
        %v2112 = vsel %vm1882, %v1442, 0
        %v2115 = vsel %vm1882, %v1443, 0
        %v2118 = vsel %vm1882, %v1444, 0
        %v2121 = vsel %vm1882, %v1445, 0
        %v2124 = vsel %vm1882, %v1446, 0
        %v2127 = vsel %vm1882, %v1447, 0
        %v2130 = vsel %vm1882, %v1448, 0
        %v2133 = vsel %vm1882, %v1449, 0
        %v2136 = vsel %vm1882, %v1450, 0
        %v2139 = vsel %vm1882, %v1451, 0
        %v2142 = vsel %vm1882, %v1452, 0
        %v2145 = vsel %vm1882, %v1453, 0
        %v2148 = vsel %vm1882, %v1454, 0
        %v2151 = vsel %vm1882, %v1455, 0
        %v2154 = vsel %vm1882, %v1456, 0
        %v2157 = vsel %vm1882, %v1457, 0
        %v2160 = vsel %vm1882, %v1458, 0
        %v2163 = vsel %vm1882, %v1459, 0
        %v2166 = vsel %vm1882, %v1460, 0
        %v2169 = vsel %vm1882, %v1461, 0
        %v2172 = vsel %vm1882, %v1462, 0
        %v2175 = vsel %vm1882, %v1463, 0
        %v2178 = vsel %vm1882, %v1464, 0
        %v2181 = vsel %vm1882, %v1465, 0
        %v2184 = vsel %vm1882, %v1466, 0
        %v2187 = vsel %vm1882, %v1467, 0
        %v2190 = vsel %vm1882, %v1468, 0
        %v2193 = vsel %vm1882, %v1469, 0
        %v2196 = vsel %vm1882, %v1470, 0
        %v2199 = vsel %vm1882, %v1471, 0
        %v2202 = vsel %vm1882, %v1472, 0
        %v2205 = vsel %vm1882, %v1473, 0
        %v2208 = vsel %vm1882, %v1474, 0
        %v2211 = vsel %vm1882, %v1475, 0
        %v2214 = vsel %vm1882, %v1476, 0
        %v2217 = vsel %vm1882, %v1477, 0
        %v2220 = vsel %vm1882, %v1478, 0
        %v2223 = vsel %vm1882, %v1479, 0
        %v2226 = vsel %vm1882, %v1480, 0
        %v2229 = vsel %vm1882, %v1481, 0
        %v2232 = vsel %vm1882, %v1482, 0
        %v2235 = vsel %vm1882, %v1483, 0
        %v2238 = vsel %vm1882, %v1484, 0
        %v2241 = vsel %vm1882, %v1485, 0
        %v2244 = vsel %vm1882, %v1486, 0
        %v2247 = vsel %vm1882, %v1487, 0
        %v2250 = vsel %vm1882, %v1488, 0
        %v2253 = vsel %vm1882, %v1489, 0
        %v2256 = vsel %vm1882, %v1490, 0
        %v2259 = vsel %vm1882, %v1491, 0
        %v2262 = vsel %vm1882, %v1492, 0
        %v2265 = vsel %vm1882, %v1493, 0
        %v2268 = vsel %vm1882, %v1494, 0
        %v2271 = vsel %vm1882, %v1495, 0
        %v2274 = vsel %vm1882, %v1496, 0
        %v2277 = vsel %vm1882, %v1497, 0
        %v2280 = vsel %vm1882, %v1498, 0
        %v2283 = vsel %vm1882, %v1499, 0
        %v2286 = vsel %vm1882, %v1500, 0
        %v2289 = vsel %vm1882, %v1501, 0
        %v2292 = vsel %vm1882, %v1502, 0
        %v2295 = vsel %vm1882, %v1503, 0
        %v2298 = vsel %vm1882, %v1504, 0
        %v2301 = vsel %vm1882, %v1505, 0
        %v2304 = vsel %vm1882, %v1506, 0
        %v2307 = vsel %vm1882, %v1507, 0
        %v2310 = vsel %vm1882, %v1508, 0
        %v2313 = vsel %vm1882, %v1509, 0
        %v2316 = vsel %vm1882, %v1510, 0
        %v2319 = vsel %vm1882, %v1511, 0
        %v2322 = vsel %vm1882, %v1512, 0
        %v2325 = vsel %vm1882, %v1513, 0
        %v2328 = vsel %vm1882, %v1514, 0
        %v2331 = vsel %vm1882, %v1515, 0
        %v2334 = vsel %vm1882, %v1516, 0
        %v2337 = vsel %vm1882, %v1517, 0
        %v2340 = vsel %vm1882, %v1518, 0
        %v2343 = vsel %vm1882, %v1519, 0
        %v2346 = vsel %vm1882, %v1520, 0
        %v2349 = vsel %vm1882, %v1521, 0
        %v2352 = vsel %vm1882, %v1522, 0
        %v2355 = vsel %vm1882, %v1523, 0
        %v2358 = vsel %vm1882, %v1524, 0
        %v2361 = vsel %vm1882, %v1525, 0
        %v2364 = vsel %vm1882, %v1526, 0
        %v2367 = vsel %vm1882, %v1527, 0
        %v2370 = vsel %vm1882, %v1528, 0
        %v2373 = vsel %vm1882, %v1529, 0
        %v2376 = vsel %vm1882, %v1530, 0
        %v2379 = vsel %vm1882, %v1531, 0
        %v2382 = vsel %vm1882, %v1532, 0
        %v2385 = vsel %vm1882, %v1533, 0
        %v2388 = vsel %vm1882, %v1534, 0
        %v2391 = vsel %vm1882, %v1535, 0
        %v2394 = vsel %vm1882, %v1536, 0
        %v2397 = vsel %vm1882, %v1537, 0
        %v2400 = vsel %vm1882, %v1538, 0
        %v2403 = vsel %vm1882, %v1539, 0
        %v2406 = vsel %vm1882, %v1540, 0
        %v2409 = vsel %vm1882, %v1541, 0
        %v2412 = vsel %vm1882, %v1542, 0
        %v2415 = vsel %vm1882, %v1543, 0
        %v2418 = vsel %vm1882, %v1544, 0
        %v2421 = vsel %vm1882, %v1545, 0
        %v2424 = vsel %vm1882, %v1546, 0
        %v2427 = vsel %vm1882, %v1547, 0
        %v2430 = vsel %vm1882, %v1548, 0
        %v2433 = vsel %vm1882, %v1549, 0
        %v2436 = vsel %vm1882, %v1550, 0
        %v2439 = vsel %vm1882, %v1551, 0
        %v2442 = vsel %vm1882, %v1552, 0
        %v2445 = vsel %vm1882, %v1553, 0
        %v2448 = vsel %vm1882, %v1554, 0
        %v2451 = vsel %vm1882, %v1555, 0
        %v2454 = vsel %vm1882, %v1556, 0
        %v2457 = vsel %vm1882, %v1557, 0
        %v2460 = vsel %vm1882, %v1558, 0
        %v2463 = vsel %vm1882, %v1559, 0
        %v2466 = vsel %vm1882, %v1560, 0
        %v2469 = vsel %vm1882, %v1561, 0
        %v2472 = vsel %vm1882, %v1562, 0
        %v2475 = vsel %vm1882, %v1563, 0
        %v2478 = vsel %vm1882, %v1564, 0
        %v2481 = vsel %vm1882, %v1565, 0
        %v2484 = vsel %vm1882, %v1566, 0
        %v2487 = vsel %vm1882, %v1567, 0
        %v2490 = vsel %vm1882, %v1568, 0
        %v2493 = vsel %vm1882, %v1569, 0
        %v2496 = vsel %vm1882, %v1570, 0
        %v2499 = vsel %vm1882, %v1571, 0
        %v2502 = vsel %vm1882, %v1572, 0
        %v2505 = vsel %vm1882, %v1573, 0
        %v2508 = vsel %vm1882, %v1574, 0
        %v2511 = vsel %vm1882, %v1575, 0
        %v2514 = vsel %vm1882, %v1576, 0
        %v2517 = vsel %vm1882, %v1577, 0
        %v2520 = vsel %vm1882, %v1578, 0
        %v2523 = vsel %vm1882, %v1579, 0
        %v2526 = vsel %vm1882, %v1580, 0
        %v2529 = vsel %vm1882, %v1581, 0
        %v2532 = vsel %vm1882, %v1582, 0
        %v2535 = vsel %vm1882, %v1583, 0
        %v2538 = vsel %vm1882, %v1584, 0
        %v2541 = vsel %vm1882, %v1585, 0
        %v2544 = vsel %vm1882, %v1586, 0
        %v2547 = vsel %vm1882, %v1587, 0
        %v2550 = vsel %vm1882, %v1588, 0
        %v2553 = vsel %vm1882, %v1589, 0
        %v2556 = vsel %vm1882, %v1590, 0
        %v2559 = vsel %vm1882, %v1591, 0
        %v2562 = vsel %vm1882, %v1592, 0
        %v2565 = vsel %vm1882, %v1593, 0
        %v2568 = vsel %vm1882, %v1594, 0
        %v2571 = vsel %vm1882, %v1595, 0
        %v2574 = vsel %vm1882, %v1596, 0
        %v2577 = vsel %vm1882, %v1597, 0
        %v2580 = vsel %vm1882, %v1598, 0
        %v2583 = vsel %vm1882, %v1599, 0
        %v2586 = vsel %vm1882, %v1600, 0
        %v2589 = vsel %vm1882, %v1601, 0
        %v2592 = vsel %vm1882, %v1602, 0
        %v2595 = vsel %vm1882, %v1603, 0
        %v2598 = vsel %vm1882, %v1604, 0
        %v2601 = vsel %vm1882, %v1605, 0
        %v2604 = vsel %vm1882, %v1606, 0
        %v2607 = vsel %vm1882, %v1607, 0
        %v2610 = vsel %vm1882, %v1608, 0
        %v2613 = vsel %vm1882, %v1609, 0
        %v2616 = vsel %vm1882, %v1610, 0
        %v2619 = vsel %vm1882, %v1611, 0
        %v2622 = vsel %vm1882, %v1612, 0
        %v2625 = vsel %vm1882, %v1613, 0
        %v2628 = vsel %vm1882, %v1614, 0
        %v2631 = vsel %vm1882, %v1615, 0
        %v2634 = vsel %vm1882, %v1616, 0
        %v2637 = vsel %vm1882, %v1617, 0
        %v2640 = vsel %vm1882, %v1618, 0
        %v2643 = vsel %vm1882, %v1619, 0
        %v2646 = vsel %vm1882, %v1620, 0
        %v2649 = vsel %vm1882, %v1621, 0
        %v2652 = vsel %vm1882, %v1622, 0
        %v2655 = vsel %vm1882, %v1623, 0
        %v2658 = vsel %vm1882, %v1624, 0
        %v2661 = vsel %vm1882, %v1625, 0
        %v2664 = vsel %vm1882, %v1626, 0
        %v2667 = vsel %vm1882, %v1627, 0
        %v2670 = vsel %vm1882, %v1628, 0
        %v2673 = vsel %vm1882, %v1629, 0
        %v2676 = vsel %vm1882, %v1630, 0
        %v2679 = vsel %vm1882, %v1631, 0
        %v2682 = vsel %vm1882, %v1632, 0
        %v2685 = vsel %vm1882, %v1633, 0
        %v2688 = vsel %vm1882, %v1634, 0
        %v2691 = vsel %vm1882, %v1635, 0
        %v2694 = vsel %vm1882, %v1636, 0
        %v2697 = vsel %vm1882, %v1637, 0
        %v2700 = vsel %vm1882, %v1638, 0
        %v2703 = vsel %vm1882, %v1639, 0
        %v2706 = vsel %vm1882, %v1640, 0
        %v2709 = vsel %vm1882, %v1641, 0
        %v2712 = vsel %vm1882, %v1642, 0
        %v2715 = vsel %vm1882, %v1643, 0
        %v2718 = vsel %vm1882, %v1644, 0
        %v2721 = vsel %vm1882, %v1645, 0
        %v2724 = vsel %vm1882, %v1646, 0
        %v2727 = vsel %vm1882, %v1647, 0
        %v2730 = vsel %vm1882, %v1648, 0
        %v2733 = vsel %vm1882, %v1649, 0
        %v2736 = vsel %vm1882, %v1650, 0
        %v2739 = vsel %vm1882, %v1651, 0
        %v2742 = vsel %vm1882, %v1652, 0
        %v2745 = vsel %vm1882, %v1653, 0
        %v2748 = vsel %vm1882, %v1654, 0
        %v2751 = vsel %vm1882, %v1655, 0
        %v2754 = vsel %vm1882, %v1656, 0
        %v2757 = vsel %vm1882, %v1657, 0
        %v2760 = vsel %vm1882, %v1658, 0
        %v2763 = vsel %vm1882, %v1659, 0
        %v2766 = vsel %vm1882, %v1660, 0
        %v2769 = vsel %vm1882, %v1661, 0
        %v2772 = vsel %vm1882, %v1662, 0
        %v2775 = vsel %vm1882, %v1663, 0
        %v2778 = vsel %vm1882, %v1664, 0
        %v2781 = vsel %vm1882, %v1665, 0
        %v2784 = vsel %vm1882, %v1666, 0
        %v2787 = vsel %vm1882, %v1667, 0
        %v2790 = vsel %vm1882, %v1668, 0
        %v2793 = vsel %vm1882, %v1669, 0
        %v2796 = vsel %vm1882, %v1670, 0
        %v2799 = vsel %vm1882, %v1671, 0
        %v2802 = vsel %vm1882, %v1672, 0
        %v2805 = vsel %vm1882, %v1673, 0
        %v2808 = vsel %vm1882, %v1674, 0
        %v2811 = vsel %vm1882, %v1675, 0
        %v2814 = vsel %vm1882, %v1676, 0
        %v2817 = vsel %vm1882, %v1677, 0
        %v2820 = vsel %vm1882, %v1678, 0
        %v2823 = vsel %vm1882, %v1679, 0
        %v2826 = vsel %vm1882, %v1680, 0
        %v2829 = vsel %vm1882, %v1681, 0
        %v2832 = vsel %vm1882, %v1682, 0
        %v2835 = vsel %vm1882, %v1683, 0
        %v2838 = vsel %vm1882, %v1684, 0
        %v2841 = vsel %vm1882, %v1685, 0
        %v2844 = vsel %vm1882, %v1686, 0
        %v2847 = vsel %vm1882, %v1687, 0
        %v2850 = vsel %vm1882, %v1688, 0
        %v2853 = vsel %vm1882, %v1689, 0
        %v2856 = vsel %vm1882, %v1690, 0
        %v2859 = vsel %vm1882, %v1691, 0
        %v2862 = vsel %vm1882, %v1692, 0
        %v2865 = vsel %vm1882, %v1693, 0
        %v2868 = vsel %vm1882, %v1694, 0
        %v2871 = vsel %vm1882, %v1695, 0
        %v2874 = vsel %vm1882, %v1696, 0
        %v2877 = vsel %vm1882, %v1697, 0
        %v2880 = vsel %vm1882, %v1698, 0
        %v2883 = vsel %vm1882, %v1699, 0
        %v2886 = vsel %vm1882, %v1700, 0
        %v2889 = vsel %vm1882, %v1701, 0
        %v2892 = vsel %vm1882, %v1702, 0
        %v2895 = vsel %vm1882, %v1703, 0
        %v2898 = vsel %vm1882, %v1704, 0
        %v2901 = vsel %vm1882, %v1705, 0
        %v2904 = vsel %vm1882, %v1706, 0
        %v2907 = vsel %vm1882, %v1707, 0
        %v2910 = vsel %vm1882, %v1708, 0
        %v2913 = vsel %vm1882, %v1709, 0
        %v2916 = vsel %vm1882, %v1710, 0
        %v2919 = vsel %vm1882, %v1711, 0
        %v2922 = vsel %vm1882, %v1712, 0
        %v2925 = vsel %vm1882, %v1713, 0
        %v2928 = vsel %vm1882, %v1714, 0
        %v2931 = vsel %vm1882, %v1715, 0
        %v2934 = vsel %vm1882, %v1716, 0
        %v2937 = vsel %vm1882, %v1717, 0
        %v2940 = vsel %vm1882, %v1718, 0
        %v2943 = vsel %vm1882, %v1719, 0
        %v2946 = vsel %vm1882, %v1720, 0
        %v2949 = vsel %vm1882, %v1721, 0
        %v2952 = vsel %vm1882, %v1722, 0
        %v2955 = vsel %vm1882, %v1723, 0
        %v2958 = vsel %vm1882, %v1724, 0
        %v2961 = vsel %vm1882, %v1725, 0
        %v2964 = vsel %vm1882, %v1726, 0
        %v2967 = vsel %vm1882, %v1727, 0
        %v2970 = vsel %vm1882, %v1728, 0
        %v2973 = vsel %vm1882, %v1729, 0
        %v2976 = vsel %vm1882, %v1730, 0
        %v2979 = vsel %vm1882, %v1731, 0
        %v2982 = vsel %vm1882, %v1732, 0
        %v2985 = vsel %vm1882, %v1733, 0
        %v2988 = vsel %vm1882, %v1734, 0
        %v2991 = vsel %vm1882, %v1735, 0
        %v2994 = vsel %vm1882, %v1736, 0
        %v2997 = vsel %vm1882, %v1737, 0
        %v3000 = vsel %vm1882, %v1738, 0
        %v3003 = vsel %vm1882, %v1739, 0
        %v3006 = vsel %vm1882, %v1740, 0
        %v3009 = vsel %vm1882, %v1741, 0
        %v3012 = vsel %vm1882, %v1742, 0
        %v3015 = vsel %vm1882, %v1743, 0
        %v3018 = vsel %vm1882, %v1744, 0
        %v3021 = vsel %vm1882, %v1745, 0
        %v3024 = vsel %vm1882, %v1746, 0
        %v3027 = vsel %vm1882, %v1747, 0
        %v3030 = vsel %vm1882, %v1748, 0
        %v3033 = vsel %vm1882, %v1749, 0
        %v3036 = vsel %vm1882, %v1750, 0
        %v3039 = vsel %vm1882, %v1751, 0
        %v3042 = vsel %vm1882, %v1752, 0
        %v3045 = vsel %vm1882, %v1753, 0
        %v3048 = vsel %vm1882, %v1754, 0
        %v3051 = vsel %vm1882, %v1755, 0
        %v3054 = vsel %vm1882, %v1756, 0
        %v3057 = vsel %vm1882, %v1757, 0
        %v3060 = vsel %vm1882, %v1758, 0
        %v3063 = vsel %vm1882, %v1759, 0
        %v3066 = vsel %vm1882, %v1760, 0
        %v3069 = vsel %vm1882, %v1761, 0
        %v3072 = vsel %vm1882, %v1762, 0
        %v3075 = vsel %vm1882, %v1763, 0
        %v3078 = vsel %vm1882, %v1764, 0
        %v3081 = vsel %vm1882, %v1765, 0
        %v3084 = vsel %vm1882, %v1766, 0
        %v3087 = vsel %vm1882, %v1767, 0
        %v3090 = vsel %vm1882, %v1768, 0
        %v3093 = vsel %vm1882, %v1769, 0
        %v3096 = vsel %vm1882, %v1770, 0
        %v3099 = vsel %vm1882, %v1771, 0
        %v3102 = vsel %vm1882, %v1772, 0
        %v3105 = vsel %vm1882, %v1773, 0
        %v3108 = vsel %vm1882, %v1774, 0
        %v3111 = vsel %vm1882, %v1775, 0
        %v3114 = vsel %vm1882, %v1776, 0
        %v3117 = vsel %vm1882, %v1777, 0
        %v3120 = vsel %vm1882, %v1778, 0
        %v3123 = vsel %vm1882, %v1779, 0
        %v3126 = vsel %vm1882, %v1780, 0
        %v3129 = vsel %vm1882, %v1781, 0
        %v3132 = vsel %vm1882, %v1782, 0
        %v3135 = vsel %vm1882, %v1783, 0
        %v3138 = vsel %vm1882, %v1784, 0
        %v3141 = vsel %vm1882, %v1785, 0
        %v3144 = vsel %vm1882, %v1786, 0
        %v3147 = vsel %vm1882, %v1787, 0
        %v3150 = vsel %vm1882, %v1788, 0
        %v3153 = vsel %vm1882, %v1789, 0
        %v3156 = vsel %vm1882, %v1790, 0
        %v3159 = vsel %vm1882, %v1791, 0
        %v3162 = vsel %vm1882, %v1792, 0
        %v3165 = vsel %vm1882, %v1793, 0
        %v3168 = vsel %vm1882, %v1794, 0
        %v3171 = vsel %vm1882, %v1795, 0
        %v3174 = vsel %vm1882, %v1796, 0
        %v3177 = vsel %vm1882, %v1797, 0
        %v3180 = vsel %vm1882, %v1798, 0
        %v3183 = vsel %vm1882, %v1799, 0
        %v3186 = vsel %vm1882, %v1800, 0
        %v3189 = vsel %vm1882, %v1801, 0
        %v3192 = vsel %vm1882, %v1802, 0
        %v3195 = vsel %vm1882, %v1803, 0
        %v3198 = vsel %vm1882, %v1804, 0
        %v3201 = vsel %vm1882, %v1805, 0
        %v3204 = vsel %vm1882, %v1806, 0
        %v3207 = vsel %vm1882, %v1807, 0
        %v3210 = vsel %vm1882, %v1808, 0
        %v3213 = vsel %vm1882, %v1809, 0
        %v3216 = vsel %vm1882, %v1810, 0
        %v3219 = vsel %vm1882, %v1811, 0
        %v3222 = vsel %vm1882, %v1812, 0
        %v3225 = vsel %vm1882, %v1813, 0
        %v3228 = vsel %vm1882, %v1814, 0
        %v3231 = vsel %vm1882, %v1815, 0
        %v3234 = vsel %vm1882, %v1816, 0
        %v3237 = vsel %vm1882, %v1817, 0
        %v3240 = vsel %vm1882, %v1818, 0
        %v3243 = vsel %vm1882, %v1819, 0
        %v3246 = vsel %vm1882, %v1820, 0
        %v3249 = vsel %vm1882, %v1821, 0
        %v3252 = vsel %vm1882, %v1822, 0
        %v3255 = vsel %vm1882, %v1823, 0
        %v3258 = vsel %vm1882, %v1824, 0
        %v3261 = vsel %vm1882, %v1825, 0
        %v3264 = vsel %vm1882, %v1826, 0
        %v3267 = vsel %vm1882, %v1827, 0
        %v3270 = vsel %vm1882, %v1828, 0
        %v3273 = vsel %vm1882, %v1829, 0
        %v3276 = vsel %vm1882, %v1830, 0
        %v3279 = vsel %vm1882, %v1831, 0
        %v3282 = vsel %vm1882, %v1832, 0
        %v3285 = vsel %vm1882, %v1833, 0
        %v3288 = vsel %vm1882, %v1834, 0
        %v3291 = vsel %vm1882, %v1835, 0
        %v3294 = vsel %vm1882, %v1836, 0
        %v3297 = vsel %vm1882, %v1837, 0
        %v3300 = vsel %vm1882, %v1838, 0
        %v3303 = vsel %vm1882, %v1839, 0
        %v3306 = vsel %vm1882, %v1840, 0
        %v3309 = vsel %vm1882, %v1841, 0
        %v3312 = vsel %vm1882, %v1842, 0
        %v3315 = vsel %vm1882, %v1843, 0
        %v3318 = vsel %vm1882, %v1844, 0
        %v3321 = vsel %vm1882, %v1845, 0
        %v3324 = vsel %vm1882, %v1846, 0
        %v3327 = vsel %vm1882, %v1847, 0
        %v3330 = vsel %vm1882, %v1848, 0
        %v3333 = vsel %vm1882, %v1849, 0
        %v3336 = vsel %vm1882, %v1850, 0
        %v3339 = vsel %vm1882, %v1851, 0
        %v3342 = vsel %vm1882, %v1852, 0
        %v3345 = vsel %vm1882, %v1853, 0
        %v3348 = vsel %vm1882, %v1854, 0
        %v3351 = vsel %vm1882, %v1855, 0
        %v3354 = vsel %vm1882, %v1856, 0
        %v3357 = vsel %vm1882, %v1857, 0
        %v3360 = vsel %vm1882, %v1858, 0
        %v3363 = vsel %vm1882, %v1859, 0
        %v3366 = vsel %vm1882, %v1860, 0
        %v3369 = vsel %vm1882, %v1861, 0
        %v3372 = vsel %vm1882, %v1862, 0
        %v3375 = vsel %vm1882, %v1863, 0
        %v3378 = vsel %vm1882, %v1864, 0
        %v3381 = vsel %vm1882, %v1865, 0
        %v3384 = vsel %vm1882, %v1866, 0
        %v3387 = vsel %vm1882, %v1867, 0
        %v3390 = vsel %vm1882, %v1868, 0
        %v3393 = vsel %vm1882, %v1869, 0
        %v3396 = vsel %vm1882, %v1870, 0
        %v3399 = vsel %vm1882, %v1871, 0
        %v3402 = vsel %vm1882, %v1872, 0
        %v3405 = vsel %vm1882, %v1873, 0
        %v3408 = vsel %vm1882, %v1874, 0
        %v3411 = vsel %vm1882, %v1875, 0
        %v3414 = vsel %vm1882, %v1876, 0
        %v3417 = vsel %vm1882, %v1877, 0
        %3419 = vmatpush.bf16.msra.mxu0 0
        %3420 = vmatpush.bf16.msra.mxu0 0
        %3421 = vmatpush.bf16.msra.mxu0 0
        %3422 = vmatpush.bf16.msra.mxu0 0
        %3423 = vmatpush.bf16.msra.mxu0 0
        %3424 = vmatpush.bf16.msra.mxu0 0
        %3425 = vmatpush.bf16.msra.mxu0 0
        %3426 = vmatpush.bf16.msra.mxu0 %v1884
        %3427 = vmatmul.bf16.gmra.mxu0 %v1880
        %v3428 = vpop.f32.mrf.mxu0
        %v3429 = vadd.f32 %v596, %v3428
        %v3430 = vpop.f32.mrf.mxu0
        %3431 = vdwg.mxu0
        %3432 = vmatpush.bf16.msra.mxu0 0
        %3433 = vmatpush.bf16.msra.mxu0 0
        %3434 = vmatpush.bf16.msra.mxu0 0
        %3435 = vmatpush.bf16.msra.mxu0 0
        %3436 = vmatpush.bf16.msra.mxu0 0
        %3437 = vmatpush.bf16.msra.mxu0 0
        %3438 = vmatpush.bf16.msra.mxu0 0
        %3439 = vmatpush.bf16.msra.mxu0 %v1887
        %3440 = vmatmul.bf16.gmra.mxu0 %v1880
        %v3441 = vpop.f32.mrf.mxu0
        %v3442 = vadd.f32 %v596, %v3441
        %v3443 = vpop.f32.mrf.mxu0
        %3444 = vdwg.mxu0
        %3445 = vmatpush.bf16.msra.mxu0 0
        %3446 = vmatpush.bf16.msra.mxu0 0
        %3447 = vmatpush.bf16.msra.mxu0 0
        %3448 = vmatpush.bf16.msra.mxu0 0
        %3449 = vmatpush.bf16.msra.mxu0 0
        %3450 = vmatpush.bf16.msra.mxu0 0
        %3451 = vmatpush.bf16.msra.mxu0 0
        %3452 = vmatpush.bf16.msra.mxu0 %v1890
        %3453 = vmatmul.bf16.gmra.mxu0 %v1880
        %v3454 = vpop.f32.mrf.mxu0
        %v3455 = vadd.f32 %v596, %v3454
        %v3456 = vpop.f32.mrf.mxu0
        %3457 = vdwg.mxu0
        %3458 = vmatpush.bf16.msra.mxu0 0
        %3459 = vmatpush.bf16.msra.mxu0 0
        %3460 = vmatpush.bf16.msra.mxu0 0
        %3461 = vmatpush.bf16.msra.mxu0 0
        %3462 = vmatpush.bf16.msra.mxu0 0
        %3463 = vmatpush.bf16.msra.mxu0 0
        %3464 = vmatpush.bf16.msra.mxu0 0
        %3465 = vmatpush.bf16.msra.mxu0 %v1893
        %3466 = vmatmul.bf16.gmra.mxu0 %v1880
        %v3467 = vpop.f32.mrf.mxu0
        %v3468 = vadd.f32 %v596, %v3467
        %v3469 = vpop.f32.mrf.mxu0
        %3470 = vdwg.mxu0
        %3471 = vmatpush.bf16.msra.mxu0 0
        %3472 = vmatpush.bf16.msra.mxu0 0
        %3473 = vmatpush.bf16.msra.mxu0 0
        %3474 = vmatpush.bf16.msra.mxu0 0
        %3475 = vmatpush.bf16.msra.mxu0 0
        %3476 = vmatpush.bf16.msra.mxu0 0
        %3477 = vmatpush.bf16.msra.mxu0 0
        %3478 = vmatpush.bf16.msra.mxu0 %v1896
        %3479 = vmatmul.bf16.gmra.mxu0 %v1880
        %v3480 = vpop.f32.mrf.mxu0
        %v3481 = vadd.f32 %v596, %v3480
        %v3482 = vpop.f32.mrf.mxu0
        %3483 = vdwg.mxu0
        %3484 = vmatpush.bf16.msra.mxu0 0
        %3485 = vmatpush.bf16.msra.mxu0 0
        %3486 = vmatpush.bf16.msra.mxu0 0
        %3487 = vmatpush.bf16.msra.mxu0 0
        %3488 = vmatpush.bf16.msra.mxu0 0
        %3489 = vmatpush.bf16.msra.mxu0 0
        %3490 = vmatpush.bf16.msra.mxu0 0
        %3491 = vmatpush.bf16.msra.mxu0 %v1899
        %3492 = vmatmul.bf16.gmra.mxu0 %v1880
        %v3493 = vpop.f32.mrf.mxu0
        %v3494 = vadd.f32 %v596, %v3493
        %v3495 = vpop.f32.mrf.mxu0
        %3496 = vdwg.mxu0
        %3497 = vmatpush.bf16.msra.mxu0 0
        %3498 = vmatpush.bf16.msra.mxu0 0
        %3499 = vmatpush.bf16.msra.mxu0 0
        %3500 = vmatpush.bf16.msra.mxu0 0
        %3501 = vmatpush.bf16.msra.mxu0 0
        %3502 = vmatpush.bf16.msra.mxu0 0
        %3503 = vmatpush.bf16.msra.mxu0 0
        %3504 = vmatpush.bf16.msra.mxu0 %v1902
        %3505 = vmatmul.bf16.gmra.mxu0 %v1880
        %v3506 = vpop.f32.mrf.mxu0
        %v3507 = vadd.f32 %v596, %v3506
        %v3508 = vpop.f32.mrf.mxu0
        %3509 = vdwg.mxu0
        %3510 = vmatpush.bf16.msra.mxu0 0
        %3511 = vmatpush.bf16.msra.mxu0 0
        %3512 = vmatpush.bf16.msra.mxu0 0
        %3513 = vmatpush.bf16.msra.mxu0 0
        %3514 = vmatpush.bf16.msra.mxu0 0
        %3515 = vmatpush.bf16.msra.mxu0 0
        %3516 = vmatpush.bf16.msra.mxu0 0
        %3517 = vmatpush.bf16.msra.mxu0 %v1905
        %3518 = vmatmul.bf16.gmra.mxu0 %v1880
        %v3519 = vpop.f32.mrf.mxu0
        %v3520 = vadd.f32 %v596, %v3519
        %v3521 = vpop.f32.mrf.mxu0
        %3522 = vdwg.mxu0
        %3523 = vmatpush.bf16.msra.mxu0 0
        %3524 = vmatpush.bf16.msra.mxu0 0
        %3525 = vmatpush.bf16.msra.mxu0 0
        %3526 = vmatpush.bf16.msra.mxu0 0
        %3527 = vmatpush.bf16.msra.mxu0 0
        %3528 = vmatpush.bf16.msra.mxu0 0
        %3529 = vmatpush.bf16.msra.mxu0 0
        %3530 = vmatpush.bf16.msra.mxu0 %v1908
        %3531 = vmatmul.bf16.gmra.mxu0 %v1880
        %v3532 = vpop.f32.mrf.mxu0
        %v3533 = vadd.f32 %v596, %v3532
        %v3534 = vpop.f32.mrf.mxu0
        %3535 = vdwg.mxu0
        %3536 = vmatpush.bf16.msra.mxu0 0
        %3537 = vmatpush.bf16.msra.mxu0 0
        %3538 = vmatpush.bf16.msra.mxu0 0
        %3539 = vmatpush.bf16.msra.mxu0 0
        %3540 = vmatpush.bf16.msra.mxu0 0
        %3541 = vmatpush.bf16.msra.mxu0 0
        %3542 = vmatpush.bf16.msra.mxu0 0
        %3543 = vmatpush.bf16.msra.mxu0 %v1911
        %3544 = vmatmul.bf16.gmra.mxu0 %v1880
        %v3545 = vpop.f32.mrf.mxu0
        %v3546 = vadd.f32 %v596, %v3545
        %v3547 = vpop.f32.mrf.mxu0
        %3548 = vdwg.mxu0
        %3549 = vmatpush.bf16.msra.mxu0 0
        %3550 = vmatpush.bf16.msra.mxu0 0
        %3551 = vmatpush.bf16.msra.mxu0 0
        %3552 = vmatpush.bf16.msra.mxu0 0
        %3553 = vmatpush.bf16.msra.mxu0 0
        %3554 = vmatpush.bf16.msra.mxu0 0
        %3555 = vmatpush.bf16.msra.mxu0 0
        %3556 = vmatpush.bf16.msra.mxu0 %v1914
        %3557 = vmatmul.bf16.gmra.mxu0 %v1880
        %v3558 = vpop.f32.mrf.mxu0
        %v3559 = vadd.f32 %v596, %v3558
        %v3560 = vpop.f32.mrf.mxu0
        %3561 = vdwg.mxu0
        %3562 = vmatpush.bf16.msra.mxu0 0
        %3563 = vmatpush.bf16.msra.mxu0 0
        %3564 = vmatpush.bf16.msra.mxu0 0
        %3565 = vmatpush.bf16.msra.mxu0 0
        %3566 = vmatpush.bf16.msra.mxu0 0
        %3567 = vmatpush.bf16.msra.mxu0 0
        %3568 = vmatpush.bf16.msra.mxu0 0
        %3569 = vmatpush.bf16.msra.mxu0 %v1917
        %3570 = vmatmul.bf16.gmra.mxu0 %v1880
        %v3571 = vpop.f32.mrf.mxu0
        %v3572 = vadd.f32 %v596, %v3571
        %v3573 = vpop.f32.mrf.mxu0
        %3574 = vdwg.mxu0
        %3575 = vmatpush.bf16.msra.mxu0 0
        %3576 = vmatpush.bf16.msra.mxu0 0
        %3577 = vmatpush.bf16.msra.mxu0 0
        %3578 = vmatpush.bf16.msra.mxu0 0
        %3579 = vmatpush.bf16.msra.mxu0 0
        %3580 = vmatpush.bf16.msra.mxu0 0
        %3581 = vmatpush.bf16.msra.mxu0 0
        %3582 = vmatpush.bf16.msra.mxu0 %v1920
        %3583 = vmatmul.bf16.gmra.mxu0 %v1880
        %v3584 = vpop.f32.mrf.mxu0
        %v3585 = vadd.f32 %v596, %v3584
        %v3586 = vpop.f32.mrf.mxu0
        %3587 = vdwg.mxu0
        %3588 = vmatpush.bf16.msra.mxu0 0
        %3589 = vmatpush.bf16.msra.mxu0 0
        %3590 = vmatpush.bf16.msra.mxu0 0
        %3591 = vmatpush.bf16.msra.mxu0 0
        %3592 = vmatpush.bf16.msra.mxu0 0
        %3593 = vmatpush.bf16.msra.mxu0 0
        %3594 = vmatpush.bf16.msra.mxu0 0
        %3595 = vmatpush.bf16.msra.mxu0 %v1923
        %3596 = vmatmul.bf16.gmra.mxu0 %v1880
        %v3597 = vpop.f32.mrf.mxu0
        %v3598 = vadd.f32 %v596, %v3597
        %v3599 = vpop.f32.mrf.mxu0
        %3600 = vdwg.mxu0
        %3601 = vmatpush.bf16.msra.mxu0 0
        %3602 = vmatpush.bf16.msra.mxu0 0
        %3603 = vmatpush.bf16.msra.mxu0 0
        %3604 = vmatpush.bf16.msra.mxu0 0
        %3605 = vmatpush.bf16.msra.mxu0 0
        %3606 = vmatpush.bf16.msra.mxu0 0
        %3607 = vmatpush.bf16.msra.mxu0 0
        %3608 = vmatpush.bf16.msra.mxu0 %v1926
        %3609 = vmatmul.bf16.gmra.mxu0 %v1880
        %v3610 = vpop.f32.mrf.mxu0
        %v3611 = vadd.f32 %v596, %v3610
        %v3612 = vpop.f32.mrf.mxu0
        %3613 = vdwg.mxu0
        %3614 = vmatpush.bf16.msra.mxu0 0
        %3615 = vmatpush.bf16.msra.mxu0 0
        %3616 = vmatpush.bf16.msra.mxu0 0
        %3617 = vmatpush.bf16.msra.mxu0 0
        %3618 = vmatpush.bf16.msra.mxu0 0
        %3619 = vmatpush.bf16.msra.mxu0 0
        %3620 = vmatpush.bf16.msra.mxu0 0
        %3621 = vmatpush.bf16.msra.mxu0 %v1929
        %3622 = vmatmul.bf16.gmra.mxu0 %v1880
        %v3623 = vpop.f32.mrf.mxu0
        %v3624 = vadd.f32 %v596, %v3623
        %v3625 = vpop.f32.mrf.mxu0
        %3626 = vdwg.mxu0
        %3627 = vmatpush.bf16.msra.mxu0 0
        %3628 = vmatpush.bf16.msra.mxu0 0
        %3629 = vmatpush.bf16.msra.mxu0 0
        %3630 = vmatpush.bf16.msra.mxu0 0
        %3631 = vmatpush.bf16.msra.mxu0 0
        %3632 = vmatpush.bf16.msra.mxu0 0
        %3633 = vmatpush.bf16.msra.mxu0 0
        %3634 = vmatpush.bf16.msra.mxu0 %v1932
        %3635 = vmatmul.bf16.gmra.mxu0 %v1880
        %v3636 = vpop.f32.mrf.mxu0
        %v3637 = vadd.f32 %v596, %v3636
        %v3638 = vpop.f32.mrf.mxu0
        %3639 = vdwg.mxu0
        %3640 = vmatpush.bf16.msra.mxu0 0
        %3641 = vmatpush.bf16.msra.mxu0 0
        %3642 = vmatpush.bf16.msra.mxu0 0
        %3643 = vmatpush.bf16.msra.mxu0 0
        %3644 = vmatpush.bf16.msra.mxu0 0
        %3645 = vmatpush.bf16.msra.mxu0 0
        %3646 = vmatpush.bf16.msra.mxu0 0
        %3647 = vmatpush.bf16.msra.mxu0 %v1935
        %3648 = vmatmul.bf16.gmra.mxu0 %v1880
        %v3649 = vpop.f32.mrf.mxu0
        %v3650 = vadd.f32 %v596, %v3649
        %v3651 = vpop.f32.mrf.mxu0
        %3652 = vdwg.mxu0
        %3653 = vmatpush.bf16.msra.mxu0 0
        %3654 = vmatpush.bf16.msra.mxu0 0
        %3655 = vmatpush.bf16.msra.mxu0 0
        %3656 = vmatpush.bf16.msra.mxu0 0
        %3657 = vmatpush.bf16.msra.mxu0 0
        %3658 = vmatpush.bf16.msra.mxu0 0
        %3659 = vmatpush.bf16.msra.mxu0 0
        %3660 = vmatpush.bf16.msra.mxu0 %v1938
        %3661 = vmatmul.bf16.gmra.mxu0 %v1880
        %v3662 = vpop.f32.mrf.mxu0
        %v3663 = vadd.f32 %v596, %v3662
        %v3664 = vpop.f32.mrf.mxu0
        %3665 = vdwg.mxu0
        %3666 = vmatpush.bf16.msra.mxu0 0
        %3667 = vmatpush.bf16.msra.mxu0 0
        %3668 = vmatpush.bf16.msra.mxu0 0
        %3669 = vmatpush.bf16.msra.mxu0 0
        %3670 = vmatpush.bf16.msra.mxu0 0
        %3671 = vmatpush.bf16.msra.mxu0 0
        %3672 = vmatpush.bf16.msra.mxu0 0
        %3673 = vmatpush.bf16.msra.mxu0 %v1941
        %3674 = vmatmul.bf16.gmra.mxu0 %v1880
        %v3675 = vpop.f32.mrf.mxu0
        %v3676 = vadd.f32 %v596, %v3675
        %v3677 = vpop.f32.mrf.mxu0
        %3678 = vdwg.mxu0
        %3679 = vmatpush.bf16.msra.mxu0 0
        %3680 = vmatpush.bf16.msra.mxu0 0
        %3681 = vmatpush.bf16.msra.mxu0 0
        %3682 = vmatpush.bf16.msra.mxu0 0
        %3683 = vmatpush.bf16.msra.mxu0 0
        %3684 = vmatpush.bf16.msra.mxu0 0
        %3685 = vmatpush.bf16.msra.mxu0 0
        %3686 = vmatpush.bf16.msra.mxu0 %v1944
        %3687 = vmatmul.bf16.gmra.mxu0 %v1880
        %v3688 = vpop.f32.mrf.mxu0
        %v3689 = vadd.f32 %v596, %v3688
        %v3690 = vpop.f32.mrf.mxu0
        %3691 = vdwg.mxu0
        %3692 = vmatpush.bf16.msra.mxu0 0
        %3693 = vmatpush.bf16.msra.mxu0 0
        %3694 = vmatpush.bf16.msra.mxu0 0
        %3695 = vmatpush.bf16.msra.mxu0 0
        %3696 = vmatpush.bf16.msra.mxu0 0
        %3697 = vmatpush.bf16.msra.mxu0 0
        %3698 = vmatpush.bf16.msra.mxu0 0
        %3699 = vmatpush.bf16.msra.mxu0 %v1947
        %3700 = vmatmul.bf16.gmra.mxu0 %v1880
        %v3701 = vpop.f32.mrf.mxu0
        %v3702 = vadd.f32 %v596, %v3701
        %v3703 = vpop.f32.mrf.mxu0
        %3704 = vdwg.mxu0
        %3705 = vmatpush.bf16.msra.mxu0 0
        %3706 = vmatpush.bf16.msra.mxu0 0
        %3707 = vmatpush.bf16.msra.mxu0 0
        %3708 = vmatpush.bf16.msra.mxu0 0
        %3709 = vmatpush.bf16.msra.mxu0 0
        %3710 = vmatpush.bf16.msra.mxu0 0
        %3711 = vmatpush.bf16.msra.mxu0 0
        %3712 = vmatpush.bf16.msra.mxu0 %v1950
        %3713 = vmatmul.bf16.gmra.mxu0 %v1880
        %v3714 = vpop.f32.mrf.mxu0
        %v3715 = vadd.f32 %v596, %v3714
        %v3716 = vpop.f32.mrf.mxu0
        %3717 = vdwg.mxu0
        %3718 = vmatpush.bf16.msra.mxu0 0
        %3719 = vmatpush.bf16.msra.mxu0 0
        %3720 = vmatpush.bf16.msra.mxu0 0
        %3721 = vmatpush.bf16.msra.mxu0 0
        %3722 = vmatpush.bf16.msra.mxu0 0
        %3723 = vmatpush.bf16.msra.mxu0 0
        %3724 = vmatpush.bf16.msra.mxu0 0
        %3725 = vmatpush.bf16.msra.mxu0 %v1953
        %3726 = vmatmul.bf16.gmra.mxu0 %v1880
        %v3727 = vpop.f32.mrf.mxu0
        %v3728 = vadd.f32 %v596, %v3727
        %v3729 = vpop.f32.mrf.mxu0
        %3730 = vdwg.mxu0
        %3731 = vmatpush.bf16.msra.mxu0 0
        %3732 = vmatpush.bf16.msra.mxu0 0
        %3733 = vmatpush.bf16.msra.mxu0 0
        %3734 = vmatpush.bf16.msra.mxu0 0
        %3735 = vmatpush.bf16.msra.mxu0 0
        %3736 = vmatpush.bf16.msra.mxu0 0
        %3737 = vmatpush.bf16.msra.mxu0 0
        %3738 = vmatpush.bf16.msra.mxu0 %v1956
        %3739 = vmatmul.bf16.gmra.mxu0 %v1880
        %v3740 = vpop.f32.mrf.mxu0
        %v3741 = vadd.f32 %v596, %v3740
        %v3742 = vpop.f32.mrf.mxu0
        %3743 = vdwg.mxu0
        %3744 = vmatpush.bf16.msra.mxu0 0
        %3745 = vmatpush.bf16.msra.mxu0 0
        %3746 = vmatpush.bf16.msra.mxu0 0
        %3747 = vmatpush.bf16.msra.mxu0 0
        %3748 = vmatpush.bf16.msra.mxu0 0
        %3749 = vmatpush.bf16.msra.mxu0 0
        %3750 = vmatpush.bf16.msra.mxu0 0
        %3751 = vmatpush.bf16.msra.mxu0 %v1959
        %3752 = vmatmul.bf16.gmra.mxu0 %v1880
        %v3753 = vpop.f32.mrf.mxu0
        %v3754 = vadd.f32 %v596, %v3753
        %v3755 = vpop.f32.mrf.mxu0
        %3756 = vdwg.mxu0
        %3757 = vmatpush.bf16.msra.mxu0 0
        %3758 = vmatpush.bf16.msra.mxu0 0
        %3759 = vmatpush.bf16.msra.mxu0 0
        %3760 = vmatpush.bf16.msra.mxu0 0
        %3761 = vmatpush.bf16.msra.mxu0 0
        %3762 = vmatpush.bf16.msra.mxu0 0
        %3763 = vmatpush.bf16.msra.mxu0 0
        %3764 = vmatpush.bf16.msra.mxu0 %v1962
        %3765 = vmatmul.bf16.gmra.mxu0 %v1880
        %v3766 = vpop.f32.mrf.mxu0
        %v3767 = vadd.f32 %v596, %v3766
        %v3768 = vpop.f32.mrf.mxu0
        %3769 = vdwg.mxu0
        %3770 = vmatpush.bf16.msra.mxu0 0
        %3771 = vmatpush.bf16.msra.mxu0 0
        %3772 = vmatpush.bf16.msra.mxu0 0
        %3773 = vmatpush.bf16.msra.mxu0 0
        %3774 = vmatpush.bf16.msra.mxu0 0
        %3775 = vmatpush.bf16.msra.mxu0 0
        %3776 = vmatpush.bf16.msra.mxu0 0
        %3777 = vmatpush.bf16.msra.mxu0 %v1965
        %3778 = vmatmul.bf16.gmra.mxu0 %v1880
        %v3779 = vpop.f32.mrf.mxu0
        %v3780 = vadd.f32 %v596, %v3779
        %v3781 = vpop.f32.mrf.mxu0
        %3782 = vdwg.mxu0
        %3783 = vmatpush.bf16.msra.mxu0 0
        %3784 = vmatpush.bf16.msra.mxu0 0
        %3785 = vmatpush.bf16.msra.mxu0 0
        %3786 = vmatpush.bf16.msra.mxu0 0
        %3787 = vmatpush.bf16.msra.mxu0 0
        %3788 = vmatpush.bf16.msra.mxu0 0
        %3789 = vmatpush.bf16.msra.mxu0 0
        %3790 = vmatpush.bf16.msra.mxu0 %v1968
        %3791 = vmatmul.bf16.gmra.mxu0 %v1880
        %v3792 = vpop.f32.mrf.mxu0
        %v3793 = vadd.f32 %v596, %v3792
        %v3794 = vpop.f32.mrf.mxu0
        %3795 = vdwg.mxu0
        %3796 = vmatpush.bf16.msra.mxu0 0
        %3797 = vmatpush.bf16.msra.mxu0 0
        %3798 = vmatpush.bf16.msra.mxu0 0
        %3799 = vmatpush.bf16.msra.mxu0 0
        %3800 = vmatpush.bf16.msra.mxu0 0
        %3801 = vmatpush.bf16.msra.mxu0 0
        %3802 = vmatpush.bf16.msra.mxu0 0
        %3803 = vmatpush.bf16.msra.mxu0 %v1971
        %3804 = vmatmul.bf16.gmra.mxu0 %v1880
        %v3805 = vpop.f32.mrf.mxu0
        %v3806 = vadd.f32 %v596, %v3805
        %v3807 = vpop.f32.mrf.mxu0
        %3808 = vdwg.mxu0
        %3809 = vmatpush.bf16.msra.mxu0 0
        %3810 = vmatpush.bf16.msra.mxu0 0
        %3811 = vmatpush.bf16.msra.mxu0 0
        %3812 = vmatpush.bf16.msra.mxu0 0
        %3813 = vmatpush.bf16.msra.mxu0 0
        %3814 = vmatpush.bf16.msra.mxu0 0
        %3815 = vmatpush.bf16.msra.mxu0 0
        %3816 = vmatpush.bf16.msra.mxu0 %v1974
        %3817 = vmatmul.bf16.gmra.mxu0 %v1880
        %v3818 = vpop.f32.mrf.mxu0
        %v3819 = vadd.f32 %v596, %v3818
        %v3820 = vpop.f32.mrf.mxu0
        %3821 = vdwg.mxu0
        %3822 = vmatpush.bf16.msra.mxu0 0
        %3823 = vmatpush.bf16.msra.mxu0 0
        %3824 = vmatpush.bf16.msra.mxu0 0
        %3825 = vmatpush.bf16.msra.mxu0 0
        %3826 = vmatpush.bf16.msra.mxu0 0
        %3827 = vmatpush.bf16.msra.mxu0 0
        %3828 = vmatpush.bf16.msra.mxu0 0
        %3829 = vmatpush.bf16.msra.mxu0 %v1977
        %3830 = vmatmul.bf16.gmra.mxu0 %v1880
        %v3831 = vpop.f32.mrf.mxu0
        %v3832 = vadd.f32 %v596, %v3831
        %v3833 = vpop.f32.mrf.mxu0
        %3834 = vdwg.mxu0
        %3835 = vmatpush.bf16.msra.mxu0 0
        %3836 = vmatpush.bf16.msra.mxu0 0
        %3837 = vmatpush.bf16.msra.mxu0 0
        %3838 = vmatpush.bf16.msra.mxu0 0
        %3839 = vmatpush.bf16.msra.mxu0 0
        %3840 = vmatpush.bf16.msra.mxu0 0
        %3841 = vmatpush.bf16.msra.mxu0 0
        %3842 = vmatpush.bf16.msra.mxu0 %v1980
        %3843 = vmatmul.bf16.gmra.mxu0 %v1880
        %v3844 = vpop.f32.mrf.mxu0
        %v3845 = vadd.f32 %v596, %v3844
        %v3846 = vpop.f32.mrf.mxu0
        %3847 = vdwg.mxu0
        %3848 = vmatpush.bf16.msra.mxu0 0
        %3849 = vmatpush.bf16.msra.mxu0 0
        %3850 = vmatpush.bf16.msra.mxu0 0
        %3851 = vmatpush.bf16.msra.mxu0 0
        %3852 = vmatpush.bf16.msra.mxu0 0
        %3853 = vmatpush.bf16.msra.mxu0 0
        %3854 = vmatpush.bf16.msra.mxu0 0
        %3855 = vmatpush.bf16.msra.mxu0 %v1983
        %3856 = vmatmul.bf16.gmra.mxu0 %v1880
        %v3857 = vpop.f32.mrf.mxu0
        %v3858 = vadd.f32 %v596, %v3857
        %v3859 = vpop.f32.mrf.mxu0
        %3860 = vdwg.mxu0
        %3861 = vmatpush.bf16.msra.mxu0 0
        %3862 = vmatpush.bf16.msra.mxu0 0
        %3863 = vmatpush.bf16.msra.mxu0 0
        %3864 = vmatpush.bf16.msra.mxu0 0
        %3865 = vmatpush.bf16.msra.mxu0 0
        %3866 = vmatpush.bf16.msra.mxu0 0
        %3867 = vmatpush.bf16.msra.mxu0 0
        %3868 = vmatpush.bf16.msra.mxu0 %v1986
        %3869 = vmatmul.bf16.gmra.mxu0 %v1880
        %v3870 = vpop.f32.mrf.mxu0
        %v3871 = vadd.f32 %v596, %v3870
        %v3872 = vpop.f32.mrf.mxu0
        %3873 = vdwg.mxu0
        %3874 = vmatpush.bf16.msra.mxu0 0
        %3875 = vmatpush.bf16.msra.mxu0 0
        %3876 = vmatpush.bf16.msra.mxu0 0
        %3877 = vmatpush.bf16.msra.mxu0 0
        %3878 = vmatpush.bf16.msra.mxu0 0
        %3879 = vmatpush.bf16.msra.mxu0 0
        %3880 = vmatpush.bf16.msra.mxu0 0
        %3881 = vmatpush.bf16.msra.mxu0 %v1989
        %3882 = vmatmul.bf16.gmra.mxu0 %v1880
        %v3883 = vpop.f32.mrf.mxu0
        %v3884 = vadd.f32 %v596, %v3883
        %v3885 = vpop.f32.mrf.mxu0
        %3886 = vdwg.mxu0
        %3887 = vmatpush.bf16.msra.mxu0 0
        %3888 = vmatpush.bf16.msra.mxu0 0
        %3889 = vmatpush.bf16.msra.mxu0 0
        %3890 = vmatpush.bf16.msra.mxu0 0
        %3891 = vmatpush.bf16.msra.mxu0 0
        %3892 = vmatpush.bf16.msra.mxu0 0
        %3893 = vmatpush.bf16.msra.mxu0 0
        %3894 = vmatpush.bf16.msra.mxu0 %v1992
        %3895 = vmatmul.bf16.gmra.mxu0 %v1880
        %v3896 = vpop.f32.mrf.mxu0
        %v3897 = vadd.f32 %v596, %v3896
        %v3898 = vpop.f32.mrf.mxu0
        %3899 = vdwg.mxu0
        %3900 = vmatpush.bf16.msra.mxu0 0
        %3901 = vmatpush.bf16.msra.mxu0 0
        %3902 = vmatpush.bf16.msra.mxu0 0
        %3903 = vmatpush.bf16.msra.mxu0 0
        %3904 = vmatpush.bf16.msra.mxu0 0
        %3905 = vmatpush.bf16.msra.mxu0 0
        %3906 = vmatpush.bf16.msra.mxu0 0
        %3907 = vmatpush.bf16.msra.mxu0 %v1995
        %3908 = vmatmul.bf16.gmra.mxu0 %v1880
        %v3909 = vpop.f32.mrf.mxu0
        %v3910 = vadd.f32 %v596, %v3909
        %v3911 = vpop.f32.mrf.mxu0
        %3912 = vdwg.mxu0
        %3913 = vmatpush.bf16.msra.mxu0 0
        %3914 = vmatpush.bf16.msra.mxu0 0
        %3915 = vmatpush.bf16.msra.mxu0 0
        %3916 = vmatpush.bf16.msra.mxu0 0
        %3917 = vmatpush.bf16.msra.mxu0 0
        %3918 = vmatpush.bf16.msra.mxu0 0
        %3919 = vmatpush.bf16.msra.mxu0 0
        %3920 = vmatpush.bf16.msra.mxu0 %v1998
        %3921 = vmatmul.bf16.gmra.mxu0 %v1880
        %v3922 = vpop.f32.mrf.mxu0
        %v3923 = vadd.f32 %v596, %v3922
        %v3924 = vpop.f32.mrf.mxu0
        %3925 = vdwg.mxu0
        %3926 = vmatpush.bf16.msra.mxu0 0
        %3927 = vmatpush.bf16.msra.mxu0 0
        %3928 = vmatpush.bf16.msra.mxu0 0
        %3929 = vmatpush.bf16.msra.mxu0 0
        %3930 = vmatpush.bf16.msra.mxu0 0
        %3931 = vmatpush.bf16.msra.mxu0 0
        %3932 = vmatpush.bf16.msra.mxu0 0
        %3933 = vmatpush.bf16.msra.mxu0 %v2001
        %3934 = vmatmul.bf16.gmra.mxu0 %v1880
        %v3935 = vpop.f32.mrf.mxu0
        %v3936 = vadd.f32 %v596, %v3935
        %v3937 = vpop.f32.mrf.mxu0
        %3938 = vdwg.mxu0
        %3939 = vmatpush.bf16.msra.mxu0 0
        %3940 = vmatpush.bf16.msra.mxu0 0
        %3941 = vmatpush.bf16.msra.mxu0 0
        %3942 = vmatpush.bf16.msra.mxu0 0
        %3943 = vmatpush.bf16.msra.mxu0 0
        %3944 = vmatpush.bf16.msra.mxu0 0
        %3945 = vmatpush.bf16.msra.mxu0 0
        %3946 = vmatpush.bf16.msra.mxu0 %v2004
        %3947 = vmatmul.bf16.gmra.mxu0 %v1880
        %v3948 = vpop.f32.mrf.mxu0
        %v3949 = vadd.f32 %v596, %v3948
        %v3950 = vpop.f32.mrf.mxu0
        %3951 = vdwg.mxu0
        %3952 = vmatpush.bf16.msra.mxu0 0
        %3953 = vmatpush.bf16.msra.mxu0 0
        %3954 = vmatpush.bf16.msra.mxu0 0
        %3955 = vmatpush.bf16.msra.mxu0 0
        %3956 = vmatpush.bf16.msra.mxu0 0
        %3957 = vmatpush.bf16.msra.mxu0 0
        %3958 = vmatpush.bf16.msra.mxu0 0
        %3959 = vmatpush.bf16.msra.mxu0 %v2007
        %3960 = vmatmul.bf16.gmra.mxu0 %v1880
        %v3961 = vpop.f32.mrf.mxu0
        %v3962 = vadd.f32 %v596, %v3961
        %v3963 = vpop.f32.mrf.mxu0
        %3964 = vdwg.mxu0
        %3965 = vmatpush.bf16.msra.mxu0 0
        %3966 = vmatpush.bf16.msra.mxu0 0
        %3967 = vmatpush.bf16.msra.mxu0 0
        %3968 = vmatpush.bf16.msra.mxu0 0
        %3969 = vmatpush.bf16.msra.mxu0 0
        %3970 = vmatpush.bf16.msra.mxu0 0
        %3971 = vmatpush.bf16.msra.mxu0 0
        %3972 = vmatpush.bf16.msra.mxu0 %v2010
        %3973 = vmatmul.bf16.gmra.mxu0 %v1880
        %v3974 = vpop.f32.mrf.mxu0
        %v3975 = vadd.f32 %v596, %v3974
        %v3976 = vpop.f32.mrf.mxu0
        %3977 = vdwg.mxu0
        %3978 = vmatpush.bf16.msra.mxu0 0
        %3979 = vmatpush.bf16.msra.mxu0 0
        %3980 = vmatpush.bf16.msra.mxu0 0
        %3981 = vmatpush.bf16.msra.mxu0 0
        %3982 = vmatpush.bf16.msra.mxu0 0
        %3983 = vmatpush.bf16.msra.mxu0 0
        %3984 = vmatpush.bf16.msra.mxu0 0
        %3985 = vmatpush.bf16.msra.mxu0 %v2013
        %3986 = vmatmul.bf16.gmra.mxu0 %v1880
        %v3987 = vpop.f32.mrf.mxu0
        %v3988 = vadd.f32 %v596, %v3987
        %v3989 = vpop.f32.mrf.mxu0
        %3990 = vdwg.mxu0
        %3991 = vmatpush.bf16.msra.mxu0 0
        %3992 = vmatpush.bf16.msra.mxu0 0
        %3993 = vmatpush.bf16.msra.mxu0 0
        %3994 = vmatpush.bf16.msra.mxu0 0
        %3995 = vmatpush.bf16.msra.mxu0 0
        %3996 = vmatpush.bf16.msra.mxu0 0
        %3997 = vmatpush.bf16.msra.mxu0 0
        %3998 = vmatpush.bf16.msra.mxu0 %v2016
        %3999 = vmatmul.bf16.gmra.mxu0 %v1880
        %v4000 = vpop.f32.mrf.mxu0
        %v4001 = vadd.f32 %v596, %v4000
        %v4002 = vpop.f32.mrf.mxu0
        %4003 = vdwg.mxu0
        %4004 = vmatpush.bf16.msra.mxu0 0
        %4005 = vmatpush.bf16.msra.mxu0 0
        %4006 = vmatpush.bf16.msra.mxu0 0
        %4007 = vmatpush.bf16.msra.mxu0 0
        %4008 = vmatpush.bf16.msra.mxu0 0
        %4009 = vmatpush.bf16.msra.mxu0 0
        %4010 = vmatpush.bf16.msra.mxu0 0
        %4011 = vmatpush.bf16.msra.mxu0 %v2019
        %4012 = vmatmul.bf16.gmra.mxu0 %v1880
        %v4013 = vpop.f32.mrf.mxu0
        %v4014 = vadd.f32 %v596, %v4013
        %v4015 = vpop.f32.mrf.mxu0
        %4016 = vdwg.mxu0
        %4017 = vmatpush.bf16.msra.mxu0 0
        %4018 = vmatpush.bf16.msra.mxu0 0
        %4019 = vmatpush.bf16.msra.mxu0 0
        %4020 = vmatpush.bf16.msra.mxu0 0
        %4021 = vmatpush.bf16.msra.mxu0 0
        %4022 = vmatpush.bf16.msra.mxu0 0
        %4023 = vmatpush.bf16.msra.mxu0 0
        %4024 = vmatpush.bf16.msra.mxu0 %v2022
        %4025 = vmatmul.bf16.gmra.mxu0 %v1880
        %v4026 = vpop.f32.mrf.mxu0
        %v4027 = vadd.f32 %v596, %v4026
        %v4028 = vpop.f32.mrf.mxu0
        %4029 = vdwg.mxu0
        %4030 = vmatpush.bf16.msra.mxu0 0
        %4031 = vmatpush.bf16.msra.mxu0 0
        %4032 = vmatpush.bf16.msra.mxu0 0
        %4033 = vmatpush.bf16.msra.mxu0 0
        %4034 = vmatpush.bf16.msra.mxu0 0
        %4035 = vmatpush.bf16.msra.mxu0 0
        %4036 = vmatpush.bf16.msra.mxu0 0
        %4037 = vmatpush.bf16.msra.mxu0 %v2025
        %4038 = vmatmul.bf16.gmra.mxu0 %v1880
        %v4039 = vpop.f32.mrf.mxu0
        %v4040 = vadd.f32 %v596, %v4039
        %v4041 = vpop.f32.mrf.mxu0
        %4042 = vdwg.mxu0
        %4043 = vmatpush.bf16.msra.mxu0 0
        %4044 = vmatpush.bf16.msra.mxu0 0
        %4045 = vmatpush.bf16.msra.mxu0 0
        %4046 = vmatpush.bf16.msra.mxu0 0
        %4047 = vmatpush.bf16.msra.mxu0 0
        %4048 = vmatpush.bf16.msra.mxu0 0
        %4049 = vmatpush.bf16.msra.mxu0 0
        %4050 = vmatpush.bf16.msra.mxu0 %v2028
        %4051 = vmatmul.bf16.gmra.mxu0 %v1880
        %v4052 = vpop.f32.mrf.mxu0
        %v4053 = vadd.f32 %v596, %v4052
        %v4054 = vpop.f32.mrf.mxu0
        %4055 = vdwg.mxu0
        %4056 = vmatpush.bf16.msra.mxu0 0
        %4057 = vmatpush.bf16.msra.mxu0 0
        %4058 = vmatpush.bf16.msra.mxu0 0
        %4059 = vmatpush.bf16.msra.mxu0 0
        %4060 = vmatpush.bf16.msra.mxu0 0
        %4061 = vmatpush.bf16.msra.mxu0 0
        %4062 = vmatpush.bf16.msra.mxu0 0
        %4063 = vmatpush.bf16.msra.mxu0 %v2031
        %4064 = vmatmul.bf16.gmra.mxu0 %v1880
        %v4065 = vpop.f32.mrf.mxu0
        %v4066 = vadd.f32 %v596, %v4065
        %v4067 = vpop.f32.mrf.mxu0
        %4068 = vdwg.mxu0
        %4069 = vmatpush.bf16.msra.mxu0 0
        %4070 = vmatpush.bf16.msra.mxu0 0
        %4071 = vmatpush.bf16.msra.mxu0 0
        %4072 = vmatpush.bf16.msra.mxu0 0
        %4073 = vmatpush.bf16.msra.mxu0 0
        %4074 = vmatpush.bf16.msra.mxu0 0
        %4075 = vmatpush.bf16.msra.mxu0 0
        %4076 = vmatpush.bf16.msra.mxu0 %v2034
        %4077 = vmatmul.bf16.gmra.mxu0 %v1880
        %v4078 = vpop.f32.mrf.mxu0
        %v4079 = vadd.f32 %v596, %v4078
        %v4080 = vpop.f32.mrf.mxu0
        %4081 = vdwg.mxu0
        %4082 = vmatpush.bf16.msra.mxu0 0
        %4083 = vmatpush.bf16.msra.mxu0 0
        %4084 = vmatpush.bf16.msra.mxu0 0
        %4085 = vmatpush.bf16.msra.mxu0 0
        %4086 = vmatpush.bf16.msra.mxu0 0
        %4087 = vmatpush.bf16.msra.mxu0 0
        %4088 = vmatpush.bf16.msra.mxu0 0
        %4089 = vmatpush.bf16.msra.mxu0 %v2037
        %4090 = vmatmul.bf16.gmra.mxu0 %v1880
        %v4091 = vpop.f32.mrf.mxu0
        %v4092 = vadd.f32 %v596, %v4091
        %v4093 = vpop.f32.mrf.mxu0
        %4094 = vdwg.mxu0
        %4095 = vmatpush.bf16.msra.mxu0 0
        %4096 = vmatpush.bf16.msra.mxu0 0
        %4097 = vmatpush.bf16.msra.mxu0 0
        %4098 = vmatpush.bf16.msra.mxu0 0
        %4099 = vmatpush.bf16.msra.mxu0 0
        %4100 = vmatpush.bf16.msra.mxu0 0
        %4101 = vmatpush.bf16.msra.mxu0 0
        %4102 = vmatpush.bf16.msra.mxu0 %v2040
        %4103 = vmatmul.bf16.gmra.mxu0 %v1880
        %v4104 = vpop.f32.mrf.mxu0
        %v4105 = vadd.f32 %v596, %v4104
        %v4106 = vpop.f32.mrf.mxu0
        %4107 = vdwg.mxu0
        %4108 = vmatpush.bf16.msra.mxu0 0
        %4109 = vmatpush.bf16.msra.mxu0 0
        %4110 = vmatpush.bf16.msra.mxu0 0
        %4111 = vmatpush.bf16.msra.mxu0 0
        %4112 = vmatpush.bf16.msra.mxu0 0
        %4113 = vmatpush.bf16.msra.mxu0 0
        %4114 = vmatpush.bf16.msra.mxu0 0
        %4115 = vmatpush.bf16.msra.mxu0 %v2043
        %4116 = vmatmul.bf16.gmra.mxu0 %v1880
        %v4117 = vpop.f32.mrf.mxu0
        %v4118 = vadd.f32 %v596, %v4117
        %v4119 = vpop.f32.mrf.mxu0
        %4120 = vdwg.mxu0
        %4121 = vmatpush.bf16.msra.mxu0 0
        %4122 = vmatpush.bf16.msra.mxu0 0
        %4123 = vmatpush.bf16.msra.mxu0 0
        %4124 = vmatpush.bf16.msra.mxu0 0
        %4125 = vmatpush.bf16.msra.mxu0 0
        %4126 = vmatpush.bf16.msra.mxu0 0
        %4127 = vmatpush.bf16.msra.mxu0 0
        %4128 = vmatpush.bf16.msra.mxu0 %v2046
        %4129 = vmatmul.bf16.gmra.mxu0 %v1880
        %v4130 = vpop.f32.mrf.mxu0
        %v4131 = vadd.f32 %v596, %v4130
        %v4132 = vpop.f32.mrf.mxu0
        %4133 = vdwg.mxu0
        %4134 = vmatpush.bf16.msra.mxu0 0
        %4135 = vmatpush.bf16.msra.mxu0 0
        %4136 = vmatpush.bf16.msra.mxu0 0
        %4137 = vmatpush.bf16.msra.mxu0 0
        %4138 = vmatpush.bf16.msra.mxu0 0
        %4139 = vmatpush.bf16.msra.mxu0 0
        %4140 = vmatpush.bf16.msra.mxu0 0
        %4141 = vmatpush.bf16.msra.mxu0 %v2049
        %4142 = vmatmul.bf16.gmra.mxu0 %v1880
        %v4143 = vpop.f32.mrf.mxu0
        %v4144 = vadd.f32 %v596, %v4143
        %v4145 = vpop.f32.mrf.mxu0
        %4146 = vdwg.mxu0
        %4147 = vmatpush.bf16.msra.mxu0 0
        %4148 = vmatpush.bf16.msra.mxu0 0
        %4149 = vmatpush.bf16.msra.mxu0 0
        %4150 = vmatpush.bf16.msra.mxu0 0
        %4151 = vmatpush.bf16.msra.mxu0 0
        %4152 = vmatpush.bf16.msra.mxu0 0
        %4153 = vmatpush.bf16.msra.mxu0 0
        %4154 = vmatpush.bf16.msra.mxu0 %v2052
        %4155 = vmatmul.bf16.gmra.mxu0 %v1880
        %v4156 = vpop.f32.mrf.mxu0
        %v4157 = vadd.f32 %v596, %v4156
        %v4158 = vpop.f32.mrf.mxu0
        %4159 = vdwg.mxu0
        %4160 = vmatpush.bf16.msra.mxu0 0
        %4161 = vmatpush.bf16.msra.mxu0 0
        %4162 = vmatpush.bf16.msra.mxu0 0
        %4163 = vmatpush.bf16.msra.mxu0 0
        %4164 = vmatpush.bf16.msra.mxu0 0
        %4165 = vmatpush.bf16.msra.mxu0 0
        %4166 = vmatpush.bf16.msra.mxu0 0
        %4167 = vmatpush.bf16.msra.mxu0 %v2055
        %4168 = vmatmul.bf16.gmra.mxu0 %v1880
        %v4169 = vpop.f32.mrf.mxu0
        %v4170 = vadd.f32 %v596, %v4169
        %v4171 = vpop.f32.mrf.mxu0
        %4172 = vdwg.mxu0
        %4173 = vmatpush.bf16.msra.mxu0 0
        %4174 = vmatpush.bf16.msra.mxu0 0
        %4175 = vmatpush.bf16.msra.mxu0 0
        %4176 = vmatpush.bf16.msra.mxu0 0
        %4177 = vmatpush.bf16.msra.mxu0 0
        %4178 = vmatpush.bf16.msra.mxu0 0
        %4179 = vmatpush.bf16.msra.mxu0 0
        %4180 = vmatpush.bf16.msra.mxu0 %v2058
        %4181 = vmatmul.bf16.gmra.mxu0 %v1880
        %v4182 = vpop.f32.mrf.mxu0
        %v4183 = vadd.f32 %v596, %v4182
        %v4184 = vpop.f32.mrf.mxu0
        %4185 = vdwg.mxu0
        %4186 = vmatpush.bf16.msra.mxu0 0
        %4187 = vmatpush.bf16.msra.mxu0 0
        %4188 = vmatpush.bf16.msra.mxu0 0
        %4189 = vmatpush.bf16.msra.mxu0 0
        %4190 = vmatpush.bf16.msra.mxu0 0
        %4191 = vmatpush.bf16.msra.mxu0 0
        %4192 = vmatpush.bf16.msra.mxu0 0
        %4193 = vmatpush.bf16.msra.mxu0 %v2061
        %4194 = vmatmul.bf16.gmra.mxu0 %v1880
        %v4195 = vpop.f32.mrf.mxu0
        %v4196 = vadd.f32 %v596, %v4195
        %v4197 = vpop.f32.mrf.mxu0
        %4198 = vdwg.mxu0
        %4199 = vmatpush.bf16.msra.mxu0 0
        %4200 = vmatpush.bf16.msra.mxu0 0
        %4201 = vmatpush.bf16.msra.mxu0 0
        %4202 = vmatpush.bf16.msra.mxu0 0
        %4203 = vmatpush.bf16.msra.mxu0 0
        %4204 = vmatpush.bf16.msra.mxu0 0
        %4205 = vmatpush.bf16.msra.mxu0 0
        %4206 = vmatpush.bf16.msra.mxu0 %v2064
        %4207 = vmatmul.bf16.gmra.mxu0 %v1880
        %v4208 = vpop.f32.mrf.mxu0
        %v4209 = vadd.f32 %v596, %v4208
        %v4210 = vpop.f32.mrf.mxu0
        %4211 = vdwg.mxu0
        %4212 = vmatpush.bf16.msra.mxu0 0
        %4213 = vmatpush.bf16.msra.mxu0 0
        %4214 = vmatpush.bf16.msra.mxu0 0
        %4215 = vmatpush.bf16.msra.mxu0 0
        %4216 = vmatpush.bf16.msra.mxu0 0
        %4217 = vmatpush.bf16.msra.mxu0 0
        %4218 = vmatpush.bf16.msra.mxu0 0
        %4219 = vmatpush.bf16.msra.mxu0 %v2067
        %4220 = vmatmul.bf16.gmra.mxu0 %v1880
        %v4221 = vpop.f32.mrf.mxu0
        %v4222 = vadd.f32 %v596, %v4221
        %v4223 = vpop.f32.mrf.mxu0
        %4224 = vdwg.mxu0
        %4225 = vmatpush.bf16.msra.mxu0 0
        %4226 = vmatpush.bf16.msra.mxu0 0
        %4227 = vmatpush.bf16.msra.mxu0 0
        %4228 = vmatpush.bf16.msra.mxu0 0
        %4229 = vmatpush.bf16.msra.mxu0 0
        %4230 = vmatpush.bf16.msra.mxu0 0
        %4231 = vmatpush.bf16.msra.mxu0 0
        %4232 = vmatpush.bf16.msra.mxu0 %v2070
        %4233 = vmatmul.bf16.gmra.mxu0 %v1880
        %v4234 = vpop.f32.mrf.mxu0
        %v4235 = vadd.f32 %v596, %v4234
        %v4236 = vpop.f32.mrf.mxu0
        %4237 = vdwg.mxu0
        %4238 = vmatpush.bf16.msra.mxu0 0
        %4239 = vmatpush.bf16.msra.mxu0 0
        %4240 = vmatpush.bf16.msra.mxu0 0
        %4241 = vmatpush.bf16.msra.mxu0 0
        %4242 = vmatpush.bf16.msra.mxu0 0
        %4243 = vmatpush.bf16.msra.mxu0 0
        %4244 = vmatpush.bf16.msra.mxu0 0
        %4245 = vmatpush.bf16.msra.mxu0 %v2073
        %4246 = vmatmul.bf16.gmra.mxu0 %v1880
        %v4247 = vpop.f32.mrf.mxu0
        %v4248 = vadd.f32 %v596, %v4247
        %v4249 = vpop.f32.mrf.mxu0
        %4250 = vdwg.mxu0
        %4251 = vmatpush.bf16.msra.mxu0 0
        %4252 = vmatpush.bf16.msra.mxu0 0
        %4253 = vmatpush.bf16.msra.mxu0 0
        %4254 = vmatpush.bf16.msra.mxu0 0
        %4255 = vmatpush.bf16.msra.mxu0 0
        %4256 = vmatpush.bf16.msra.mxu0 0
        %4257 = vmatpush.bf16.msra.mxu0 0
        %4258 = vmatpush.bf16.msra.mxu0 %v2076
        %4259 = vmatmul.bf16.gmra.mxu0 %v1880
        %v4260 = vpop.f32.mrf.mxu0
        %v4261 = vadd.f32 %v596, %v4260
        %v4262 = vpop.f32.mrf.mxu0
        %4263 = vdwg.mxu0
        %4264 = vmatpush.bf16.msra.mxu0 0
        %4265 = vmatpush.bf16.msra.mxu0 0
        %4266 = vmatpush.bf16.msra.mxu0 0
        %4267 = vmatpush.bf16.msra.mxu0 0
        %4268 = vmatpush.bf16.msra.mxu0 0
        %4269 = vmatpush.bf16.msra.mxu0 0
        %4270 = vmatpush.bf16.msra.mxu0 0
        %4271 = vmatpush.bf16.msra.mxu0 %v2079
        %4272 = vmatmul.bf16.gmra.mxu0 %v1880
        %v4273 = vpop.f32.mrf.mxu0
        %v4274 = vadd.f32 %v596, %v4273
        %v4275 = vpop.f32.mrf.mxu0
        %4276 = vdwg.mxu0
        %4277 = vmatpush.bf16.msra.mxu0 0
        %4278 = vmatpush.bf16.msra.mxu0 0
        %4279 = vmatpush.bf16.msra.mxu0 0
        %4280 = vmatpush.bf16.msra.mxu0 0
        %4281 = vmatpush.bf16.msra.mxu0 0
        %4282 = vmatpush.bf16.msra.mxu0 0
        %4283 = vmatpush.bf16.msra.mxu0 0
        %4284 = vmatpush.bf16.msra.mxu0 %v2082
        %4285 = vmatmul.bf16.gmra.mxu0 %v1880
        %v4286 = vpop.f32.mrf.mxu0
        %v4287 = vadd.f32 %v596, %v4286
        %v4288 = vpop.f32.mrf.mxu0
        %4289 = vdwg.mxu0
        %4290 = vmatpush.bf16.msra.mxu0 0
        %4291 = vmatpush.bf16.msra.mxu0 0
        %4292 = vmatpush.bf16.msra.mxu0 0
        %4293 = vmatpush.bf16.msra.mxu0 0
        %4294 = vmatpush.bf16.msra.mxu0 0
        %4295 = vmatpush.bf16.msra.mxu0 0
        %4296 = vmatpush.bf16.msra.mxu0 0
        %4297 = vmatpush.bf16.msra.mxu0 %v2085
        %4298 = vmatmul.bf16.gmra.mxu0 %v1880
        %v4299 = vpop.f32.mrf.mxu0
        %v4300 = vadd.f32 %v596, %v4299
        %v4301 = vpop.f32.mrf.mxu0
        %4302 = vdwg.mxu0
        %4303 = vmatpush.bf16.msra.mxu0 0
        %4304 = vmatpush.bf16.msra.mxu0 0
        %4305 = vmatpush.bf16.msra.mxu0 0
        %4306 = vmatpush.bf16.msra.mxu0 0
        %4307 = vmatpush.bf16.msra.mxu0 0
        %4308 = vmatpush.bf16.msra.mxu0 0
        %4309 = vmatpush.bf16.msra.mxu0 0
        %4310 = vmatpush.bf16.msra.mxu0 %v2088
        %4311 = vmatmul.bf16.gmra.mxu0 %v1880
        %v4312 = vpop.f32.mrf.mxu0
        %v4313 = vadd.f32 %v596, %v4312
        %v4314 = vpop.f32.mrf.mxu0
        %4315 = vdwg.mxu0
        %4316 = vmatpush.bf16.msra.mxu0 0
        %4317 = vmatpush.bf16.msra.mxu0 0
        %4318 = vmatpush.bf16.msra.mxu0 0
        %4319 = vmatpush.bf16.msra.mxu0 0
        %4320 = vmatpush.bf16.msra.mxu0 0
        %4321 = vmatpush.bf16.msra.mxu0 0
        %4322 = vmatpush.bf16.msra.mxu0 0
        %4323 = vmatpush.bf16.msra.mxu0 %v2091
        %4324 = vmatmul.bf16.gmra.mxu0 %v1880
        %v4325 = vpop.f32.mrf.mxu0
        %v4326 = vadd.f32 %v596, %v4325
        %v4327 = vpop.f32.mrf.mxu0
        %4328 = vdwg.mxu0
        %4329 = vmatpush.bf16.msra.mxu0 0
        %4330 = vmatpush.bf16.msra.mxu0 0
        %4331 = vmatpush.bf16.msra.mxu0 0
        %4332 = vmatpush.bf16.msra.mxu0 0
        %4333 = vmatpush.bf16.msra.mxu0 0
        %4334 = vmatpush.bf16.msra.mxu0 0
        %4335 = vmatpush.bf16.msra.mxu0 0
        %4336 = vmatpush.bf16.msra.mxu0 %v2094
        %4337 = vmatmul.bf16.gmra.mxu0 %v1880
        %v4338 = vpop.f32.mrf.mxu0
        %v4339 = vadd.f32 %v596, %v4338
        %v4340 = vpop.f32.mrf.mxu0
        %4341 = vdwg.mxu0
        %4342 = vmatpush.bf16.msra.mxu0 0
        %4343 = vmatpush.bf16.msra.mxu0 0
        %4344 = vmatpush.bf16.msra.mxu0 0
        %4345 = vmatpush.bf16.msra.mxu0 0
        %4346 = vmatpush.bf16.msra.mxu0 0
        %4347 = vmatpush.bf16.msra.mxu0 0
        %4348 = vmatpush.bf16.msra.mxu0 0
        %4349 = vmatpush.bf16.msra.mxu0 %v2097
        %4350 = vmatmul.bf16.gmra.mxu0 %v1880
        %v4351 = vpop.f32.mrf.mxu0
        %v4352 = vadd.f32 %v596, %v4351
        %v4353 = vpop.f32.mrf.mxu0
        %4354 = vdwg.mxu0
        %4355 = vmatpush.bf16.msra.mxu0 0
        %4356 = vmatpush.bf16.msra.mxu0 0
        %4357 = vmatpush.bf16.msra.mxu0 0
        %4358 = vmatpush.bf16.msra.mxu0 0
        %4359 = vmatpush.bf16.msra.mxu0 0
        %4360 = vmatpush.bf16.msra.mxu0 0
        %4361 = vmatpush.bf16.msra.mxu0 0
        %4362 = vmatpush.bf16.msra.mxu0 %v2100
        %4363 = vmatmul.bf16.gmra.mxu0 %v1880
        %v4364 = vpop.f32.mrf.mxu0
        %v4365 = vadd.f32 %v596, %v4364
        %v4366 = vpop.f32.mrf.mxu0
        %4367 = vdwg.mxu0
        %4368 = vmatpush.bf16.msra.mxu0 0
        %4369 = vmatpush.bf16.msra.mxu0 0
        %4370 = vmatpush.bf16.msra.mxu0 0
        %4371 = vmatpush.bf16.msra.mxu0 0
        %4372 = vmatpush.bf16.msra.mxu0 0
        %4373 = vmatpush.bf16.msra.mxu0 0
        %4374 = vmatpush.bf16.msra.mxu0 0
        %4375 = vmatpush.bf16.msra.mxu0 %v2103
        %4376 = vmatmul.bf16.gmra.mxu0 %v1880
        %v4377 = vpop.f32.mrf.mxu0
        %v4378 = vadd.f32 %v596, %v4377
        %v4379 = vpop.f32.mrf.mxu0
        %4380 = vdwg.mxu0
        %4381 = vmatpush.bf16.msra.mxu0 0
        %4382 = vmatpush.bf16.msra.mxu0 0
        %4383 = vmatpush.bf16.msra.mxu0 0
        %4384 = vmatpush.bf16.msra.mxu0 0
        %4385 = vmatpush.bf16.msra.mxu0 0
        %4386 = vmatpush.bf16.msra.mxu0 0
        %4387 = vmatpush.bf16.msra.mxu0 0
        %4388 = vmatpush.bf16.msra.mxu0 %v2106
        %4389 = vmatmul.bf16.gmra.mxu0 %v1880
        %v4390 = vpop.f32.mrf.mxu0
        %v4391 = vadd.f32 %v596, %v4390
        %v4392 = vpop.f32.mrf.mxu0
        %4393 = vdwg.mxu0
        %4394 = vmatpush.bf16.msra.mxu0 0
        %4395 = vmatpush.bf16.msra.mxu0 0
        %4396 = vmatpush.bf16.msra.mxu0 0
        %4397 = vmatpush.bf16.msra.mxu0 0
        %4398 = vmatpush.bf16.msra.mxu0 0
        %4399 = vmatpush.bf16.msra.mxu0 0
        %4400 = vmatpush.bf16.msra.mxu0 0
        %4401 = vmatpush.bf16.msra.mxu0 %v2109
        %4402 = vmatmul.bf16.gmra.mxu0 %v1880
        %v4403 = vpop.f32.mrf.mxu0
        %v4404 = vadd.f32 %v596, %v4403
        %v4405 = vpop.f32.mrf.mxu0
        %4406 = vdwg.mxu0
        %4407 = vmatpush.bf16.msra.mxu0 0
        %4408 = vmatpush.bf16.msra.mxu0 0
        %4409 = vmatpush.bf16.msra.mxu0 0
        %4410 = vmatpush.bf16.msra.mxu0 0
        %4411 = vmatpush.bf16.msra.mxu0 0
        %4412 = vmatpush.bf16.msra.mxu0 0
        %4413 = vmatpush.bf16.msra.mxu0 0
        %4414 = vmatpush.bf16.msra.mxu0 %v2112
        %4415 = vmatmul.bf16.gmra.mxu0 %v1880
        %v4416 = vpop.f32.mrf.mxu0
        %v4417 = vadd.f32 %v596, %v4416
        %v4418 = vpop.f32.mrf.mxu0
        %4419 = vdwg.mxu0
        %4420 = vmatpush.bf16.msra.mxu0 0
        %4421 = vmatpush.bf16.msra.mxu0 0
        %4422 = vmatpush.bf16.msra.mxu0 0
        %4423 = vmatpush.bf16.msra.mxu0 0
        %4424 = vmatpush.bf16.msra.mxu0 0
        %4425 = vmatpush.bf16.msra.mxu0 0
        %4426 = vmatpush.bf16.msra.mxu0 0
        %4427 = vmatpush.bf16.msra.mxu0 %v2115
        %4428 = vmatmul.bf16.gmra.mxu0 %v1880
        %v4429 = vpop.f32.mrf.mxu0
        %v4430 = vadd.f32 %v596, %v4429
        %v4431 = vpop.f32.mrf.mxu0
        %4432 = vdwg.mxu0
        %4433 = vmatpush.bf16.msra.mxu0 0
        %4434 = vmatpush.bf16.msra.mxu0 0
        %4435 = vmatpush.bf16.msra.mxu0 0
        %4436 = vmatpush.bf16.msra.mxu0 0
        %4437 = vmatpush.bf16.msra.mxu0 0
        %4438 = vmatpush.bf16.msra.mxu0 0
        %4439 = vmatpush.bf16.msra.mxu0 0
        %4440 = vmatpush.bf16.msra.mxu0 %v2118
        %4441 = vmatmul.bf16.gmra.mxu0 %v1880
        %v4442 = vpop.f32.mrf.mxu0
        %v4443 = vadd.f32 %v596, %v4442
        %v4444 = vpop.f32.mrf.mxu0
        %4445 = vdwg.mxu0
        %4446 = vmatpush.bf16.msra.mxu0 0
        %4447 = vmatpush.bf16.msra.mxu0 0
        %4448 = vmatpush.bf16.msra.mxu0 0
        %4449 = vmatpush.bf16.msra.mxu0 0
        %4450 = vmatpush.bf16.msra.mxu0 0
        %4451 = vmatpush.bf16.msra.mxu0 0
        %4452 = vmatpush.bf16.msra.mxu0 0
        %4453 = vmatpush.bf16.msra.mxu0 %v2121
        %4454 = vmatmul.bf16.gmra.mxu0 %v1880
        %v4455 = vpop.f32.mrf.mxu0
        %v4456 = vadd.f32 %v596, %v4455
        %v4457 = vpop.f32.mrf.mxu0
        %4458 = vdwg.mxu0
        %4459 = vmatpush.bf16.msra.mxu0 0
        %4460 = vmatpush.bf16.msra.mxu0 0
        %4461 = vmatpush.bf16.msra.mxu0 0
        %4462 = vmatpush.bf16.msra.mxu0 0
        %4463 = vmatpush.bf16.msra.mxu0 0
        %4464 = vmatpush.bf16.msra.mxu0 0
        %4465 = vmatpush.bf16.msra.mxu0 0
        %4466 = vmatpush.bf16.msra.mxu0 %v2124
        %4467 = vmatmul.bf16.gmra.mxu0 %v1880
        %v4468 = vpop.f32.mrf.mxu0
        %v4469 = vadd.f32 %v596, %v4468
        %v4470 = vpop.f32.mrf.mxu0
        %4471 = vdwg.mxu0
        %4472 = vmatpush.bf16.msra.mxu0 0
        %4473 = vmatpush.bf16.msra.mxu0 0
        %4474 = vmatpush.bf16.msra.mxu0 0
        %4475 = vmatpush.bf16.msra.mxu0 0
        %4476 = vmatpush.bf16.msra.mxu0 0
        %4477 = vmatpush.bf16.msra.mxu0 0
        %4478 = vmatpush.bf16.msra.mxu0 0
        %4479 = vmatpush.bf16.msra.mxu0 %v2127
        %4480 = vmatmul.bf16.gmra.mxu0 %v1880
        %v4481 = vpop.f32.mrf.mxu0
        %v4482 = vadd.f32 %v596, %v4481
        %v4483 = vpop.f32.mrf.mxu0
        %4484 = vdwg.mxu0
        %4485 = vmatpush.bf16.msra.mxu0 0
        %4486 = vmatpush.bf16.msra.mxu0 0
        %4487 = vmatpush.bf16.msra.mxu0 0
        %4488 = vmatpush.bf16.msra.mxu0 0
        %4489 = vmatpush.bf16.msra.mxu0 0
        %4490 = vmatpush.bf16.msra.mxu0 0
        %4491 = vmatpush.bf16.msra.mxu0 0
        %4492 = vmatpush.bf16.msra.mxu0 %v2130
        %4493 = vmatmul.bf16.gmra.mxu0 %v1880
        %v4494 = vpop.f32.mrf.mxu0
        %v4495 = vadd.f32 %v596, %v4494
        %v4496 = vpop.f32.mrf.mxu0
        %4497 = vdwg.mxu0
        %4498 = vmatpush.bf16.msra.mxu0 0
        %4499 = vmatpush.bf16.msra.mxu0 0
        %4500 = vmatpush.bf16.msra.mxu0 0
        %4501 = vmatpush.bf16.msra.mxu0 0
        %4502 = vmatpush.bf16.msra.mxu0 0
        %4503 = vmatpush.bf16.msra.mxu0 0
        %4504 = vmatpush.bf16.msra.mxu0 0
        %4505 = vmatpush.bf16.msra.mxu0 %v2133
        %4506 = vmatmul.bf16.gmra.mxu0 %v1880
        %v4507 = vpop.f32.mrf.mxu0
        %v4508 = vadd.f32 %v596, %v4507
        %v4509 = vpop.f32.mrf.mxu0
        %4510 = vdwg.mxu0
        %4511 = vmatpush.bf16.msra.mxu0 0
        %4512 = vmatpush.bf16.msra.mxu0 0
        %4513 = vmatpush.bf16.msra.mxu0 0
        %4514 = vmatpush.bf16.msra.mxu0 0
        %4515 = vmatpush.bf16.msra.mxu0 0
        %4516 = vmatpush.bf16.msra.mxu0 0
        %4517 = vmatpush.bf16.msra.mxu0 0
        %4518 = vmatpush.bf16.msra.mxu0 %v2136
        %4519 = vmatmul.bf16.gmra.mxu0 %v1880
        %v4520 = vpop.f32.mrf.mxu0
        %v4521 = vadd.f32 %v596, %v4520
        %v4522 = vpop.f32.mrf.mxu0
        %4523 = vdwg.mxu0
        %4524 = vmatpush.bf16.msra.mxu0 0
        %4525 = vmatpush.bf16.msra.mxu0 0
        %4526 = vmatpush.bf16.msra.mxu0 0
        %4527 = vmatpush.bf16.msra.mxu0 0
        %4528 = vmatpush.bf16.msra.mxu0 0
        %4529 = vmatpush.bf16.msra.mxu0 0
        %4530 = vmatpush.bf16.msra.mxu0 0
        %4531 = vmatpush.bf16.msra.mxu0 %v2139
        %4532 = vmatmul.bf16.gmra.mxu0 %v1880
        %v4533 = vpop.f32.mrf.mxu0
        %v4534 = vadd.f32 %v596, %v4533
        %v4535 = vpop.f32.mrf.mxu0
        %4536 = vdwg.mxu0
        %4537 = vmatpush.bf16.msra.mxu0 0
        %4538 = vmatpush.bf16.msra.mxu0 0
        %4539 = vmatpush.bf16.msra.mxu0 0
        %4540 = vmatpush.bf16.msra.mxu0 0
        %4541 = vmatpush.bf16.msra.mxu0 0
        %4542 = vmatpush.bf16.msra.mxu0 0
        %4543 = vmatpush.bf16.msra.mxu0 0
        %4544 = vmatpush.bf16.msra.mxu0 %v2142
        %4545 = vmatmul.bf16.gmra.mxu0 %v1880
        %v4546 = vpop.f32.mrf.mxu0
        %v4547 = vadd.f32 %v596, %v4546
        %v4548 = vpop.f32.mrf.mxu0
        %4549 = vdwg.mxu0
        %4550 = vmatpush.bf16.msra.mxu0 0
        %4551 = vmatpush.bf16.msra.mxu0 0
        %4552 = vmatpush.bf16.msra.mxu0 0
        %4553 = vmatpush.bf16.msra.mxu0 0
        %4554 = vmatpush.bf16.msra.mxu0 0
        %4555 = vmatpush.bf16.msra.mxu0 0
        %4556 = vmatpush.bf16.msra.mxu0 0
        %4557 = vmatpush.bf16.msra.mxu0 %v2145
        %4558 = vmatmul.bf16.gmra.mxu0 %v1880
        %v4559 = vpop.f32.mrf.mxu0
        %v4560 = vadd.f32 %v596, %v4559
        %v4561 = vpop.f32.mrf.mxu0
        %4562 = vdwg.mxu0
        %4563 = vmatpush.bf16.msra.mxu0 0
        %4564 = vmatpush.bf16.msra.mxu0 0
        %4565 = vmatpush.bf16.msra.mxu0 0
        %4566 = vmatpush.bf16.msra.mxu0 0
        %4567 = vmatpush.bf16.msra.mxu0 0
        %4568 = vmatpush.bf16.msra.mxu0 0
        %4569 = vmatpush.bf16.msra.mxu0 0
        %4570 = vmatpush.bf16.msra.mxu0 %v2148
        %4571 = vmatmul.bf16.gmra.mxu0 %v1880
        %v4572 = vpop.f32.mrf.mxu0
        %v4573 = vadd.f32 %v596, %v4572
        %v4574 = vpop.f32.mrf.mxu0
        %4575 = vdwg.mxu0
        %4576 = vmatpush.bf16.msra.mxu0 0
        %4577 = vmatpush.bf16.msra.mxu0 0
        %4578 = vmatpush.bf16.msra.mxu0 0
        %4579 = vmatpush.bf16.msra.mxu0 0
        %4580 = vmatpush.bf16.msra.mxu0 0
        %4581 = vmatpush.bf16.msra.mxu0 0
        %4582 = vmatpush.bf16.msra.mxu0 0
        %4583 = vmatpush.bf16.msra.mxu0 %v2151
        %4584 = vmatmul.bf16.gmra.mxu0 %v1880
        %v4585 = vpop.f32.mrf.mxu0
        %v4586 = vadd.f32 %v596, %v4585
        %v4587 = vpop.f32.mrf.mxu0
        %4588 = vdwg.mxu0
        %4589 = vmatpush.bf16.msra.mxu0 0
        %4590 = vmatpush.bf16.msra.mxu0 0
        %4591 = vmatpush.bf16.msra.mxu0 0
        %4592 = vmatpush.bf16.msra.mxu0 0
        %4593 = vmatpush.bf16.msra.mxu0 0
        %4594 = vmatpush.bf16.msra.mxu0 0
        %4595 = vmatpush.bf16.msra.mxu0 0
        %4596 = vmatpush.bf16.msra.mxu0 %v2154
        %4597 = vmatmul.bf16.gmra.mxu0 %v1880
        %v4598 = vpop.f32.mrf.mxu0
        %v4599 = vadd.f32 %v596, %v4598
        %v4600 = vpop.f32.mrf.mxu0
        %4601 = vdwg.mxu0
        %4602 = vmatpush.bf16.msra.mxu0 0
        %4603 = vmatpush.bf16.msra.mxu0 0
        %4604 = vmatpush.bf16.msra.mxu0 0
        %4605 = vmatpush.bf16.msra.mxu0 0
        %4606 = vmatpush.bf16.msra.mxu0 0
        %4607 = vmatpush.bf16.msra.mxu0 0
        %4608 = vmatpush.bf16.msra.mxu0 0
        %4609 = vmatpush.bf16.msra.mxu0 %v2157
        %4610 = vmatmul.bf16.gmra.mxu0 %v1880
        %v4611 = vpop.f32.mrf.mxu0
        %v4612 = vadd.f32 %v596, %v4611
        %v4613 = vpop.f32.mrf.mxu0
        %4614 = vdwg.mxu0
        %4615 = vmatpush.bf16.msra.mxu0 0
        %4616 = vmatpush.bf16.msra.mxu0 0
        %4617 = vmatpush.bf16.msra.mxu0 0
        %4618 = vmatpush.bf16.msra.mxu0 0
        %4619 = vmatpush.bf16.msra.mxu0 0
        %4620 = vmatpush.bf16.msra.mxu0 0
        %4621 = vmatpush.bf16.msra.mxu0 0
        %4622 = vmatpush.bf16.msra.mxu0 %v2160
        %4623 = vmatmul.bf16.gmra.mxu0 %v1880
        %v4624 = vpop.f32.mrf.mxu0
        %v4625 = vadd.f32 %v596, %v4624
        %v4626 = vpop.f32.mrf.mxu0
        %4627 = vdwg.mxu0
        %4628 = vmatpush.bf16.msra.mxu0 0
        %4629 = vmatpush.bf16.msra.mxu0 0
        %4630 = vmatpush.bf16.msra.mxu0 0
        %4631 = vmatpush.bf16.msra.mxu0 0
        %4632 = vmatpush.bf16.msra.mxu0 0
        %4633 = vmatpush.bf16.msra.mxu0 0
        %4634 = vmatpush.bf16.msra.mxu0 0
        %4635 = vmatpush.bf16.msra.mxu0 %v2163
        %4636 = vmatmul.bf16.gmra.mxu0 %v1880
        %v4637 = vpop.f32.mrf.mxu0
        %v4638 = vadd.f32 %v596, %v4637
        %v4639 = vpop.f32.mrf.mxu0
        %4640 = vdwg.mxu0
        %4641 = vmatpush.bf16.msra.mxu0 0
        %4642 = vmatpush.bf16.msra.mxu0 0
        %4643 = vmatpush.bf16.msra.mxu0 0
        %4644 = vmatpush.bf16.msra.mxu0 0
        %4645 = vmatpush.bf16.msra.mxu0 0
        %4646 = vmatpush.bf16.msra.mxu0 0
        %4647 = vmatpush.bf16.msra.mxu0 0
        %4648 = vmatpush.bf16.msra.mxu0 %v2166
        %4649 = vmatmul.bf16.gmra.mxu0 %v1880
        %v4650 = vpop.f32.mrf.mxu0
        %v4651 = vadd.f32 %v596, %v4650
        %v4652 = vpop.f32.mrf.mxu0
        %4653 = vdwg.mxu0
        %4654 = vmatpush.bf16.msra.mxu0 0
        %4655 = vmatpush.bf16.msra.mxu0 0
        %4656 = vmatpush.bf16.msra.mxu0 0
        %4657 = vmatpush.bf16.msra.mxu0 0
        %4658 = vmatpush.bf16.msra.mxu0 0
        %4659 = vmatpush.bf16.msra.mxu0 0
        %4660 = vmatpush.bf16.msra.mxu0 0
        %4661 = vmatpush.bf16.msra.mxu0 %v2169
        %4662 = vmatmul.bf16.gmra.mxu0 %v1880
        %v4663 = vpop.f32.mrf.mxu0
        %v4664 = vadd.f32 %v596, %v4663
        %v4665 = vpop.f32.mrf.mxu0
        %4666 = vdwg.mxu0
        %4667 = vmatpush.bf16.msra.mxu0 0
        %4668 = vmatpush.bf16.msra.mxu0 0
        %4669 = vmatpush.bf16.msra.mxu0 0
        %4670 = vmatpush.bf16.msra.mxu0 0
        %4671 = vmatpush.bf16.msra.mxu0 0
        %4672 = vmatpush.bf16.msra.mxu0 0
        %4673 = vmatpush.bf16.msra.mxu0 0
        %4674 = vmatpush.bf16.msra.mxu0 %v2172
        %4675 = vmatmul.bf16.gmra.mxu0 %v1880
        %v4676 = vpop.f32.mrf.mxu0
        %v4677 = vadd.f32 %v596, %v4676
        %v4678 = vpop.f32.mrf.mxu0
        %4679 = vdwg.mxu0
        %4680 = vmatpush.bf16.msra.mxu0 0
        %4681 = vmatpush.bf16.msra.mxu0 0
        %4682 = vmatpush.bf16.msra.mxu0 0
        %4683 = vmatpush.bf16.msra.mxu0 0
        %4684 = vmatpush.bf16.msra.mxu0 0
        %4685 = vmatpush.bf16.msra.mxu0 0
        %4686 = vmatpush.bf16.msra.mxu0 0
        %4687 = vmatpush.bf16.msra.mxu0 %v2175
        %4688 = vmatmul.bf16.gmra.mxu0 %v1880
        %v4689 = vpop.f32.mrf.mxu0
        %v4690 = vadd.f32 %v596, %v4689
        %v4691 = vpop.f32.mrf.mxu0
        %4692 = vdwg.mxu0
        %4693 = vmatpush.bf16.msra.mxu0 0
        %4694 = vmatpush.bf16.msra.mxu0 0
        %4695 = vmatpush.bf16.msra.mxu0 0
        %4696 = vmatpush.bf16.msra.mxu0 0
        %4697 = vmatpush.bf16.msra.mxu0 0
        %4698 = vmatpush.bf16.msra.mxu0 0
        %4699 = vmatpush.bf16.msra.mxu0 0
        %4700 = vmatpush.bf16.msra.mxu0 %v2178
        %4701 = vmatmul.bf16.gmra.mxu0 %v1880
        %v4702 = vpop.f32.mrf.mxu0
        %v4703 = vadd.f32 %v596, %v4702
        %v4704 = vpop.f32.mrf.mxu0
        %4705 = vdwg.mxu0
        %4706 = vmatpush.bf16.msra.mxu0 0
        %4707 = vmatpush.bf16.msra.mxu0 0
        %4708 = vmatpush.bf16.msra.mxu0 0
        %4709 = vmatpush.bf16.msra.mxu0 0
        %4710 = vmatpush.bf16.msra.mxu0 0
        %4711 = vmatpush.bf16.msra.mxu0 0
        %4712 = vmatpush.bf16.msra.mxu0 0
        %4713 = vmatpush.bf16.msra.mxu0 %v2181
        %4714 = vmatmul.bf16.gmra.mxu0 %v1880
        %v4715 = vpop.f32.mrf.mxu0
        %v4716 = vadd.f32 %v596, %v4715
        %v4717 = vpop.f32.mrf.mxu0
        %4718 = vdwg.mxu0
        %4719 = vmatpush.bf16.msra.mxu0 0
        %4720 = vmatpush.bf16.msra.mxu0 0
        %4721 = vmatpush.bf16.msra.mxu0 0
        %4722 = vmatpush.bf16.msra.mxu0 0
        %4723 = vmatpush.bf16.msra.mxu0 0
        %4724 = vmatpush.bf16.msra.mxu0 0
        %4725 = vmatpush.bf16.msra.mxu0 0
        %4726 = vmatpush.bf16.msra.mxu0 %v2184
        %4727 = vmatmul.bf16.gmra.mxu0 %v1880
        %v4728 = vpop.f32.mrf.mxu0
        %v4729 = vadd.f32 %v596, %v4728
        %v4730 = vpop.f32.mrf.mxu0
        %4731 = vdwg.mxu0
        %4732 = vmatpush.bf16.msra.mxu0 0
        %4733 = vmatpush.bf16.msra.mxu0 0
        %4734 = vmatpush.bf16.msra.mxu0 0
        %4735 = vmatpush.bf16.msra.mxu0 0
        %4736 = vmatpush.bf16.msra.mxu0 0
        %4737 = vmatpush.bf16.msra.mxu0 0
        %4738 = vmatpush.bf16.msra.mxu0 0
        %4739 = vmatpush.bf16.msra.mxu0 %v2187
        %4740 = vmatmul.bf16.gmra.mxu0 %v1880
        %v4741 = vpop.f32.mrf.mxu0
        %v4742 = vadd.f32 %v596, %v4741
        %v4743 = vpop.f32.mrf.mxu0
        %4744 = vdwg.mxu0
        %4745 = vmatpush.bf16.msra.mxu0 0
        %4746 = vmatpush.bf16.msra.mxu0 0
        %4747 = vmatpush.bf16.msra.mxu0 0
        %4748 = vmatpush.bf16.msra.mxu0 0
        %4749 = vmatpush.bf16.msra.mxu0 0
        %4750 = vmatpush.bf16.msra.mxu0 0
        %4751 = vmatpush.bf16.msra.mxu0 0
        %4752 = vmatpush.bf16.msra.mxu0 %v2190
        %4753 = vmatmul.bf16.gmra.mxu0 %v1880
        %v4754 = vpop.f32.mrf.mxu0
        %v4755 = vadd.f32 %v596, %v4754
        %v4756 = vpop.f32.mrf.mxu0
        %4757 = vdwg.mxu0
        %4758 = vmatpush.bf16.msra.mxu0 0
        %4759 = vmatpush.bf16.msra.mxu0 0
        %4760 = vmatpush.bf16.msra.mxu0 0
        %4761 = vmatpush.bf16.msra.mxu0 0
        %4762 = vmatpush.bf16.msra.mxu0 0
        %4763 = vmatpush.bf16.msra.mxu0 0
        %4764 = vmatpush.bf16.msra.mxu0 0
        %4765 = vmatpush.bf16.msra.mxu0 %v2193
        %4766 = vmatmul.bf16.gmra.mxu0 %v1880
        %v4767 = vpop.f32.mrf.mxu0
        %v4768 = vadd.f32 %v596, %v4767
        %v4769 = vpop.f32.mrf.mxu0
        %4770 = vdwg.mxu0
        %4771 = vmatpush.bf16.msra.mxu0 0
        %4772 = vmatpush.bf16.msra.mxu0 0
        %4773 = vmatpush.bf16.msra.mxu0 0
        %4774 = vmatpush.bf16.msra.mxu0 0
        %4775 = vmatpush.bf16.msra.mxu0 0
        %4776 = vmatpush.bf16.msra.mxu0 0
        %4777 = vmatpush.bf16.msra.mxu0 0
        %4778 = vmatpush.bf16.msra.mxu0 %v2196
        %4779 = vmatmul.bf16.gmra.mxu0 %v1880
        %v4780 = vpop.f32.mrf.mxu0
        %v4781 = vadd.f32 %v596, %v4780
        %v4782 = vpop.f32.mrf.mxu0
        %4783 = vdwg.mxu0
        %4784 = vmatpush.bf16.msra.mxu0 0
        %4785 = vmatpush.bf16.msra.mxu0 0
        %4786 = vmatpush.bf16.msra.mxu0 0
        %4787 = vmatpush.bf16.msra.mxu0 0
        %4788 = vmatpush.bf16.msra.mxu0 0
        %4789 = vmatpush.bf16.msra.mxu0 0
        %4790 = vmatpush.bf16.msra.mxu0 0
        %4791 = vmatpush.bf16.msra.mxu0 %v2199
        %4792 = vmatmul.bf16.gmra.mxu0 %v1880
        %v4793 = vpop.f32.mrf.mxu0
        %v4794 = vadd.f32 %v596, %v4793
        %v4795 = vpop.f32.mrf.mxu0
        %4796 = vdwg.mxu0
        %4797 = vmatpush.bf16.msra.mxu0 0
        %4798 = vmatpush.bf16.msra.mxu0 0
        %4799 = vmatpush.bf16.msra.mxu0 0
        %4800 = vmatpush.bf16.msra.mxu0 0
        %4801 = vmatpush.bf16.msra.mxu0 0
        %4802 = vmatpush.bf16.msra.mxu0 0
        %4803 = vmatpush.bf16.msra.mxu0 0
        %4804 = vmatpush.bf16.msra.mxu0 %v2202
        %4805 = vmatmul.bf16.gmra.mxu0 %v1880
        %v4806 = vpop.f32.mrf.mxu0
        %v4807 = vadd.f32 %v596, %v4806
        %v4808 = vpop.f32.mrf.mxu0
        %4809 = vdwg.mxu0
        %4810 = vmatpush.bf16.msra.mxu0 0
        %4811 = vmatpush.bf16.msra.mxu0 0
        %4812 = vmatpush.bf16.msra.mxu0 0
        %4813 = vmatpush.bf16.msra.mxu0 0
        %4814 = vmatpush.bf16.msra.mxu0 0
        %4815 = vmatpush.bf16.msra.mxu0 0
        %4816 = vmatpush.bf16.msra.mxu0 0
        %4817 = vmatpush.bf16.msra.mxu0 %v2205
        %4818 = vmatmul.bf16.gmra.mxu0 %v1880
        %v4819 = vpop.f32.mrf.mxu0
        %v4820 = vadd.f32 %v596, %v4819
        %v4821 = vpop.f32.mrf.mxu0
        %4822 = vdwg.mxu0
        %4823 = vmatpush.bf16.msra.mxu0 0
        %4824 = vmatpush.bf16.msra.mxu0 0
        %4825 = vmatpush.bf16.msra.mxu0 0
        %4826 = vmatpush.bf16.msra.mxu0 0
        %4827 = vmatpush.bf16.msra.mxu0 0
        %4828 = vmatpush.bf16.msra.mxu0 0
        %4829 = vmatpush.bf16.msra.mxu0 0
        %4830 = vmatpush.bf16.msra.mxu0 %v2208
        %4831 = vmatmul.bf16.gmra.mxu0 %v1880
        %v4832 = vpop.f32.mrf.mxu0
        %v4833 = vadd.f32 %v596, %v4832
        %v4834 = vpop.f32.mrf.mxu0
        %4835 = vdwg.mxu0
        %4836 = vmatpush.bf16.msra.mxu0 0
        %4837 = vmatpush.bf16.msra.mxu0 0
        %4838 = vmatpush.bf16.msra.mxu0 0
        %4839 = vmatpush.bf16.msra.mxu0 0
        %4840 = vmatpush.bf16.msra.mxu0 0
        %4841 = vmatpush.bf16.msra.mxu0 0
        %4842 = vmatpush.bf16.msra.mxu0 0
        %4843 = vmatpush.bf16.msra.mxu0 %v2211
        %4844 = vmatmul.bf16.gmra.mxu0 %v1880
        %v4845 = vpop.f32.mrf.mxu0
        %v4846 = vadd.f32 %v596, %v4845
        %v4847 = vpop.f32.mrf.mxu0
        %4848 = vdwg.mxu0
        %4849 = vmatpush.bf16.msra.mxu0 0
        %4850 = vmatpush.bf16.msra.mxu0 0
        %4851 = vmatpush.bf16.msra.mxu0 0
        %4852 = vmatpush.bf16.msra.mxu0 0
        %4853 = vmatpush.bf16.msra.mxu0 0
        %4854 = vmatpush.bf16.msra.mxu0 0
        %4855 = vmatpush.bf16.msra.mxu0 0
        %4856 = vmatpush.bf16.msra.mxu0 %v2214
        %4857 = vmatmul.bf16.gmra.mxu0 %v1880
        %v4858 = vpop.f32.mrf.mxu0
        %v4859 = vadd.f32 %v596, %v4858
        %v4860 = vpop.f32.mrf.mxu0
        %4861 = vdwg.mxu0
        %4862 = vmatpush.bf16.msra.mxu0 0
        %4863 = vmatpush.bf16.msra.mxu0 0
        %4864 = vmatpush.bf16.msra.mxu0 0
        %4865 = vmatpush.bf16.msra.mxu0 0
        %4866 = vmatpush.bf16.msra.mxu0 0
        %4867 = vmatpush.bf16.msra.mxu0 0
        %4868 = vmatpush.bf16.msra.mxu0 0
        %4869 = vmatpush.bf16.msra.mxu0 %v2217
        %4870 = vmatmul.bf16.gmra.mxu0 %v1880
        %v4871 = vpop.f32.mrf.mxu0
        %v4872 = vadd.f32 %v596, %v4871
        %v4873 = vpop.f32.mrf.mxu0
        %4874 = vdwg.mxu0
        %4875 = vmatpush.bf16.msra.mxu0 0
        %4876 = vmatpush.bf16.msra.mxu0 0
        %4877 = vmatpush.bf16.msra.mxu0 0
        %4878 = vmatpush.bf16.msra.mxu0 0
        %4879 = vmatpush.bf16.msra.mxu0 0
        %4880 = vmatpush.bf16.msra.mxu0 0
        %4881 = vmatpush.bf16.msra.mxu0 0
        %4882 = vmatpush.bf16.msra.mxu0 %v2220
        %4883 = vmatmul.bf16.gmra.mxu0 %v1880
        %v4884 = vpop.f32.mrf.mxu0
        %v4885 = vadd.f32 %v596, %v4884
        %v4886 = vpop.f32.mrf.mxu0
        %4887 = vdwg.mxu0
        %4888 = vmatpush.bf16.msra.mxu0 0
        %4889 = vmatpush.bf16.msra.mxu0 0
        %4890 = vmatpush.bf16.msra.mxu0 0
        %4891 = vmatpush.bf16.msra.mxu0 0
        %4892 = vmatpush.bf16.msra.mxu0 0
        %4893 = vmatpush.bf16.msra.mxu0 0
        %4894 = vmatpush.bf16.msra.mxu0 0
        %4895 = vmatpush.bf16.msra.mxu0 %v2223
        %4896 = vmatmul.bf16.gmra.mxu0 %v1880
        %v4897 = vpop.f32.mrf.mxu0
        %v4898 = vadd.f32 %v596, %v4897
        %v4899 = vpop.f32.mrf.mxu0
        %4900 = vdwg.mxu0
        %4901 = vmatpush.bf16.msra.mxu0 0
        %4902 = vmatpush.bf16.msra.mxu0 0
        %4903 = vmatpush.bf16.msra.mxu0 0
        %4904 = vmatpush.bf16.msra.mxu0 0
        %4905 = vmatpush.bf16.msra.mxu0 0
        %4906 = vmatpush.bf16.msra.mxu0 0
        %4907 = vmatpush.bf16.msra.mxu0 0
        %4908 = vmatpush.bf16.msra.mxu0 %v2226
        %4909 = vmatmul.bf16.gmra.mxu0 %v1880
        %v4910 = vpop.f32.mrf.mxu0
        %v4911 = vadd.f32 %v596, %v4910
        %v4912 = vpop.f32.mrf.mxu0
        %4913 = vdwg.mxu0
        %4914 = vmatpush.bf16.msra.mxu0 0
        %4915 = vmatpush.bf16.msra.mxu0 0
        %4916 = vmatpush.bf16.msra.mxu0 0
        %4917 = vmatpush.bf16.msra.mxu0 0
        %4918 = vmatpush.bf16.msra.mxu0 0
        %4919 = vmatpush.bf16.msra.mxu0 0
        %4920 = vmatpush.bf16.msra.mxu0 0
        %4921 = vmatpush.bf16.msra.mxu0 %v2229
        %4922 = vmatmul.bf16.gmra.mxu0 %v1880
        %v4923 = vpop.f32.mrf.mxu0
        %v4924 = vadd.f32 %v596, %v4923
        %v4925 = vpop.f32.mrf.mxu0
        %4926 = vdwg.mxu0
        %4927 = vmatpush.bf16.msra.mxu0 0
        %4928 = vmatpush.bf16.msra.mxu0 0
        %4929 = vmatpush.bf16.msra.mxu0 0
        %4930 = vmatpush.bf16.msra.mxu0 0
        %4931 = vmatpush.bf16.msra.mxu0 0
        %4932 = vmatpush.bf16.msra.mxu0 0
        %4933 = vmatpush.bf16.msra.mxu0 0
        %4934 = vmatpush.bf16.msra.mxu0 %v2232
        %4935 = vmatmul.bf16.gmra.mxu0 %v1880
        %v4936 = vpop.f32.mrf.mxu0
        %v4937 = vadd.f32 %v596, %v4936
        %v4938 = vpop.f32.mrf.mxu0
        %4939 = vdwg.mxu0
        %4940 = vmatpush.bf16.msra.mxu0 0
        %4941 = vmatpush.bf16.msra.mxu0 0
        %4942 = vmatpush.bf16.msra.mxu0 0
        %4943 = vmatpush.bf16.msra.mxu0 0
        %4944 = vmatpush.bf16.msra.mxu0 0
        %4945 = vmatpush.bf16.msra.mxu0 0
        %4946 = vmatpush.bf16.msra.mxu0 0
        %4947 = vmatpush.bf16.msra.mxu0 %v2235
        %4948 = vmatmul.bf16.gmra.mxu0 %v1880
        %v4949 = vpop.f32.mrf.mxu0
        %v4950 = vadd.f32 %v596, %v4949
        %v4951 = vpop.f32.mrf.mxu0
        %4952 = vdwg.mxu0
        %4953 = vmatpush.bf16.msra.mxu0 0
        %4954 = vmatpush.bf16.msra.mxu0 0
        %4955 = vmatpush.bf16.msra.mxu0 0
        %4956 = vmatpush.bf16.msra.mxu0 0
        %4957 = vmatpush.bf16.msra.mxu0 0
        %4958 = vmatpush.bf16.msra.mxu0 0
        %4959 = vmatpush.bf16.msra.mxu0 0
        %4960 = vmatpush.bf16.msra.mxu0 %v2238
        %4961 = vmatmul.bf16.gmra.mxu0 %v1880
        %v4962 = vpop.f32.mrf.mxu0
        %v4963 = vadd.f32 %v596, %v4962
        %v4964 = vpop.f32.mrf.mxu0
        %4965 = vdwg.mxu0
        %4966 = vmatpush.bf16.msra.mxu0 0
        %4967 = vmatpush.bf16.msra.mxu0 0
        %4968 = vmatpush.bf16.msra.mxu0 0
        %4969 = vmatpush.bf16.msra.mxu0 0
        %4970 = vmatpush.bf16.msra.mxu0 0
        %4971 = vmatpush.bf16.msra.mxu0 0
        %4972 = vmatpush.bf16.msra.mxu0 0
        %4973 = vmatpush.bf16.msra.mxu0 %v2241
        %4974 = vmatmul.bf16.gmra.mxu0 %v1880
        %v4975 = vpop.f32.mrf.mxu0
        %v4976 = vadd.f32 %v596, %v4975
        %v4977 = vpop.f32.mrf.mxu0
        %4978 = vdwg.mxu0
        %4979 = vmatpush.bf16.msra.mxu0 0
        %4980 = vmatpush.bf16.msra.mxu0 0
        %4981 = vmatpush.bf16.msra.mxu0 0
        %4982 = vmatpush.bf16.msra.mxu0 0
        %4983 = vmatpush.bf16.msra.mxu0 0
        %4984 = vmatpush.bf16.msra.mxu0 0
        %4985 = vmatpush.bf16.msra.mxu0 0
        %4986 = vmatpush.bf16.msra.mxu0 %v2244
        %4987 = vmatmul.bf16.gmra.mxu0 %v1880
        %v4988 = vpop.f32.mrf.mxu0
        %v4989 = vadd.f32 %v596, %v4988
        %v4990 = vpop.f32.mrf.mxu0
        %4991 = vdwg.mxu0
        %4992 = vmatpush.bf16.msra.mxu0 0
        %4993 = vmatpush.bf16.msra.mxu0 0
        %4994 = vmatpush.bf16.msra.mxu0 0
        %4995 = vmatpush.bf16.msra.mxu0 0
        %4996 = vmatpush.bf16.msra.mxu0 0
        %4997 = vmatpush.bf16.msra.mxu0 0
        %4998 = vmatpush.bf16.msra.mxu0 0
        %4999 = vmatpush.bf16.msra.mxu0 %v2247
        %5000 = vmatmul.bf16.gmra.mxu0 %v1880
        %v5001 = vpop.f32.mrf.mxu0
        %v5002 = vadd.f32 %v596, %v5001
        %v5003 = vpop.f32.mrf.mxu0
        %5004 = vdwg.mxu0
        %5005 = vmatpush.bf16.msra.mxu0 0
        %5006 = vmatpush.bf16.msra.mxu0 0
        %5007 = vmatpush.bf16.msra.mxu0 0
        %5008 = vmatpush.bf16.msra.mxu0 0
        %5009 = vmatpush.bf16.msra.mxu0 0
        %5010 = vmatpush.bf16.msra.mxu0 0
        %5011 = vmatpush.bf16.msra.mxu0 0
        %5012 = vmatpush.bf16.msra.mxu0 %v2250
        %5013 = vmatmul.bf16.gmra.mxu0 %v1880
        %v5014 = vpop.f32.mrf.mxu0
        %v5015 = vadd.f32 %v596, %v5014
        %v5016 = vpop.f32.mrf.mxu0
        %5017 = vdwg.mxu0
        %5018 = vmatpush.bf16.msra.mxu0 0
        %5019 = vmatpush.bf16.msra.mxu0 0
        %5020 = vmatpush.bf16.msra.mxu0 0
        %5021 = vmatpush.bf16.msra.mxu0 0
        %5022 = vmatpush.bf16.msra.mxu0 0
        %5023 = vmatpush.bf16.msra.mxu0 0
        %5024 = vmatpush.bf16.msra.mxu0 0
        %5025 = vmatpush.bf16.msra.mxu0 %v2253
        %5026 = vmatmul.bf16.gmra.mxu0 %v1880
        %v5027 = vpop.f32.mrf.mxu0
        %v5028 = vadd.f32 %v596, %v5027
        %v5029 = vpop.f32.mrf.mxu0
        %5030 = vdwg.mxu0
        %5031 = vmatpush.bf16.msra.mxu0 0
        %5032 = vmatpush.bf16.msra.mxu0 0
        %5033 = vmatpush.bf16.msra.mxu0 0
        %5034 = vmatpush.bf16.msra.mxu0 0
        %5035 = vmatpush.bf16.msra.mxu0 0
        %5036 = vmatpush.bf16.msra.mxu0 0
        %5037 = vmatpush.bf16.msra.mxu0 0
        %5038 = vmatpush.bf16.msra.mxu0 %v2256
        %5039 = vmatmul.bf16.gmra.mxu0 %v1880
        %v5040 = vpop.f32.mrf.mxu0
        %v5041 = vadd.f32 %v596, %v5040
        %v5042 = vpop.f32.mrf.mxu0
        %5043 = vdwg.mxu0
        %5044 = vmatpush.bf16.msra.mxu0 0
        %5045 = vmatpush.bf16.msra.mxu0 0
        %5046 = vmatpush.bf16.msra.mxu0 0
        %5047 = vmatpush.bf16.msra.mxu0 0
        %5048 = vmatpush.bf16.msra.mxu0 0
        %5049 = vmatpush.bf16.msra.mxu0 0
        %5050 = vmatpush.bf16.msra.mxu0 0
        %5051 = vmatpush.bf16.msra.mxu0 %v2259
        %5052 = vmatmul.bf16.gmra.mxu0 %v1880
        %v5053 = vpop.f32.mrf.mxu0
        %v5054 = vadd.f32 %v596, %v5053
        %v5055 = vpop.f32.mrf.mxu0
        %5056 = vdwg.mxu0
        %5057 = vmatpush.bf16.msra.mxu0 0
        %5058 = vmatpush.bf16.msra.mxu0 0
        %5059 = vmatpush.bf16.msra.mxu0 0
        %5060 = vmatpush.bf16.msra.mxu0 0
        %5061 = vmatpush.bf16.msra.mxu0 0
        %5062 = vmatpush.bf16.msra.mxu0 0
        %5063 = vmatpush.bf16.msra.mxu0 0
        %5064 = vmatpush.bf16.msra.mxu0 %v2262
        %5065 = vmatmul.bf16.gmra.mxu0 %v1880
        %v5066 = vpop.f32.mrf.mxu0
        %v5067 = vadd.f32 %v596, %v5066
        %v5068 = vpop.f32.mrf.mxu0
        %5069 = vdwg.mxu0
        %5070 = vmatpush.bf16.msra.mxu0 0
        %5071 = vmatpush.bf16.msra.mxu0 0
        %5072 = vmatpush.bf16.msra.mxu0 0
        %5073 = vmatpush.bf16.msra.mxu0 0
        %5074 = vmatpush.bf16.msra.mxu0 0
        %5075 = vmatpush.bf16.msra.mxu0 0
        %5076 = vmatpush.bf16.msra.mxu0 0
        %5077 = vmatpush.bf16.msra.mxu0 %v2265
        %5078 = vmatmul.bf16.gmra.mxu0 %v1880
        %v5079 = vpop.f32.mrf.mxu0
        %v5080 = vadd.f32 %v596, %v5079
        %v5081 = vpop.f32.mrf.mxu0
        %5082 = vdwg.mxu0
        %5083 = vmatpush.bf16.msra.mxu0 0
        %5084 = vmatpush.bf16.msra.mxu0 0
        %5085 = vmatpush.bf16.msra.mxu0 0
        %5086 = vmatpush.bf16.msra.mxu0 0
        %5087 = vmatpush.bf16.msra.mxu0 0
        %5088 = vmatpush.bf16.msra.mxu0 0
        %5089 = vmatpush.bf16.msra.mxu0 0
        %5090 = vmatpush.bf16.msra.mxu0 %v2268
        %5091 = vmatmul.bf16.gmra.mxu0 %v1880
        %v5092 = vpop.f32.mrf.mxu0
        %v5093 = vadd.f32 %v596, %v5092
        %v5094 = vpop.f32.mrf.mxu0
        %5095 = vdwg.mxu0
        %5096 = vmatpush.bf16.msra.mxu0 0
        %5097 = vmatpush.bf16.msra.mxu0 0
        %5098 = vmatpush.bf16.msra.mxu0 0
        %5099 = vmatpush.bf16.msra.mxu0 0
        %5100 = vmatpush.bf16.msra.mxu0 0
        %5101 = vmatpush.bf16.msra.mxu0 0
        %5102 = vmatpush.bf16.msra.mxu0 0
        %5103 = vmatpush.bf16.msra.mxu0 %v2271
        %5104 = vmatmul.bf16.gmra.mxu0 %v1880
        %v5105 = vpop.f32.mrf.mxu0
        %v5106 = vadd.f32 %v596, %v5105
        %v5107 = vpop.f32.mrf.mxu0
        %5108 = vdwg.mxu0
        %5109 = vmatpush.bf16.msra.mxu0 0
        %5110 = vmatpush.bf16.msra.mxu0 0
        %5111 = vmatpush.bf16.msra.mxu0 0
        %5112 = vmatpush.bf16.msra.mxu0 0
        %5113 = vmatpush.bf16.msra.mxu0 0
        %5114 = vmatpush.bf16.msra.mxu0 0
        %5115 = vmatpush.bf16.msra.mxu0 0
        %5116 = vmatpush.bf16.msra.mxu0 %v2274
        %5117 = vmatmul.bf16.gmra.mxu0 %v1880
        %v5118 = vpop.f32.mrf.mxu0
        %v5119 = vadd.f32 %v596, %v5118
        %v5120 = vpop.f32.mrf.mxu0
        %5121 = vdwg.mxu0
        %5122 = vmatpush.bf16.msra.mxu0 0
        %5123 = vmatpush.bf16.msra.mxu0 0
        %5124 = vmatpush.bf16.msra.mxu0 0
        %5125 = vmatpush.bf16.msra.mxu0 0
        %5126 = vmatpush.bf16.msra.mxu0 0
        %5127 = vmatpush.bf16.msra.mxu0 0
        %5128 = vmatpush.bf16.msra.mxu0 0
        %5129 = vmatpush.bf16.msra.mxu0 %v2277
        %5130 = vmatmul.bf16.gmra.mxu0 %v1880
        %v5131 = vpop.f32.mrf.mxu0
        %v5132 = vadd.f32 %v596, %v5131
        %v5133 = vpop.f32.mrf.mxu0
        %5134 = vdwg.mxu0
        %5135 = vmatpush.bf16.msra.mxu0 0
        %5136 = vmatpush.bf16.msra.mxu0 0
        %5137 = vmatpush.bf16.msra.mxu0 0
        %5138 = vmatpush.bf16.msra.mxu0 0
        %5139 = vmatpush.bf16.msra.mxu0 0
        %5140 = vmatpush.bf16.msra.mxu0 0
        %5141 = vmatpush.bf16.msra.mxu0 0
        %5142 = vmatpush.bf16.msra.mxu0 %v2280
        %5143 = vmatmul.bf16.gmra.mxu0 %v1880
        %v5144 = vpop.f32.mrf.mxu0
        %v5145 = vadd.f32 %v596, %v5144
        %v5146 = vpop.f32.mrf.mxu0
        %5147 = vdwg.mxu0
        %5148 = vmatpush.bf16.msra.mxu0 0
        %5149 = vmatpush.bf16.msra.mxu0 0
        %5150 = vmatpush.bf16.msra.mxu0 0
        %5151 = vmatpush.bf16.msra.mxu0 0
        %5152 = vmatpush.bf16.msra.mxu0 0
        %5153 = vmatpush.bf16.msra.mxu0 0
        %5154 = vmatpush.bf16.msra.mxu0 0
        %5155 = vmatpush.bf16.msra.mxu0 %v2283
        %5156 = vmatmul.bf16.gmra.mxu0 %v1880
        %v5157 = vpop.f32.mrf.mxu0
        %v5158 = vadd.f32 %v596, %v5157
        %v5159 = vpop.f32.mrf.mxu0
        %5160 = vdwg.mxu0
        %5161 = vmatpush.bf16.msra.mxu0 0
        %5162 = vmatpush.bf16.msra.mxu0 0
        %5163 = vmatpush.bf16.msra.mxu0 0
        %5164 = vmatpush.bf16.msra.mxu0 0
        %5165 = vmatpush.bf16.msra.mxu0 0
        %5166 = vmatpush.bf16.msra.mxu0 0
        %5167 = vmatpush.bf16.msra.mxu0 0
        %5168 = vmatpush.bf16.msra.mxu0 %v2286
        %5169 = vmatmul.bf16.gmra.mxu0 %v1880
        %v5170 = vpop.f32.mrf.mxu0
        %v5171 = vadd.f32 %v596, %v5170
        %v5172 = vpop.f32.mrf.mxu0
        %5173 = vdwg.mxu0
        %5174 = vmatpush.bf16.msra.mxu0 0
        %5175 = vmatpush.bf16.msra.mxu0 0
        %5176 = vmatpush.bf16.msra.mxu0 0
        %5177 = vmatpush.bf16.msra.mxu0 0
        %5178 = vmatpush.bf16.msra.mxu0 0
        %5179 = vmatpush.bf16.msra.mxu0 0
        %5180 = vmatpush.bf16.msra.mxu0 0
        %5181 = vmatpush.bf16.msra.mxu0 %v2289
        %5182 = vmatmul.bf16.gmra.mxu0 %v1880
        %v5183 = vpop.f32.mrf.mxu0
        %v5184 = vadd.f32 %v596, %v5183
        %v5185 = vpop.f32.mrf.mxu0
        %5186 = vdwg.mxu0
        %5187 = vmatpush.bf16.msra.mxu0 0
        %5188 = vmatpush.bf16.msra.mxu0 0
        %5189 = vmatpush.bf16.msra.mxu0 0
        %5190 = vmatpush.bf16.msra.mxu0 0
        %5191 = vmatpush.bf16.msra.mxu0 0
        %5192 = vmatpush.bf16.msra.mxu0 0
        %5193 = vmatpush.bf16.msra.mxu0 0
        %5194 = vmatpush.bf16.msra.mxu0 %v2292
        %5195 = vmatmul.bf16.gmra.mxu0 %v1880
        %v5196 = vpop.f32.mrf.mxu0
        %v5197 = vadd.f32 %v596, %v5196
        %v5198 = vpop.f32.mrf.mxu0
        %5199 = vdwg.mxu0
        %5200 = vmatpush.bf16.msra.mxu0 0
        %5201 = vmatpush.bf16.msra.mxu0 0
        %5202 = vmatpush.bf16.msra.mxu0 0
        %5203 = vmatpush.bf16.msra.mxu0 0
        %5204 = vmatpush.bf16.msra.mxu0 0
        %5205 = vmatpush.bf16.msra.mxu0 0
        %5206 = vmatpush.bf16.msra.mxu0 0
        %5207 = vmatpush.bf16.msra.mxu0 %v2295
        %5208 = vmatmul.bf16.gmra.mxu0 %v1880
        %v5209 = vpop.f32.mrf.mxu0
        %v5210 = vadd.f32 %v596, %v5209
        %v5211 = vpop.f32.mrf.mxu0
        %5212 = vdwg.mxu0
        %5213 = vmatpush.bf16.msra.mxu0 0
        %5214 = vmatpush.bf16.msra.mxu0 0
        %5215 = vmatpush.bf16.msra.mxu0 0
        %5216 = vmatpush.bf16.msra.mxu0 0
        %5217 = vmatpush.bf16.msra.mxu0 0
        %5218 = vmatpush.bf16.msra.mxu0 0
        %5219 = vmatpush.bf16.msra.mxu0 0
        %5220 = vmatpush.bf16.msra.mxu0 %v2298
        %5221 = vmatmul.bf16.gmra.mxu0 %v1880
        %v5222 = vpop.f32.mrf.mxu0
        %v5223 = vadd.f32 %v596, %v5222
        %v5224 = vpop.f32.mrf.mxu0
        %5225 = vdwg.mxu0
        %5226 = vmatpush.bf16.msra.mxu0 0
        %5227 = vmatpush.bf16.msra.mxu0 0
        %5228 = vmatpush.bf16.msra.mxu0 0
        %5229 = vmatpush.bf16.msra.mxu0 0
        %5230 = vmatpush.bf16.msra.mxu0 0
        %5231 = vmatpush.bf16.msra.mxu0 0
        %5232 = vmatpush.bf16.msra.mxu0 0
        %5233 = vmatpush.bf16.msra.mxu0 %v2301
        %5234 = vmatmul.bf16.gmra.mxu0 %v1880
        %v5235 = vpop.f32.mrf.mxu0
        %v5236 = vadd.f32 %v596, %v5235
        %v5237 = vpop.f32.mrf.mxu0
        %5238 = vdwg.mxu0
        %5239 = vmatpush.bf16.msra.mxu0 0
        %5240 = vmatpush.bf16.msra.mxu0 0
        %5241 = vmatpush.bf16.msra.mxu0 0
        %5242 = vmatpush.bf16.msra.mxu0 0
        %5243 = vmatpush.bf16.msra.mxu0 0
        %5244 = vmatpush.bf16.msra.mxu0 0
        %5245 = vmatpush.bf16.msra.mxu0 0
        %5246 = vmatpush.bf16.msra.mxu0 %v2304
        %5247 = vmatmul.bf16.gmra.mxu0 %v1880
        %v5248 = vpop.f32.mrf.mxu0
        %v5249 = vadd.f32 %v596, %v5248
        %v5250 = vpop.f32.mrf.mxu0
        %5251 = vdwg.mxu0
        %5252 = vmatpush.bf16.msra.mxu0 0
        %5253 = vmatpush.bf16.msra.mxu0 0
        %5254 = vmatpush.bf16.msra.mxu0 0
        %5255 = vmatpush.bf16.msra.mxu0 0
        %5256 = vmatpush.bf16.msra.mxu0 0
        %5257 = vmatpush.bf16.msra.mxu0 0
        %5258 = vmatpush.bf16.msra.mxu0 0
        %5259 = vmatpush.bf16.msra.mxu0 %v2307
        %5260 = vmatmul.bf16.gmra.mxu0 %v1880
        %v5261 = vpop.f32.mrf.mxu0
        %v5262 = vadd.f32 %v596, %v5261
        %v5263 = vpop.f32.mrf.mxu0
        %5264 = vdwg.mxu0
        %5265 = vmatpush.bf16.msra.mxu0 0
        %5266 = vmatpush.bf16.msra.mxu0 0
        %5267 = vmatpush.bf16.msra.mxu0 0
        %5268 = vmatpush.bf16.msra.mxu0 0
        %5269 = vmatpush.bf16.msra.mxu0 0
        %5270 = vmatpush.bf16.msra.mxu0 0
        %5271 = vmatpush.bf16.msra.mxu0 0
        %5272 = vmatpush.bf16.msra.mxu0 %v2310
        %5273 = vmatmul.bf16.gmra.mxu0 %v1880
        %v5274 = vpop.f32.mrf.mxu0
        %v5275 = vadd.f32 %v596, %v5274
        %v5276 = vpop.f32.mrf.mxu0
        %5277 = vdwg.mxu0
        %5278 = vmatpush.bf16.msra.mxu0 0
        %5279 = vmatpush.bf16.msra.mxu0 0
        %5280 = vmatpush.bf16.msra.mxu0 0
        %5281 = vmatpush.bf16.msra.mxu0 0
        %5282 = vmatpush.bf16.msra.mxu0 0
        %5283 = vmatpush.bf16.msra.mxu0 0
        %5284 = vmatpush.bf16.msra.mxu0 0
        %5285 = vmatpush.bf16.msra.mxu0 %v2313
        %5286 = vmatmul.bf16.gmra.mxu0 %v1880
        %v5287 = vpop.f32.mrf.mxu0
        %v5288 = vadd.f32 %v596, %v5287
        %v5289 = vpop.f32.mrf.mxu0
        %5290 = vdwg.mxu0
        %5291 = vmatpush.bf16.msra.mxu0 0
        %5292 = vmatpush.bf16.msra.mxu0 0
        %5293 = vmatpush.bf16.msra.mxu0 0
        %5294 = vmatpush.bf16.msra.mxu0 0
        %5295 = vmatpush.bf16.msra.mxu0 0
        %5296 = vmatpush.bf16.msra.mxu0 0
        %5297 = vmatpush.bf16.msra.mxu0 0
        %5298 = vmatpush.bf16.msra.mxu0 %v2316
        %5299 = vmatmul.bf16.gmra.mxu0 %v1880
        %v5300 = vpop.f32.mrf.mxu0
        %v5301 = vadd.f32 %v596, %v5300
        %v5302 = vpop.f32.mrf.mxu0
        %5303 = vdwg.mxu0
        %5304 = vmatpush.bf16.msra.mxu0 0
        %5305 = vmatpush.bf16.msra.mxu0 0
        %5306 = vmatpush.bf16.msra.mxu0 0
        %5307 = vmatpush.bf16.msra.mxu0 0
        %5308 = vmatpush.bf16.msra.mxu0 0
        %5309 = vmatpush.bf16.msra.mxu0 0
        %5310 = vmatpush.bf16.msra.mxu0 0
        %5311 = vmatpush.bf16.msra.mxu0 %v2319
        %5312 = vmatmul.bf16.gmra.mxu0 %v1880
        %v5313 = vpop.f32.mrf.mxu0
        %v5314 = vadd.f32 %v596, %v5313
        %v5315 = vpop.f32.mrf.mxu0
        %5316 = vdwg.mxu0
        %5317 = vmatpush.bf16.msra.mxu0 0
        %5318 = vmatpush.bf16.msra.mxu0 0
        %5319 = vmatpush.bf16.msra.mxu0 0
        %5320 = vmatpush.bf16.msra.mxu0 0
        %5321 = vmatpush.bf16.msra.mxu0 0
        %5322 = vmatpush.bf16.msra.mxu0 0
        %5323 = vmatpush.bf16.msra.mxu0 0
        %5324 = vmatpush.bf16.msra.mxu0 %v2322
        %5325 = vmatmul.bf16.gmra.mxu0 %v1880
        %v5326 = vpop.f32.mrf.mxu0
        %v5327 = vadd.f32 %v596, %v5326
        %v5328 = vpop.f32.mrf.mxu0
        %5329 = vdwg.mxu0
        %5330 = vmatpush.bf16.msra.mxu0 0
        %5331 = vmatpush.bf16.msra.mxu0 0
        %5332 = vmatpush.bf16.msra.mxu0 0
        %5333 = vmatpush.bf16.msra.mxu0 0
        %5334 = vmatpush.bf16.msra.mxu0 0
        %5335 = vmatpush.bf16.msra.mxu0 0
        %5336 = vmatpush.bf16.msra.mxu0 0
        %5337 = vmatpush.bf16.msra.mxu0 %v2325
        %5338 = vmatmul.bf16.gmra.mxu0 %v1880
        %v5339 = vpop.f32.mrf.mxu0
        %v5340 = vadd.f32 %v596, %v5339
        %v5341 = vpop.f32.mrf.mxu0
        %5342 = vdwg.mxu0
        %5343 = vmatpush.bf16.msra.mxu0 0
        %5344 = vmatpush.bf16.msra.mxu0 0
        %5345 = vmatpush.bf16.msra.mxu0 0
        %5346 = vmatpush.bf16.msra.mxu0 0
        %5347 = vmatpush.bf16.msra.mxu0 0
        %5348 = vmatpush.bf16.msra.mxu0 0
        %5349 = vmatpush.bf16.msra.mxu0 0
        %5350 = vmatpush.bf16.msra.mxu0 %v2328
        %5351 = vmatmul.bf16.gmra.mxu0 %v1880
        %v5352 = vpop.f32.mrf.mxu0
        %v5353 = vadd.f32 %v596, %v5352
        %v5354 = vpop.f32.mrf.mxu0
        %5355 = vdwg.mxu0
        %5356 = vmatpush.bf16.msra.mxu0 0
        %5357 = vmatpush.bf16.msra.mxu0 0
        %5358 = vmatpush.bf16.msra.mxu0 0
        %5359 = vmatpush.bf16.msra.mxu0 0
        %5360 = vmatpush.bf16.msra.mxu0 0
        %5361 = vmatpush.bf16.msra.mxu0 0
        %5362 = vmatpush.bf16.msra.mxu0 0
        %5363 = vmatpush.bf16.msra.mxu0 %v2331
        %5364 = vmatmul.bf16.gmra.mxu0 %v1880
        %v5365 = vpop.f32.mrf.mxu0
        %v5366 = vadd.f32 %v596, %v5365
        %v5367 = vpop.f32.mrf.mxu0
        %5368 = vdwg.mxu0
        %5369 = vmatpush.bf16.msra.mxu0 0
        %5370 = vmatpush.bf16.msra.mxu0 0
        %5371 = vmatpush.bf16.msra.mxu0 0
        %5372 = vmatpush.bf16.msra.mxu0 0
        %5373 = vmatpush.bf16.msra.mxu0 0
        %5374 = vmatpush.bf16.msra.mxu0 0
        %5375 = vmatpush.bf16.msra.mxu0 0
        %5376 = vmatpush.bf16.msra.mxu0 %v2334
        %5377 = vmatmul.bf16.gmra.mxu0 %v1880
        %v5378 = vpop.f32.mrf.mxu0
        %v5379 = vadd.f32 %v596, %v5378
        %v5380 = vpop.f32.mrf.mxu0
        %5381 = vdwg.mxu0
        %5382 = vmatpush.bf16.msra.mxu0 0
        %5383 = vmatpush.bf16.msra.mxu0 0
        %5384 = vmatpush.bf16.msra.mxu0 0
        %5385 = vmatpush.bf16.msra.mxu0 0
        %5386 = vmatpush.bf16.msra.mxu0 0
        %5387 = vmatpush.bf16.msra.mxu0 0
        %5388 = vmatpush.bf16.msra.mxu0 0
        %5389 = vmatpush.bf16.msra.mxu0 %v2337
        %5390 = vmatmul.bf16.gmra.mxu0 %v1880
        %v5391 = vpop.f32.mrf.mxu0
        %v5392 = vadd.f32 %v596, %v5391
        %v5393 = vpop.f32.mrf.mxu0
        %5394 = vdwg.mxu0
        %5395 = vmatpush.bf16.msra.mxu0 0
        %5396 = vmatpush.bf16.msra.mxu0 0
        %5397 = vmatpush.bf16.msra.mxu0 0
        %5398 = vmatpush.bf16.msra.mxu0 0
        %5399 = vmatpush.bf16.msra.mxu0 0
        %5400 = vmatpush.bf16.msra.mxu0 0
        %5401 = vmatpush.bf16.msra.mxu0 0
        %5402 = vmatpush.bf16.msra.mxu0 %v2340
        %5403 = vmatmul.bf16.gmra.mxu0 %v1880
        %v5404 = vpop.f32.mrf.mxu0
        %v5405 = vadd.f32 %v596, %v5404
        %v5406 = vpop.f32.mrf.mxu0
        %5407 = vdwg.mxu0
        %5408 = vmatpush.bf16.msra.mxu0 0
        %5409 = vmatpush.bf16.msra.mxu0 0
        %5410 = vmatpush.bf16.msra.mxu0 0
        %5411 = vmatpush.bf16.msra.mxu0 0
        %5412 = vmatpush.bf16.msra.mxu0 0
        %5413 = vmatpush.bf16.msra.mxu0 0
        %5414 = vmatpush.bf16.msra.mxu0 0
        %5415 = vmatpush.bf16.msra.mxu0 %v2343
        %5416 = vmatmul.bf16.gmra.mxu0 %v1880
        %v5417 = vpop.f32.mrf.mxu0
        %v5418 = vadd.f32 %v596, %v5417
        %v5419 = vpop.f32.mrf.mxu0
        %5420 = vdwg.mxu0
        %5421 = vmatpush.bf16.msra.mxu0 0
        %5422 = vmatpush.bf16.msra.mxu0 0
        %5423 = vmatpush.bf16.msra.mxu0 0
        %5424 = vmatpush.bf16.msra.mxu0 0
        %5425 = vmatpush.bf16.msra.mxu0 0
        %5426 = vmatpush.bf16.msra.mxu0 0
        %5427 = vmatpush.bf16.msra.mxu0 0
        %5428 = vmatpush.bf16.msra.mxu0 %v2346
        %5429 = vmatmul.bf16.gmra.mxu0 %v1880
        %v5430 = vpop.f32.mrf.mxu0
        %v5431 = vadd.f32 %v596, %v5430
        %v5432 = vpop.f32.mrf.mxu0
        %5433 = vdwg.mxu0
        %5434 = vmatpush.bf16.msra.mxu0 0
        %5435 = vmatpush.bf16.msra.mxu0 0
        %5436 = vmatpush.bf16.msra.mxu0 0
        %5437 = vmatpush.bf16.msra.mxu0 0
        %5438 = vmatpush.bf16.msra.mxu0 0
        %5439 = vmatpush.bf16.msra.mxu0 0
        %5440 = vmatpush.bf16.msra.mxu0 0
        %5441 = vmatpush.bf16.msra.mxu0 %v2349
        %5442 = vmatmul.bf16.gmra.mxu0 %v1880
        %v5443 = vpop.f32.mrf.mxu0
        %v5444 = vadd.f32 %v596, %v5443
        %v5445 = vpop.f32.mrf.mxu0
        %5446 = vdwg.mxu0
        %5447 = vmatpush.bf16.msra.mxu0 0
        %5448 = vmatpush.bf16.msra.mxu0 0
        %5449 = vmatpush.bf16.msra.mxu0 0
        %5450 = vmatpush.bf16.msra.mxu0 0
        %5451 = vmatpush.bf16.msra.mxu0 0
        %5452 = vmatpush.bf16.msra.mxu0 0
        %5453 = vmatpush.bf16.msra.mxu0 0
        %5454 = vmatpush.bf16.msra.mxu0 %v2352
        %5455 = vmatmul.bf16.gmra.mxu0 %v1880
        %v5456 = vpop.f32.mrf.mxu0
        %v5457 = vadd.f32 %v596, %v5456
        %v5458 = vpop.f32.mrf.mxu0
        %5459 = vdwg.mxu0
        %5460 = vmatpush.bf16.msra.mxu0 0
        %5461 = vmatpush.bf16.msra.mxu0 0
        %5462 = vmatpush.bf16.msra.mxu0 0
        %5463 = vmatpush.bf16.msra.mxu0 0
        %5464 = vmatpush.bf16.msra.mxu0 0
        %5465 = vmatpush.bf16.msra.mxu0 0
        %5466 = vmatpush.bf16.msra.mxu0 0
        %5467 = vmatpush.bf16.msra.mxu0 %v2355
        %5468 = vmatmul.bf16.gmra.mxu0 %v1880
        %v5469 = vpop.f32.mrf.mxu0
        %v5470 = vadd.f32 %v596, %v5469
        %v5471 = vpop.f32.mrf.mxu0
        %5472 = vdwg.mxu0
        %5473 = vmatpush.bf16.msra.mxu0 0
        %5474 = vmatpush.bf16.msra.mxu0 0
        %5475 = vmatpush.bf16.msra.mxu0 0
        %5476 = vmatpush.bf16.msra.mxu0 0
        %5477 = vmatpush.bf16.msra.mxu0 0
        %5478 = vmatpush.bf16.msra.mxu0 0
        %5479 = vmatpush.bf16.msra.mxu0 0
        %5480 = vmatpush.bf16.msra.mxu0 %v2358
        %5481 = vmatmul.bf16.gmra.mxu0 %v1880
        %v5482 = vpop.f32.mrf.mxu0
        %v5483 = vadd.f32 %v596, %v5482
        %v5484 = vpop.f32.mrf.mxu0
        %5485 = vdwg.mxu0
        %5486 = vmatpush.bf16.msra.mxu0 0
        %5487 = vmatpush.bf16.msra.mxu0 0
        %5488 = vmatpush.bf16.msra.mxu0 0
        %5489 = vmatpush.bf16.msra.mxu0 0
        %5490 = vmatpush.bf16.msra.mxu0 0
        %5491 = vmatpush.bf16.msra.mxu0 0
        %5492 = vmatpush.bf16.msra.mxu0 0
        %5493 = vmatpush.bf16.msra.mxu0 %v2361
        %5494 = vmatmul.bf16.gmra.mxu0 %v1880
        %v5495 = vpop.f32.mrf.mxu0
        %v5496 = vadd.f32 %v596, %v5495
        %v5497 = vpop.f32.mrf.mxu0
        %5498 = vdwg.mxu0
        %5499 = vmatpush.bf16.msra.mxu0 0
        %5500 = vmatpush.bf16.msra.mxu0 0
        %5501 = vmatpush.bf16.msra.mxu0 0
        %5502 = vmatpush.bf16.msra.mxu0 0
        %5503 = vmatpush.bf16.msra.mxu0 0
        %5504 = vmatpush.bf16.msra.mxu0 0
        %5505 = vmatpush.bf16.msra.mxu0 0
        %5506 = vmatpush.bf16.msra.mxu0 %v2364
        %5507 = vmatmul.bf16.gmra.mxu0 %v1880
        %v5508 = vpop.f32.mrf.mxu0
        %v5509 = vadd.f32 %v596, %v5508
        %v5510 = vpop.f32.mrf.mxu0
        %5511 = vdwg.mxu0
        %5512 = vmatpush.bf16.msra.mxu0 0
        %5513 = vmatpush.bf16.msra.mxu0 0
        %5514 = vmatpush.bf16.msra.mxu0 0
        %5515 = vmatpush.bf16.msra.mxu0 0
        %5516 = vmatpush.bf16.msra.mxu0 0
        %5517 = vmatpush.bf16.msra.mxu0 0
        %5518 = vmatpush.bf16.msra.mxu0 0
        %5519 = vmatpush.bf16.msra.mxu0 %v2367
        %5520 = vmatmul.bf16.gmra.mxu0 %v1880
        %v5521 = vpop.f32.mrf.mxu0
        %v5522 = vadd.f32 %v596, %v5521
        %v5523 = vpop.f32.mrf.mxu0
        %5524 = vdwg.mxu0
        %5525 = vmatpush.bf16.msra.mxu0 0
        %5526 = vmatpush.bf16.msra.mxu0 0
        %5527 = vmatpush.bf16.msra.mxu0 0
        %5528 = vmatpush.bf16.msra.mxu0 0
        %5529 = vmatpush.bf16.msra.mxu0 0
        %5530 = vmatpush.bf16.msra.mxu0 0
        %5531 = vmatpush.bf16.msra.mxu0 0
        %5532 = vmatpush.bf16.msra.mxu0 %v2370
        %5533 = vmatmul.bf16.gmra.mxu0 %v1880
        %v5534 = vpop.f32.mrf.mxu0
        %v5535 = vadd.f32 %v596, %v5534
        %v5536 = vpop.f32.mrf.mxu0
        %5537 = vdwg.mxu0
        %5538 = vmatpush.bf16.msra.mxu0 0
        %5539 = vmatpush.bf16.msra.mxu0 0
        %5540 = vmatpush.bf16.msra.mxu0 0
        %5541 = vmatpush.bf16.msra.mxu0 0
        %5542 = vmatpush.bf16.msra.mxu0 0
        %5543 = vmatpush.bf16.msra.mxu0 0
        %5544 = vmatpush.bf16.msra.mxu0 0
        %5545 = vmatpush.bf16.msra.mxu0 %v2373
        %5546 = vmatmul.bf16.gmra.mxu0 %v1880
        %v5547 = vpop.f32.mrf.mxu0
        %v5548 = vadd.f32 %v596, %v5547
        %v5549 = vpop.f32.mrf.mxu0
        %5550 = vdwg.mxu0
        %5551 = vmatpush.bf16.msra.mxu0 0
        %5552 = vmatpush.bf16.msra.mxu0 0
        %5553 = vmatpush.bf16.msra.mxu0 0
        %5554 = vmatpush.bf16.msra.mxu0 0
        %5555 = vmatpush.bf16.msra.mxu0 0
        %5556 = vmatpush.bf16.msra.mxu0 0
        %5557 = vmatpush.bf16.msra.mxu0 0
        %5558 = vmatpush.bf16.msra.mxu0 %v2376
        %5559 = vmatmul.bf16.gmra.mxu0 %v1880
        %v5560 = vpop.f32.mrf.mxu0
        %v5561 = vadd.f32 %v596, %v5560
        %v5562 = vpop.f32.mrf.mxu0
        %5563 = vdwg.mxu0
        %5564 = vmatpush.bf16.msra.mxu0 0
        %5565 = vmatpush.bf16.msra.mxu0 0
        %5566 = vmatpush.bf16.msra.mxu0 0
        %5567 = vmatpush.bf16.msra.mxu0 0
        %5568 = vmatpush.bf16.msra.mxu0 0
        %5569 = vmatpush.bf16.msra.mxu0 0
        %5570 = vmatpush.bf16.msra.mxu0 0
        %5571 = vmatpush.bf16.msra.mxu0 %v2379
        %5572 = vmatmul.bf16.gmra.mxu0 %v1880
        %v5573 = vpop.f32.mrf.mxu0
        %v5574 = vadd.f32 %v596, %v5573
        %v5575 = vpop.f32.mrf.mxu0
        %5576 = vdwg.mxu0
        %5577 = vmatpush.bf16.msra.mxu0 0
        %5578 = vmatpush.bf16.msra.mxu0 0
        %5579 = vmatpush.bf16.msra.mxu0 0
        %5580 = vmatpush.bf16.msra.mxu0 0
        %5581 = vmatpush.bf16.msra.mxu0 0
        %5582 = vmatpush.bf16.msra.mxu0 0
        %5583 = vmatpush.bf16.msra.mxu0 0
        %5584 = vmatpush.bf16.msra.mxu0 %v2382
        %5585 = vmatmul.bf16.gmra.mxu0 %v1880
        %v5586 = vpop.f32.mrf.mxu0
        %v5587 = vadd.f32 %v596, %v5586
        %v5588 = vpop.f32.mrf.mxu0
        %5589 = vdwg.mxu0
        %5590 = vmatpush.bf16.msra.mxu0 0
        %5591 = vmatpush.bf16.msra.mxu0 0
        %5592 = vmatpush.bf16.msra.mxu0 0
        %5593 = vmatpush.bf16.msra.mxu0 0
        %5594 = vmatpush.bf16.msra.mxu0 0
        %5595 = vmatpush.bf16.msra.mxu0 0
        %5596 = vmatpush.bf16.msra.mxu0 0
        %5597 = vmatpush.bf16.msra.mxu0 %v2385
        %5598 = vmatmul.bf16.gmra.mxu0 %v1880
        %v5599 = vpop.f32.mrf.mxu0
        %v5600 = vadd.f32 %v596, %v5599
        %v5601 = vpop.f32.mrf.mxu0
        %5602 = vdwg.mxu0
        %5603 = vmatpush.bf16.msra.mxu0 0
        %5604 = vmatpush.bf16.msra.mxu0 0
        %5605 = vmatpush.bf16.msra.mxu0 0
        %5606 = vmatpush.bf16.msra.mxu0 0
        %5607 = vmatpush.bf16.msra.mxu0 0
        %5608 = vmatpush.bf16.msra.mxu0 0
        %5609 = vmatpush.bf16.msra.mxu0 0
        %5610 = vmatpush.bf16.msra.mxu0 %v2388
        %5611 = vmatmul.bf16.gmra.mxu0 %v1880
        %v5612 = vpop.f32.mrf.mxu0
        %v5613 = vadd.f32 %v596, %v5612
        %v5614 = vpop.f32.mrf.mxu0
        %5615 = vdwg.mxu0
        %5616 = vmatpush.bf16.msra.mxu0 0
        %5617 = vmatpush.bf16.msra.mxu0 0
        %5618 = vmatpush.bf16.msra.mxu0 0
        %5619 = vmatpush.bf16.msra.mxu0 0
        %5620 = vmatpush.bf16.msra.mxu0 0
        %5621 = vmatpush.bf16.msra.mxu0 0
        %5622 = vmatpush.bf16.msra.mxu0 0
        %5623 = vmatpush.bf16.msra.mxu0 %v2391
        %5624 = vmatmul.bf16.gmra.mxu0 %v1880
        %v5625 = vpop.f32.mrf.mxu0
        %v5626 = vadd.f32 %v596, %v5625
        %v5627 = vpop.f32.mrf.mxu0
        %5628 = vdwg.mxu0
        %5629 = vmatpush.bf16.msra.mxu0 0
        %5630 = vmatpush.bf16.msra.mxu0 0
        %5631 = vmatpush.bf16.msra.mxu0 0
        %5632 = vmatpush.bf16.msra.mxu0 0
        %5633 = vmatpush.bf16.msra.mxu0 0
        %5634 = vmatpush.bf16.msra.mxu0 0
        %5635 = vmatpush.bf16.msra.mxu0 0
        %5636 = vmatpush.bf16.msra.mxu0 %v2394
        %5637 = vmatmul.bf16.gmra.mxu0 %v1880
        %v5638 = vpop.f32.mrf.mxu0
        %v5639 = vadd.f32 %v596, %v5638
        %v5640 = vpop.f32.mrf.mxu0
        %5641 = vdwg.mxu0
        %5642 = vmatpush.bf16.msra.mxu0 0
        %5643 = vmatpush.bf16.msra.mxu0 0
        %5644 = vmatpush.bf16.msra.mxu0 0
        %5645 = vmatpush.bf16.msra.mxu0 0
        %5646 = vmatpush.bf16.msra.mxu0 0
        %5647 = vmatpush.bf16.msra.mxu0 0
        %5648 = vmatpush.bf16.msra.mxu0 0
        %5649 = vmatpush.bf16.msra.mxu0 %v2397
        %5650 = vmatmul.bf16.gmra.mxu0 %v1880
        %v5651 = vpop.f32.mrf.mxu0
        %v5652 = vadd.f32 %v596, %v5651
        %v5653 = vpop.f32.mrf.mxu0
        %5654 = vdwg.mxu0
        %5655 = vmatpush.bf16.msra.mxu0 0
        %5656 = vmatpush.bf16.msra.mxu0 0
        %5657 = vmatpush.bf16.msra.mxu0 0
        %5658 = vmatpush.bf16.msra.mxu0 0
        %5659 = vmatpush.bf16.msra.mxu0 0
        %5660 = vmatpush.bf16.msra.mxu0 0
        %5661 = vmatpush.bf16.msra.mxu0 0
        %5662 = vmatpush.bf16.msra.mxu0 %v2400
        %5663 = vmatmul.bf16.gmra.mxu0 %v1880
        %v5664 = vpop.f32.mrf.mxu0
        %v5665 = vadd.f32 %v596, %v5664
        %v5666 = vpop.f32.mrf.mxu0
        %5667 = vdwg.mxu0
        %5668 = vmatpush.bf16.msra.mxu0 0
        %5669 = vmatpush.bf16.msra.mxu0 0
        %5670 = vmatpush.bf16.msra.mxu0 0
        %5671 = vmatpush.bf16.msra.mxu0 0
        %5672 = vmatpush.bf16.msra.mxu0 0
        %5673 = vmatpush.bf16.msra.mxu0 0
        %5674 = vmatpush.bf16.msra.mxu0 0
        %5675 = vmatpush.bf16.msra.mxu0 %v2403
        %5676 = vmatmul.bf16.gmra.mxu0 %v1880
        %v5677 = vpop.f32.mrf.mxu0
        %v5678 = vadd.f32 %v596, %v5677
        %v5679 = vpop.f32.mrf.mxu0
        %5680 = vdwg.mxu0
        %5681 = vmatpush.bf16.msra.mxu0 0
        %5682 = vmatpush.bf16.msra.mxu0 0
        %5683 = vmatpush.bf16.msra.mxu0 0
        %5684 = vmatpush.bf16.msra.mxu0 0
        %5685 = vmatpush.bf16.msra.mxu0 0
        %5686 = vmatpush.bf16.msra.mxu0 0
        %5687 = vmatpush.bf16.msra.mxu0 0
        %5688 = vmatpush.bf16.msra.mxu0 %v2406
        %5689 = vmatmul.bf16.gmra.mxu0 %v1880
        %v5690 = vpop.f32.mrf.mxu0
        %v5691 = vadd.f32 %v596, %v5690
        %v5692 = vpop.f32.mrf.mxu0
        %5693 = vdwg.mxu0
        %5694 = vmatpush.bf16.msra.mxu0 0
        %5695 = vmatpush.bf16.msra.mxu0 0
        %5696 = vmatpush.bf16.msra.mxu0 0
        %5697 = vmatpush.bf16.msra.mxu0 0
        %5698 = vmatpush.bf16.msra.mxu0 0
        %5699 = vmatpush.bf16.msra.mxu0 0
        %5700 = vmatpush.bf16.msra.mxu0 0
        %5701 = vmatpush.bf16.msra.mxu0 %v2409
        %5702 = vmatmul.bf16.gmra.mxu0 %v1880
        %v5703 = vpop.f32.mrf.mxu0
        %v5704 = vadd.f32 %v596, %v5703
        %v5705 = vpop.f32.mrf.mxu0
        %5706 = vdwg.mxu0
        %5707 = vmatpush.bf16.msra.mxu0 0
        %5708 = vmatpush.bf16.msra.mxu0 0
        %5709 = vmatpush.bf16.msra.mxu0 0
        %5710 = vmatpush.bf16.msra.mxu0 0
        %5711 = vmatpush.bf16.msra.mxu0 0
        %5712 = vmatpush.bf16.msra.mxu0 0
        %5713 = vmatpush.bf16.msra.mxu0 0
        %5714 = vmatpush.bf16.msra.mxu0 %v2412
        %5715 = vmatmul.bf16.gmra.mxu0 %v1880
        %v5716 = vpop.f32.mrf.mxu0
        %v5717 = vadd.f32 %v596, %v5716
        %v5718 = vpop.f32.mrf.mxu0
        %5719 = vdwg.mxu0
        %5720 = vmatpush.bf16.msra.mxu0 0
        %5721 = vmatpush.bf16.msra.mxu0 0
        %5722 = vmatpush.bf16.msra.mxu0 0
        %5723 = vmatpush.bf16.msra.mxu0 0
        %5724 = vmatpush.bf16.msra.mxu0 0
        %5725 = vmatpush.bf16.msra.mxu0 0
        %5726 = vmatpush.bf16.msra.mxu0 0
        %5727 = vmatpush.bf16.msra.mxu0 %v2415
        %5728 = vmatmul.bf16.gmra.mxu0 %v1880
        %v5729 = vpop.f32.mrf.mxu0
        %v5730 = vadd.f32 %v596, %v5729
        %v5731 = vpop.f32.mrf.mxu0
        %5732 = vdwg.mxu0
        %5733 = vmatpush.bf16.msra.mxu0 0
        %5734 = vmatpush.bf16.msra.mxu0 0
        %5735 = vmatpush.bf16.msra.mxu0 0
        %5736 = vmatpush.bf16.msra.mxu0 0
        %5737 = vmatpush.bf16.msra.mxu0 0
        %5738 = vmatpush.bf16.msra.mxu0 0
        %5739 = vmatpush.bf16.msra.mxu0 0
        %5740 = vmatpush.bf16.msra.mxu0 %v2418
        %5741 = vmatmul.bf16.gmra.mxu0 %v1880
        %v5742 = vpop.f32.mrf.mxu0
        %v5743 = vadd.f32 %v596, %v5742
        %v5744 = vpop.f32.mrf.mxu0
        %5745 = vdwg.mxu0
        %5746 = vmatpush.bf16.msra.mxu0 0
        %5747 = vmatpush.bf16.msra.mxu0 0
        %5748 = vmatpush.bf16.msra.mxu0 0
        %5749 = vmatpush.bf16.msra.mxu0 0
        %5750 = vmatpush.bf16.msra.mxu0 0
        %5751 = vmatpush.bf16.msra.mxu0 0
        %5752 = vmatpush.bf16.msra.mxu0 0
        %5753 = vmatpush.bf16.msra.mxu0 %v2421
        %5754 = vmatmul.bf16.gmra.mxu0 %v1880
        %v5755 = vpop.f32.mrf.mxu0
        %v5756 = vadd.f32 %v596, %v5755
        %v5757 = vpop.f32.mrf.mxu0
        %5758 = vdwg.mxu0
        %5759 = vmatpush.bf16.msra.mxu0 0
        %5760 = vmatpush.bf16.msra.mxu0 0
        %5761 = vmatpush.bf16.msra.mxu0 0
        %5762 = vmatpush.bf16.msra.mxu0 0
        %5763 = vmatpush.bf16.msra.mxu0 0
        %5764 = vmatpush.bf16.msra.mxu0 0
        %5765 = vmatpush.bf16.msra.mxu0 0
        %5766 = vmatpush.bf16.msra.mxu0 %v2424
        %5767 = vmatmul.bf16.gmra.mxu0 %v1880
        %v5768 = vpop.f32.mrf.mxu0
        %v5769 = vadd.f32 %v596, %v5768
        %v5770 = vpop.f32.mrf.mxu0
        %5771 = vdwg.mxu0
        %5772 = vmatpush.bf16.msra.mxu0 0
        %5773 = vmatpush.bf16.msra.mxu0 0
        %5774 = vmatpush.bf16.msra.mxu0 0
        %5775 = vmatpush.bf16.msra.mxu0 0
        %5776 = vmatpush.bf16.msra.mxu0 0
        %5777 = vmatpush.bf16.msra.mxu0 0
        %5778 = vmatpush.bf16.msra.mxu0 0
        %5779 = vmatpush.bf16.msra.mxu0 %v2427
        %5780 = vmatmul.bf16.gmra.mxu0 %v1880
        %v5781 = vpop.f32.mrf.mxu0
        %v5782 = vadd.f32 %v596, %v5781
        %v5783 = vpop.f32.mrf.mxu0
        %5784 = vdwg.mxu0
        %5785 = vmatpush.bf16.msra.mxu0 0
        %5786 = vmatpush.bf16.msra.mxu0 0
        %5787 = vmatpush.bf16.msra.mxu0 0
        %5788 = vmatpush.bf16.msra.mxu0 0
        %5789 = vmatpush.bf16.msra.mxu0 0
        %5790 = vmatpush.bf16.msra.mxu0 0
        %5791 = vmatpush.bf16.msra.mxu0 0
        %5792 = vmatpush.bf16.msra.mxu0 %v2430
        %5793 = vmatmul.bf16.gmra.mxu0 %v1880
        %v5794 = vpop.f32.mrf.mxu0
        %v5795 = vadd.f32 %v596, %v5794
        %v5796 = vpop.f32.mrf.mxu0
        %5797 = vdwg.mxu0
        %5798 = vmatpush.bf16.msra.mxu0 0
        %5799 = vmatpush.bf16.msra.mxu0 0
        %5800 = vmatpush.bf16.msra.mxu0 0
        %5801 = vmatpush.bf16.msra.mxu0 0
        %5802 = vmatpush.bf16.msra.mxu0 0
        %5803 = vmatpush.bf16.msra.mxu0 0
        %5804 = vmatpush.bf16.msra.mxu0 0
        %5805 = vmatpush.bf16.msra.mxu0 %v2433
        %5806 = vmatmul.bf16.gmra.mxu0 %v1880
        %v5807 = vpop.f32.mrf.mxu0
        %v5808 = vadd.f32 %v596, %v5807
        %v5809 = vpop.f32.mrf.mxu0
        %5810 = vdwg.mxu0
        %5811 = vmatpush.bf16.msra.mxu0 0
        %5812 = vmatpush.bf16.msra.mxu0 0
        %5813 = vmatpush.bf16.msra.mxu0 0
        %5814 = vmatpush.bf16.msra.mxu0 0
        %5815 = vmatpush.bf16.msra.mxu0 0
        %5816 = vmatpush.bf16.msra.mxu0 0
        %5817 = vmatpush.bf16.msra.mxu0 0
        %5818 = vmatpush.bf16.msra.mxu0 %v2436
        %5819 = vmatmul.bf16.gmra.mxu0 %v1880
        %v5820 = vpop.f32.mrf.mxu0
        %v5821 = vadd.f32 %v596, %v5820
        %v5822 = vpop.f32.mrf.mxu0
        %5823 = vdwg.mxu0
        %5824 = vmatpush.bf16.msra.mxu0 0
        %5825 = vmatpush.bf16.msra.mxu0 0
        %5826 = vmatpush.bf16.msra.mxu0 0
        %5827 = vmatpush.bf16.msra.mxu0 0
        %5828 = vmatpush.bf16.msra.mxu0 0
        %5829 = vmatpush.bf16.msra.mxu0 0
        %5830 = vmatpush.bf16.msra.mxu0 0
        %5831 = vmatpush.bf16.msra.mxu0 %v2439
        %5832 = vmatmul.bf16.gmra.mxu0 %v1880
        %v5833 = vpop.f32.mrf.mxu0
        %v5834 = vadd.f32 %v596, %v5833
        %v5835 = vpop.f32.mrf.mxu0
        %5836 = vdwg.mxu0
        %5837 = vmatpush.bf16.msra.mxu0 0
        %5838 = vmatpush.bf16.msra.mxu0 0
        %5839 = vmatpush.bf16.msra.mxu0 0
        %5840 = vmatpush.bf16.msra.mxu0 0
        %5841 = vmatpush.bf16.msra.mxu0 0
        %5842 = vmatpush.bf16.msra.mxu0 0
        %5843 = vmatpush.bf16.msra.mxu0 0
        %5844 = vmatpush.bf16.msra.mxu0 %v2442
        %5845 = vmatmul.bf16.gmra.mxu0 %v1880
        %v5846 = vpop.f32.mrf.mxu0
        %v5847 = vadd.f32 %v596, %v5846
        %v5848 = vpop.f32.mrf.mxu0
        %5849 = vdwg.mxu0
        %5850 = vmatpush.bf16.msra.mxu0 0
        %5851 = vmatpush.bf16.msra.mxu0 0
        %5852 = vmatpush.bf16.msra.mxu0 0
        %5853 = vmatpush.bf16.msra.mxu0 0
        %5854 = vmatpush.bf16.msra.mxu0 0
        %5855 = vmatpush.bf16.msra.mxu0 0
        %5856 = vmatpush.bf16.msra.mxu0 0
        %5857 = vmatpush.bf16.msra.mxu0 %v2445
        %5858 = vmatmul.bf16.gmra.mxu0 %v1880
        %v5859 = vpop.f32.mrf.mxu0
        %v5860 = vadd.f32 %v596, %v5859
        %v5861 = vpop.f32.mrf.mxu0
        %5862 = vdwg.mxu0
        %5863 = vmatpush.bf16.msra.mxu0 0
        %5864 = vmatpush.bf16.msra.mxu0 0
        %5865 = vmatpush.bf16.msra.mxu0 0
        %5866 = vmatpush.bf16.msra.mxu0 0
        %5867 = vmatpush.bf16.msra.mxu0 0
        %5868 = vmatpush.bf16.msra.mxu0 0
        %5869 = vmatpush.bf16.msra.mxu0 0
        %5870 = vmatpush.bf16.msra.mxu0 %v2448
        %5871 = vmatmul.bf16.gmra.mxu0 %v1880
        %v5872 = vpop.f32.mrf.mxu0
        %v5873 = vadd.f32 %v596, %v5872
        %v5874 = vpop.f32.mrf.mxu0
        %5875 = vdwg.mxu0
        %5876 = vmatpush.bf16.msra.mxu0 0
        %5877 = vmatpush.bf16.msra.mxu0 0
        %5878 = vmatpush.bf16.msra.mxu0 0
        %5879 = vmatpush.bf16.msra.mxu0 0
        %5880 = vmatpush.bf16.msra.mxu0 0
        %5881 = vmatpush.bf16.msra.mxu0 0
        %5882 = vmatpush.bf16.msra.mxu0 0
        %5883 = vmatpush.bf16.msra.mxu0 %v2451
        %5884 = vmatmul.bf16.gmra.mxu0 %v1880
        %v5885 = vpop.f32.mrf.mxu0
        %v5886 = vadd.f32 %v596, %v5885
        %v5887 = vpop.f32.mrf.mxu0
        %5888 = vdwg.mxu0
        %5889 = vmatpush.bf16.msra.mxu0 0
        %5890 = vmatpush.bf16.msra.mxu0 0
        %5891 = vmatpush.bf16.msra.mxu0 0
        %5892 = vmatpush.bf16.msra.mxu0 0
        %5893 = vmatpush.bf16.msra.mxu0 0
        %5894 = vmatpush.bf16.msra.mxu0 0
        %5895 = vmatpush.bf16.msra.mxu0 0
        %5896 = vmatpush.bf16.msra.mxu0 %v2454
        %5897 = vmatmul.bf16.gmra.mxu0 %v1880
        %v5898 = vpop.f32.mrf.mxu0
        %v5899 = vadd.f32 %v596, %v5898
        %v5900 = vpop.f32.mrf.mxu0
        %5901 = vdwg.mxu0
        %5902 = vmatpush.bf16.msra.mxu0 0
        %5903 = vmatpush.bf16.msra.mxu0 0
        %5904 = vmatpush.bf16.msra.mxu0 0
        %5905 = vmatpush.bf16.msra.mxu0 0
        %5906 = vmatpush.bf16.msra.mxu0 0
        %5907 = vmatpush.bf16.msra.mxu0 0
        %5908 = vmatpush.bf16.msra.mxu0 0
        %5909 = vmatpush.bf16.msra.mxu0 %v2457
        %5910 = vmatmul.bf16.gmra.mxu0 %v1880
        %v5911 = vpop.f32.mrf.mxu0
        %v5912 = vadd.f32 %v596, %v5911
        %v5913 = vpop.f32.mrf.mxu0
        %5914 = vdwg.mxu0
        %5915 = vmatpush.bf16.msra.mxu0 0
        %5916 = vmatpush.bf16.msra.mxu0 0
        %5917 = vmatpush.bf16.msra.mxu0 0
        %5918 = vmatpush.bf16.msra.mxu0 0
        %5919 = vmatpush.bf16.msra.mxu0 0
        %5920 = vmatpush.bf16.msra.mxu0 0
        %5921 = vmatpush.bf16.msra.mxu0 0
        %5922 = vmatpush.bf16.msra.mxu0 %v2460
        %5923 = vmatmul.bf16.gmra.mxu0 %v1880
        %v5924 = vpop.f32.mrf.mxu0
        %v5925 = vadd.f32 %v596, %v5924
        %v5926 = vpop.f32.mrf.mxu0
        %5927 = vdwg.mxu0
        %5928 = vmatpush.bf16.msra.mxu0 0
        %5929 = vmatpush.bf16.msra.mxu0 0
        %5930 = vmatpush.bf16.msra.mxu0 0
        %5931 = vmatpush.bf16.msra.mxu0 0
        %5932 = vmatpush.bf16.msra.mxu0 0
        %5933 = vmatpush.bf16.msra.mxu0 0
        %5934 = vmatpush.bf16.msra.mxu0 0
        %5935 = vmatpush.bf16.msra.mxu0 %v2463
        %5936 = vmatmul.bf16.gmra.mxu0 %v1880
        %v5937 = vpop.f32.mrf.mxu0
        %v5938 = vadd.f32 %v596, %v5937
        %v5939 = vpop.f32.mrf.mxu0
        %5940 = vdwg.mxu0
        %5941 = vmatpush.bf16.msra.mxu0 0
        %5942 = vmatpush.bf16.msra.mxu0 0
        %5943 = vmatpush.bf16.msra.mxu0 0
        %5944 = vmatpush.bf16.msra.mxu0 0
        %5945 = vmatpush.bf16.msra.mxu0 0
        %5946 = vmatpush.bf16.msra.mxu0 0
        %5947 = vmatpush.bf16.msra.mxu0 0
        %5948 = vmatpush.bf16.msra.mxu0 %v2466
        %5949 = vmatmul.bf16.gmra.mxu0 %v1880
        %v5950 = vpop.f32.mrf.mxu0
        %v5951 = vadd.f32 %v596, %v5950
        %v5952 = vpop.f32.mrf.mxu0
        %5953 = vdwg.mxu0
        %5954 = vmatpush.bf16.msra.mxu0 0
        %5955 = vmatpush.bf16.msra.mxu0 0
        %5956 = vmatpush.bf16.msra.mxu0 0
        %5957 = vmatpush.bf16.msra.mxu0 0
        %5958 = vmatpush.bf16.msra.mxu0 0
        %5959 = vmatpush.bf16.msra.mxu0 0
        %5960 = vmatpush.bf16.msra.mxu0 0
        %5961 = vmatpush.bf16.msra.mxu0 %v2469
        %5962 = vmatmul.bf16.gmra.mxu0 %v1880
        %v5963 = vpop.f32.mrf.mxu0
        %v5964 = vadd.f32 %v596, %v5963
        %v5965 = vpop.f32.mrf.mxu0
        %5966 = vdwg.mxu0
        %5967 = vmatpush.bf16.msra.mxu0 0
        %5968 = vmatpush.bf16.msra.mxu0 0
        %5969 = vmatpush.bf16.msra.mxu0 0
        %5970 = vmatpush.bf16.msra.mxu0 0
        %5971 = vmatpush.bf16.msra.mxu0 0
        %5972 = vmatpush.bf16.msra.mxu0 0
        %5973 = vmatpush.bf16.msra.mxu0 0
        %5974 = vmatpush.bf16.msra.mxu0 %v2472
        %5975 = vmatmul.bf16.gmra.mxu0 %v1880
        %v5976 = vpop.f32.mrf.mxu0
        %v5977 = vadd.f32 %v596, %v5976
        %v5978 = vpop.f32.mrf.mxu0
        %5979 = vdwg.mxu0
        %5980 = vmatpush.bf16.msra.mxu0 0
        %5981 = vmatpush.bf16.msra.mxu0 0
        %5982 = vmatpush.bf16.msra.mxu0 0
        %5983 = vmatpush.bf16.msra.mxu0 0
        %5984 = vmatpush.bf16.msra.mxu0 0
        %5985 = vmatpush.bf16.msra.mxu0 0
        %5986 = vmatpush.bf16.msra.mxu0 0
        %5987 = vmatpush.bf16.msra.mxu0 %v2475
        %5988 = vmatmul.bf16.gmra.mxu0 %v1880
        %v5989 = vpop.f32.mrf.mxu0
        %v5990 = vadd.f32 %v596, %v5989
        %v5991 = vpop.f32.mrf.mxu0
        %5992 = vdwg.mxu0
        %5993 = vmatpush.bf16.msra.mxu0 0
        %5994 = vmatpush.bf16.msra.mxu0 0
        %5995 = vmatpush.bf16.msra.mxu0 0
        %5996 = vmatpush.bf16.msra.mxu0 0
        %5997 = vmatpush.bf16.msra.mxu0 0
        %5998 = vmatpush.bf16.msra.mxu0 0
        %5999 = vmatpush.bf16.msra.mxu0 0
        %6000 = vmatpush.bf16.msra.mxu0 %v2478
        %6001 = vmatmul.bf16.gmra.mxu0 %v1880
        %v6002 = vpop.f32.mrf.mxu0
        %v6003 = vadd.f32 %v596, %v6002
        %v6004 = vpop.f32.mrf.mxu0
        %6005 = vdwg.mxu0
        %6006 = vmatpush.bf16.msra.mxu0 0
        %6007 = vmatpush.bf16.msra.mxu0 0
        %6008 = vmatpush.bf16.msra.mxu0 0
        %6009 = vmatpush.bf16.msra.mxu0 0
        %6010 = vmatpush.bf16.msra.mxu0 0
        %6011 = vmatpush.bf16.msra.mxu0 0
        %6012 = vmatpush.bf16.msra.mxu0 0
        %6013 = vmatpush.bf16.msra.mxu0 %v2481
        %6014 = vmatmul.bf16.gmra.mxu0 %v1880
        %v6015 = vpop.f32.mrf.mxu0
        %v6016 = vadd.f32 %v596, %v6015
        %v6017 = vpop.f32.mrf.mxu0
        %6018 = vdwg.mxu0
        %6019 = vmatpush.bf16.msra.mxu0 0
        %6020 = vmatpush.bf16.msra.mxu0 0
        %6021 = vmatpush.bf16.msra.mxu0 0
        %6022 = vmatpush.bf16.msra.mxu0 0
        %6023 = vmatpush.bf16.msra.mxu0 0
        %6024 = vmatpush.bf16.msra.mxu0 0
        %6025 = vmatpush.bf16.msra.mxu0 0
        %6026 = vmatpush.bf16.msra.mxu0 %v2484
        %6027 = vmatmul.bf16.gmra.mxu0 %v1880
        %v6028 = vpop.f32.mrf.mxu0
        %v6029 = vadd.f32 %v596, %v6028
        %v6030 = vpop.f32.mrf.mxu0
        %6031 = vdwg.mxu0
        %6032 = vmatpush.bf16.msra.mxu0 0
        %6033 = vmatpush.bf16.msra.mxu0 0
        %6034 = vmatpush.bf16.msra.mxu0 0
        %6035 = vmatpush.bf16.msra.mxu0 0
        %6036 = vmatpush.bf16.msra.mxu0 0
        %6037 = vmatpush.bf16.msra.mxu0 0
        %6038 = vmatpush.bf16.msra.mxu0 0
        %6039 = vmatpush.bf16.msra.mxu0 %v2487
        %6040 = vmatmul.bf16.gmra.mxu0 %v1880
        %v6041 = vpop.f32.mrf.mxu0
        %v6042 = vadd.f32 %v596, %v6041
        %v6043 = vpop.f32.mrf.mxu0
        %6044 = vdwg.mxu0
        %6045 = vmatpush.bf16.msra.mxu0 0
        %6046 = vmatpush.bf16.msra.mxu0 0
        %6047 = vmatpush.bf16.msra.mxu0 0
        %6048 = vmatpush.bf16.msra.mxu0 0
        %6049 = vmatpush.bf16.msra.mxu0 0
        %6050 = vmatpush.bf16.msra.mxu0 0
        %6051 = vmatpush.bf16.msra.mxu0 0
        %6052 = vmatpush.bf16.msra.mxu0 %v2490
        %6053 = vmatmul.bf16.gmra.mxu0 %v1880
        %v6054 = vpop.f32.mrf.mxu0
        %v6055 = vadd.f32 %v596, %v6054
        %v6056 = vpop.f32.mrf.mxu0
        %6057 = vdwg.mxu0
        %6058 = vmatpush.bf16.msra.mxu0 0
        %6059 = vmatpush.bf16.msra.mxu0 0
        %6060 = vmatpush.bf16.msra.mxu0 0
        %6061 = vmatpush.bf16.msra.mxu0 0
        %6062 = vmatpush.bf16.msra.mxu0 0
        %6063 = vmatpush.bf16.msra.mxu0 0
        %6064 = vmatpush.bf16.msra.mxu0 0
        %6065 = vmatpush.bf16.msra.mxu0 %v2493
        %6066 = vmatmul.bf16.gmra.mxu0 %v1880
        %v6067 = vpop.f32.mrf.mxu0
        %v6068 = vadd.f32 %v596, %v6067
        %v6069 = vpop.f32.mrf.mxu0
        %6070 = vdwg.mxu0
        %6071 = vmatpush.bf16.msra.mxu0 0
        %6072 = vmatpush.bf16.msra.mxu0 0
        %6073 = vmatpush.bf16.msra.mxu0 0
        %6074 = vmatpush.bf16.msra.mxu0 0
        %6075 = vmatpush.bf16.msra.mxu0 0
        %6076 = vmatpush.bf16.msra.mxu0 0
        %6077 = vmatpush.bf16.msra.mxu0 0
        %6078 = vmatpush.bf16.msra.mxu0 %v2496
        %6079 = vmatmul.bf16.gmra.mxu0 %v1880
        %v6080 = vpop.f32.mrf.mxu0
        %v6081 = vadd.f32 %v596, %v6080
        %v6082 = vpop.f32.mrf.mxu0
        %6083 = vdwg.mxu0
        %6084 = vmatpush.bf16.msra.mxu0 0
        %6085 = vmatpush.bf16.msra.mxu0 0
        %6086 = vmatpush.bf16.msra.mxu0 0
        %6087 = vmatpush.bf16.msra.mxu0 0
        %6088 = vmatpush.bf16.msra.mxu0 0
        %6089 = vmatpush.bf16.msra.mxu0 0
        %6090 = vmatpush.bf16.msra.mxu0 0
        %6091 = vmatpush.bf16.msra.mxu0 %v2499
        %6092 = vmatmul.bf16.gmra.mxu0 %v1880
        %v6093 = vpop.f32.mrf.mxu0
        %v6094 = vadd.f32 %v596, %v6093
        %v6095 = vpop.f32.mrf.mxu0
        %6096 = vdwg.mxu0
        %6097 = vmatpush.bf16.msra.mxu0 0
        %6098 = vmatpush.bf16.msra.mxu0 0
        %6099 = vmatpush.bf16.msra.mxu0 0
        %6100 = vmatpush.bf16.msra.mxu0 0
        %6101 = vmatpush.bf16.msra.mxu0 0
        %6102 = vmatpush.bf16.msra.mxu0 0
        %6103 = vmatpush.bf16.msra.mxu0 0
        %6104 = vmatpush.bf16.msra.mxu0 %v2502
        %6105 = vmatmul.bf16.gmra.mxu0 %v1880
        %v6106 = vpop.f32.mrf.mxu0
        %v6107 = vadd.f32 %v596, %v6106
        %v6108 = vpop.f32.mrf.mxu0
        %6109 = vdwg.mxu0
        %6110 = vmatpush.bf16.msra.mxu0 0
        %6111 = vmatpush.bf16.msra.mxu0 0
        %6112 = vmatpush.bf16.msra.mxu0 0
        %6113 = vmatpush.bf16.msra.mxu0 0
        %6114 = vmatpush.bf16.msra.mxu0 0
        %6115 = vmatpush.bf16.msra.mxu0 0
        %6116 = vmatpush.bf16.msra.mxu0 0
        %6117 = vmatpush.bf16.msra.mxu0 %v2505
        %6118 = vmatmul.bf16.gmra.mxu0 %v1880
        %v6119 = vpop.f32.mrf.mxu0
        %v6120 = vadd.f32 %v596, %v6119
        %v6121 = vpop.f32.mrf.mxu0
        %6122 = vdwg.mxu0
        %6123 = vmatpush.bf16.msra.mxu0 0
        %6124 = vmatpush.bf16.msra.mxu0 0
        %6125 = vmatpush.bf16.msra.mxu0 0
        %6126 = vmatpush.bf16.msra.mxu0 0
        %6127 = vmatpush.bf16.msra.mxu0 0
        %6128 = vmatpush.bf16.msra.mxu0 0
        %6129 = vmatpush.bf16.msra.mxu0 0
        %6130 = vmatpush.bf16.msra.mxu0 %v2508
        %6131 = vmatmul.bf16.gmra.mxu0 %v1880
        %v6132 = vpop.f32.mrf.mxu0
        %v6133 = vadd.f32 %v596, %v6132
        %v6134 = vpop.f32.mrf.mxu0
        %6135 = vdwg.mxu0
        %6136 = vmatpush.bf16.msra.mxu0 0
        %6137 = vmatpush.bf16.msra.mxu0 0
        %6138 = vmatpush.bf16.msra.mxu0 0
        %6139 = vmatpush.bf16.msra.mxu0 0
        %6140 = vmatpush.bf16.msra.mxu0 0
        %6141 = vmatpush.bf16.msra.mxu0 0
        %6142 = vmatpush.bf16.msra.mxu0 0
        %6143 = vmatpush.bf16.msra.mxu0 %v2511
        %6144 = vmatmul.bf16.gmra.mxu0 %v1880
        %v6145 = vpop.f32.mrf.mxu0
        %v6146 = vadd.f32 %v596, %v6145
        %v6147 = vpop.f32.mrf.mxu0
        %6148 = vdwg.mxu0
        %6149 = vmatpush.bf16.msra.mxu0 0
        %6150 = vmatpush.bf16.msra.mxu0 0
        %6151 = vmatpush.bf16.msra.mxu0 0
        %6152 = vmatpush.bf16.msra.mxu0 0
        %6153 = vmatpush.bf16.msra.mxu0 0
        %6154 = vmatpush.bf16.msra.mxu0 0
        %6155 = vmatpush.bf16.msra.mxu0 0
        %6156 = vmatpush.bf16.msra.mxu0 %v2514
        %6157 = vmatmul.bf16.gmra.mxu0 %v1880
        %v6158 = vpop.f32.mrf.mxu0
        %v6159 = vadd.f32 %v596, %v6158
        %v6160 = vpop.f32.mrf.mxu0
        %6161 = vdwg.mxu0
        %6162 = vmatpush.bf16.msra.mxu0 0
        %6163 = vmatpush.bf16.msra.mxu0 0
        %6164 = vmatpush.bf16.msra.mxu0 0
        %6165 = vmatpush.bf16.msra.mxu0 0
        %6166 = vmatpush.bf16.msra.mxu0 0
        %6167 = vmatpush.bf16.msra.mxu0 0
        %6168 = vmatpush.bf16.msra.mxu0 0
        %6169 = vmatpush.bf16.msra.mxu0 %v2517
        %6170 = vmatmul.bf16.gmra.mxu0 %v1880
        %v6171 = vpop.f32.mrf.mxu0
        %v6172 = vadd.f32 %v596, %v6171
        %v6173 = vpop.f32.mrf.mxu0
        %6174 = vdwg.mxu0
        %6175 = vmatpush.bf16.msra.mxu0 0
        %6176 = vmatpush.bf16.msra.mxu0 0
        %6177 = vmatpush.bf16.msra.mxu0 0
        %6178 = vmatpush.bf16.msra.mxu0 0
        %6179 = vmatpush.bf16.msra.mxu0 0
        %6180 = vmatpush.bf16.msra.mxu0 0
        %6181 = vmatpush.bf16.msra.mxu0 0
        %6182 = vmatpush.bf16.msra.mxu0 %v2520
        %6183 = vmatmul.bf16.gmra.mxu0 %v1880
        %v6184 = vpop.f32.mrf.mxu0
        %v6185 = vadd.f32 %v596, %v6184
        %v6186 = vpop.f32.mrf.mxu0
        %6187 = vdwg.mxu0
        %6188 = vmatpush.bf16.msra.mxu0 0
        %6189 = vmatpush.bf16.msra.mxu0 0
        %6190 = vmatpush.bf16.msra.mxu0 0
        %6191 = vmatpush.bf16.msra.mxu0 0
        %6192 = vmatpush.bf16.msra.mxu0 0
        %6193 = vmatpush.bf16.msra.mxu0 0
        %6194 = vmatpush.bf16.msra.mxu0 0
        %6195 = vmatpush.bf16.msra.mxu0 %v2523
        %6196 = vmatmul.bf16.gmra.mxu0 %v1880
        %v6197 = vpop.f32.mrf.mxu0
        %v6198 = vadd.f32 %v596, %v6197
        %v6199 = vpop.f32.mrf.mxu0
        %6200 = vdwg.mxu0
        %6201 = vmatpush.bf16.msra.mxu0 0
        %6202 = vmatpush.bf16.msra.mxu0 0
        %6203 = vmatpush.bf16.msra.mxu0 0
        %6204 = vmatpush.bf16.msra.mxu0 0
        %6205 = vmatpush.bf16.msra.mxu0 0
        %6206 = vmatpush.bf16.msra.mxu0 0
        %6207 = vmatpush.bf16.msra.mxu0 0
        %6208 = vmatpush.bf16.msra.mxu0 %v2526
        %6209 = vmatmul.bf16.gmra.mxu0 %v1880
        %v6210 = vpop.f32.mrf.mxu0
        %v6211 = vadd.f32 %v596, %v6210
        %v6212 = vpop.f32.mrf.mxu0
        %6213 = vdwg.mxu0
        %6214 = vmatpush.bf16.msra.mxu0 0
        %6215 = vmatpush.bf16.msra.mxu0 0
        %6216 = vmatpush.bf16.msra.mxu0 0
        %6217 = vmatpush.bf16.msra.mxu0 0
        %6218 = vmatpush.bf16.msra.mxu0 0
        %6219 = vmatpush.bf16.msra.mxu0 0
        %6220 = vmatpush.bf16.msra.mxu0 0
        %6221 = vmatpush.bf16.msra.mxu0 %v2529
        %6222 = vmatmul.bf16.gmra.mxu0 %v1880
        %v6223 = vpop.f32.mrf.mxu0
        %v6224 = vadd.f32 %v596, %v6223
        %v6225 = vpop.f32.mrf.mxu0
        %6226 = vdwg.mxu0
        %6227 = vmatpush.bf16.msra.mxu0 0
        %6228 = vmatpush.bf16.msra.mxu0 0
        %6229 = vmatpush.bf16.msra.mxu0 0
        %6230 = vmatpush.bf16.msra.mxu0 0
        %6231 = vmatpush.bf16.msra.mxu0 0
        %6232 = vmatpush.bf16.msra.mxu0 0
        %6233 = vmatpush.bf16.msra.mxu0 0
        %6234 = vmatpush.bf16.msra.mxu0 %v2532
        %6235 = vmatmul.bf16.gmra.mxu0 %v1880
        %v6236 = vpop.f32.mrf.mxu0
        %v6237 = vadd.f32 %v596, %v6236
        %v6238 = vpop.f32.mrf.mxu0
        %6239 = vdwg.mxu0
        %6240 = vmatpush.bf16.msra.mxu0 0
        %6241 = vmatpush.bf16.msra.mxu0 0
        %6242 = vmatpush.bf16.msra.mxu0 0
        %6243 = vmatpush.bf16.msra.mxu0 0
        %6244 = vmatpush.bf16.msra.mxu0 0
        %6245 = vmatpush.bf16.msra.mxu0 0
        %6246 = vmatpush.bf16.msra.mxu0 0
        %6247 = vmatpush.bf16.msra.mxu0 %v2535
        %6248 = vmatmul.bf16.gmra.mxu0 %v1880
        %v6249 = vpop.f32.mrf.mxu0
        %v6250 = vadd.f32 %v596, %v6249
        %v6251 = vpop.f32.mrf.mxu0
        %6252 = vdwg.mxu0
        %6253 = vmatpush.bf16.msra.mxu0 0
        %6254 = vmatpush.bf16.msra.mxu0 0
        %6255 = vmatpush.bf16.msra.mxu0 0
        %6256 = vmatpush.bf16.msra.mxu0 0
        %6257 = vmatpush.bf16.msra.mxu0 0
        %6258 = vmatpush.bf16.msra.mxu0 0
        %6259 = vmatpush.bf16.msra.mxu0 0
        %6260 = vmatpush.bf16.msra.mxu0 %v2538
        %6261 = vmatmul.bf16.gmra.mxu0 %v1880
        %v6262 = vpop.f32.mrf.mxu0
        %v6263 = vadd.f32 %v596, %v6262
        %v6264 = vpop.f32.mrf.mxu0
        %6265 = vdwg.mxu0
        %6266 = vmatpush.bf16.msra.mxu0 0
        %6267 = vmatpush.bf16.msra.mxu0 0
        %6268 = vmatpush.bf16.msra.mxu0 0
        %6269 = vmatpush.bf16.msra.mxu0 0
        %6270 = vmatpush.bf16.msra.mxu0 0
        %6271 = vmatpush.bf16.msra.mxu0 0
        %6272 = vmatpush.bf16.msra.mxu0 0
        %6273 = vmatpush.bf16.msra.mxu0 %v2541
        %6274 = vmatmul.bf16.gmra.mxu0 %v1880
        %v6275 = vpop.f32.mrf.mxu0
        %v6276 = vadd.f32 %v596, %v6275
        %v6277 = vpop.f32.mrf.mxu0
        %6278 = vdwg.mxu0
        %6279 = vmatpush.bf16.msra.mxu0 0
        %6280 = vmatpush.bf16.msra.mxu0 0
        %6281 = vmatpush.bf16.msra.mxu0 0
        %6282 = vmatpush.bf16.msra.mxu0 0
        %6283 = vmatpush.bf16.msra.mxu0 0
        %6284 = vmatpush.bf16.msra.mxu0 0
        %6285 = vmatpush.bf16.msra.mxu0 0
        %6286 = vmatpush.bf16.msra.mxu0 %v2544
        %6287 = vmatmul.bf16.gmra.mxu0 %v1880
        %v6288 = vpop.f32.mrf.mxu0
        %v6289 = vadd.f32 %v596, %v6288
        %v6290 = vpop.f32.mrf.mxu0
        %6291 = vdwg.mxu0
        %6292 = vmatpush.bf16.msra.mxu0 0
        %6293 = vmatpush.bf16.msra.mxu0 0
        %6294 = vmatpush.bf16.msra.mxu0 0
        %6295 = vmatpush.bf16.msra.mxu0 0
        %6296 = vmatpush.bf16.msra.mxu0 0
        %6297 = vmatpush.bf16.msra.mxu0 0
        %6298 = vmatpush.bf16.msra.mxu0 0
        %6299 = vmatpush.bf16.msra.mxu0 %v2547
        %6300 = vmatmul.bf16.gmra.mxu0 %v1880
        %v6301 = vpop.f32.mrf.mxu0
        %v6302 = vadd.f32 %v596, %v6301
        %v6303 = vpop.f32.mrf.mxu0
        %6304 = vdwg.mxu0
        %6305 = vmatpush.bf16.msra.mxu0 0
        %6306 = vmatpush.bf16.msra.mxu0 0
        %6307 = vmatpush.bf16.msra.mxu0 0
        %6308 = vmatpush.bf16.msra.mxu0 0
        %6309 = vmatpush.bf16.msra.mxu0 0
        %6310 = vmatpush.bf16.msra.mxu0 0
        %6311 = vmatpush.bf16.msra.mxu0 0
        %6312 = vmatpush.bf16.msra.mxu0 %v2550
        %6313 = vmatmul.bf16.gmra.mxu0 %v1880
        %v6314 = vpop.f32.mrf.mxu0
        %v6315 = vadd.f32 %v596, %v6314
        %v6316 = vpop.f32.mrf.mxu0
        %6317 = vdwg.mxu0
        %6318 = vmatpush.bf16.msra.mxu0 0
        %6319 = vmatpush.bf16.msra.mxu0 0
        %6320 = vmatpush.bf16.msra.mxu0 0
        %6321 = vmatpush.bf16.msra.mxu0 0
        %6322 = vmatpush.bf16.msra.mxu0 0
        %6323 = vmatpush.bf16.msra.mxu0 0
        %6324 = vmatpush.bf16.msra.mxu0 0
        %6325 = vmatpush.bf16.msra.mxu0 %v2553
        %6326 = vmatmul.bf16.gmra.mxu0 %v1880
        %v6327 = vpop.f32.mrf.mxu0
        %v6328 = vadd.f32 %v596, %v6327
        %v6329 = vpop.f32.mrf.mxu0
        %6330 = vdwg.mxu0
        %6331 = vmatpush.bf16.msra.mxu0 0
        %6332 = vmatpush.bf16.msra.mxu0 0
        %6333 = vmatpush.bf16.msra.mxu0 0
        %6334 = vmatpush.bf16.msra.mxu0 0
        %6335 = vmatpush.bf16.msra.mxu0 0
        %6336 = vmatpush.bf16.msra.mxu0 0
        %6337 = vmatpush.bf16.msra.mxu0 0
        %6338 = vmatpush.bf16.msra.mxu0 %v2556
        %6339 = vmatmul.bf16.gmra.mxu0 %v1880
        %v6340 = vpop.f32.mrf.mxu0
        %v6341 = vadd.f32 %v596, %v6340
        %v6342 = vpop.f32.mrf.mxu0
        %6343 = vdwg.mxu0
        %6344 = vmatpush.bf16.msra.mxu0 0
        %6345 = vmatpush.bf16.msra.mxu0 0
        %6346 = vmatpush.bf16.msra.mxu0 0
        %6347 = vmatpush.bf16.msra.mxu0 0
        %6348 = vmatpush.bf16.msra.mxu0 0
        %6349 = vmatpush.bf16.msra.mxu0 0
        %6350 = vmatpush.bf16.msra.mxu0 0
        %6351 = vmatpush.bf16.msra.mxu0 %v2559
        %6352 = vmatmul.bf16.gmra.mxu0 %v1880
        %v6353 = vpop.f32.mrf.mxu0
        %v6354 = vadd.f32 %v596, %v6353
        %v6355 = vpop.f32.mrf.mxu0
        %6356 = vdwg.mxu0
        %6357 = vmatpush.bf16.msra.mxu0 0
        %6358 = vmatpush.bf16.msra.mxu0 0
        %6359 = vmatpush.bf16.msra.mxu0 0
        %6360 = vmatpush.bf16.msra.mxu0 0
        %6361 = vmatpush.bf16.msra.mxu0 0
        %6362 = vmatpush.bf16.msra.mxu0 0
        %6363 = vmatpush.bf16.msra.mxu0 0
        %6364 = vmatpush.bf16.msra.mxu0 %v2562
        %6365 = vmatmul.bf16.gmra.mxu0 %v1880
        %v6366 = vpop.f32.mrf.mxu0
        %v6367 = vadd.f32 %v596, %v6366
        %v6368 = vpop.f32.mrf.mxu0
        %6369 = vdwg.mxu0
        %6370 = vmatpush.bf16.msra.mxu0 0
        %6371 = vmatpush.bf16.msra.mxu0 0
        %6372 = vmatpush.bf16.msra.mxu0 0
        %6373 = vmatpush.bf16.msra.mxu0 0
        %6374 = vmatpush.bf16.msra.mxu0 0
        %6375 = vmatpush.bf16.msra.mxu0 0
        %6376 = vmatpush.bf16.msra.mxu0 0
        %6377 = vmatpush.bf16.msra.mxu0 %v2565
        %6378 = vmatmul.bf16.gmra.mxu0 %v1880
        %v6379 = vpop.f32.mrf.mxu0
        %v6380 = vadd.f32 %v596, %v6379
        %v6381 = vpop.f32.mrf.mxu0
        %6382 = vdwg.mxu0
        %6383 = vmatpush.bf16.msra.mxu0 0
        %6384 = vmatpush.bf16.msra.mxu0 0
        %6385 = vmatpush.bf16.msra.mxu0 0
        %6386 = vmatpush.bf16.msra.mxu0 0
        %6387 = vmatpush.bf16.msra.mxu0 0
        %6388 = vmatpush.bf16.msra.mxu0 0
        %6389 = vmatpush.bf16.msra.mxu0 0
        %6390 = vmatpush.bf16.msra.mxu0 %v2568
        %6391 = vmatmul.bf16.gmra.mxu0 %v1880
        %v6392 = vpop.f32.mrf.mxu0
        %v6393 = vadd.f32 %v596, %v6392
        %v6394 = vpop.f32.mrf.mxu0
        %6395 = vdwg.mxu0
        %6396 = vmatpush.bf16.msra.mxu0 0
        %6397 = vmatpush.bf16.msra.mxu0 0
        %6398 = vmatpush.bf16.msra.mxu0 0
        %6399 = vmatpush.bf16.msra.mxu0 0
        %6400 = vmatpush.bf16.msra.mxu0 0
        %6401 = vmatpush.bf16.msra.mxu0 0
        %6402 = vmatpush.bf16.msra.mxu0 0
        %6403 = vmatpush.bf16.msra.mxu0 %v2571
        %6404 = vmatmul.bf16.gmra.mxu0 %v1880
        %v6405 = vpop.f32.mrf.mxu0
        %v6406 = vadd.f32 %v596, %v6405
        %v6407 = vpop.f32.mrf.mxu0
        %6408 = vdwg.mxu0
        %6409 = vmatpush.bf16.msra.mxu0 0
        %6410 = vmatpush.bf16.msra.mxu0 0
        %6411 = vmatpush.bf16.msra.mxu0 0
        %6412 = vmatpush.bf16.msra.mxu0 0
        %6413 = vmatpush.bf16.msra.mxu0 0
        %6414 = vmatpush.bf16.msra.mxu0 0
        %6415 = vmatpush.bf16.msra.mxu0 0
        %6416 = vmatpush.bf16.msra.mxu0 %v2574
        %6417 = vmatmul.bf16.gmra.mxu0 %v1880
        %v6418 = vpop.f32.mrf.mxu0
        %v6419 = vadd.f32 %v596, %v6418
        %v6420 = vpop.f32.mrf.mxu0
        %6421 = vdwg.mxu0
        %6422 = vmatpush.bf16.msra.mxu0 0
        %6423 = vmatpush.bf16.msra.mxu0 0
        %6424 = vmatpush.bf16.msra.mxu0 0
        %6425 = vmatpush.bf16.msra.mxu0 0
        %6426 = vmatpush.bf16.msra.mxu0 0
        %6427 = vmatpush.bf16.msra.mxu0 0
        %6428 = vmatpush.bf16.msra.mxu0 0
        %6429 = vmatpush.bf16.msra.mxu0 %v2577
        %6430 = vmatmul.bf16.gmra.mxu0 %v1880
        %v6431 = vpop.f32.mrf.mxu0
        %v6432 = vadd.f32 %v596, %v6431
        %v6433 = vpop.f32.mrf.mxu0
        %6434 = vdwg.mxu0
        %6435 = vmatpush.bf16.msra.mxu0 0
        %6436 = vmatpush.bf16.msra.mxu0 0
        %6437 = vmatpush.bf16.msra.mxu0 0
        %6438 = vmatpush.bf16.msra.mxu0 0
        %6439 = vmatpush.bf16.msra.mxu0 0
        %6440 = vmatpush.bf16.msra.mxu0 0
        %6441 = vmatpush.bf16.msra.mxu0 0
        %6442 = vmatpush.bf16.msra.mxu0 %v2580
        %6443 = vmatmul.bf16.gmra.mxu0 %v1880
        %v6444 = vpop.f32.mrf.mxu0
        %v6445 = vadd.f32 %v596, %v6444
        %v6446 = vpop.f32.mrf.mxu0
        %6447 = vdwg.mxu0
        %6448 = vmatpush.bf16.msra.mxu0 0
        %6449 = vmatpush.bf16.msra.mxu0 0
        %6450 = vmatpush.bf16.msra.mxu0 0
        %6451 = vmatpush.bf16.msra.mxu0 0
        %6452 = vmatpush.bf16.msra.mxu0 0
        %6453 = vmatpush.bf16.msra.mxu0 0
        %6454 = vmatpush.bf16.msra.mxu0 0
        %6455 = vmatpush.bf16.msra.mxu0 %v2583
        %6456 = vmatmul.bf16.gmra.mxu0 %v1880
        %v6457 = vpop.f32.mrf.mxu0
        %v6458 = vadd.f32 %v596, %v6457
        %v6459 = vpop.f32.mrf.mxu0
        %6460 = vdwg.mxu0
        %6461 = vmatpush.bf16.msra.mxu0 0
        %6462 = vmatpush.bf16.msra.mxu0 0
        %6463 = vmatpush.bf16.msra.mxu0 0
        %6464 = vmatpush.bf16.msra.mxu0 0
        %6465 = vmatpush.bf16.msra.mxu0 0
        %6466 = vmatpush.bf16.msra.mxu0 0
        %6467 = vmatpush.bf16.msra.mxu0 0
        %6468 = vmatpush.bf16.msra.mxu0 %v2586
        %6469 = vmatmul.bf16.gmra.mxu0 %v1880
        %v6470 = vpop.f32.mrf.mxu0
        %v6471 = vadd.f32 %v596, %v6470
        %v6472 = vpop.f32.mrf.mxu0
        %6473 = vdwg.mxu0
        %6474 = vmatpush.bf16.msra.mxu0 0
        %6475 = vmatpush.bf16.msra.mxu0 0
        %6476 = vmatpush.bf16.msra.mxu0 0
        %6477 = vmatpush.bf16.msra.mxu0 0
        %6478 = vmatpush.bf16.msra.mxu0 0
        %6479 = vmatpush.bf16.msra.mxu0 0
        %6480 = vmatpush.bf16.msra.mxu0 0
        %6481 = vmatpush.bf16.msra.mxu0 %v2589
        %6482 = vmatmul.bf16.gmra.mxu0 %v1880
        %v6483 = vpop.f32.mrf.mxu0
        %v6484 = vadd.f32 %v596, %v6483
        %v6485 = vpop.f32.mrf.mxu0
        %6486 = vdwg.mxu0
        %6487 = vmatpush.bf16.msra.mxu0 0
        %6488 = vmatpush.bf16.msra.mxu0 0
        %6489 = vmatpush.bf16.msra.mxu0 0
        %6490 = vmatpush.bf16.msra.mxu0 0
        %6491 = vmatpush.bf16.msra.mxu0 0
        %6492 = vmatpush.bf16.msra.mxu0 0
        %6493 = vmatpush.bf16.msra.mxu0 0
        %6494 = vmatpush.bf16.msra.mxu0 %v2592
        %6495 = vmatmul.bf16.gmra.mxu0 %v1880
        %v6496 = vpop.f32.mrf.mxu0
        %v6497 = vadd.f32 %v596, %v6496
        %v6498 = vpop.f32.mrf.mxu0
        %6499 = vdwg.mxu0
        %6500 = vmatpush.bf16.msra.mxu0 0
        %6501 = vmatpush.bf16.msra.mxu0 0
        %6502 = vmatpush.bf16.msra.mxu0 0
        %6503 = vmatpush.bf16.msra.mxu0 0
        %6504 = vmatpush.bf16.msra.mxu0 0
        %6505 = vmatpush.bf16.msra.mxu0 0
        %6506 = vmatpush.bf16.msra.mxu0 0
        %6507 = vmatpush.bf16.msra.mxu0 %v2595
        %6508 = vmatmul.bf16.gmra.mxu0 %v1880
        %v6509 = vpop.f32.mrf.mxu0
        %v6510 = vadd.f32 %v596, %v6509
        %v6511 = vpop.f32.mrf.mxu0
        %6512 = vdwg.mxu0
        %6513 = vmatpush.bf16.msra.mxu0 0
        %6514 = vmatpush.bf16.msra.mxu0 0
        %6515 = vmatpush.bf16.msra.mxu0 0
        %6516 = vmatpush.bf16.msra.mxu0 0
        %6517 = vmatpush.bf16.msra.mxu0 0
        %6518 = vmatpush.bf16.msra.mxu0 0
        %6519 = vmatpush.bf16.msra.mxu0 0
        %6520 = vmatpush.bf16.msra.mxu0 %v2598
        %6521 = vmatmul.bf16.gmra.mxu0 %v1880
        %v6522 = vpop.f32.mrf.mxu0
        %v6523 = vadd.f32 %v596, %v6522
        %v6524 = vpop.f32.mrf.mxu0
        %6525 = vdwg.mxu0
        %6526 = vmatpush.bf16.msra.mxu0 0
        %6527 = vmatpush.bf16.msra.mxu0 0
        %6528 = vmatpush.bf16.msra.mxu0 0
        %6529 = vmatpush.bf16.msra.mxu0 0
        %6530 = vmatpush.bf16.msra.mxu0 0
        %6531 = vmatpush.bf16.msra.mxu0 0
        %6532 = vmatpush.bf16.msra.mxu0 0
        %6533 = vmatpush.bf16.msra.mxu0 %v2601
        %6534 = vmatmul.bf16.gmra.mxu0 %v1880
        %v6535 = vpop.f32.mrf.mxu0
        %v6536 = vadd.f32 %v596, %v6535
        %v6537 = vpop.f32.mrf.mxu0
        %6538 = vdwg.mxu0
        %6539 = vmatpush.bf16.msra.mxu0 0
        %6540 = vmatpush.bf16.msra.mxu0 0
        %6541 = vmatpush.bf16.msra.mxu0 0
        %6542 = vmatpush.bf16.msra.mxu0 0
        %6543 = vmatpush.bf16.msra.mxu0 0
        %6544 = vmatpush.bf16.msra.mxu0 0
        %6545 = vmatpush.bf16.msra.mxu0 0
        %6546 = vmatpush.bf16.msra.mxu0 %v2604
        %6547 = vmatmul.bf16.gmra.mxu0 %v1880
        %v6548 = vpop.f32.mrf.mxu0
        %v6549 = vadd.f32 %v596, %v6548
        %v6550 = vpop.f32.mrf.mxu0
        %6551 = vdwg.mxu0
        %6552 = vmatpush.bf16.msra.mxu0 0
        %6553 = vmatpush.bf16.msra.mxu0 0
        %6554 = vmatpush.bf16.msra.mxu0 0
        %6555 = vmatpush.bf16.msra.mxu0 0
        %6556 = vmatpush.bf16.msra.mxu0 0
        %6557 = vmatpush.bf16.msra.mxu0 0
        %6558 = vmatpush.bf16.msra.mxu0 0
        %6559 = vmatpush.bf16.msra.mxu0 %v2607
        %6560 = vmatmul.bf16.gmra.mxu0 %v1880
        %v6561 = vpop.f32.mrf.mxu0
        %v6562 = vadd.f32 %v596, %v6561
        %v6563 = vpop.f32.mrf.mxu0
        %6564 = vdwg.mxu0
        %6565 = vmatpush.bf16.msra.mxu0 0
        %6566 = vmatpush.bf16.msra.mxu0 0
        %6567 = vmatpush.bf16.msra.mxu0 0
        %6568 = vmatpush.bf16.msra.mxu0 0
        %6569 = vmatpush.bf16.msra.mxu0 0
        %6570 = vmatpush.bf16.msra.mxu0 0
        %6571 = vmatpush.bf16.msra.mxu0 0
        %6572 = vmatpush.bf16.msra.mxu0 %v2610
        %6573 = vmatmul.bf16.gmra.mxu0 %v1880
        %v6574 = vpop.f32.mrf.mxu0
        %v6575 = vadd.f32 %v596, %v6574
        %v6576 = vpop.f32.mrf.mxu0
        %6577 = vdwg.mxu0
        %6578 = vmatpush.bf16.msra.mxu0 0
        %6579 = vmatpush.bf16.msra.mxu0 0
        %6580 = vmatpush.bf16.msra.mxu0 0
        %6581 = vmatpush.bf16.msra.mxu0 0
        %6582 = vmatpush.bf16.msra.mxu0 0
        %6583 = vmatpush.bf16.msra.mxu0 0
        %6584 = vmatpush.bf16.msra.mxu0 0
        %6585 = vmatpush.bf16.msra.mxu0 %v2613
        %6586 = vmatmul.bf16.gmra.mxu0 %v1880
        %v6587 = vpop.f32.mrf.mxu0
        %v6588 = vadd.f32 %v596, %v6587
        %v6589 = vpop.f32.mrf.mxu0
        %6590 = vdwg.mxu0
        %6591 = vmatpush.bf16.msra.mxu0 0
        %6592 = vmatpush.bf16.msra.mxu0 0
        %6593 = vmatpush.bf16.msra.mxu0 0
        %6594 = vmatpush.bf16.msra.mxu0 0
        %6595 = vmatpush.bf16.msra.mxu0 0
        %6596 = vmatpush.bf16.msra.mxu0 0
        %6597 = vmatpush.bf16.msra.mxu0 0
        %6598 = vmatpush.bf16.msra.mxu0 %v2616
        %6599 = vmatmul.bf16.gmra.mxu0 %v1880
        %v6600 = vpop.f32.mrf.mxu0
        %v6601 = vadd.f32 %v596, %v6600
        %v6602 = vpop.f32.mrf.mxu0
        %6603 = vdwg.mxu0
        %6604 = vmatpush.bf16.msra.mxu0 0
        %6605 = vmatpush.bf16.msra.mxu0 0
        %6606 = vmatpush.bf16.msra.mxu0 0
        %6607 = vmatpush.bf16.msra.mxu0 0
        %6608 = vmatpush.bf16.msra.mxu0 0
        %6609 = vmatpush.bf16.msra.mxu0 0
        %6610 = vmatpush.bf16.msra.mxu0 0
        %6611 = vmatpush.bf16.msra.mxu0 %v2619
        %6612 = vmatmul.bf16.gmra.mxu0 %v1880
        %v6613 = vpop.f32.mrf.mxu0
        %v6614 = vadd.f32 %v596, %v6613
        %v6615 = vpop.f32.mrf.mxu0
        %6616 = vdwg.mxu0
        %6617 = vmatpush.bf16.msra.mxu0 0
        %6618 = vmatpush.bf16.msra.mxu0 0
        %6619 = vmatpush.bf16.msra.mxu0 0
        %6620 = vmatpush.bf16.msra.mxu0 0
        %6621 = vmatpush.bf16.msra.mxu0 0
        %6622 = vmatpush.bf16.msra.mxu0 0
        %6623 = vmatpush.bf16.msra.mxu0 0
        %6624 = vmatpush.bf16.msra.mxu0 %v2622
        %6625 = vmatmul.bf16.gmra.mxu0 %v1880
        %v6626 = vpop.f32.mrf.mxu0
        %v6627 = vadd.f32 %v596, %v6626
        %v6628 = vpop.f32.mrf.mxu0
        %6629 = vdwg.mxu0
        %6630 = vmatpush.bf16.msra.mxu0 0
        %6631 = vmatpush.bf16.msra.mxu0 0
        %6632 = vmatpush.bf16.msra.mxu0 0
        %6633 = vmatpush.bf16.msra.mxu0 0
        %6634 = vmatpush.bf16.msra.mxu0 0
        %6635 = vmatpush.bf16.msra.mxu0 0
        %6636 = vmatpush.bf16.msra.mxu0 0
        %6637 = vmatpush.bf16.msra.mxu0 %v2625
        %6638 = vmatmul.bf16.gmra.mxu0 %v1880
        %v6639 = vpop.f32.mrf.mxu0
        %v6640 = vadd.f32 %v596, %v6639
        %v6641 = vpop.f32.mrf.mxu0
        %6642 = vdwg.mxu0
        %6643 = vmatpush.bf16.msra.mxu0 0
        %6644 = vmatpush.bf16.msra.mxu0 0
        %6645 = vmatpush.bf16.msra.mxu0 0
        %6646 = vmatpush.bf16.msra.mxu0 0
        %6647 = vmatpush.bf16.msra.mxu0 0
        %6648 = vmatpush.bf16.msra.mxu0 0
        %6649 = vmatpush.bf16.msra.mxu0 0
        %6650 = vmatpush.bf16.msra.mxu0 %v2628
        %6651 = vmatmul.bf16.gmra.mxu0 %v1880
        %v6652 = vpop.f32.mrf.mxu0
        %v6653 = vadd.f32 %v596, %v6652
        %v6654 = vpop.f32.mrf.mxu0
        %6655 = vdwg.mxu0
        %6656 = vmatpush.bf16.msra.mxu0 0
        %6657 = vmatpush.bf16.msra.mxu0 0
        %6658 = vmatpush.bf16.msra.mxu0 0
        %6659 = vmatpush.bf16.msra.mxu0 0
        %6660 = vmatpush.bf16.msra.mxu0 0
        %6661 = vmatpush.bf16.msra.mxu0 0
        %6662 = vmatpush.bf16.msra.mxu0 0
        %6663 = vmatpush.bf16.msra.mxu0 %v2631
        %6664 = vmatmul.bf16.gmra.mxu0 %v1880
        %v6665 = vpop.f32.mrf.mxu0
        %v6666 = vadd.f32 %v596, %v6665
        %v6667 = vpop.f32.mrf.mxu0
        %6668 = vdwg.mxu0
        %6669 = vmatpush.bf16.msra.mxu0 0
        %6670 = vmatpush.bf16.msra.mxu0 0
        %6671 = vmatpush.bf16.msra.mxu0 0
        %6672 = vmatpush.bf16.msra.mxu0 0
        %6673 = vmatpush.bf16.msra.mxu0 0
        %6674 = vmatpush.bf16.msra.mxu0 0
        %6675 = vmatpush.bf16.msra.mxu0 0
        %6676 = vmatpush.bf16.msra.mxu0 %v2634
        %6677 = vmatmul.bf16.gmra.mxu0 %v1880
        %v6678 = vpop.f32.mrf.mxu0
        %v6679 = vadd.f32 %v596, %v6678
        %v6680 = vpop.f32.mrf.mxu0
        %6681 = vdwg.mxu0
        %6682 = vmatpush.bf16.msra.mxu0 0
        %6683 = vmatpush.bf16.msra.mxu0 0
        %6684 = vmatpush.bf16.msra.mxu0 0
        %6685 = vmatpush.bf16.msra.mxu0 0
        %6686 = vmatpush.bf16.msra.mxu0 0
        %6687 = vmatpush.bf16.msra.mxu0 0
        %6688 = vmatpush.bf16.msra.mxu0 0
        %6689 = vmatpush.bf16.msra.mxu0 %v2637
        %6690 = vmatmul.bf16.gmra.mxu0 %v1880
        %v6691 = vpop.f32.mrf.mxu0
        %v6692 = vadd.f32 %v596, %v6691
        %v6693 = vpop.f32.mrf.mxu0
        %6694 = vdwg.mxu0
        %6695 = vmatpush.bf16.msra.mxu0 0
        %6696 = vmatpush.bf16.msra.mxu0 0
        %6697 = vmatpush.bf16.msra.mxu0 0
        %6698 = vmatpush.bf16.msra.mxu0 0
        %6699 = vmatpush.bf16.msra.mxu0 0
        %6700 = vmatpush.bf16.msra.mxu0 0
        %6701 = vmatpush.bf16.msra.mxu0 0
        %6702 = vmatpush.bf16.msra.mxu0 %v2640
        %6703 = vmatmul.bf16.gmra.mxu0 %v1880
        %v6704 = vpop.f32.mrf.mxu0
        %v6705 = vadd.f32 %v596, %v6704
        %v6706 = vpop.f32.mrf.mxu0
        %6707 = vdwg.mxu0
        %6708 = vmatpush.bf16.msra.mxu0 0
        %6709 = vmatpush.bf16.msra.mxu0 0
        %6710 = vmatpush.bf16.msra.mxu0 0
        %6711 = vmatpush.bf16.msra.mxu0 0
        %6712 = vmatpush.bf16.msra.mxu0 0
        %6713 = vmatpush.bf16.msra.mxu0 0
        %6714 = vmatpush.bf16.msra.mxu0 0
        %6715 = vmatpush.bf16.msra.mxu0 %v2643
        %6716 = vmatmul.bf16.gmra.mxu0 %v1880
        %v6717 = vpop.f32.mrf.mxu0
        %v6718 = vadd.f32 %v596, %v6717
        %v6719 = vpop.f32.mrf.mxu0
        %6720 = vdwg.mxu0
        %6721 = vmatpush.bf16.msra.mxu0 0
        %6722 = vmatpush.bf16.msra.mxu0 0
        %6723 = vmatpush.bf16.msra.mxu0 0
        %6724 = vmatpush.bf16.msra.mxu0 0
        %6725 = vmatpush.bf16.msra.mxu0 0
        %6726 = vmatpush.bf16.msra.mxu0 0
        %6727 = vmatpush.bf16.msra.mxu0 0
        %6728 = vmatpush.bf16.msra.mxu0 %v2646
        %6729 = vmatmul.bf16.gmra.mxu0 %v1880
        %v6730 = vpop.f32.mrf.mxu0
        %v6731 = vadd.f32 %v596, %v6730
        %v6732 = vpop.f32.mrf.mxu0
        %6733 = vdwg.mxu0
        %6734 = vmatpush.bf16.msra.mxu0 0
        %6735 = vmatpush.bf16.msra.mxu0 0
        %6736 = vmatpush.bf16.msra.mxu0 0
        %6737 = vmatpush.bf16.msra.mxu0 0
        %6738 = vmatpush.bf16.msra.mxu0 0
        %6739 = vmatpush.bf16.msra.mxu0 0
        %6740 = vmatpush.bf16.msra.mxu0 0
        %6741 = vmatpush.bf16.msra.mxu0 %v2649
        %6742 = vmatmul.bf16.gmra.mxu0 %v1880
        %v6743 = vpop.f32.mrf.mxu0
        %v6744 = vadd.f32 %v596, %v6743
        %v6745 = vpop.f32.mrf.mxu0
        %6746 = vdwg.mxu0
        %6747 = vmatpush.bf16.msra.mxu0 0
        %6748 = vmatpush.bf16.msra.mxu0 0
        %6749 = vmatpush.bf16.msra.mxu0 0
        %6750 = vmatpush.bf16.msra.mxu0 0
        %6751 = vmatpush.bf16.msra.mxu0 0
        %6752 = vmatpush.bf16.msra.mxu0 0
        %6753 = vmatpush.bf16.msra.mxu0 0
        %6754 = vmatpush.bf16.msra.mxu0 %v2652
        %6755 = vmatmul.bf16.gmra.mxu0 %v1880
        %v6756 = vpop.f32.mrf.mxu0
        %v6757 = vadd.f32 %v596, %v6756
        %v6758 = vpop.f32.mrf.mxu0
        %6759 = vdwg.mxu0
        %6760 = vmatpush.bf16.msra.mxu0 0
        %6761 = vmatpush.bf16.msra.mxu0 0
        %6762 = vmatpush.bf16.msra.mxu0 0
        %6763 = vmatpush.bf16.msra.mxu0 0
        %6764 = vmatpush.bf16.msra.mxu0 0
        %6765 = vmatpush.bf16.msra.mxu0 0
        %6766 = vmatpush.bf16.msra.mxu0 0
        %6767 = vmatpush.bf16.msra.mxu0 %v2655
        %6768 = vmatmul.bf16.gmra.mxu0 %v1880
        %v6769 = vpop.f32.mrf.mxu0
        %v6770 = vadd.f32 %v596, %v6769
        %v6771 = vpop.f32.mrf.mxu0
        %6772 = vdwg.mxu0
        %6773 = vmatpush.bf16.msra.mxu0 0
        %6774 = vmatpush.bf16.msra.mxu0 0
        %6775 = vmatpush.bf16.msra.mxu0 0
        %6776 = vmatpush.bf16.msra.mxu0 0
        %6777 = vmatpush.bf16.msra.mxu0 0
        %6778 = vmatpush.bf16.msra.mxu0 0
        %6779 = vmatpush.bf16.msra.mxu0 0
        %6780 = vmatpush.bf16.msra.mxu0 %v2658
        %6781 = vmatmul.bf16.gmra.mxu0 %v1880
        %v6782 = vpop.f32.mrf.mxu0
        %v6783 = vadd.f32 %v596, %v6782
        %v6784 = vpop.f32.mrf.mxu0
        %6785 = vdwg.mxu0
        %6786 = vmatpush.bf16.msra.mxu0 0
        %6787 = vmatpush.bf16.msra.mxu0 0
        %6788 = vmatpush.bf16.msra.mxu0 0
        %6789 = vmatpush.bf16.msra.mxu0 0
        %6790 = vmatpush.bf16.msra.mxu0 0
        %6791 = vmatpush.bf16.msra.mxu0 0
        %6792 = vmatpush.bf16.msra.mxu0 0
        %6793 = vmatpush.bf16.msra.mxu0 %v2661
        %6794 = vmatmul.bf16.gmra.mxu0 %v1880
        %v6795 = vpop.f32.mrf.mxu0
        %v6796 = vadd.f32 %v596, %v6795
        %v6797 = vpop.f32.mrf.mxu0
        %6798 = vdwg.mxu0
        %6799 = vmatpush.bf16.msra.mxu0 0
        %6800 = vmatpush.bf16.msra.mxu0 0
        %6801 = vmatpush.bf16.msra.mxu0 0
        %6802 = vmatpush.bf16.msra.mxu0 0
        %6803 = vmatpush.bf16.msra.mxu0 0
        %6804 = vmatpush.bf16.msra.mxu0 0
        %6805 = vmatpush.bf16.msra.mxu0 0
        %6806 = vmatpush.bf16.msra.mxu0 %v2664
        %6807 = vmatmul.bf16.gmra.mxu0 %v1880
        %v6808 = vpop.f32.mrf.mxu0
        %v6809 = vadd.f32 %v596, %v6808
        %v6810 = vpop.f32.mrf.mxu0
        %6811 = vdwg.mxu0
        %6812 = vmatpush.bf16.msra.mxu0 0
        %6813 = vmatpush.bf16.msra.mxu0 0
        %6814 = vmatpush.bf16.msra.mxu0 0
        %6815 = vmatpush.bf16.msra.mxu0 0
        %6816 = vmatpush.bf16.msra.mxu0 0
        %6817 = vmatpush.bf16.msra.mxu0 0
        %6818 = vmatpush.bf16.msra.mxu0 0
        %6819 = vmatpush.bf16.msra.mxu0 %v2667
        %6820 = vmatmul.bf16.gmra.mxu0 %v1880
        %v6821 = vpop.f32.mrf.mxu0
        %v6822 = vadd.f32 %v596, %v6821
        %v6823 = vpop.f32.mrf.mxu0
        %6824 = vdwg.mxu0
        %6825 = vmatpush.bf16.msra.mxu0 0
        %6826 = vmatpush.bf16.msra.mxu0 0
        %6827 = vmatpush.bf16.msra.mxu0 0
        %6828 = vmatpush.bf16.msra.mxu0 0
        %6829 = vmatpush.bf16.msra.mxu0 0
        %6830 = vmatpush.bf16.msra.mxu0 0
        %6831 = vmatpush.bf16.msra.mxu0 0
        %6832 = vmatpush.bf16.msra.mxu0 %v2670
        %6833 = vmatmul.bf16.gmra.mxu0 %v1880
        %v6834 = vpop.f32.mrf.mxu0
        %v6835 = vadd.f32 %v596, %v6834
        %v6836 = vpop.f32.mrf.mxu0
        %6837 = vdwg.mxu0
        %6838 = vmatpush.bf16.msra.mxu0 0
        %6839 = vmatpush.bf16.msra.mxu0 0
        %6840 = vmatpush.bf16.msra.mxu0 0
        %6841 = vmatpush.bf16.msra.mxu0 0
        %6842 = vmatpush.bf16.msra.mxu0 0
        %6843 = vmatpush.bf16.msra.mxu0 0
        %6844 = vmatpush.bf16.msra.mxu0 0
        %6845 = vmatpush.bf16.msra.mxu0 %v2673
        %6846 = vmatmul.bf16.gmra.mxu0 %v1880
        %v6847 = vpop.f32.mrf.mxu0
        %v6848 = vadd.f32 %v596, %v6847
        %v6849 = vpop.f32.mrf.mxu0
        %6850 = vdwg.mxu0
        %6851 = vmatpush.bf16.msra.mxu0 0
        %6852 = vmatpush.bf16.msra.mxu0 0
        %6853 = vmatpush.bf16.msra.mxu0 0
        %6854 = vmatpush.bf16.msra.mxu0 0
        %6855 = vmatpush.bf16.msra.mxu0 0
        %6856 = vmatpush.bf16.msra.mxu0 0
        %6857 = vmatpush.bf16.msra.mxu0 0
        %6858 = vmatpush.bf16.msra.mxu0 %v2676
        %6859 = vmatmul.bf16.gmra.mxu0 %v1880
        %v6860 = vpop.f32.mrf.mxu0
        %v6861 = vadd.f32 %v596, %v6860
        %v6862 = vpop.f32.mrf.mxu0
        %6863 = vdwg.mxu0
        %6864 = vmatpush.bf16.msra.mxu0 0
        %6865 = vmatpush.bf16.msra.mxu0 0
        %6866 = vmatpush.bf16.msra.mxu0 0
        %6867 = vmatpush.bf16.msra.mxu0 0
        %6868 = vmatpush.bf16.msra.mxu0 0
        %6869 = vmatpush.bf16.msra.mxu0 0
        %6870 = vmatpush.bf16.msra.mxu0 0
        %6871 = vmatpush.bf16.msra.mxu0 %v2679
        %6872 = vmatmul.bf16.gmra.mxu0 %v1880
        %v6873 = vpop.f32.mrf.mxu0
        %v6874 = vadd.f32 %v596, %v6873
        %v6875 = vpop.f32.mrf.mxu0
        %6876 = vdwg.mxu0
        %6877 = vmatpush.bf16.msra.mxu0 0
        %6878 = vmatpush.bf16.msra.mxu0 0
        %6879 = vmatpush.bf16.msra.mxu0 0
        %6880 = vmatpush.bf16.msra.mxu0 0
        %6881 = vmatpush.bf16.msra.mxu0 0
        %6882 = vmatpush.bf16.msra.mxu0 0
        %6883 = vmatpush.bf16.msra.mxu0 0
        %6884 = vmatpush.bf16.msra.mxu0 %v2682
        %6885 = vmatmul.bf16.gmra.mxu0 %v1880
        %v6886 = vpop.f32.mrf.mxu0
        %v6887 = vadd.f32 %v596, %v6886
        %v6888 = vpop.f32.mrf.mxu0
        %6889 = vdwg.mxu0
        %6890 = vmatpush.bf16.msra.mxu0 0
        %6891 = vmatpush.bf16.msra.mxu0 0
        %6892 = vmatpush.bf16.msra.mxu0 0
        %6893 = vmatpush.bf16.msra.mxu0 0
        %6894 = vmatpush.bf16.msra.mxu0 0
        %6895 = vmatpush.bf16.msra.mxu0 0
        %6896 = vmatpush.bf16.msra.mxu0 0
        %6897 = vmatpush.bf16.msra.mxu0 %v2685
        %6898 = vmatmul.bf16.gmra.mxu0 %v1880
        %v6899 = vpop.f32.mrf.mxu0
        %v6900 = vadd.f32 %v596, %v6899
        %v6901 = vpop.f32.mrf.mxu0
        %6902 = vdwg.mxu0
        %6903 = vmatpush.bf16.msra.mxu0 0
        %6904 = vmatpush.bf16.msra.mxu0 0
        %6905 = vmatpush.bf16.msra.mxu0 0
        %6906 = vmatpush.bf16.msra.mxu0 0
        %6907 = vmatpush.bf16.msra.mxu0 0
        %6908 = vmatpush.bf16.msra.mxu0 0
        %6909 = vmatpush.bf16.msra.mxu0 0
        %6910 = vmatpush.bf16.msra.mxu0 %v2688
        %6911 = vmatmul.bf16.gmra.mxu0 %v1880
        %v6912 = vpop.f32.mrf.mxu0
        %v6913 = vadd.f32 %v596, %v6912
        %v6914 = vpop.f32.mrf.mxu0
        %6915 = vdwg.mxu0
        %6916 = vmatpush.bf16.msra.mxu0 0
        %6917 = vmatpush.bf16.msra.mxu0 0
        %6918 = vmatpush.bf16.msra.mxu0 0
        %6919 = vmatpush.bf16.msra.mxu0 0
        %6920 = vmatpush.bf16.msra.mxu0 0
        %6921 = vmatpush.bf16.msra.mxu0 0
        %6922 = vmatpush.bf16.msra.mxu0 0
        %6923 = vmatpush.bf16.msra.mxu0 %v2691
        %6924 = vmatmul.bf16.gmra.mxu0 %v1880
        %v6925 = vpop.f32.mrf.mxu0
        %v6926 = vadd.f32 %v596, %v6925
        %v6927 = vpop.f32.mrf.mxu0
        %6928 = vdwg.mxu0
        %6929 = vmatpush.bf16.msra.mxu0 0
        %6930 = vmatpush.bf16.msra.mxu0 0
        %6931 = vmatpush.bf16.msra.mxu0 0
        %6932 = vmatpush.bf16.msra.mxu0 0
        %6933 = vmatpush.bf16.msra.mxu0 0
        %6934 = vmatpush.bf16.msra.mxu0 0
        %6935 = vmatpush.bf16.msra.mxu0 0
        %6936 = vmatpush.bf16.msra.mxu0 %v2694
        %6937 = vmatmul.bf16.gmra.mxu0 %v1880
        %v6938 = vpop.f32.mrf.mxu0
        %v6939 = vadd.f32 %v596, %v6938
        %v6940 = vpop.f32.mrf.mxu0
        %6941 = vdwg.mxu0
        %6942 = vmatpush.bf16.msra.mxu0 0
        %6943 = vmatpush.bf16.msra.mxu0 0
        %6944 = vmatpush.bf16.msra.mxu0 0
        %6945 = vmatpush.bf16.msra.mxu0 0
        %6946 = vmatpush.bf16.msra.mxu0 0
        %6947 = vmatpush.bf16.msra.mxu0 0
        %6948 = vmatpush.bf16.msra.mxu0 0
        %6949 = vmatpush.bf16.msra.mxu0 %v2697
        %6950 = vmatmul.bf16.gmra.mxu0 %v1880
        %v6951 = vpop.f32.mrf.mxu0
        %v6952 = vadd.f32 %v596, %v6951
        %v6953 = vpop.f32.mrf.mxu0
        %6954 = vdwg.mxu0
        %6955 = vmatpush.bf16.msra.mxu0 0
        %6956 = vmatpush.bf16.msra.mxu0 0
        %6957 = vmatpush.bf16.msra.mxu0 0
        %6958 = vmatpush.bf16.msra.mxu0 0
        %6959 = vmatpush.bf16.msra.mxu0 0
        %6960 = vmatpush.bf16.msra.mxu0 0
        %6961 = vmatpush.bf16.msra.mxu0 0
        %6962 = vmatpush.bf16.msra.mxu0 %v2700
        %6963 = vmatmul.bf16.gmra.mxu0 %v1880
        %v6964 = vpop.f32.mrf.mxu0
        %v6965 = vadd.f32 %v596, %v6964
        %v6966 = vpop.f32.mrf.mxu0
        %6967 = vdwg.mxu0
        %6968 = vmatpush.bf16.msra.mxu0 0
        %6969 = vmatpush.bf16.msra.mxu0 0
        %6970 = vmatpush.bf16.msra.mxu0 0
        %6971 = vmatpush.bf16.msra.mxu0 0
        %6972 = vmatpush.bf16.msra.mxu0 0
        %6973 = vmatpush.bf16.msra.mxu0 0
        %6974 = vmatpush.bf16.msra.mxu0 0
        %6975 = vmatpush.bf16.msra.mxu0 %v2703
        %6976 = vmatmul.bf16.gmra.mxu0 %v1880
        %v6977 = vpop.f32.mrf.mxu0
        %v6978 = vadd.f32 %v596, %v6977
        %v6979 = vpop.f32.mrf.mxu0
        %6980 = vdwg.mxu0
        %6981 = vmatpush.bf16.msra.mxu0 0
        %6982 = vmatpush.bf16.msra.mxu0 0
        %6983 = vmatpush.bf16.msra.mxu0 0
        %6984 = vmatpush.bf16.msra.mxu0 0
        %6985 = vmatpush.bf16.msra.mxu0 0
        %6986 = vmatpush.bf16.msra.mxu0 0
        %6987 = vmatpush.bf16.msra.mxu0 0
        %6988 = vmatpush.bf16.msra.mxu0 %v2706
        %6989 = vmatmul.bf16.gmra.mxu0 %v1880
        %v6990 = vpop.f32.mrf.mxu0
        %v6991 = vadd.f32 %v596, %v6990
        %v6992 = vpop.f32.mrf.mxu0
        %6993 = vdwg.mxu0
        %6994 = vmatpush.bf16.msra.mxu0 0
        %6995 = vmatpush.bf16.msra.mxu0 0
        %6996 = vmatpush.bf16.msra.mxu0 0
        %6997 = vmatpush.bf16.msra.mxu0 0
        %6998 = vmatpush.bf16.msra.mxu0 0
        %6999 = vmatpush.bf16.msra.mxu0 0
        %7000 = vmatpush.bf16.msra.mxu0 0
        %7001 = vmatpush.bf16.msra.mxu0 %v2709
        %7002 = vmatmul.bf16.gmra.mxu0 %v1880
        %v7003 = vpop.f32.mrf.mxu0
        %v7004 = vadd.f32 %v596, %v7003
        %v7005 = vpop.f32.mrf.mxu0
        %7006 = vdwg.mxu0
        %7007 = vmatpush.bf16.msra.mxu0 0
        %7008 = vmatpush.bf16.msra.mxu0 0
        %7009 = vmatpush.bf16.msra.mxu0 0
        %7010 = vmatpush.bf16.msra.mxu0 0
        %7011 = vmatpush.bf16.msra.mxu0 0
        %7012 = vmatpush.bf16.msra.mxu0 0
        %7013 = vmatpush.bf16.msra.mxu0 0
        %7014 = vmatpush.bf16.msra.mxu0 %v2712
        %7015 = vmatmul.bf16.gmra.mxu0 %v1880
        %v7016 = vpop.f32.mrf.mxu0
        %v7017 = vadd.f32 %v596, %v7016
        %v7018 = vpop.f32.mrf.mxu0
        %7019 = vdwg.mxu0
        %7020 = vmatpush.bf16.msra.mxu0 0
        %7021 = vmatpush.bf16.msra.mxu0 0
        %7022 = vmatpush.bf16.msra.mxu0 0
        %7023 = vmatpush.bf16.msra.mxu0 0
        %7024 = vmatpush.bf16.msra.mxu0 0
        %7025 = vmatpush.bf16.msra.mxu0 0
        %7026 = vmatpush.bf16.msra.mxu0 0
        %7027 = vmatpush.bf16.msra.mxu0 %v2715
        %7028 = vmatmul.bf16.gmra.mxu0 %v1880
        %v7029 = vpop.f32.mrf.mxu0
        %v7030 = vadd.f32 %v596, %v7029
        %v7031 = vpop.f32.mrf.mxu0
        %7032 = vdwg.mxu0
        %7033 = vmatpush.bf16.msra.mxu0 0
        %7034 = vmatpush.bf16.msra.mxu0 0
        %7035 = vmatpush.bf16.msra.mxu0 0
        %7036 = vmatpush.bf16.msra.mxu0 0
        %7037 = vmatpush.bf16.msra.mxu0 0
        %7038 = vmatpush.bf16.msra.mxu0 0
        %7039 = vmatpush.bf16.msra.mxu0 0
        %7040 = vmatpush.bf16.msra.mxu0 %v2718
        %7041 = vmatmul.bf16.gmra.mxu0 %v1880
        %v7042 = vpop.f32.mrf.mxu0
        %v7043 = vadd.f32 %v596, %v7042
        %v7044 = vpop.f32.mrf.mxu0
        %7045 = vdwg.mxu0
        %7046 = vmatpush.bf16.msra.mxu0 0
        %7047 = vmatpush.bf16.msra.mxu0 0
        %7048 = vmatpush.bf16.msra.mxu0 0
        %7049 = vmatpush.bf16.msra.mxu0 0
        %7050 = vmatpush.bf16.msra.mxu0 0
        %7051 = vmatpush.bf16.msra.mxu0 0
        %7052 = vmatpush.bf16.msra.mxu0 0
        %7053 = vmatpush.bf16.msra.mxu0 %v2721
        %7054 = vmatmul.bf16.gmra.mxu0 %v1880
        %v7055 = vpop.f32.mrf.mxu0
        %v7056 = vadd.f32 %v596, %v7055
        %v7057 = vpop.f32.mrf.mxu0
        %7058 = vdwg.mxu0
        %7059 = vmatpush.bf16.msra.mxu0 0
        %7060 = vmatpush.bf16.msra.mxu0 0
        %7061 = vmatpush.bf16.msra.mxu0 0
        %7062 = vmatpush.bf16.msra.mxu0 0
        %7063 = vmatpush.bf16.msra.mxu0 0
        %7064 = vmatpush.bf16.msra.mxu0 0
        %7065 = vmatpush.bf16.msra.mxu0 0
        %7066 = vmatpush.bf16.msra.mxu0 %v2724
        %7067 = vmatmul.bf16.gmra.mxu0 %v1880
        %v7068 = vpop.f32.mrf.mxu0
        %v7069 = vadd.f32 %v596, %v7068
        %v7070 = vpop.f32.mrf.mxu0
        %7071 = vdwg.mxu0
        %7072 = vmatpush.bf16.msra.mxu0 0
        %7073 = vmatpush.bf16.msra.mxu0 0
        %7074 = vmatpush.bf16.msra.mxu0 0
        %7075 = vmatpush.bf16.msra.mxu0 0
        %7076 = vmatpush.bf16.msra.mxu0 0
        %7077 = vmatpush.bf16.msra.mxu0 0
        %7078 = vmatpush.bf16.msra.mxu0 0
        %7079 = vmatpush.bf16.msra.mxu0 %v2727
        %7080 = vmatmul.bf16.gmra.mxu0 %v1880
        %v7081 = vpop.f32.mrf.mxu0
        %v7082 = vadd.f32 %v596, %v7081
        %v7083 = vpop.f32.mrf.mxu0
        %7084 = vdwg.mxu0
        %7085 = vmatpush.bf16.msra.mxu0 0
        %7086 = vmatpush.bf16.msra.mxu0 0
        %7087 = vmatpush.bf16.msra.mxu0 0
        %7088 = vmatpush.bf16.msra.mxu0 0
        %7089 = vmatpush.bf16.msra.mxu0 0
        %7090 = vmatpush.bf16.msra.mxu0 0
        %7091 = vmatpush.bf16.msra.mxu0 0
        %7092 = vmatpush.bf16.msra.mxu0 %v2730
        %7093 = vmatmul.bf16.gmra.mxu0 %v1880
        %v7094 = vpop.f32.mrf.mxu0
        %v7095 = vadd.f32 %v596, %v7094
        %v7096 = vpop.f32.mrf.mxu0
        %7097 = vdwg.mxu0
        %7098 = vmatpush.bf16.msra.mxu0 0
        %7099 = vmatpush.bf16.msra.mxu0 0
        %7100 = vmatpush.bf16.msra.mxu0 0
        %7101 = vmatpush.bf16.msra.mxu0 0
        %7102 = vmatpush.bf16.msra.mxu0 0
        %7103 = vmatpush.bf16.msra.mxu0 0
        %7104 = vmatpush.bf16.msra.mxu0 0
        %7105 = vmatpush.bf16.msra.mxu0 %v2733
        %7106 = vmatmul.bf16.gmra.mxu0 %v1880
        %v7107 = vpop.f32.mrf.mxu0
        %v7108 = vadd.f32 %v596, %v7107
        %v7109 = vpop.f32.mrf.mxu0
        %7110 = vdwg.mxu0
        %7111 = vmatpush.bf16.msra.mxu0 0
        %7112 = vmatpush.bf16.msra.mxu0 0
        %7113 = vmatpush.bf16.msra.mxu0 0
        %7114 = vmatpush.bf16.msra.mxu0 0
        %7115 = vmatpush.bf16.msra.mxu0 0
        %7116 = vmatpush.bf16.msra.mxu0 0
        %7117 = vmatpush.bf16.msra.mxu0 0
        %7118 = vmatpush.bf16.msra.mxu0 %v2736
        %7119 = vmatmul.bf16.gmra.mxu0 %v1880
        %v7120 = vpop.f32.mrf.mxu0
        %v7121 = vadd.f32 %v596, %v7120
        %v7122 = vpop.f32.mrf.mxu0
        %7123 = vdwg.mxu0
        %7124 = vmatpush.bf16.msra.mxu0 0
        %7125 = vmatpush.bf16.msra.mxu0 0
        %7126 = vmatpush.bf16.msra.mxu0 0
        %7127 = vmatpush.bf16.msra.mxu0 0
        %7128 = vmatpush.bf16.msra.mxu0 0
        %7129 = vmatpush.bf16.msra.mxu0 0
        %7130 = vmatpush.bf16.msra.mxu0 0
        %7131 = vmatpush.bf16.msra.mxu0 %v2739
        %7132 = vmatmul.bf16.gmra.mxu0 %v1880
        %v7133 = vpop.f32.mrf.mxu0
        %v7134 = vadd.f32 %v596, %v7133
        %v7135 = vpop.f32.mrf.mxu0
        %7136 = vdwg.mxu0
        %7137 = vmatpush.bf16.msra.mxu0 0
        %7138 = vmatpush.bf16.msra.mxu0 0
        %7139 = vmatpush.bf16.msra.mxu0 0
        %7140 = vmatpush.bf16.msra.mxu0 0
        %7141 = vmatpush.bf16.msra.mxu0 0
        %7142 = vmatpush.bf16.msra.mxu0 0
        %7143 = vmatpush.bf16.msra.mxu0 0
        %7144 = vmatpush.bf16.msra.mxu0 %v2742
        %7145 = vmatmul.bf16.gmra.mxu0 %v1880
        %v7146 = vpop.f32.mrf.mxu0
        %v7147 = vadd.f32 %v596, %v7146
        %v7148 = vpop.f32.mrf.mxu0
        %7149 = vdwg.mxu0
        %7150 = vmatpush.bf16.msra.mxu0 0
        %7151 = vmatpush.bf16.msra.mxu0 0
        %7152 = vmatpush.bf16.msra.mxu0 0
        %7153 = vmatpush.bf16.msra.mxu0 0
        %7154 = vmatpush.bf16.msra.mxu0 0
        %7155 = vmatpush.bf16.msra.mxu0 0
        %7156 = vmatpush.bf16.msra.mxu0 0
        %7157 = vmatpush.bf16.msra.mxu0 %v2745
        %7158 = vmatmul.bf16.gmra.mxu0 %v1880
        %v7159 = vpop.f32.mrf.mxu0
        %v7160 = vadd.f32 %v596, %v7159
        %v7161 = vpop.f32.mrf.mxu0
        %7162 = vdwg.mxu0
        %7163 = vmatpush.bf16.msra.mxu0 0
        %7164 = vmatpush.bf16.msra.mxu0 0
        %7165 = vmatpush.bf16.msra.mxu0 0
        %7166 = vmatpush.bf16.msra.mxu0 0
        %7167 = vmatpush.bf16.msra.mxu0 0
        %7168 = vmatpush.bf16.msra.mxu0 0
        %7169 = vmatpush.bf16.msra.mxu0 0
        %7170 = vmatpush.bf16.msra.mxu0 %v2748
        %7171 = vmatmul.bf16.gmra.mxu0 %v1880
        %v7172 = vpop.f32.mrf.mxu0
        %v7173 = vadd.f32 %v596, %v7172
        %v7174 = vpop.f32.mrf.mxu0
        %7175 = vdwg.mxu0
        %7176 = vmatpush.bf16.msra.mxu0 0
        %7177 = vmatpush.bf16.msra.mxu0 0
        %7178 = vmatpush.bf16.msra.mxu0 0
        %7179 = vmatpush.bf16.msra.mxu0 0
        %7180 = vmatpush.bf16.msra.mxu0 0
        %7181 = vmatpush.bf16.msra.mxu0 0
        %7182 = vmatpush.bf16.msra.mxu0 0
        %7183 = vmatpush.bf16.msra.mxu0 %v2751
        %7184 = vmatmul.bf16.gmra.mxu0 %v1880
        %v7185 = vpop.f32.mrf.mxu0
        %v7186 = vadd.f32 %v596, %v7185
        %v7187 = vpop.f32.mrf.mxu0
        %7188 = vdwg.mxu0
        %7189 = vmatpush.bf16.msra.mxu0 0
        %7190 = vmatpush.bf16.msra.mxu0 0
        %7191 = vmatpush.bf16.msra.mxu0 0
        %7192 = vmatpush.bf16.msra.mxu0 0
        %7193 = vmatpush.bf16.msra.mxu0 0
        %7194 = vmatpush.bf16.msra.mxu0 0
        %7195 = vmatpush.bf16.msra.mxu0 0
        %7196 = vmatpush.bf16.msra.mxu0 %v2754
        %7197 = vmatmul.bf16.gmra.mxu0 %v1880
        %v7198 = vpop.f32.mrf.mxu0
        %v7199 = vadd.f32 %v596, %v7198
        %v7200 = vpop.f32.mrf.mxu0
        %7201 = vdwg.mxu0
        %7202 = vmatpush.bf16.msra.mxu0 0
        %7203 = vmatpush.bf16.msra.mxu0 0
        %7204 = vmatpush.bf16.msra.mxu0 0
        %7205 = vmatpush.bf16.msra.mxu0 0
        %7206 = vmatpush.bf16.msra.mxu0 0
        %7207 = vmatpush.bf16.msra.mxu0 0
        %7208 = vmatpush.bf16.msra.mxu0 0
        %7209 = vmatpush.bf16.msra.mxu0 %v2757
        %7210 = vmatmul.bf16.gmra.mxu0 %v1880
        %v7211 = vpop.f32.mrf.mxu0
        %v7212 = vadd.f32 %v596, %v7211
        %v7213 = vpop.f32.mrf.mxu0
        %7214 = vdwg.mxu0
        %7215 = vmatpush.bf16.msra.mxu0 0
        %7216 = vmatpush.bf16.msra.mxu0 0
        %7217 = vmatpush.bf16.msra.mxu0 0
        %7218 = vmatpush.bf16.msra.mxu0 0
        %7219 = vmatpush.bf16.msra.mxu0 0
        %7220 = vmatpush.bf16.msra.mxu0 0
        %7221 = vmatpush.bf16.msra.mxu0 0
        %7222 = vmatpush.bf16.msra.mxu0 %v2760
        %7223 = vmatmul.bf16.gmra.mxu0 %v1880
        %v7224 = vpop.f32.mrf.mxu0
        %v7225 = vadd.f32 %v596, %v7224
        %v7226 = vpop.f32.mrf.mxu0
        %7227 = vdwg.mxu0
        %7228 = vmatpush.bf16.msra.mxu0 0
        %7229 = vmatpush.bf16.msra.mxu0 0
        %7230 = vmatpush.bf16.msra.mxu0 0
        %7231 = vmatpush.bf16.msra.mxu0 0
        %7232 = vmatpush.bf16.msra.mxu0 0
        %7233 = vmatpush.bf16.msra.mxu0 0
        %7234 = vmatpush.bf16.msra.mxu0 0
        %7235 = vmatpush.bf16.msra.mxu0 %v2763
        %7236 = vmatmul.bf16.gmra.mxu0 %v1880
        %v7237 = vpop.f32.mrf.mxu0
        %v7238 = vadd.f32 %v596, %v7237
        %v7239 = vpop.f32.mrf.mxu0
        %7240 = vdwg.mxu0
        %7241 = vmatpush.bf16.msra.mxu0 0
        %7242 = vmatpush.bf16.msra.mxu0 0
        %7243 = vmatpush.bf16.msra.mxu0 0
        %7244 = vmatpush.bf16.msra.mxu0 0
        %7245 = vmatpush.bf16.msra.mxu0 0
        %7246 = vmatpush.bf16.msra.mxu0 0
        %7247 = vmatpush.bf16.msra.mxu0 0
        %7248 = vmatpush.bf16.msra.mxu0 %v2766
        %7249 = vmatmul.bf16.gmra.mxu0 %v1880
        %v7250 = vpop.f32.mrf.mxu0
        %v7251 = vadd.f32 %v596, %v7250
        %v7252 = vpop.f32.mrf.mxu0
        %7253 = vdwg.mxu0
        %7254 = vmatpush.bf16.msra.mxu0 0
        %7255 = vmatpush.bf16.msra.mxu0 0
        %7256 = vmatpush.bf16.msra.mxu0 0
        %7257 = vmatpush.bf16.msra.mxu0 0
        %7258 = vmatpush.bf16.msra.mxu0 0
        %7259 = vmatpush.bf16.msra.mxu0 0
        %7260 = vmatpush.bf16.msra.mxu0 0
        %7261 = vmatpush.bf16.msra.mxu0 %v2769
        %7262 = vmatmul.bf16.gmra.mxu0 %v1880
        %v7263 = vpop.f32.mrf.mxu0
        %v7264 = vadd.f32 %v596, %v7263
        %v7265 = vpop.f32.mrf.mxu0
        %7266 = vdwg.mxu0
        %7267 = vmatpush.bf16.msra.mxu0 0
        %7268 = vmatpush.bf16.msra.mxu0 0
        %7269 = vmatpush.bf16.msra.mxu0 0
        %7270 = vmatpush.bf16.msra.mxu0 0
        %7271 = vmatpush.bf16.msra.mxu0 0
        %7272 = vmatpush.bf16.msra.mxu0 0
        %7273 = vmatpush.bf16.msra.mxu0 0
        %7274 = vmatpush.bf16.msra.mxu0 %v2772
        %7275 = vmatmul.bf16.gmra.mxu0 %v1880
        %v7276 = vpop.f32.mrf.mxu0
        %v7277 = vadd.f32 %v596, %v7276
        %v7278 = vpop.f32.mrf.mxu0
        %7279 = vdwg.mxu0
        %7280 = vmatpush.bf16.msra.mxu0 0
        %7281 = vmatpush.bf16.msra.mxu0 0
        %7282 = vmatpush.bf16.msra.mxu0 0
        %7283 = vmatpush.bf16.msra.mxu0 0
        %7284 = vmatpush.bf16.msra.mxu0 0
        %7285 = vmatpush.bf16.msra.mxu0 0
        %7286 = vmatpush.bf16.msra.mxu0 0
        %7287 = vmatpush.bf16.msra.mxu0 %v2775
        %7288 = vmatmul.bf16.gmra.mxu0 %v1880
        %v7289 = vpop.f32.mrf.mxu0
        %v7290 = vadd.f32 %v596, %v7289
        %v7291 = vpop.f32.mrf.mxu0
        %7292 = vdwg.mxu0
        %7293 = vmatpush.bf16.msra.mxu0 0
        %7294 = vmatpush.bf16.msra.mxu0 0
        %7295 = vmatpush.bf16.msra.mxu0 0
        %7296 = vmatpush.bf16.msra.mxu0 0
        %7297 = vmatpush.bf16.msra.mxu0 0
        %7298 = vmatpush.bf16.msra.mxu0 0
        %7299 = vmatpush.bf16.msra.mxu0 0
        %7300 = vmatpush.bf16.msra.mxu0 %v2778
        %7301 = vmatmul.bf16.gmra.mxu0 %v1880
        %v7302 = vpop.f32.mrf.mxu0
        %v7303 = vadd.f32 %v596, %v7302
        %v7304 = vpop.f32.mrf.mxu0
        %7305 = vdwg.mxu0
        %7306 = vmatpush.bf16.msra.mxu0 0
        %7307 = vmatpush.bf16.msra.mxu0 0
        %7308 = vmatpush.bf16.msra.mxu0 0
        %7309 = vmatpush.bf16.msra.mxu0 0
        %7310 = vmatpush.bf16.msra.mxu0 0
        %7311 = vmatpush.bf16.msra.mxu0 0
        %7312 = vmatpush.bf16.msra.mxu0 0
        %7313 = vmatpush.bf16.msra.mxu0 %v2781
        %7314 = vmatmul.bf16.gmra.mxu0 %v1880
        %v7315 = vpop.f32.mrf.mxu0
        %v7316 = vadd.f32 %v596, %v7315
        %v7317 = vpop.f32.mrf.mxu0
        %7318 = vdwg.mxu0
        %7319 = vmatpush.bf16.msra.mxu0 0
        %7320 = vmatpush.bf16.msra.mxu0 0
        %7321 = vmatpush.bf16.msra.mxu0 0
        %7322 = vmatpush.bf16.msra.mxu0 0
        %7323 = vmatpush.bf16.msra.mxu0 0
        %7324 = vmatpush.bf16.msra.mxu0 0
        %7325 = vmatpush.bf16.msra.mxu0 0
        %7326 = vmatpush.bf16.msra.mxu0 %v2784
        %7327 = vmatmul.bf16.gmra.mxu0 %v1880
        %v7328 = vpop.f32.mrf.mxu0
        %v7329 = vadd.f32 %v596, %v7328
        %v7330 = vpop.f32.mrf.mxu0
        %7331 = vdwg.mxu0
        %7332 = vmatpush.bf16.msra.mxu0 0
        %7333 = vmatpush.bf16.msra.mxu0 0
        %7334 = vmatpush.bf16.msra.mxu0 0
        %7335 = vmatpush.bf16.msra.mxu0 0
        %7336 = vmatpush.bf16.msra.mxu0 0
        %7337 = vmatpush.bf16.msra.mxu0 0
        %7338 = vmatpush.bf16.msra.mxu0 0
        %7339 = vmatpush.bf16.msra.mxu0 %v2787
        %7340 = vmatmul.bf16.gmra.mxu0 %v1880
        %v7341 = vpop.f32.mrf.mxu0
        %v7342 = vadd.f32 %v596, %v7341
        %v7343 = vpop.f32.mrf.mxu0
        %7344 = vdwg.mxu0
        %7345 = vmatpush.bf16.msra.mxu0 0
        %7346 = vmatpush.bf16.msra.mxu0 0
        %7347 = vmatpush.bf16.msra.mxu0 0
        %7348 = vmatpush.bf16.msra.mxu0 0
        %7349 = vmatpush.bf16.msra.mxu0 0
        %7350 = vmatpush.bf16.msra.mxu0 0
        %7351 = vmatpush.bf16.msra.mxu0 0
        %7352 = vmatpush.bf16.msra.mxu0 %v2790
        %7353 = vmatmul.bf16.gmra.mxu0 %v1880
        %v7354 = vpop.f32.mrf.mxu0
        %v7355 = vadd.f32 %v596, %v7354
        %v7356 = vpop.f32.mrf.mxu0
        %7357 = vdwg.mxu0
        %7358 = vmatpush.bf16.msra.mxu0 0
        %7359 = vmatpush.bf16.msra.mxu0 0
        %7360 = vmatpush.bf16.msra.mxu0 0
        %7361 = vmatpush.bf16.msra.mxu0 0
        %7362 = vmatpush.bf16.msra.mxu0 0
        %7363 = vmatpush.bf16.msra.mxu0 0
        %7364 = vmatpush.bf16.msra.mxu0 0
        %7365 = vmatpush.bf16.msra.mxu0 %v2793
        %7366 = vmatmul.bf16.gmra.mxu0 %v1880
        %v7367 = vpop.f32.mrf.mxu0
        %v7368 = vadd.f32 %v596, %v7367
        %v7369 = vpop.f32.mrf.mxu0
        %7370 = vdwg.mxu0
        %7371 = vmatpush.bf16.msra.mxu0 0
        %7372 = vmatpush.bf16.msra.mxu0 0
        %7373 = vmatpush.bf16.msra.mxu0 0
        %7374 = vmatpush.bf16.msra.mxu0 0
        %7375 = vmatpush.bf16.msra.mxu0 0
        %7376 = vmatpush.bf16.msra.mxu0 0
        %7377 = vmatpush.bf16.msra.mxu0 0
        %7378 = vmatpush.bf16.msra.mxu0 %v2796
        %7379 = vmatmul.bf16.gmra.mxu0 %v1880
        %v7380 = vpop.f32.mrf.mxu0
        %v7381 = vadd.f32 %v596, %v7380
        %v7382 = vpop.f32.mrf.mxu0
        %7383 = vdwg.mxu0
        %7384 = vmatpush.bf16.msra.mxu0 0
        %7385 = vmatpush.bf16.msra.mxu0 0
        %7386 = vmatpush.bf16.msra.mxu0 0
        %7387 = vmatpush.bf16.msra.mxu0 0
        %7388 = vmatpush.bf16.msra.mxu0 0
        %7389 = vmatpush.bf16.msra.mxu0 0
        %7390 = vmatpush.bf16.msra.mxu0 0
        %7391 = vmatpush.bf16.msra.mxu0 %v2799
        %7392 = vmatmul.bf16.gmra.mxu0 %v1880
        %v7393 = vpop.f32.mrf.mxu0
        %v7394 = vadd.f32 %v596, %v7393
        %v7395 = vpop.f32.mrf.mxu0
        %7396 = vdwg.mxu0
        %7397 = vmatpush.bf16.msra.mxu0 0
        %7398 = vmatpush.bf16.msra.mxu0 0
        %7399 = vmatpush.bf16.msra.mxu0 0
        %7400 = vmatpush.bf16.msra.mxu0 0
        %7401 = vmatpush.bf16.msra.mxu0 0
        %7402 = vmatpush.bf16.msra.mxu0 0
        %7403 = vmatpush.bf16.msra.mxu0 0
        %7404 = vmatpush.bf16.msra.mxu0 %v2802
        %7405 = vmatmul.bf16.gmra.mxu0 %v1880
        %v7406 = vpop.f32.mrf.mxu0
        %v7407 = vadd.f32 %v596, %v7406
        %v7408 = vpop.f32.mrf.mxu0
        %7409 = vdwg.mxu0
        %7410 = vmatpush.bf16.msra.mxu0 0
        %7411 = vmatpush.bf16.msra.mxu0 0
        %7412 = vmatpush.bf16.msra.mxu0 0
        %7413 = vmatpush.bf16.msra.mxu0 0
        %7414 = vmatpush.bf16.msra.mxu0 0
        %7415 = vmatpush.bf16.msra.mxu0 0
        %7416 = vmatpush.bf16.msra.mxu0 0
        %7417 = vmatpush.bf16.msra.mxu0 %v2805
        %7418 = vmatmul.bf16.gmra.mxu0 %v1880
        %v7419 = vpop.f32.mrf.mxu0
        %v7420 = vadd.f32 %v596, %v7419
        %v7421 = vpop.f32.mrf.mxu0
        %7422 = vdwg.mxu0
        %7423 = vmatpush.bf16.msra.mxu0 0
        %7424 = vmatpush.bf16.msra.mxu0 0
        %7425 = vmatpush.bf16.msra.mxu0 0
        %7426 = vmatpush.bf16.msra.mxu0 0
        %7427 = vmatpush.bf16.msra.mxu0 0
        %7428 = vmatpush.bf16.msra.mxu0 0
        %7429 = vmatpush.bf16.msra.mxu0 0
        %7430 = vmatpush.bf16.msra.mxu0 %v2808
        %7431 = vmatmul.bf16.gmra.mxu0 %v1880
        %v7432 = vpop.f32.mrf.mxu0
        %v7433 = vadd.f32 %v596, %v7432
        %v7434 = vpop.f32.mrf.mxu0
        %7435 = vdwg.mxu0
        %7436 = vmatpush.bf16.msra.mxu0 0
        %7437 = vmatpush.bf16.msra.mxu0 0
        %7438 = vmatpush.bf16.msra.mxu0 0
        %7439 = vmatpush.bf16.msra.mxu0 0
        %7440 = vmatpush.bf16.msra.mxu0 0
        %7441 = vmatpush.bf16.msra.mxu0 0
        %7442 = vmatpush.bf16.msra.mxu0 0
        %7443 = vmatpush.bf16.msra.mxu0 %v2811
        %7444 = vmatmul.bf16.gmra.mxu0 %v1880
        %v7445 = vpop.f32.mrf.mxu0
        %v7446 = vadd.f32 %v596, %v7445
        %v7447 = vpop.f32.mrf.mxu0
        %7448 = vdwg.mxu0
        %7449 = vmatpush.bf16.msra.mxu0 0
        %7450 = vmatpush.bf16.msra.mxu0 0
        %7451 = vmatpush.bf16.msra.mxu0 0
        %7452 = vmatpush.bf16.msra.mxu0 0
        %7453 = vmatpush.bf16.msra.mxu0 0
        %7454 = vmatpush.bf16.msra.mxu0 0
        %7455 = vmatpush.bf16.msra.mxu0 0
        %7456 = vmatpush.bf16.msra.mxu0 %v2814
        %7457 = vmatmul.bf16.gmra.mxu0 %v1880
        %v7458 = vpop.f32.mrf.mxu0
        %v7459 = vadd.f32 %v596, %v7458
        %v7460 = vpop.f32.mrf.mxu0
        %7461 = vdwg.mxu0
        %7462 = vmatpush.bf16.msra.mxu0 0
        %7463 = vmatpush.bf16.msra.mxu0 0
        %7464 = vmatpush.bf16.msra.mxu0 0
        %7465 = vmatpush.bf16.msra.mxu0 0
        %7466 = vmatpush.bf16.msra.mxu0 0
        %7467 = vmatpush.bf16.msra.mxu0 0
        %7468 = vmatpush.bf16.msra.mxu0 0
        %7469 = vmatpush.bf16.msra.mxu0 %v2817
        %7470 = vmatmul.bf16.gmra.mxu0 %v1880
        %v7471 = vpop.f32.mrf.mxu0
        %v7472 = vadd.f32 %v596, %v7471
        %v7473 = vpop.f32.mrf.mxu0
        %7474 = vdwg.mxu0
        %7475 = vmatpush.bf16.msra.mxu0 0
        %7476 = vmatpush.bf16.msra.mxu0 0
        %7477 = vmatpush.bf16.msra.mxu0 0
        %7478 = vmatpush.bf16.msra.mxu0 0
        %7479 = vmatpush.bf16.msra.mxu0 0
        %7480 = vmatpush.bf16.msra.mxu0 0
        %7481 = vmatpush.bf16.msra.mxu0 0
        %7482 = vmatpush.bf16.msra.mxu0 %v2820
        %7483 = vmatmul.bf16.gmra.mxu0 %v1880
        %v7484 = vpop.f32.mrf.mxu0
        %v7485 = vadd.f32 %v596, %v7484
        %v7486 = vpop.f32.mrf.mxu0
        %7487 = vdwg.mxu0
        %7488 = vmatpush.bf16.msra.mxu0 0
        %7489 = vmatpush.bf16.msra.mxu0 0
        %7490 = vmatpush.bf16.msra.mxu0 0
        %7491 = vmatpush.bf16.msra.mxu0 0
        %7492 = vmatpush.bf16.msra.mxu0 0
        %7493 = vmatpush.bf16.msra.mxu0 0
        %7494 = vmatpush.bf16.msra.mxu0 0
        %7495 = vmatpush.bf16.msra.mxu0 %v2823
        %7496 = vmatmul.bf16.gmra.mxu0 %v1880
        %v7497 = vpop.f32.mrf.mxu0
        %v7498 = vadd.f32 %v596, %v7497
        %v7499 = vpop.f32.mrf.mxu0
        %7500 = vdwg.mxu0
        %7501 = vmatpush.bf16.msra.mxu0 0
        %7502 = vmatpush.bf16.msra.mxu0 0
        %7503 = vmatpush.bf16.msra.mxu0 0
        %7504 = vmatpush.bf16.msra.mxu0 0
        %7505 = vmatpush.bf16.msra.mxu0 0
        %7506 = vmatpush.bf16.msra.mxu0 0
        %7507 = vmatpush.bf16.msra.mxu0 0
        %7508 = vmatpush.bf16.msra.mxu0 %v2826
        %7509 = vmatmul.bf16.gmra.mxu0 %v1880
        %v7510 = vpop.f32.mrf.mxu0
        %v7511 = vadd.f32 %v596, %v7510
        %v7512 = vpop.f32.mrf.mxu0
        %7513 = vdwg.mxu0
        %7514 = vmatpush.bf16.msra.mxu0 0
        %7515 = vmatpush.bf16.msra.mxu0 0
        %7516 = vmatpush.bf16.msra.mxu0 0
        %7517 = vmatpush.bf16.msra.mxu0 0
        %7518 = vmatpush.bf16.msra.mxu0 0
        %7519 = vmatpush.bf16.msra.mxu0 0
        %7520 = vmatpush.bf16.msra.mxu0 0
        %7521 = vmatpush.bf16.msra.mxu0 %v2829
        %7522 = vmatmul.bf16.gmra.mxu0 %v1880
        %v7523 = vpop.f32.mrf.mxu0
        %v7524 = vadd.f32 %v596, %v7523
        %v7525 = vpop.f32.mrf.mxu0
        %7526 = vdwg.mxu0
        %7527 = vmatpush.bf16.msra.mxu0 0
        %7528 = vmatpush.bf16.msra.mxu0 0
        %7529 = vmatpush.bf16.msra.mxu0 0
        %7530 = vmatpush.bf16.msra.mxu0 0
        %7531 = vmatpush.bf16.msra.mxu0 0
        %7532 = vmatpush.bf16.msra.mxu0 0
        %7533 = vmatpush.bf16.msra.mxu0 0
        %7534 = vmatpush.bf16.msra.mxu0 %v2832
        %7535 = vmatmul.bf16.gmra.mxu0 %v1880
        %v7536 = vpop.f32.mrf.mxu0
        %v7537 = vadd.f32 %v596, %v7536
        %v7538 = vpop.f32.mrf.mxu0
        %7539 = vdwg.mxu0
        %7540 = vmatpush.bf16.msra.mxu0 0
        %7541 = vmatpush.bf16.msra.mxu0 0
        %7542 = vmatpush.bf16.msra.mxu0 0
        %7543 = vmatpush.bf16.msra.mxu0 0
        %7544 = vmatpush.bf16.msra.mxu0 0
        %7545 = vmatpush.bf16.msra.mxu0 0
        %7546 = vmatpush.bf16.msra.mxu0 0
        %7547 = vmatpush.bf16.msra.mxu0 %v2835
        %7548 = vmatmul.bf16.gmra.mxu0 %v1880
        %v7549 = vpop.f32.mrf.mxu0
        %v7550 = vadd.f32 %v596, %v7549
        %v7551 = vpop.f32.mrf.mxu0
        %7552 = vdwg.mxu0
        %7553 = vmatpush.bf16.msra.mxu0 0
        %7554 = vmatpush.bf16.msra.mxu0 0
        %7555 = vmatpush.bf16.msra.mxu0 0
        %7556 = vmatpush.bf16.msra.mxu0 0
        %7557 = vmatpush.bf16.msra.mxu0 0
        %7558 = vmatpush.bf16.msra.mxu0 0
        %7559 = vmatpush.bf16.msra.mxu0 0
        %7560 = vmatpush.bf16.msra.mxu0 %v2838
        %7561 = vmatmul.bf16.gmra.mxu0 %v1880
        %v7562 = vpop.f32.mrf.mxu0
        %v7563 = vadd.f32 %v596, %v7562
        %v7564 = vpop.f32.mrf.mxu0
        %7565 = vdwg.mxu0
        %7566 = vmatpush.bf16.msra.mxu0 0
        %7567 = vmatpush.bf16.msra.mxu0 0
        %7568 = vmatpush.bf16.msra.mxu0 0
        %7569 = vmatpush.bf16.msra.mxu0 0
        %7570 = vmatpush.bf16.msra.mxu0 0
        %7571 = vmatpush.bf16.msra.mxu0 0
        %7572 = vmatpush.bf16.msra.mxu0 0
        %7573 = vmatpush.bf16.msra.mxu0 %v2841
        %7574 = vmatmul.bf16.gmra.mxu0 %v1880
        %v7575 = vpop.f32.mrf.mxu0
        %v7576 = vadd.f32 %v596, %v7575
        %v7577 = vpop.f32.mrf.mxu0
        %7578 = vdwg.mxu0
        %7579 = vmatpush.bf16.msra.mxu0 0
        %7580 = vmatpush.bf16.msra.mxu0 0
        %7581 = vmatpush.bf16.msra.mxu0 0
        %7582 = vmatpush.bf16.msra.mxu0 0
        %7583 = vmatpush.bf16.msra.mxu0 0
        %7584 = vmatpush.bf16.msra.mxu0 0
        %7585 = vmatpush.bf16.msra.mxu0 0
        %7586 = vmatpush.bf16.msra.mxu0 %v2844
        %7587 = vmatmul.bf16.gmra.mxu0 %v1880
        %v7588 = vpop.f32.mrf.mxu0
        %v7589 = vadd.f32 %v596, %v7588
        %v7590 = vpop.f32.mrf.mxu0
        %7591 = vdwg.mxu0
        %7592 = vmatpush.bf16.msra.mxu0 0
        %7593 = vmatpush.bf16.msra.mxu0 0
        %7594 = vmatpush.bf16.msra.mxu0 0
        %7595 = vmatpush.bf16.msra.mxu0 0
        %7596 = vmatpush.bf16.msra.mxu0 0
        %7597 = vmatpush.bf16.msra.mxu0 0
        %7598 = vmatpush.bf16.msra.mxu0 0
        %7599 = vmatpush.bf16.msra.mxu0 %v2847
        %7600 = vmatmul.bf16.gmra.mxu0 %v1880
        %v7601 = vpop.f32.mrf.mxu0
        %v7602 = vadd.f32 %v596, %v7601
        %v7603 = vpop.f32.mrf.mxu0
        %7604 = vdwg.mxu0
        %7605 = vmatpush.bf16.msra.mxu0 0
        %7606 = vmatpush.bf16.msra.mxu0 0
        %7607 = vmatpush.bf16.msra.mxu0 0
        %7608 = vmatpush.bf16.msra.mxu0 0
        %7609 = vmatpush.bf16.msra.mxu0 0
        %7610 = vmatpush.bf16.msra.mxu0 0
        %7611 = vmatpush.bf16.msra.mxu0 0
        %7612 = vmatpush.bf16.msra.mxu0 %v2850
        %7613 = vmatmul.bf16.gmra.mxu0 %v1880
        %v7614 = vpop.f32.mrf.mxu0
        %v7615 = vadd.f32 %v596, %v7614
        %v7616 = vpop.f32.mrf.mxu0
        %7617 = vdwg.mxu0
        %7618 = vmatpush.bf16.msra.mxu0 0
        %7619 = vmatpush.bf16.msra.mxu0 0
        %7620 = vmatpush.bf16.msra.mxu0 0
        %7621 = vmatpush.bf16.msra.mxu0 0
        %7622 = vmatpush.bf16.msra.mxu0 0
        %7623 = vmatpush.bf16.msra.mxu0 0
        %7624 = vmatpush.bf16.msra.mxu0 0
        %7625 = vmatpush.bf16.msra.mxu0 %v2853
        %7626 = vmatmul.bf16.gmra.mxu0 %v1880
        %v7627 = vpop.f32.mrf.mxu0
        %v7628 = vadd.f32 %v596, %v7627
        %v7629 = vpop.f32.mrf.mxu0
        %7630 = vdwg.mxu0
        %7631 = vmatpush.bf16.msra.mxu0 0
        %7632 = vmatpush.bf16.msra.mxu0 0
        %7633 = vmatpush.bf16.msra.mxu0 0
        %7634 = vmatpush.bf16.msra.mxu0 0
        %7635 = vmatpush.bf16.msra.mxu0 0
        %7636 = vmatpush.bf16.msra.mxu0 0
        %7637 = vmatpush.bf16.msra.mxu0 0
        %7638 = vmatpush.bf16.msra.mxu0 %v2856
        %7639 = vmatmul.bf16.gmra.mxu0 %v1880
        %v7640 = vpop.f32.mrf.mxu0
        %v7641 = vadd.f32 %v596, %v7640
        %v7642 = vpop.f32.mrf.mxu0
        %7643 = vdwg.mxu0
        %7644 = vmatpush.bf16.msra.mxu0 0
        %7645 = vmatpush.bf16.msra.mxu0 0
        %7646 = vmatpush.bf16.msra.mxu0 0
        %7647 = vmatpush.bf16.msra.mxu0 0
        %7648 = vmatpush.bf16.msra.mxu0 0
        %7649 = vmatpush.bf16.msra.mxu0 0
        %7650 = vmatpush.bf16.msra.mxu0 0
        %7651 = vmatpush.bf16.msra.mxu0 %v2859
        %7652 = vmatmul.bf16.gmra.mxu0 %v1880
        %v7653 = vpop.f32.mrf.mxu0
        %v7654 = vadd.f32 %v596, %v7653
        %v7655 = vpop.f32.mrf.mxu0
        %7656 = vdwg.mxu0
        %7657 = vmatpush.bf16.msra.mxu0 0
        %7658 = vmatpush.bf16.msra.mxu0 0
        %7659 = vmatpush.bf16.msra.mxu0 0
        %7660 = vmatpush.bf16.msra.mxu0 0
        %7661 = vmatpush.bf16.msra.mxu0 0
        %7662 = vmatpush.bf16.msra.mxu0 0
        %7663 = vmatpush.bf16.msra.mxu0 0
        %7664 = vmatpush.bf16.msra.mxu0 %v2862
        %7665 = vmatmul.bf16.gmra.mxu0 %v1880
        %v7666 = vpop.f32.mrf.mxu0
        %v7667 = vadd.f32 %v596, %v7666
        %v7668 = vpop.f32.mrf.mxu0
        %7669 = vdwg.mxu0
        %7670 = vmatpush.bf16.msra.mxu0 0
        %7671 = vmatpush.bf16.msra.mxu0 0
        %7672 = vmatpush.bf16.msra.mxu0 0
        %7673 = vmatpush.bf16.msra.mxu0 0
        %7674 = vmatpush.bf16.msra.mxu0 0
        %7675 = vmatpush.bf16.msra.mxu0 0
        %7676 = vmatpush.bf16.msra.mxu0 0
        %7677 = vmatpush.bf16.msra.mxu0 %v2865
        %7678 = vmatmul.bf16.gmra.mxu0 %v1880
        %v7679 = vpop.f32.mrf.mxu0
        %v7680 = vadd.f32 %v596, %v7679
        %v7681 = vpop.f32.mrf.mxu0
        %7682 = vdwg.mxu0
        %7683 = vmatpush.bf16.msra.mxu0 0
        %7684 = vmatpush.bf16.msra.mxu0 0
        %7685 = vmatpush.bf16.msra.mxu0 0
        %7686 = vmatpush.bf16.msra.mxu0 0
        %7687 = vmatpush.bf16.msra.mxu0 0
        %7688 = vmatpush.bf16.msra.mxu0 0
        %7689 = vmatpush.bf16.msra.mxu0 0
        %7690 = vmatpush.bf16.msra.mxu0 %v2868
        %7691 = vmatmul.bf16.gmra.mxu0 %v1880
        %v7692 = vpop.f32.mrf.mxu0
        %v7693 = vadd.f32 %v596, %v7692
        %v7694 = vpop.f32.mrf.mxu0
        %7695 = vdwg.mxu0
        %7696 = vmatpush.bf16.msra.mxu0 0
        %7697 = vmatpush.bf16.msra.mxu0 0
        %7698 = vmatpush.bf16.msra.mxu0 0
        %7699 = vmatpush.bf16.msra.mxu0 0
        %7700 = vmatpush.bf16.msra.mxu0 0
        %7701 = vmatpush.bf16.msra.mxu0 0
        %7702 = vmatpush.bf16.msra.mxu0 0
        %7703 = vmatpush.bf16.msra.mxu0 %v2871
        %7704 = vmatmul.bf16.gmra.mxu0 %v1880
        %v7705 = vpop.f32.mrf.mxu0
        %v7706 = vadd.f32 %v596, %v7705
        %v7707 = vpop.f32.mrf.mxu0
        %7708 = vdwg.mxu0
        %7709 = vmatpush.bf16.msra.mxu0 0
        %7710 = vmatpush.bf16.msra.mxu0 0
        %7711 = vmatpush.bf16.msra.mxu0 0
        %7712 = vmatpush.bf16.msra.mxu0 0
        %7713 = vmatpush.bf16.msra.mxu0 0
        %7714 = vmatpush.bf16.msra.mxu0 0
        %7715 = vmatpush.bf16.msra.mxu0 0
        %7716 = vmatpush.bf16.msra.mxu0 %v2874
        %7717 = vmatmul.bf16.gmra.mxu0 %v1880
        %v7718 = vpop.f32.mrf.mxu0
        %v7719 = vadd.f32 %v596, %v7718
        %v7720 = vpop.f32.mrf.mxu0
        %7721 = vdwg.mxu0
        %7722 = vmatpush.bf16.msra.mxu0 0
        %7723 = vmatpush.bf16.msra.mxu0 0
        %7724 = vmatpush.bf16.msra.mxu0 0
        %7725 = vmatpush.bf16.msra.mxu0 0
        %7726 = vmatpush.bf16.msra.mxu0 0
        %7727 = vmatpush.bf16.msra.mxu0 0
        %7728 = vmatpush.bf16.msra.mxu0 0
        %7729 = vmatpush.bf16.msra.mxu0 %v2877
        %7730 = vmatmul.bf16.gmra.mxu0 %v1880
        %v7731 = vpop.f32.mrf.mxu0
        %v7732 = vadd.f32 %v596, %v7731
        %v7733 = vpop.f32.mrf.mxu0
        %7734 = vdwg.mxu0
        %7735 = vmatpush.bf16.msra.mxu0 0
        %7736 = vmatpush.bf16.msra.mxu0 0
        %7737 = vmatpush.bf16.msra.mxu0 0
        %7738 = vmatpush.bf16.msra.mxu0 0
        %7739 = vmatpush.bf16.msra.mxu0 0
        %7740 = vmatpush.bf16.msra.mxu0 0
        %7741 = vmatpush.bf16.msra.mxu0 0
        %7742 = vmatpush.bf16.msra.mxu0 %v2880
        %7743 = vmatmul.bf16.gmra.mxu0 %v1880
        %v7744 = vpop.f32.mrf.mxu0
        %v7745 = vadd.f32 %v596, %v7744
        %v7746 = vpop.f32.mrf.mxu0
        %7747 = vdwg.mxu0
        %7748 = vmatpush.bf16.msra.mxu0 0
        %7749 = vmatpush.bf16.msra.mxu0 0
        %7750 = vmatpush.bf16.msra.mxu0 0
        %7751 = vmatpush.bf16.msra.mxu0 0
        %7752 = vmatpush.bf16.msra.mxu0 0
        %7753 = vmatpush.bf16.msra.mxu0 0
        %7754 = vmatpush.bf16.msra.mxu0 0
        %7755 = vmatpush.bf16.msra.mxu0 %v2883
        %7756 = vmatmul.bf16.gmra.mxu0 %v1880
        %v7757 = vpop.f32.mrf.mxu0
        %v7758 = vadd.f32 %v596, %v7757
        %v7759 = vpop.f32.mrf.mxu0
        %7760 = vdwg.mxu0
        %7761 = vmatpush.bf16.msra.mxu0 0
        %7762 = vmatpush.bf16.msra.mxu0 0
        %7763 = vmatpush.bf16.msra.mxu0 0
        %7764 = vmatpush.bf16.msra.mxu0 0
        %7765 = vmatpush.bf16.msra.mxu0 0
        %7766 = vmatpush.bf16.msra.mxu0 0
        %7767 = vmatpush.bf16.msra.mxu0 0
        %7768 = vmatpush.bf16.msra.mxu0 %v2886
        %7769 = vmatmul.bf16.gmra.mxu0 %v1880
        %v7770 = vpop.f32.mrf.mxu0
        %v7771 = vadd.f32 %v596, %v7770
        %v7772 = vpop.f32.mrf.mxu0
        %7773 = vdwg.mxu0
        %7774 = vmatpush.bf16.msra.mxu0 0
        %7775 = vmatpush.bf16.msra.mxu0 0
        %7776 = vmatpush.bf16.msra.mxu0 0
        %7777 = vmatpush.bf16.msra.mxu0 0
        %7778 = vmatpush.bf16.msra.mxu0 0
        %7779 = vmatpush.bf16.msra.mxu0 0
        %7780 = vmatpush.bf16.msra.mxu0 0
        %7781 = vmatpush.bf16.msra.mxu0 %v2889
        %7782 = vmatmul.bf16.gmra.mxu0 %v1880
        %v7783 = vpop.f32.mrf.mxu0
        %v7784 = vadd.f32 %v596, %v7783
        %v7785 = vpop.f32.mrf.mxu0
        %7786 = vdwg.mxu0
        %7787 = vmatpush.bf16.msra.mxu0 0
        %7788 = vmatpush.bf16.msra.mxu0 0
        %7789 = vmatpush.bf16.msra.mxu0 0
        %7790 = vmatpush.bf16.msra.mxu0 0
        %7791 = vmatpush.bf16.msra.mxu0 0
        %7792 = vmatpush.bf16.msra.mxu0 0
        %7793 = vmatpush.bf16.msra.mxu0 0
        %7794 = vmatpush.bf16.msra.mxu0 %v2892
        %7795 = vmatmul.bf16.gmra.mxu0 %v1880
        %v7796 = vpop.f32.mrf.mxu0
        %v7797 = vadd.f32 %v596, %v7796
        %v7798 = vpop.f32.mrf.mxu0
        %7799 = vdwg.mxu0
        %7800 = vmatpush.bf16.msra.mxu0 0
        %7801 = vmatpush.bf16.msra.mxu0 0
        %7802 = vmatpush.bf16.msra.mxu0 0
        %7803 = vmatpush.bf16.msra.mxu0 0
        %7804 = vmatpush.bf16.msra.mxu0 0
        %7805 = vmatpush.bf16.msra.mxu0 0
        %7806 = vmatpush.bf16.msra.mxu0 0
        %7807 = vmatpush.bf16.msra.mxu0 %v2895
        %7808 = vmatmul.bf16.gmra.mxu0 %v1880
        %v7809 = vpop.f32.mrf.mxu0
        %v7810 = vadd.f32 %v596, %v7809
        %v7811 = vpop.f32.mrf.mxu0
        %7812 = vdwg.mxu0
        %7813 = vmatpush.bf16.msra.mxu0 0
        %7814 = vmatpush.bf16.msra.mxu0 0
        %7815 = vmatpush.bf16.msra.mxu0 0
        %7816 = vmatpush.bf16.msra.mxu0 0
        %7817 = vmatpush.bf16.msra.mxu0 0
        %7818 = vmatpush.bf16.msra.mxu0 0
        %7819 = vmatpush.bf16.msra.mxu0 0
        %7820 = vmatpush.bf16.msra.mxu0 %v2898
        %7821 = vmatmul.bf16.gmra.mxu0 %v1880
        %v7822 = vpop.f32.mrf.mxu0
        %v7823 = vadd.f32 %v596, %v7822
        %v7824 = vpop.f32.mrf.mxu0
        %7825 = vdwg.mxu0
        %7826 = vmatpush.bf16.msra.mxu0 0
        %7827 = vmatpush.bf16.msra.mxu0 0
        %7828 = vmatpush.bf16.msra.mxu0 0
        %7829 = vmatpush.bf16.msra.mxu0 0
        %7830 = vmatpush.bf16.msra.mxu0 0
        %7831 = vmatpush.bf16.msra.mxu0 0
        %7832 = vmatpush.bf16.msra.mxu0 0
        %7833 = vmatpush.bf16.msra.mxu0 %v2901
        %7834 = vmatmul.bf16.gmra.mxu0 %v1880
        %v7835 = vpop.f32.mrf.mxu0
        %v7836 = vadd.f32 %v596, %v7835
        %v7837 = vpop.f32.mrf.mxu0
        %7838 = vdwg.mxu0
        %7839 = vmatpush.bf16.msra.mxu0 0
        %7840 = vmatpush.bf16.msra.mxu0 0
        %7841 = vmatpush.bf16.msra.mxu0 0
        %7842 = vmatpush.bf16.msra.mxu0 0
        %7843 = vmatpush.bf16.msra.mxu0 0
        %7844 = vmatpush.bf16.msra.mxu0 0
        %7845 = vmatpush.bf16.msra.mxu0 0
        %7846 = vmatpush.bf16.msra.mxu0 %v2904
        %7847 = vmatmul.bf16.gmra.mxu0 %v1880
        %v7848 = vpop.f32.mrf.mxu0
        %v7849 = vadd.f32 %v596, %v7848
        %v7850 = vpop.f32.mrf.mxu0
        %7851 = vdwg.mxu0
        %7852 = vmatpush.bf16.msra.mxu0 0
        %7853 = vmatpush.bf16.msra.mxu0 0
        %7854 = vmatpush.bf16.msra.mxu0 0
        %7855 = vmatpush.bf16.msra.mxu0 0
        %7856 = vmatpush.bf16.msra.mxu0 0
        %7857 = vmatpush.bf16.msra.mxu0 0
        %7858 = vmatpush.bf16.msra.mxu0 0
        %7859 = vmatpush.bf16.msra.mxu0 %v2907
        %7860 = vmatmul.bf16.gmra.mxu0 %v1880
        %v7861 = vpop.f32.mrf.mxu0
        %v7862 = vadd.f32 %v596, %v7861
        %v7863 = vpop.f32.mrf.mxu0
        %7864 = vdwg.mxu0
        %7865 = vmatpush.bf16.msra.mxu0 0
        %7866 = vmatpush.bf16.msra.mxu0 0
        %7867 = vmatpush.bf16.msra.mxu0 0
        %7868 = vmatpush.bf16.msra.mxu0 0
        %7869 = vmatpush.bf16.msra.mxu0 0
        %7870 = vmatpush.bf16.msra.mxu0 0
        %7871 = vmatpush.bf16.msra.mxu0 0
        %7872 = vmatpush.bf16.msra.mxu0 %v2910
        %7873 = vmatmul.bf16.gmra.mxu0 %v1880
        %v7874 = vpop.f32.mrf.mxu0
        %v7875 = vadd.f32 %v596, %v7874
        %v7876 = vpop.f32.mrf.mxu0
        %7877 = vdwg.mxu0
        %7878 = vmatpush.bf16.msra.mxu0 0
        %7879 = vmatpush.bf16.msra.mxu0 0
        %7880 = vmatpush.bf16.msra.mxu0 0
        %7881 = vmatpush.bf16.msra.mxu0 0
        %7882 = vmatpush.bf16.msra.mxu0 0
        %7883 = vmatpush.bf16.msra.mxu0 0
        %7884 = vmatpush.bf16.msra.mxu0 0
        %7885 = vmatpush.bf16.msra.mxu0 %v2913
        %7886 = vmatmul.bf16.gmra.mxu0 %v1880
        %v7887 = vpop.f32.mrf.mxu0
        %v7888 = vadd.f32 %v596, %v7887
        %v7889 = vpop.f32.mrf.mxu0
        %7890 = vdwg.mxu0
        %7891 = vmatpush.bf16.msra.mxu0 0
        %7892 = vmatpush.bf16.msra.mxu0 0
        %7893 = vmatpush.bf16.msra.mxu0 0
        %7894 = vmatpush.bf16.msra.mxu0 0
        %7895 = vmatpush.bf16.msra.mxu0 0
        %7896 = vmatpush.bf16.msra.mxu0 0
        %7897 = vmatpush.bf16.msra.mxu0 0
        %7898 = vmatpush.bf16.msra.mxu0 %v2916
        %7899 = vmatmul.bf16.gmra.mxu0 %v1880
        %v7900 = vpop.f32.mrf.mxu0
        %v7901 = vadd.f32 %v596, %v7900
        %v7902 = vpop.f32.mrf.mxu0
        %7903 = vdwg.mxu0
        %7904 = vmatpush.bf16.msra.mxu0 0
        %7905 = vmatpush.bf16.msra.mxu0 0
        %7906 = vmatpush.bf16.msra.mxu0 0
        %7907 = vmatpush.bf16.msra.mxu0 0
        %7908 = vmatpush.bf16.msra.mxu0 0
        %7909 = vmatpush.bf16.msra.mxu0 0
        %7910 = vmatpush.bf16.msra.mxu0 0
        %7911 = vmatpush.bf16.msra.mxu0 %v2919
        %7912 = vmatmul.bf16.gmra.mxu0 %v1880
        %v7913 = vpop.f32.mrf.mxu0
        %v7914 = vadd.f32 %v596, %v7913
        %v7915 = vpop.f32.mrf.mxu0
        %7916 = vdwg.mxu0
        %7917 = vmatpush.bf16.msra.mxu0 0
        %7918 = vmatpush.bf16.msra.mxu0 0
        %7919 = vmatpush.bf16.msra.mxu0 0
        %7920 = vmatpush.bf16.msra.mxu0 0
        %7921 = vmatpush.bf16.msra.mxu0 0
        %7922 = vmatpush.bf16.msra.mxu0 0
        %7923 = vmatpush.bf16.msra.mxu0 0
        %7924 = vmatpush.bf16.msra.mxu0 %v2922
        %7925 = vmatmul.bf16.gmra.mxu0 %v1880
        %v7926 = vpop.f32.mrf.mxu0
        %v7927 = vadd.f32 %v596, %v7926
        %v7928 = vpop.f32.mrf.mxu0
        %7929 = vdwg.mxu0
        %7930 = vmatpush.bf16.msra.mxu0 0
        %7931 = vmatpush.bf16.msra.mxu0 0
        %7932 = vmatpush.bf16.msra.mxu0 0
        %7933 = vmatpush.bf16.msra.mxu0 0
        %7934 = vmatpush.bf16.msra.mxu0 0
        %7935 = vmatpush.bf16.msra.mxu0 0
        %7936 = vmatpush.bf16.msra.mxu0 0
        %7937 = vmatpush.bf16.msra.mxu0 %v2925
        %7938 = vmatmul.bf16.gmra.mxu0 %v1880
        %v7939 = vpop.f32.mrf.mxu0
        %v7940 = vadd.f32 %v596, %v7939
        %v7941 = vpop.f32.mrf.mxu0
        %7942 = vdwg.mxu0
        %7943 = vmatpush.bf16.msra.mxu0 0
        %7944 = vmatpush.bf16.msra.mxu0 0
        %7945 = vmatpush.bf16.msra.mxu0 0
        %7946 = vmatpush.bf16.msra.mxu0 0
        %7947 = vmatpush.bf16.msra.mxu0 0
        %7948 = vmatpush.bf16.msra.mxu0 0
        %7949 = vmatpush.bf16.msra.mxu0 0
        %7950 = vmatpush.bf16.msra.mxu0 %v2928
        %7951 = vmatmul.bf16.gmra.mxu0 %v1880
        %v7952 = vpop.f32.mrf.mxu0
        %v7953 = vadd.f32 %v596, %v7952
        %v7954 = vpop.f32.mrf.mxu0
        %7955 = vdwg.mxu0
        %7956 = vmatpush.bf16.msra.mxu0 0
        %7957 = vmatpush.bf16.msra.mxu0 0
        %7958 = vmatpush.bf16.msra.mxu0 0
        %7959 = vmatpush.bf16.msra.mxu0 0
        %7960 = vmatpush.bf16.msra.mxu0 0
        %7961 = vmatpush.bf16.msra.mxu0 0
        %7962 = vmatpush.bf16.msra.mxu0 0
        %7963 = vmatpush.bf16.msra.mxu0 %v2931
        %7964 = vmatmul.bf16.gmra.mxu0 %v1880
        %v7965 = vpop.f32.mrf.mxu0
        %v7966 = vadd.f32 %v596, %v7965
        %v7967 = vpop.f32.mrf.mxu0
        %7968 = vdwg.mxu0
        %7969 = vmatpush.bf16.msra.mxu0 0
        %7970 = vmatpush.bf16.msra.mxu0 0
        %7971 = vmatpush.bf16.msra.mxu0 0
        %7972 = vmatpush.bf16.msra.mxu0 0
        %7973 = vmatpush.bf16.msra.mxu0 0
        %7974 = vmatpush.bf16.msra.mxu0 0
        %7975 = vmatpush.bf16.msra.mxu0 0
        %7976 = vmatpush.bf16.msra.mxu0 %v2934
        %7977 = vmatmul.bf16.gmra.mxu0 %v1880
        %v7978 = vpop.f32.mrf.mxu0
        %v7979 = vadd.f32 %v596, %v7978
        %v7980 = vpop.f32.mrf.mxu0
        %7981 = vdwg.mxu0
        %7982 = vmatpush.bf16.msra.mxu0 0
        %7983 = vmatpush.bf16.msra.mxu0 0
        %7984 = vmatpush.bf16.msra.mxu0 0
        %7985 = vmatpush.bf16.msra.mxu0 0
        %7986 = vmatpush.bf16.msra.mxu0 0
        %7987 = vmatpush.bf16.msra.mxu0 0
        %7988 = vmatpush.bf16.msra.mxu0 0
        %7989 = vmatpush.bf16.msra.mxu0 %v2937
        %7990 = vmatmul.bf16.gmra.mxu0 %v1880
        %v7991 = vpop.f32.mrf.mxu0
        %v7992 = vadd.f32 %v596, %v7991
        %v7993 = vpop.f32.mrf.mxu0
        %7994 = vdwg.mxu0
        %7995 = vmatpush.bf16.msra.mxu0 0
        %7996 = vmatpush.bf16.msra.mxu0 0
        %7997 = vmatpush.bf16.msra.mxu0 0
        %7998 = vmatpush.bf16.msra.mxu0 0
        %7999 = vmatpush.bf16.msra.mxu0 0
        %8000 = vmatpush.bf16.msra.mxu0 0
        %8001 = vmatpush.bf16.msra.mxu0 0
        %8002 = vmatpush.bf16.msra.mxu0 %v2940
        %8003 = vmatmul.bf16.gmra.mxu0 %v1880
        %v8004 = vpop.f32.mrf.mxu0
        %v8005 = vadd.f32 %v596, %v8004
        %v8006 = vpop.f32.mrf.mxu0
        %8007 = vdwg.mxu0
        %8008 = vmatpush.bf16.msra.mxu0 0
        %8009 = vmatpush.bf16.msra.mxu0 0
        %8010 = vmatpush.bf16.msra.mxu0 0
        %8011 = vmatpush.bf16.msra.mxu0 0
        %8012 = vmatpush.bf16.msra.mxu0 0
        %8013 = vmatpush.bf16.msra.mxu0 0
        %8014 = vmatpush.bf16.msra.mxu0 0
        %8015 = vmatpush.bf16.msra.mxu0 %v2943
        %8016 = vmatmul.bf16.gmra.mxu0 %v1880
        %v8017 = vpop.f32.mrf.mxu0
        %v8018 = vadd.f32 %v596, %v8017
        %v8019 = vpop.f32.mrf.mxu0
        %8020 = vdwg.mxu0
        %8021 = vmatpush.bf16.msra.mxu0 0
        %8022 = vmatpush.bf16.msra.mxu0 0
        %8023 = vmatpush.bf16.msra.mxu0 0
        %8024 = vmatpush.bf16.msra.mxu0 0
        %8025 = vmatpush.bf16.msra.mxu0 0
        %8026 = vmatpush.bf16.msra.mxu0 0
        %8027 = vmatpush.bf16.msra.mxu0 0
        %8028 = vmatpush.bf16.msra.mxu0 %v2946
        %8029 = vmatmul.bf16.gmra.mxu0 %v1880
        %v8030 = vpop.f32.mrf.mxu0
        %v8031 = vadd.f32 %v596, %v8030
        %v8032 = vpop.f32.mrf.mxu0
        %8033 = vdwg.mxu0
        %8034 = vmatpush.bf16.msra.mxu0 0
        %8035 = vmatpush.bf16.msra.mxu0 0
        %8036 = vmatpush.bf16.msra.mxu0 0
        %8037 = vmatpush.bf16.msra.mxu0 0
        %8038 = vmatpush.bf16.msra.mxu0 0
        %8039 = vmatpush.bf16.msra.mxu0 0
        %8040 = vmatpush.bf16.msra.mxu0 0
        %8041 = vmatpush.bf16.msra.mxu0 %v2949
        %8042 = vmatmul.bf16.gmra.mxu0 %v1880
        %v8043 = vpop.f32.mrf.mxu0
        %v8044 = vadd.f32 %v596, %v8043
        %v8045 = vpop.f32.mrf.mxu0
        %8046 = vdwg.mxu0
        %8047 = vmatpush.bf16.msra.mxu0 0
        %8048 = vmatpush.bf16.msra.mxu0 0
        %8049 = vmatpush.bf16.msra.mxu0 0
        %8050 = vmatpush.bf16.msra.mxu0 0
        %8051 = vmatpush.bf16.msra.mxu0 0
        %8052 = vmatpush.bf16.msra.mxu0 0
        %8053 = vmatpush.bf16.msra.mxu0 0
        %8054 = vmatpush.bf16.msra.mxu0 %v2952
        %8055 = vmatmul.bf16.gmra.mxu0 %v1880
        %v8056 = vpop.f32.mrf.mxu0
        %v8057 = vadd.f32 %v596, %v8056
        %v8058 = vpop.f32.mrf.mxu0
        %8059 = vdwg.mxu0
        %8060 = vmatpush.bf16.msra.mxu0 0
        %8061 = vmatpush.bf16.msra.mxu0 0
        %8062 = vmatpush.bf16.msra.mxu0 0
        %8063 = vmatpush.bf16.msra.mxu0 0
        %8064 = vmatpush.bf16.msra.mxu0 0
        %8065 = vmatpush.bf16.msra.mxu0 0
        %8066 = vmatpush.bf16.msra.mxu0 0
        %8067 = vmatpush.bf16.msra.mxu0 %v2955
        %8068 = vmatmul.bf16.gmra.mxu0 %v1880
        %v8069 = vpop.f32.mrf.mxu0
        %v8070 = vadd.f32 %v596, %v8069
        %v8071 = vpop.f32.mrf.mxu0
        %8072 = vdwg.mxu0
        %8073 = vmatpush.bf16.msra.mxu0 0
        %8074 = vmatpush.bf16.msra.mxu0 0
        %8075 = vmatpush.bf16.msra.mxu0 0
        %8076 = vmatpush.bf16.msra.mxu0 0
        %8077 = vmatpush.bf16.msra.mxu0 0
        %8078 = vmatpush.bf16.msra.mxu0 0
        %8079 = vmatpush.bf16.msra.mxu0 0
        %8080 = vmatpush.bf16.msra.mxu0 %v2958
        %8081 = vmatmul.bf16.gmra.mxu0 %v1880
        %v8082 = vpop.f32.mrf.mxu0
        %v8083 = vadd.f32 %v596, %v8082
        %v8084 = vpop.f32.mrf.mxu0
        %8085 = vdwg.mxu0
        %8086 = vmatpush.bf16.msra.mxu0 0
        %8087 = vmatpush.bf16.msra.mxu0 0
        %8088 = vmatpush.bf16.msra.mxu0 0
        %8089 = vmatpush.bf16.msra.mxu0 0
        %8090 = vmatpush.bf16.msra.mxu0 0
        %8091 = vmatpush.bf16.msra.mxu0 0
        %8092 = vmatpush.bf16.msra.mxu0 0
        %8093 = vmatpush.bf16.msra.mxu0 %v2961
        %8094 = vmatmul.bf16.gmra.mxu0 %v1880
        %v8095 = vpop.f32.mrf.mxu0
        %v8096 = vadd.f32 %v596, %v8095
        %v8097 = vpop.f32.mrf.mxu0
        %8098 = vdwg.mxu0
        %8099 = vmatpush.bf16.msra.mxu0 0
        %8100 = vmatpush.bf16.msra.mxu0 0
        %8101 = vmatpush.bf16.msra.mxu0 0
        %8102 = vmatpush.bf16.msra.mxu0 0
        %8103 = vmatpush.bf16.msra.mxu0 0
        %8104 = vmatpush.bf16.msra.mxu0 0
        %8105 = vmatpush.bf16.msra.mxu0 0
        %8106 = vmatpush.bf16.msra.mxu0 %v2964
        %8107 = vmatmul.bf16.gmra.mxu0 %v1880
        %v8108 = vpop.f32.mrf.mxu0
        %v8109 = vadd.f32 %v596, %v8108
        %v8110 = vpop.f32.mrf.mxu0
        %8111 = vdwg.mxu0
        %8112 = vmatpush.bf16.msra.mxu0 0
        %8113 = vmatpush.bf16.msra.mxu0 0
        %8114 = vmatpush.bf16.msra.mxu0 0
        %8115 = vmatpush.bf16.msra.mxu0 0
        %8116 = vmatpush.bf16.msra.mxu0 0
        %8117 = vmatpush.bf16.msra.mxu0 0
        %8118 = vmatpush.bf16.msra.mxu0 0
        %8119 = vmatpush.bf16.msra.mxu0 %v2967
        %8120 = vmatmul.bf16.gmra.mxu0 %v1880
        %v8121 = vpop.f32.mrf.mxu0
        %v8122 = vadd.f32 %v596, %v8121
        %v8123 = vpop.f32.mrf.mxu0
        %8124 = vdwg.mxu0
        %8125 = vmatpush.bf16.msra.mxu0 0
        %8126 = vmatpush.bf16.msra.mxu0 0
        %8127 = vmatpush.bf16.msra.mxu0 0
        %8128 = vmatpush.bf16.msra.mxu0 0
        %8129 = vmatpush.bf16.msra.mxu0 0
        %8130 = vmatpush.bf16.msra.mxu0 0
        %8131 = vmatpush.bf16.msra.mxu0 0
        %8132 = vmatpush.bf16.msra.mxu0 %v2970
        %8133 = vmatmul.bf16.gmra.mxu0 %v1880
        %v8134 = vpop.f32.mrf.mxu0
        %v8135 = vadd.f32 %v596, %v8134
        %v8136 = vpop.f32.mrf.mxu0
        %8137 = vdwg.mxu0
        %8138 = vmatpush.bf16.msra.mxu0 0
        %8139 = vmatpush.bf16.msra.mxu0 0
        %8140 = vmatpush.bf16.msra.mxu0 0
        %8141 = vmatpush.bf16.msra.mxu0 0
        %8142 = vmatpush.bf16.msra.mxu0 0
        %8143 = vmatpush.bf16.msra.mxu0 0
        %8144 = vmatpush.bf16.msra.mxu0 0
        %8145 = vmatpush.bf16.msra.mxu0 %v2973
        %8146 = vmatmul.bf16.gmra.mxu0 %v1880
        %v8147 = vpop.f32.mrf.mxu0
        %v8148 = vadd.f32 %v596, %v8147
        %v8149 = vpop.f32.mrf.mxu0
        %8150 = vdwg.mxu0
        %8151 = vmatpush.bf16.msra.mxu0 0
        %8152 = vmatpush.bf16.msra.mxu0 0
        %8153 = vmatpush.bf16.msra.mxu0 0
        %8154 = vmatpush.bf16.msra.mxu0 0
        %8155 = vmatpush.bf16.msra.mxu0 0
        %8156 = vmatpush.bf16.msra.mxu0 0
        %8157 = vmatpush.bf16.msra.mxu0 0
        %8158 = vmatpush.bf16.msra.mxu0 %v2976
        %8159 = vmatmul.bf16.gmra.mxu0 %v1880
        %v8160 = vpop.f32.mrf.mxu0
        %v8161 = vadd.f32 %v596, %v8160
        %v8162 = vpop.f32.mrf.mxu0
        %8163 = vdwg.mxu0
        %8164 = vmatpush.bf16.msra.mxu0 0
        %8165 = vmatpush.bf16.msra.mxu0 0
        %8166 = vmatpush.bf16.msra.mxu0 0
        %8167 = vmatpush.bf16.msra.mxu0 0
        %8168 = vmatpush.bf16.msra.mxu0 0
        %8169 = vmatpush.bf16.msra.mxu0 0
        %8170 = vmatpush.bf16.msra.mxu0 0
        %8171 = vmatpush.bf16.msra.mxu0 %v2979
        %8172 = vmatmul.bf16.gmra.mxu0 %v1880
        %v8173 = vpop.f32.mrf.mxu0
        %v8174 = vadd.f32 %v596, %v8173
        %v8175 = vpop.f32.mrf.mxu0
        %8176 = vdwg.mxu0
        %8177 = vmatpush.bf16.msra.mxu0 0
        %8178 = vmatpush.bf16.msra.mxu0 0
        %8179 = vmatpush.bf16.msra.mxu0 0
        %8180 = vmatpush.bf16.msra.mxu0 0
        %8181 = vmatpush.bf16.msra.mxu0 0
        %8182 = vmatpush.bf16.msra.mxu0 0
        %8183 = vmatpush.bf16.msra.mxu0 0
        %8184 = vmatpush.bf16.msra.mxu0 %v2982
        %8185 = vmatmul.bf16.gmra.mxu0 %v1880
        %v8186 = vpop.f32.mrf.mxu0
        %v8187 = vadd.f32 %v596, %v8186
        %v8188 = vpop.f32.mrf.mxu0
        %8189 = vdwg.mxu0
        %8190 = vmatpush.bf16.msra.mxu0 0
        %8191 = vmatpush.bf16.msra.mxu0 0
        %8192 = vmatpush.bf16.msra.mxu0 0
        %8193 = vmatpush.bf16.msra.mxu0 0
        %8194 = vmatpush.bf16.msra.mxu0 0
        %8195 = vmatpush.bf16.msra.mxu0 0
        %8196 = vmatpush.bf16.msra.mxu0 0
        %8197 = vmatpush.bf16.msra.mxu0 %v2985
        %8198 = vmatmul.bf16.gmra.mxu0 %v1880
        %v8199 = vpop.f32.mrf.mxu0
        %v8200 = vadd.f32 %v596, %v8199
        %v8201 = vpop.f32.mrf.mxu0
        %8202 = vdwg.mxu0
        %8203 = vmatpush.bf16.msra.mxu0 0
        %8204 = vmatpush.bf16.msra.mxu0 0
        %8205 = vmatpush.bf16.msra.mxu0 0
        %8206 = vmatpush.bf16.msra.mxu0 0
        %8207 = vmatpush.bf16.msra.mxu0 0
        %8208 = vmatpush.bf16.msra.mxu0 0
        %8209 = vmatpush.bf16.msra.mxu0 0
        %8210 = vmatpush.bf16.msra.mxu0 %v2988
        %8211 = vmatmul.bf16.gmra.mxu0 %v1880
        %v8212 = vpop.f32.mrf.mxu0
        %v8213 = vadd.f32 %v596, %v8212
        %v8214 = vpop.f32.mrf.mxu0
        %8215 = vdwg.mxu0
        %8216 = vmatpush.bf16.msra.mxu0 0
        %8217 = vmatpush.bf16.msra.mxu0 0
        %8218 = vmatpush.bf16.msra.mxu0 0
        %8219 = vmatpush.bf16.msra.mxu0 0
        %8220 = vmatpush.bf16.msra.mxu0 0
        %8221 = vmatpush.bf16.msra.mxu0 0
        %8222 = vmatpush.bf16.msra.mxu0 0
        %8223 = vmatpush.bf16.msra.mxu0 %v2991
        %8224 = vmatmul.bf16.gmra.mxu0 %v1880
        %v8225 = vpop.f32.mrf.mxu0
        %v8226 = vadd.f32 %v596, %v8225
        %v8227 = vpop.f32.mrf.mxu0
        %8228 = vdwg.mxu0
        %8229 = vmatpush.bf16.msra.mxu0 0
        %8230 = vmatpush.bf16.msra.mxu0 0
        %8231 = vmatpush.bf16.msra.mxu0 0
        %8232 = vmatpush.bf16.msra.mxu0 0
        %8233 = vmatpush.bf16.msra.mxu0 0
        %8234 = vmatpush.bf16.msra.mxu0 0
        %8235 = vmatpush.bf16.msra.mxu0 0
        %8236 = vmatpush.bf16.msra.mxu0 %v2994
        %8237 = vmatmul.bf16.gmra.mxu0 %v1880
        %v8238 = vpop.f32.mrf.mxu0
        %v8239 = vadd.f32 %v596, %v8238
        %v8240 = vpop.f32.mrf.mxu0
        %8241 = vdwg.mxu0
        %8242 = vmatpush.bf16.msra.mxu0 0
        %8243 = vmatpush.bf16.msra.mxu0 0
        %8244 = vmatpush.bf16.msra.mxu0 0
        %8245 = vmatpush.bf16.msra.mxu0 0
        %8246 = vmatpush.bf16.msra.mxu0 0
        %8247 = vmatpush.bf16.msra.mxu0 0
        %8248 = vmatpush.bf16.msra.mxu0 0
        %8249 = vmatpush.bf16.msra.mxu0 %v2997
        %8250 = vmatmul.bf16.gmra.mxu0 %v1880
        %v8251 = vpop.f32.mrf.mxu0
        %v8252 = vadd.f32 %v596, %v8251
        %v8253 = vpop.f32.mrf.mxu0
        %8254 = vdwg.mxu0
        %8255 = vmatpush.bf16.msra.mxu0 0
        %8256 = vmatpush.bf16.msra.mxu0 0
        %8257 = vmatpush.bf16.msra.mxu0 0
        %8258 = vmatpush.bf16.msra.mxu0 0
        %8259 = vmatpush.bf16.msra.mxu0 0
        %8260 = vmatpush.bf16.msra.mxu0 0
        %8261 = vmatpush.bf16.msra.mxu0 0
        %8262 = vmatpush.bf16.msra.mxu0 %v3000
        %8263 = vmatmul.bf16.gmra.mxu0 %v1880
        %v8264 = vpop.f32.mrf.mxu0
        %v8265 = vadd.f32 %v596, %v8264
        %v8266 = vpop.f32.mrf.mxu0
        %8267 = vdwg.mxu0
        %8268 = vmatpush.bf16.msra.mxu0 0
        %8269 = vmatpush.bf16.msra.mxu0 0
        %8270 = vmatpush.bf16.msra.mxu0 0
        %8271 = vmatpush.bf16.msra.mxu0 0
        %8272 = vmatpush.bf16.msra.mxu0 0
        %8273 = vmatpush.bf16.msra.mxu0 0
        %8274 = vmatpush.bf16.msra.mxu0 0
        %8275 = vmatpush.bf16.msra.mxu0 %v3003
        %8276 = vmatmul.bf16.gmra.mxu0 %v1880
        %v8277 = vpop.f32.mrf.mxu0
        %v8278 = vadd.f32 %v596, %v8277
        %v8279 = vpop.f32.mrf.mxu0
        %8280 = vdwg.mxu0
        %8281 = vmatpush.bf16.msra.mxu0 0
        %8282 = vmatpush.bf16.msra.mxu0 0
        %8283 = vmatpush.bf16.msra.mxu0 0
        %8284 = vmatpush.bf16.msra.mxu0 0
        %8285 = vmatpush.bf16.msra.mxu0 0
        %8286 = vmatpush.bf16.msra.mxu0 0
        %8287 = vmatpush.bf16.msra.mxu0 0
        %8288 = vmatpush.bf16.msra.mxu0 %v3006
        %8289 = vmatmul.bf16.gmra.mxu0 %v1880
        %v8290 = vpop.f32.mrf.mxu0
        %v8291 = vadd.f32 %v596, %v8290
        %v8292 = vpop.f32.mrf.mxu0
        %8293 = vdwg.mxu0
        %8294 = vmatpush.bf16.msra.mxu0 0
        %8295 = vmatpush.bf16.msra.mxu0 0
        %8296 = vmatpush.bf16.msra.mxu0 0
        %8297 = vmatpush.bf16.msra.mxu0 0
        %8298 = vmatpush.bf16.msra.mxu0 0
        %8299 = vmatpush.bf16.msra.mxu0 0
        %8300 = vmatpush.bf16.msra.mxu0 0
        %8301 = vmatpush.bf16.msra.mxu0 %v3009
        %8302 = vmatmul.bf16.gmra.mxu0 %v1880
        %v8303 = vpop.f32.mrf.mxu0
        %v8304 = vadd.f32 %v596, %v8303
        %v8305 = vpop.f32.mrf.mxu0
        %8306 = vdwg.mxu0
        %8307 = vmatpush.bf16.msra.mxu0 0
        %8308 = vmatpush.bf16.msra.mxu0 0
        %8309 = vmatpush.bf16.msra.mxu0 0
        %8310 = vmatpush.bf16.msra.mxu0 0
        %8311 = vmatpush.bf16.msra.mxu0 0
        %8312 = vmatpush.bf16.msra.mxu0 0
        %8313 = vmatpush.bf16.msra.mxu0 0
        %8314 = vmatpush.bf16.msra.mxu0 %v3012
        %8315 = vmatmul.bf16.gmra.mxu0 %v1880
        %v8316 = vpop.f32.mrf.mxu0
        %v8317 = vadd.f32 %v596, %v8316
        %v8318 = vpop.f32.mrf.mxu0
        %8319 = vdwg.mxu0
        %8320 = vmatpush.bf16.msra.mxu0 0
        %8321 = vmatpush.bf16.msra.mxu0 0
        %8322 = vmatpush.bf16.msra.mxu0 0
        %8323 = vmatpush.bf16.msra.mxu0 0
        %8324 = vmatpush.bf16.msra.mxu0 0
        %8325 = vmatpush.bf16.msra.mxu0 0
        %8326 = vmatpush.bf16.msra.mxu0 0
        %8327 = vmatpush.bf16.msra.mxu0 %v3015
        %8328 = vmatmul.bf16.gmra.mxu0 %v1880
        %v8329 = vpop.f32.mrf.mxu0
        %v8330 = vadd.f32 %v596, %v8329
        %v8331 = vpop.f32.mrf.mxu0
        %8332 = vdwg.mxu0
        %8333 = vmatpush.bf16.msra.mxu0 0
        %8334 = vmatpush.bf16.msra.mxu0 0
        %8335 = vmatpush.bf16.msra.mxu0 0
        %8336 = vmatpush.bf16.msra.mxu0 0
        %8337 = vmatpush.bf16.msra.mxu0 0
        %8338 = vmatpush.bf16.msra.mxu0 0
        %8339 = vmatpush.bf16.msra.mxu0 0
        %8340 = vmatpush.bf16.msra.mxu0 %v3018
        %8341 = vmatmul.bf16.gmra.mxu0 %v1880
        %v8342 = vpop.f32.mrf.mxu0
        %v8343 = vadd.f32 %v596, %v8342
        %v8344 = vpop.f32.mrf.mxu0
        %8345 = vdwg.mxu0
        %8346 = vmatpush.bf16.msra.mxu0 0
        %8347 = vmatpush.bf16.msra.mxu0 0
        %8348 = vmatpush.bf16.msra.mxu0 0
        %8349 = vmatpush.bf16.msra.mxu0 0
        %8350 = vmatpush.bf16.msra.mxu0 0
        %8351 = vmatpush.bf16.msra.mxu0 0
        %8352 = vmatpush.bf16.msra.mxu0 0
        %8353 = vmatpush.bf16.msra.mxu0 %v3021
        %8354 = vmatmul.bf16.gmra.mxu0 %v1880
        %v8355 = vpop.f32.mrf.mxu0
        %v8356 = vadd.f32 %v596, %v8355
        %v8357 = vpop.f32.mrf.mxu0
        %8358 = vdwg.mxu0
        %8359 = vmatpush.bf16.msra.mxu0 0
        %8360 = vmatpush.bf16.msra.mxu0 0
        %8361 = vmatpush.bf16.msra.mxu0 0
        %8362 = vmatpush.bf16.msra.mxu0 0
        %8363 = vmatpush.bf16.msra.mxu0 0
        %8364 = vmatpush.bf16.msra.mxu0 0
        %8365 = vmatpush.bf16.msra.mxu0 0
        %8366 = vmatpush.bf16.msra.mxu0 %v3024
        %8367 = vmatmul.bf16.gmra.mxu0 %v1880
        %v8368 = vpop.f32.mrf.mxu0
        %v8369 = vadd.f32 %v596, %v8368
        %v8370 = vpop.f32.mrf.mxu0
        %8371 = vdwg.mxu0
        %8372 = vmatpush.bf16.msra.mxu0 0
        %8373 = vmatpush.bf16.msra.mxu0 0
        %8374 = vmatpush.bf16.msra.mxu0 0
        %8375 = vmatpush.bf16.msra.mxu0 0
        %8376 = vmatpush.bf16.msra.mxu0 0
        %8377 = vmatpush.bf16.msra.mxu0 0
        %8378 = vmatpush.bf16.msra.mxu0 0
        %8379 = vmatpush.bf16.msra.mxu0 %v3027
        %8380 = vmatmul.bf16.gmra.mxu0 %v1880
        %v8381 = vpop.f32.mrf.mxu0
        %v8382 = vadd.f32 %v596, %v8381
        %v8383 = vpop.f32.mrf.mxu0
        %8384 = vdwg.mxu0
        %8385 = vmatpush.bf16.msra.mxu0 0
        %8386 = vmatpush.bf16.msra.mxu0 0
        %8387 = vmatpush.bf16.msra.mxu0 0
        %8388 = vmatpush.bf16.msra.mxu0 0
        %8389 = vmatpush.bf16.msra.mxu0 0
        %8390 = vmatpush.bf16.msra.mxu0 0
        %8391 = vmatpush.bf16.msra.mxu0 0
        %8392 = vmatpush.bf16.msra.mxu0 %v3030
        %8393 = vmatmul.bf16.gmra.mxu0 %v1880
        %v8394 = vpop.f32.mrf.mxu0
        %v8395 = vadd.f32 %v596, %v8394
        %v8396 = vpop.f32.mrf.mxu0
        %8397 = vdwg.mxu0
        %8398 = vmatpush.bf16.msra.mxu0 0
        %8399 = vmatpush.bf16.msra.mxu0 0
        %8400 = vmatpush.bf16.msra.mxu0 0
        %8401 = vmatpush.bf16.msra.mxu0 0
        %8402 = vmatpush.bf16.msra.mxu0 0
        %8403 = vmatpush.bf16.msra.mxu0 0
        %8404 = vmatpush.bf16.msra.mxu0 0
        %8405 = vmatpush.bf16.msra.mxu0 %v3033
        %8406 = vmatmul.bf16.gmra.mxu0 %v1880
        %v8407 = vpop.f32.mrf.mxu0
        %v8408 = vadd.f32 %v596, %v8407
        %v8409 = vpop.f32.mrf.mxu0
        %8410 = vdwg.mxu0
        %8411 = vmatpush.bf16.msra.mxu0 0
        %8412 = vmatpush.bf16.msra.mxu0 0
        %8413 = vmatpush.bf16.msra.mxu0 0
        %8414 = vmatpush.bf16.msra.mxu0 0
        %8415 = vmatpush.bf16.msra.mxu0 0
        %8416 = vmatpush.bf16.msra.mxu0 0
        %8417 = vmatpush.bf16.msra.mxu0 0
        %8418 = vmatpush.bf16.msra.mxu0 %v3036
        %8419 = vmatmul.bf16.gmra.mxu0 %v1880
        %v8420 = vpop.f32.mrf.mxu0
        %v8421 = vadd.f32 %v596, %v8420
        %v8422 = vpop.f32.mrf.mxu0
        %8423 = vdwg.mxu0
        %8424 = vmatpush.bf16.msra.mxu0 0
        %8425 = vmatpush.bf16.msra.mxu0 0
        %8426 = vmatpush.bf16.msra.mxu0 0
        %8427 = vmatpush.bf16.msra.mxu0 0
        %8428 = vmatpush.bf16.msra.mxu0 0
        %8429 = vmatpush.bf16.msra.mxu0 0
        %8430 = vmatpush.bf16.msra.mxu0 0
        %8431 = vmatpush.bf16.msra.mxu0 %v3039
        %8432 = vmatmul.bf16.gmra.mxu0 %v1880
        %v8433 = vpop.f32.mrf.mxu0
        %v8434 = vadd.f32 %v596, %v8433
        %v8435 = vpop.f32.mrf.mxu0
        %8436 = vdwg.mxu0
        %8437 = vmatpush.bf16.msra.mxu0 0
        %8438 = vmatpush.bf16.msra.mxu0 0
        %8439 = vmatpush.bf16.msra.mxu0 0
        %8440 = vmatpush.bf16.msra.mxu0 0
        %8441 = vmatpush.bf16.msra.mxu0 0
        %8442 = vmatpush.bf16.msra.mxu0 0
        %8443 = vmatpush.bf16.msra.mxu0 0
        %8444 = vmatpush.bf16.msra.mxu0 %v3042
        %8445 = vmatmul.bf16.gmra.mxu0 %v1880
        %v8446 = vpop.f32.mrf.mxu0
        %v8447 = vadd.f32 %v596, %v8446
        %v8448 = vpop.f32.mrf.mxu0
        %8449 = vdwg.mxu0
        %8450 = vmatpush.bf16.msra.mxu0 0
        %8451 = vmatpush.bf16.msra.mxu0 0
        %8452 = vmatpush.bf16.msra.mxu0 0
        %8453 = vmatpush.bf16.msra.mxu0 0
        %8454 = vmatpush.bf16.msra.mxu0 0
        %8455 = vmatpush.bf16.msra.mxu0 0
        %8456 = vmatpush.bf16.msra.mxu0 0
        %8457 = vmatpush.bf16.msra.mxu0 %v3045
        %8458 = vmatmul.bf16.gmra.mxu0 %v1880
        %v8459 = vpop.f32.mrf.mxu0
        %v8460 = vadd.f32 %v596, %v8459
        %v8461 = vpop.f32.mrf.mxu0
        %8462 = vdwg.mxu0
        %8463 = vmatpush.bf16.msra.mxu0 0
        %8464 = vmatpush.bf16.msra.mxu0 0
        %8465 = vmatpush.bf16.msra.mxu0 0
        %8466 = vmatpush.bf16.msra.mxu0 0
        %8467 = vmatpush.bf16.msra.mxu0 0
        %8468 = vmatpush.bf16.msra.mxu0 0
        %8469 = vmatpush.bf16.msra.mxu0 0
        %8470 = vmatpush.bf16.msra.mxu0 %v3048
        %8471 = vmatmul.bf16.gmra.mxu0 %v1880
        %v8472 = vpop.f32.mrf.mxu0
        %v8473 = vadd.f32 %v596, %v8472
        %v8474 = vpop.f32.mrf.mxu0
        %8475 = vdwg.mxu0
        %8476 = vmatpush.bf16.msra.mxu0 0
        %8477 = vmatpush.bf16.msra.mxu0 0
        %8478 = vmatpush.bf16.msra.mxu0 0
        %8479 = vmatpush.bf16.msra.mxu0 0
        %8480 = vmatpush.bf16.msra.mxu0 0
        %8481 = vmatpush.bf16.msra.mxu0 0
        %8482 = vmatpush.bf16.msra.mxu0 0
        %8483 = vmatpush.bf16.msra.mxu0 %v3051
        %8484 = vmatmul.bf16.gmra.mxu0 %v1880
        %v8485 = vpop.f32.mrf.mxu0
        %v8486 = vadd.f32 %v596, %v8485
        %v8487 = vpop.f32.mrf.mxu0
        %8488 = vdwg.mxu0
        %8489 = vmatpush.bf16.msra.mxu0 0
        %8490 = vmatpush.bf16.msra.mxu0 0
        %8491 = vmatpush.bf16.msra.mxu0 0
        %8492 = vmatpush.bf16.msra.mxu0 0
        %8493 = vmatpush.bf16.msra.mxu0 0
        %8494 = vmatpush.bf16.msra.mxu0 0
        %8495 = vmatpush.bf16.msra.mxu0 0
        %8496 = vmatpush.bf16.msra.mxu0 %v3054
        %8497 = vmatmul.bf16.gmra.mxu0 %v1880
        %v8498 = vpop.f32.mrf.mxu0
        %v8499 = vadd.f32 %v596, %v8498
        %v8500 = vpop.f32.mrf.mxu0
        %8501 = vdwg.mxu0
        %8502 = vmatpush.bf16.msra.mxu0 0
        %8503 = vmatpush.bf16.msra.mxu0 0
        %8504 = vmatpush.bf16.msra.mxu0 0
        %8505 = vmatpush.bf16.msra.mxu0 0
        %8506 = vmatpush.bf16.msra.mxu0 0
        %8507 = vmatpush.bf16.msra.mxu0 0
        %8508 = vmatpush.bf16.msra.mxu0 0
        %8509 = vmatpush.bf16.msra.mxu0 %v3057
        %8510 = vmatmul.bf16.gmra.mxu0 %v1880
        %v8511 = vpop.f32.mrf.mxu0
        %v8512 = vadd.f32 %v596, %v8511
        %v8513 = vpop.f32.mrf.mxu0
        %8514 = vdwg.mxu0
        %8515 = vmatpush.bf16.msra.mxu0 0
        %8516 = vmatpush.bf16.msra.mxu0 0
        %8517 = vmatpush.bf16.msra.mxu0 0
        %8518 = vmatpush.bf16.msra.mxu0 0
        %8519 = vmatpush.bf16.msra.mxu0 0
        %8520 = vmatpush.bf16.msra.mxu0 0
        %8521 = vmatpush.bf16.msra.mxu0 0
        %8522 = vmatpush.bf16.msra.mxu0 %v3060
        %8523 = vmatmul.bf16.gmra.mxu0 %v1880
        %v8524 = vpop.f32.mrf.mxu0
        %v8525 = vadd.f32 %v596, %v8524
        %v8526 = vpop.f32.mrf.mxu0
        %8527 = vdwg.mxu0
        %8528 = vmatpush.bf16.msra.mxu0 0
        %8529 = vmatpush.bf16.msra.mxu0 0
        %8530 = vmatpush.bf16.msra.mxu0 0
        %8531 = vmatpush.bf16.msra.mxu0 0
        %8532 = vmatpush.bf16.msra.mxu0 0
        %8533 = vmatpush.bf16.msra.mxu0 0
        %8534 = vmatpush.bf16.msra.mxu0 0
        %8535 = vmatpush.bf16.msra.mxu0 %v3063
        %8536 = vmatmul.bf16.gmra.mxu0 %v1880
        %v8537 = vpop.f32.mrf.mxu0
        %v8538 = vadd.f32 %v596, %v8537
        %v8539 = vpop.f32.mrf.mxu0
        %8540 = vdwg.mxu0
        %8541 = vmatpush.bf16.msra.mxu0 0
        %8542 = vmatpush.bf16.msra.mxu0 0
        %8543 = vmatpush.bf16.msra.mxu0 0
        %8544 = vmatpush.bf16.msra.mxu0 0
        %8545 = vmatpush.bf16.msra.mxu0 0
        %8546 = vmatpush.bf16.msra.mxu0 0
        %8547 = vmatpush.bf16.msra.mxu0 0
        %8548 = vmatpush.bf16.msra.mxu0 %v3066
        %8549 = vmatmul.bf16.gmra.mxu0 %v1880
        %v8550 = vpop.f32.mrf.mxu0
        %v8551 = vadd.f32 %v596, %v8550
        %v8552 = vpop.f32.mrf.mxu0
        %8553 = vdwg.mxu0
        %8554 = vmatpush.bf16.msra.mxu0 0
        %8555 = vmatpush.bf16.msra.mxu0 0
        %8556 = vmatpush.bf16.msra.mxu0 0
        %8557 = vmatpush.bf16.msra.mxu0 0
        %8558 = vmatpush.bf16.msra.mxu0 0
        %8559 = vmatpush.bf16.msra.mxu0 0
        %8560 = vmatpush.bf16.msra.mxu0 0
        %8561 = vmatpush.bf16.msra.mxu0 %v3069
        %8562 = vmatmul.bf16.gmra.mxu0 %v1880
        %v8563 = vpop.f32.mrf.mxu0
        %v8564 = vadd.f32 %v596, %v8563
        %v8565 = vpop.f32.mrf.mxu0
        %8566 = vdwg.mxu0
        %8567 = vmatpush.bf16.msra.mxu0 0
        %8568 = vmatpush.bf16.msra.mxu0 0
        %8569 = vmatpush.bf16.msra.mxu0 0
        %8570 = vmatpush.bf16.msra.mxu0 0
        %8571 = vmatpush.bf16.msra.mxu0 0
        %8572 = vmatpush.bf16.msra.mxu0 0
        %8573 = vmatpush.bf16.msra.mxu0 0
        %8574 = vmatpush.bf16.msra.mxu0 %v3072
        %8575 = vmatmul.bf16.gmra.mxu0 %v1880
        %v8576 = vpop.f32.mrf.mxu0
        %v8577 = vadd.f32 %v596, %v8576
        %v8578 = vpop.f32.mrf.mxu0
        %8579 = vdwg.mxu0
        %8580 = vmatpush.bf16.msra.mxu0 0
        %8581 = vmatpush.bf16.msra.mxu0 0
        %8582 = vmatpush.bf16.msra.mxu0 0
        %8583 = vmatpush.bf16.msra.mxu0 0
        %8584 = vmatpush.bf16.msra.mxu0 0
        %8585 = vmatpush.bf16.msra.mxu0 0
        %8586 = vmatpush.bf16.msra.mxu0 0
        %8587 = vmatpush.bf16.msra.mxu0 %v3075
        %8588 = vmatmul.bf16.gmra.mxu0 %v1880
        %v8589 = vpop.f32.mrf.mxu0
        %v8590 = vadd.f32 %v596, %v8589
        %v8591 = vpop.f32.mrf.mxu0
        %8592 = vdwg.mxu0
        %8593 = vmatpush.bf16.msra.mxu0 0
        %8594 = vmatpush.bf16.msra.mxu0 0
        %8595 = vmatpush.bf16.msra.mxu0 0
        %8596 = vmatpush.bf16.msra.mxu0 0
        %8597 = vmatpush.bf16.msra.mxu0 0
        %8598 = vmatpush.bf16.msra.mxu0 0
        %8599 = vmatpush.bf16.msra.mxu0 0
        %8600 = vmatpush.bf16.msra.mxu0 %v3078
        %8601 = vmatmul.bf16.gmra.mxu0 %v1880
        %v8602 = vpop.f32.mrf.mxu0
        %v8603 = vadd.f32 %v596, %v8602
        %v8604 = vpop.f32.mrf.mxu0
        %8605 = vdwg.mxu0
        %8606 = vmatpush.bf16.msra.mxu0 0
        %8607 = vmatpush.bf16.msra.mxu0 0
        %8608 = vmatpush.bf16.msra.mxu0 0
        %8609 = vmatpush.bf16.msra.mxu0 0
        %8610 = vmatpush.bf16.msra.mxu0 0
        %8611 = vmatpush.bf16.msra.mxu0 0
        %8612 = vmatpush.bf16.msra.mxu0 0
        %8613 = vmatpush.bf16.msra.mxu0 %v3081
        %8614 = vmatmul.bf16.gmra.mxu0 %v1880
        %v8615 = vpop.f32.mrf.mxu0
        %v8616 = vadd.f32 %v596, %v8615
        %v8617 = vpop.f32.mrf.mxu0
        %8618 = vdwg.mxu0
        %8619 = vmatpush.bf16.msra.mxu0 0
        %8620 = vmatpush.bf16.msra.mxu0 0
        %8621 = vmatpush.bf16.msra.mxu0 0
        %8622 = vmatpush.bf16.msra.mxu0 0
        %8623 = vmatpush.bf16.msra.mxu0 0
        %8624 = vmatpush.bf16.msra.mxu0 0
        %8625 = vmatpush.bf16.msra.mxu0 0
        %8626 = vmatpush.bf16.msra.mxu0 %v3084
        %8627 = vmatmul.bf16.gmra.mxu0 %v1880
        %v8628 = vpop.f32.mrf.mxu0
        %v8629 = vadd.f32 %v596, %v8628
        %v8630 = vpop.f32.mrf.mxu0
        %8631 = vdwg.mxu0
        %8632 = vmatpush.bf16.msra.mxu0 0
        %8633 = vmatpush.bf16.msra.mxu0 0
        %8634 = vmatpush.bf16.msra.mxu0 0
        %8635 = vmatpush.bf16.msra.mxu0 0
        %8636 = vmatpush.bf16.msra.mxu0 0
        %8637 = vmatpush.bf16.msra.mxu0 0
        %8638 = vmatpush.bf16.msra.mxu0 0
        %8639 = vmatpush.bf16.msra.mxu0 %v3087
        %8640 = vmatmul.bf16.gmra.mxu0 %v1880
        %v8641 = vpop.f32.mrf.mxu0
        %v8642 = vadd.f32 %v596, %v8641
        %v8643 = vpop.f32.mrf.mxu0
        %8644 = vdwg.mxu0
        %8645 = vmatpush.bf16.msra.mxu0 0
        %8646 = vmatpush.bf16.msra.mxu0 0
        %8647 = vmatpush.bf16.msra.mxu0 0
        %8648 = vmatpush.bf16.msra.mxu0 0
        %8649 = vmatpush.bf16.msra.mxu0 0
        %8650 = vmatpush.bf16.msra.mxu0 0
        %8651 = vmatpush.bf16.msra.mxu0 0
        %8652 = vmatpush.bf16.msra.mxu0 %v3090
        %8653 = vmatmul.bf16.gmra.mxu0 %v1880
        %v8654 = vpop.f32.mrf.mxu0
        %v8655 = vadd.f32 %v596, %v8654
        %v8656 = vpop.f32.mrf.mxu0
        %8657 = vdwg.mxu0
        %8658 = vmatpush.bf16.msra.mxu0 0
        %8659 = vmatpush.bf16.msra.mxu0 0
        %8660 = vmatpush.bf16.msra.mxu0 0
        %8661 = vmatpush.bf16.msra.mxu0 0
        %8662 = vmatpush.bf16.msra.mxu0 0
        %8663 = vmatpush.bf16.msra.mxu0 0
        %8664 = vmatpush.bf16.msra.mxu0 0
        %8665 = vmatpush.bf16.msra.mxu0 %v3093
        %8666 = vmatmul.bf16.gmra.mxu0 %v1880
        %v8667 = vpop.f32.mrf.mxu0
        %v8668 = vadd.f32 %v596, %v8667
        %v8669 = vpop.f32.mrf.mxu0
        %8670 = vdwg.mxu0
        %8671 = vmatpush.bf16.msra.mxu0 0
        %8672 = vmatpush.bf16.msra.mxu0 0
        %8673 = vmatpush.bf16.msra.mxu0 0
        %8674 = vmatpush.bf16.msra.mxu0 0
        %8675 = vmatpush.bf16.msra.mxu0 0
        %8676 = vmatpush.bf16.msra.mxu0 0
        %8677 = vmatpush.bf16.msra.mxu0 0
        %8678 = vmatpush.bf16.msra.mxu0 %v3096
        %8679 = vmatmul.bf16.gmra.mxu0 %v1880
        %v8680 = vpop.f32.mrf.mxu0
        %v8681 = vadd.f32 %v596, %v8680
        %v8682 = vpop.f32.mrf.mxu0
        %8683 = vdwg.mxu0
        %8684 = vmatpush.bf16.msra.mxu0 0
        %8685 = vmatpush.bf16.msra.mxu0 0
        %8686 = vmatpush.bf16.msra.mxu0 0
        %8687 = vmatpush.bf16.msra.mxu0 0
        %8688 = vmatpush.bf16.msra.mxu0 0
        %8689 = vmatpush.bf16.msra.mxu0 0
        %8690 = vmatpush.bf16.msra.mxu0 0
        %8691 = vmatpush.bf16.msra.mxu0 %v3099
        %8692 = vmatmul.bf16.gmra.mxu0 %v1880
        %v8693 = vpop.f32.mrf.mxu0
        %v8694 = vadd.f32 %v596, %v8693
        %v8695 = vpop.f32.mrf.mxu0
        %8696 = vdwg.mxu0
        %8697 = vmatpush.bf16.msra.mxu0 0
        %8698 = vmatpush.bf16.msra.mxu0 0
        %8699 = vmatpush.bf16.msra.mxu0 0
        %8700 = vmatpush.bf16.msra.mxu0 0
        %8701 = vmatpush.bf16.msra.mxu0 0
        %8702 = vmatpush.bf16.msra.mxu0 0
        %8703 = vmatpush.bf16.msra.mxu0 0
        %8704 = vmatpush.bf16.msra.mxu0 %v3102
        %8705 = vmatmul.bf16.gmra.mxu0 %v1880
        %v8706 = vpop.f32.mrf.mxu0
        %v8707 = vadd.f32 %v596, %v8706
        %v8708 = vpop.f32.mrf.mxu0
        %8709 = vdwg.mxu0
        %8710 = vmatpush.bf16.msra.mxu0 0
        %8711 = vmatpush.bf16.msra.mxu0 0
        %8712 = vmatpush.bf16.msra.mxu0 0
        %8713 = vmatpush.bf16.msra.mxu0 0
        %8714 = vmatpush.bf16.msra.mxu0 0
        %8715 = vmatpush.bf16.msra.mxu0 0
        %8716 = vmatpush.bf16.msra.mxu0 0
        %8717 = vmatpush.bf16.msra.mxu0 %v3105
        %8718 = vmatmul.bf16.gmra.mxu0 %v1880
        %v8719 = vpop.f32.mrf.mxu0
        %v8720 = vadd.f32 %v596, %v8719
        %v8721 = vpop.f32.mrf.mxu0
        %8722 = vdwg.mxu0
        %8723 = vmatpush.bf16.msra.mxu0 0
        %8724 = vmatpush.bf16.msra.mxu0 0
        %8725 = vmatpush.bf16.msra.mxu0 0
        %8726 = vmatpush.bf16.msra.mxu0 0
        %8727 = vmatpush.bf16.msra.mxu0 0
        %8728 = vmatpush.bf16.msra.mxu0 0
        %8729 = vmatpush.bf16.msra.mxu0 0
        %8730 = vmatpush.bf16.msra.mxu0 %v3108
        %8731 = vmatmul.bf16.gmra.mxu0 %v1880
        %v8732 = vpop.f32.mrf.mxu0
        %v8733 = vadd.f32 %v596, %v8732
        %v8734 = vpop.f32.mrf.mxu0
        %8735 = vdwg.mxu0
        %8736 = vmatpush.bf16.msra.mxu0 0
        %8737 = vmatpush.bf16.msra.mxu0 0
        %8738 = vmatpush.bf16.msra.mxu0 0
        %8739 = vmatpush.bf16.msra.mxu0 0
        %8740 = vmatpush.bf16.msra.mxu0 0
        %8741 = vmatpush.bf16.msra.mxu0 0
        %8742 = vmatpush.bf16.msra.mxu0 0
        %8743 = vmatpush.bf16.msra.mxu0 %v3111
        %8744 = vmatmul.bf16.gmra.mxu0 %v1880
        %v8745 = vpop.f32.mrf.mxu0
        %v8746 = vadd.f32 %v596, %v8745
        %v8747 = vpop.f32.mrf.mxu0
        %8748 = vdwg.mxu0
        %8749 = vmatpush.bf16.msra.mxu0 0
        %8750 = vmatpush.bf16.msra.mxu0 0
        %8751 = vmatpush.bf16.msra.mxu0 0
        %8752 = vmatpush.bf16.msra.mxu0 0
        %8753 = vmatpush.bf16.msra.mxu0 0
        %8754 = vmatpush.bf16.msra.mxu0 0
        %8755 = vmatpush.bf16.msra.mxu0 0
        %8756 = vmatpush.bf16.msra.mxu0 %v3114
        %8757 = vmatmul.bf16.gmra.mxu0 %v1880
        %v8758 = vpop.f32.mrf.mxu0
        %v8759 = vadd.f32 %v596, %v8758
        %v8760 = vpop.f32.mrf.mxu0
        %8761 = vdwg.mxu0
        %8762 = vmatpush.bf16.msra.mxu0 0
        %8763 = vmatpush.bf16.msra.mxu0 0
        %8764 = vmatpush.bf16.msra.mxu0 0
        %8765 = vmatpush.bf16.msra.mxu0 0
        %8766 = vmatpush.bf16.msra.mxu0 0
        %8767 = vmatpush.bf16.msra.mxu0 0
        %8768 = vmatpush.bf16.msra.mxu0 0
        %8769 = vmatpush.bf16.msra.mxu0 %v3117
        %8770 = vmatmul.bf16.gmra.mxu0 %v1880
        %v8771 = vpop.f32.mrf.mxu0
        %v8772 = vadd.f32 %v596, %v8771
        %v8773 = vpop.f32.mrf.mxu0
        %8774 = vdwg.mxu0
        %8775 = vmatpush.bf16.msra.mxu0 0
        %8776 = vmatpush.bf16.msra.mxu0 0
        %8777 = vmatpush.bf16.msra.mxu0 0
        %8778 = vmatpush.bf16.msra.mxu0 0
        %8779 = vmatpush.bf16.msra.mxu0 0
        %8780 = vmatpush.bf16.msra.mxu0 0
        %8781 = vmatpush.bf16.msra.mxu0 0
        %8782 = vmatpush.bf16.msra.mxu0 %v3120
        %8783 = vmatmul.bf16.gmra.mxu0 %v1880
        %v8784 = vpop.f32.mrf.mxu0
        %v8785 = vadd.f32 %v596, %v8784
        %v8786 = vpop.f32.mrf.mxu0
        %8787 = vdwg.mxu0
        %8788 = vmatpush.bf16.msra.mxu0 0
        %8789 = vmatpush.bf16.msra.mxu0 0
        %8790 = vmatpush.bf16.msra.mxu0 0
        %8791 = vmatpush.bf16.msra.mxu0 0
        %8792 = vmatpush.bf16.msra.mxu0 0
        %8793 = vmatpush.bf16.msra.mxu0 0
        %8794 = vmatpush.bf16.msra.mxu0 0
        %8795 = vmatpush.bf16.msra.mxu0 %v3123
        %8796 = vmatmul.bf16.gmra.mxu0 %v1880
        %v8797 = vpop.f32.mrf.mxu0
        %v8798 = vadd.f32 %v596, %v8797
        %v8799 = vpop.f32.mrf.mxu0
        %8800 = vdwg.mxu0
        %8801 = vmatpush.bf16.msra.mxu0 0
        %8802 = vmatpush.bf16.msra.mxu0 0
        %8803 = vmatpush.bf16.msra.mxu0 0
        %8804 = vmatpush.bf16.msra.mxu0 0
        %8805 = vmatpush.bf16.msra.mxu0 0
        %8806 = vmatpush.bf16.msra.mxu0 0
        %8807 = vmatpush.bf16.msra.mxu0 0
        %8808 = vmatpush.bf16.msra.mxu0 %v3126
        %8809 = vmatmul.bf16.gmra.mxu0 %v1880
        %v8810 = vpop.f32.mrf.mxu0
        %v8811 = vadd.f32 %v596, %v8810
        %v8812 = vpop.f32.mrf.mxu0
        %8813 = vdwg.mxu0
        %8814 = vmatpush.bf16.msra.mxu0 0
        %8815 = vmatpush.bf16.msra.mxu0 0
        %8816 = vmatpush.bf16.msra.mxu0 0
        %8817 = vmatpush.bf16.msra.mxu0 0
        %8818 = vmatpush.bf16.msra.mxu0 0
        %8819 = vmatpush.bf16.msra.mxu0 0
        %8820 = vmatpush.bf16.msra.mxu0 0
        %8821 = vmatpush.bf16.msra.mxu0 %v3129
        %8822 = vmatmul.bf16.gmra.mxu0 %v1880
        %v8823 = vpop.f32.mrf.mxu0
        %v8824 = vadd.f32 %v596, %v8823
        %v8825 = vpop.f32.mrf.mxu0
        %8826 = vdwg.mxu0
        %8827 = vmatpush.bf16.msra.mxu0 0
        %8828 = vmatpush.bf16.msra.mxu0 0
        %8829 = vmatpush.bf16.msra.mxu0 0
        %8830 = vmatpush.bf16.msra.mxu0 0
        %8831 = vmatpush.bf16.msra.mxu0 0
        %8832 = vmatpush.bf16.msra.mxu0 0
        %8833 = vmatpush.bf16.msra.mxu0 0
        %8834 = vmatpush.bf16.msra.mxu0 %v3132
        %8835 = vmatmul.bf16.gmra.mxu0 %v1880
        %v8836 = vpop.f32.mrf.mxu0
        %v8837 = vadd.f32 %v596, %v8836
        %v8838 = vpop.f32.mrf.mxu0
        %8839 = vdwg.mxu0
        %8840 = vmatpush.bf16.msra.mxu0 0
        %8841 = vmatpush.bf16.msra.mxu0 0
        %8842 = vmatpush.bf16.msra.mxu0 0
        %8843 = vmatpush.bf16.msra.mxu0 0
        %8844 = vmatpush.bf16.msra.mxu0 0
        %8845 = vmatpush.bf16.msra.mxu0 0
        %8846 = vmatpush.bf16.msra.mxu0 0
        %8847 = vmatpush.bf16.msra.mxu0 %v3135
        %8848 = vmatmul.bf16.gmra.mxu0 %v1880
        %v8849 = vpop.f32.mrf.mxu0
        %v8850 = vadd.f32 %v596, %v8849
        %v8851 = vpop.f32.mrf.mxu0
        %8852 = vdwg.mxu0
        %8853 = vmatpush.bf16.msra.mxu0 0
        %8854 = vmatpush.bf16.msra.mxu0 0
        %8855 = vmatpush.bf16.msra.mxu0 0
        %8856 = vmatpush.bf16.msra.mxu0 0
        %8857 = vmatpush.bf16.msra.mxu0 0
        %8858 = vmatpush.bf16.msra.mxu0 0
        %8859 = vmatpush.bf16.msra.mxu0 0
        %8860 = vmatpush.bf16.msra.mxu0 %v3138
        %8861 = vmatmul.bf16.gmra.mxu0 %v1880
        %v8862 = vpop.f32.mrf.mxu0
        %v8863 = vadd.f32 %v596, %v8862
        %v8864 = vpop.f32.mrf.mxu0
        %8865 = vdwg.mxu0
        %8866 = vmatpush.bf16.msra.mxu0 0
        %8867 = vmatpush.bf16.msra.mxu0 0
        %8868 = vmatpush.bf16.msra.mxu0 0
        %8869 = vmatpush.bf16.msra.mxu0 0
        %8870 = vmatpush.bf16.msra.mxu0 0
        %8871 = vmatpush.bf16.msra.mxu0 0
        %8872 = vmatpush.bf16.msra.mxu0 0
        %8873 = vmatpush.bf16.msra.mxu0 %v3141
        %8874 = vmatmul.bf16.gmra.mxu0 %v1880
        %v8875 = vpop.f32.mrf.mxu0
        %v8876 = vadd.f32 %v596, %v8875
        %v8877 = vpop.f32.mrf.mxu0
        %8878 = vdwg.mxu0
        %8879 = vmatpush.bf16.msra.mxu0 0
        %8880 = vmatpush.bf16.msra.mxu0 0
        %8881 = vmatpush.bf16.msra.mxu0 0
        %8882 = vmatpush.bf16.msra.mxu0 0
        %8883 = vmatpush.bf16.msra.mxu0 0
        %8884 = vmatpush.bf16.msra.mxu0 0
        %8885 = vmatpush.bf16.msra.mxu0 0
        %8886 = vmatpush.bf16.msra.mxu0 %v3144
        %8887 = vmatmul.bf16.gmra.mxu0 %v1880
        %v8888 = vpop.f32.mrf.mxu0
        %v8889 = vadd.f32 %v596, %v8888
        %v8890 = vpop.f32.mrf.mxu0
        %8891 = vdwg.mxu0
        %8892 = vmatpush.bf16.msra.mxu0 0
        %8893 = vmatpush.bf16.msra.mxu0 0
        %8894 = vmatpush.bf16.msra.mxu0 0
        %8895 = vmatpush.bf16.msra.mxu0 0
        %8896 = vmatpush.bf16.msra.mxu0 0
        %8897 = vmatpush.bf16.msra.mxu0 0
        %8898 = vmatpush.bf16.msra.mxu0 0
        %8899 = vmatpush.bf16.msra.mxu0 %v3147
        %8900 = vmatmul.bf16.gmra.mxu0 %v1880
        %v8901 = vpop.f32.mrf.mxu0
        %v8902 = vadd.f32 %v596, %v8901
        %v8903 = vpop.f32.mrf.mxu0
        %8904 = vdwg.mxu0
        %8905 = vmatpush.bf16.msra.mxu0 0
        %8906 = vmatpush.bf16.msra.mxu0 0
        %8907 = vmatpush.bf16.msra.mxu0 0
        %8908 = vmatpush.bf16.msra.mxu0 0
        %8909 = vmatpush.bf16.msra.mxu0 0
        %8910 = vmatpush.bf16.msra.mxu0 0
        %8911 = vmatpush.bf16.msra.mxu0 0
        %8912 = vmatpush.bf16.msra.mxu0 %v3150
        %8913 = vmatmul.bf16.gmra.mxu0 %v1880
        %v8914 = vpop.f32.mrf.mxu0
        %v8915 = vadd.f32 %v596, %v8914
        %v8916 = vpop.f32.mrf.mxu0
        %8917 = vdwg.mxu0
        %8918 = vmatpush.bf16.msra.mxu0 0
        %8919 = vmatpush.bf16.msra.mxu0 0
        %8920 = vmatpush.bf16.msra.mxu0 0
        %8921 = vmatpush.bf16.msra.mxu0 0
        %8922 = vmatpush.bf16.msra.mxu0 0
        %8923 = vmatpush.bf16.msra.mxu0 0
        %8924 = vmatpush.bf16.msra.mxu0 0
        %8925 = vmatpush.bf16.msra.mxu0 %v3153
        %8926 = vmatmul.bf16.gmra.mxu0 %v1880
        %v8927 = vpop.f32.mrf.mxu0
        %v8928 = vadd.f32 %v596, %v8927
        %v8929 = vpop.f32.mrf.mxu0
        %8930 = vdwg.mxu0
        %8931 = vmatpush.bf16.msra.mxu0 0
        %8932 = vmatpush.bf16.msra.mxu0 0
        %8933 = vmatpush.bf16.msra.mxu0 0
        %8934 = vmatpush.bf16.msra.mxu0 0
        %8935 = vmatpush.bf16.msra.mxu0 0
        %8936 = vmatpush.bf16.msra.mxu0 0
        %8937 = vmatpush.bf16.msra.mxu0 0
        %8938 = vmatpush.bf16.msra.mxu0 %v3156
        %8939 = vmatmul.bf16.gmra.mxu0 %v1880
        %v8940 = vpop.f32.mrf.mxu0
        %v8941 = vadd.f32 %v596, %v8940
        %v8942 = vpop.f32.mrf.mxu0
        %8943 = vdwg.mxu0
        %8944 = vmatpush.bf16.msra.mxu0 0
        %8945 = vmatpush.bf16.msra.mxu0 0
        %8946 = vmatpush.bf16.msra.mxu0 0
        %8947 = vmatpush.bf16.msra.mxu0 0
        %8948 = vmatpush.bf16.msra.mxu0 0
        %8949 = vmatpush.bf16.msra.mxu0 0
        %8950 = vmatpush.bf16.msra.mxu0 0
        %8951 = vmatpush.bf16.msra.mxu0 %v3159
        %8952 = vmatmul.bf16.gmra.mxu0 %v1880
        %v8953 = vpop.f32.mrf.mxu0
        %v8954 = vadd.f32 %v596, %v8953
        %v8955 = vpop.f32.mrf.mxu0
        %8956 = vdwg.mxu0
        %8957 = vmatpush.bf16.msra.mxu0 0
        %8958 = vmatpush.bf16.msra.mxu0 0
        %8959 = vmatpush.bf16.msra.mxu0 0
        %8960 = vmatpush.bf16.msra.mxu0 0
        %8961 = vmatpush.bf16.msra.mxu0 0
        %8962 = vmatpush.bf16.msra.mxu0 0
        %8963 = vmatpush.bf16.msra.mxu0 0
        %8964 = vmatpush.bf16.msra.mxu0 %v3162
        %8965 = vmatmul.bf16.gmra.mxu0 %v1880
        %v8966 = vpop.f32.mrf.mxu0
        %v8967 = vadd.f32 %v596, %v8966
        %v8968 = vpop.f32.mrf.mxu0
        %8969 = vdwg.mxu0
        %8970 = vmatpush.bf16.msra.mxu0 0
        %8971 = vmatpush.bf16.msra.mxu0 0
        %8972 = vmatpush.bf16.msra.mxu0 0
        %8973 = vmatpush.bf16.msra.mxu0 0
        %8974 = vmatpush.bf16.msra.mxu0 0
        %8975 = vmatpush.bf16.msra.mxu0 0
        %8976 = vmatpush.bf16.msra.mxu0 0
        %8977 = vmatpush.bf16.msra.mxu0 %v3165
        %8978 = vmatmul.bf16.gmra.mxu0 %v1880
        %v8979 = vpop.f32.mrf.mxu0
        %v8980 = vadd.f32 %v596, %v8979
        %v8981 = vpop.f32.mrf.mxu0
        %8982 = vdwg.mxu0
        %8983 = vmatpush.bf16.msra.mxu0 0
        %8984 = vmatpush.bf16.msra.mxu0 0
        %8985 = vmatpush.bf16.msra.mxu0 0
        %8986 = vmatpush.bf16.msra.mxu0 0
        %8987 = vmatpush.bf16.msra.mxu0 0
        %8988 = vmatpush.bf16.msra.mxu0 0
        %8989 = vmatpush.bf16.msra.mxu0 0
        %8990 = vmatpush.bf16.msra.mxu0 %v3168
        %8991 = vmatmul.bf16.gmra.mxu0 %v1880
        %v8992 = vpop.f32.mrf.mxu0
        %v8993 = vadd.f32 %v596, %v8992
        %v8994 = vpop.f32.mrf.mxu0
        %8995 = vdwg.mxu0
        %8996 = vmatpush.bf16.msra.mxu0 0
        %8997 = vmatpush.bf16.msra.mxu0 0
        %8998 = vmatpush.bf16.msra.mxu0 0
        %8999 = vmatpush.bf16.msra.mxu0 0
        %9000 = vmatpush.bf16.msra.mxu0 0
        %9001 = vmatpush.bf16.msra.mxu0 0
        %9002 = vmatpush.bf16.msra.mxu0 0
        %9003 = vmatpush.bf16.msra.mxu0 %v3171
        %9004 = vmatmul.bf16.gmra.mxu0 %v1880
        %v9005 = vpop.f32.mrf.mxu0
        %v9006 = vadd.f32 %v596, %v9005
        %v9007 = vpop.f32.mrf.mxu0
        %9008 = vdwg.mxu0
        %9009 = vmatpush.bf16.msra.mxu0 0
        %9010 = vmatpush.bf16.msra.mxu0 0
        %9011 = vmatpush.bf16.msra.mxu0 0
        %9012 = vmatpush.bf16.msra.mxu0 0
        %9013 = vmatpush.bf16.msra.mxu0 0
        %9014 = vmatpush.bf16.msra.mxu0 0
        %9015 = vmatpush.bf16.msra.mxu0 0
        %9016 = vmatpush.bf16.msra.mxu0 %v3174
        %9017 = vmatmul.bf16.gmra.mxu0 %v1880
        %v9018 = vpop.f32.mrf.mxu0
        %v9019 = vadd.f32 %v596, %v9018
        %v9020 = vpop.f32.mrf.mxu0
        %9021 = vdwg.mxu0
        %9022 = vmatpush.bf16.msra.mxu0 0
        %9023 = vmatpush.bf16.msra.mxu0 0
        %9024 = vmatpush.bf16.msra.mxu0 0
        %9025 = vmatpush.bf16.msra.mxu0 0
        %9026 = vmatpush.bf16.msra.mxu0 0
        %9027 = vmatpush.bf16.msra.mxu0 0
        %9028 = vmatpush.bf16.msra.mxu0 0
        %9029 = vmatpush.bf16.msra.mxu0 %v3177
        %9030 = vmatmul.bf16.gmra.mxu0 %v1880
        %v9031 = vpop.f32.mrf.mxu0
        %v9032 = vadd.f32 %v596, %v9031
        %v9033 = vpop.f32.mrf.mxu0
        %9034 = vdwg.mxu0
        %9035 = vmatpush.bf16.msra.mxu0 0
        %9036 = vmatpush.bf16.msra.mxu0 0
        %9037 = vmatpush.bf16.msra.mxu0 0
        %9038 = vmatpush.bf16.msra.mxu0 0
        %9039 = vmatpush.bf16.msra.mxu0 0
        %9040 = vmatpush.bf16.msra.mxu0 0
        %9041 = vmatpush.bf16.msra.mxu0 0
        %9042 = vmatpush.bf16.msra.mxu0 %v3180
        %9043 = vmatmul.bf16.gmra.mxu0 %v1880
        %v9044 = vpop.f32.mrf.mxu0
        %v9045 = vadd.f32 %v596, %v9044
        %v9046 = vpop.f32.mrf.mxu0
        %9047 = vdwg.mxu0
        %9048 = vmatpush.bf16.msra.mxu0 0
        %9049 = vmatpush.bf16.msra.mxu0 0
        %9050 = vmatpush.bf16.msra.mxu0 0
        %9051 = vmatpush.bf16.msra.mxu0 0
        %9052 = vmatpush.bf16.msra.mxu0 0
        %9053 = vmatpush.bf16.msra.mxu0 0
        %9054 = vmatpush.bf16.msra.mxu0 0
        %9055 = vmatpush.bf16.msra.mxu0 %v3183
        %9056 = vmatmul.bf16.gmra.mxu0 %v1880
        %v9057 = vpop.f32.mrf.mxu0
        %v9058 = vadd.f32 %v596, %v9057
        %v9059 = vpop.f32.mrf.mxu0
        %9060 = vdwg.mxu0
        %9061 = vmatpush.bf16.msra.mxu0 0
        %9062 = vmatpush.bf16.msra.mxu0 0
        %9063 = vmatpush.bf16.msra.mxu0 0
        %9064 = vmatpush.bf16.msra.mxu0 0
        %9065 = vmatpush.bf16.msra.mxu0 0
        %9066 = vmatpush.bf16.msra.mxu0 0
        %9067 = vmatpush.bf16.msra.mxu0 0
        %9068 = vmatpush.bf16.msra.mxu0 %v3186
        %9069 = vmatmul.bf16.gmra.mxu0 %v1880
        %v9070 = vpop.f32.mrf.mxu0
        %v9071 = vadd.f32 %v596, %v9070
        %v9072 = vpop.f32.mrf.mxu0
        %9073 = vdwg.mxu0
        %9074 = vmatpush.bf16.msra.mxu0 0
        %9075 = vmatpush.bf16.msra.mxu0 0
        %9076 = vmatpush.bf16.msra.mxu0 0
        %9077 = vmatpush.bf16.msra.mxu0 0
        %9078 = vmatpush.bf16.msra.mxu0 0
        %9079 = vmatpush.bf16.msra.mxu0 0
        %9080 = vmatpush.bf16.msra.mxu0 0
        %9081 = vmatpush.bf16.msra.mxu0 %v3189
        %9082 = vmatmul.bf16.gmra.mxu0 %v1880
        %v9083 = vpop.f32.mrf.mxu0
        %v9084 = vadd.f32 %v596, %v9083
        %v9085 = vpop.f32.mrf.mxu0
        %9086 = vdwg.mxu0
        %9087 = vmatpush.bf16.msra.mxu0 0
        %9088 = vmatpush.bf16.msra.mxu0 0
        %9089 = vmatpush.bf16.msra.mxu0 0
        %9090 = vmatpush.bf16.msra.mxu0 0
        %9091 = vmatpush.bf16.msra.mxu0 0
        %9092 = vmatpush.bf16.msra.mxu0 0
        %9093 = vmatpush.bf16.msra.mxu0 0
        %9094 = vmatpush.bf16.msra.mxu0 %v3192
        %9095 = vmatmul.bf16.gmra.mxu0 %v1880
        %v9096 = vpop.f32.mrf.mxu0
        %v9097 = vadd.f32 %v596, %v9096
        %v9098 = vpop.f32.mrf.mxu0
        %9099 = vdwg.mxu0
        %9100 = vmatpush.bf16.msra.mxu0 0
        %9101 = vmatpush.bf16.msra.mxu0 0
        %9102 = vmatpush.bf16.msra.mxu0 0
        %9103 = vmatpush.bf16.msra.mxu0 0
        %9104 = vmatpush.bf16.msra.mxu0 0
        %9105 = vmatpush.bf16.msra.mxu0 0
        %9106 = vmatpush.bf16.msra.mxu0 0
        %9107 = vmatpush.bf16.msra.mxu0 %v3195
        %9108 = vmatmul.bf16.gmra.mxu0 %v1880
        %v9109 = vpop.f32.mrf.mxu0
        %v9110 = vadd.f32 %v596, %v9109
        %v9111 = vpop.f32.mrf.mxu0
        %9112 = vdwg.mxu0
        %9113 = vmatpush.bf16.msra.mxu0 0
        %9114 = vmatpush.bf16.msra.mxu0 0
        %9115 = vmatpush.bf16.msra.mxu0 0
        %9116 = vmatpush.bf16.msra.mxu0 0
        %9117 = vmatpush.bf16.msra.mxu0 0
        %9118 = vmatpush.bf16.msra.mxu0 0
        %9119 = vmatpush.bf16.msra.mxu0 0
        %9120 = vmatpush.bf16.msra.mxu0 %v3198
        %9121 = vmatmul.bf16.gmra.mxu0 %v1880
        %v9122 = vpop.f32.mrf.mxu0
        %v9123 = vadd.f32 %v596, %v9122
        %v9124 = vpop.f32.mrf.mxu0
        %9125 = vdwg.mxu0
        %9126 = vmatpush.bf16.msra.mxu0 0
        %9127 = vmatpush.bf16.msra.mxu0 0
        %9128 = vmatpush.bf16.msra.mxu0 0
        %9129 = vmatpush.bf16.msra.mxu0 0
        %9130 = vmatpush.bf16.msra.mxu0 0
        %9131 = vmatpush.bf16.msra.mxu0 0
        %9132 = vmatpush.bf16.msra.mxu0 0
        %9133 = vmatpush.bf16.msra.mxu0 %v3201
        %9134 = vmatmul.bf16.gmra.mxu0 %v1880
        %v9135 = vpop.f32.mrf.mxu0
        %v9136 = vadd.f32 %v596, %v9135
        %v9137 = vpop.f32.mrf.mxu0
        %9138 = vdwg.mxu0
        %9139 = vmatpush.bf16.msra.mxu0 0
        %9140 = vmatpush.bf16.msra.mxu0 0
        %9141 = vmatpush.bf16.msra.mxu0 0
        %9142 = vmatpush.bf16.msra.mxu0 0
        %9143 = vmatpush.bf16.msra.mxu0 0
        %9144 = vmatpush.bf16.msra.mxu0 0
        %9145 = vmatpush.bf16.msra.mxu0 0
        %9146 = vmatpush.bf16.msra.mxu0 %v3204
        %9147 = vmatmul.bf16.gmra.mxu0 %v1880
        %v9148 = vpop.f32.mrf.mxu0
        %v9149 = vadd.f32 %v596, %v9148
        %v9150 = vpop.f32.mrf.mxu0
        %9151 = vdwg.mxu0
        %9152 = vmatpush.bf16.msra.mxu0 0
        %9153 = vmatpush.bf16.msra.mxu0 0
        %9154 = vmatpush.bf16.msra.mxu0 0
        %9155 = vmatpush.bf16.msra.mxu0 0
        %9156 = vmatpush.bf16.msra.mxu0 0
        %9157 = vmatpush.bf16.msra.mxu0 0
        %9158 = vmatpush.bf16.msra.mxu0 0
        %9159 = vmatpush.bf16.msra.mxu0 %v3207
        %9160 = vmatmul.bf16.gmra.mxu0 %v1880
        %v9161 = vpop.f32.mrf.mxu0
        %v9162 = vadd.f32 %v596, %v9161
        %v9163 = vpop.f32.mrf.mxu0
        %9164 = vdwg.mxu0
        %9165 = vmatpush.bf16.msra.mxu0 0
        %9166 = vmatpush.bf16.msra.mxu0 0
        %9167 = vmatpush.bf16.msra.mxu0 0
        %9168 = vmatpush.bf16.msra.mxu0 0
        %9169 = vmatpush.bf16.msra.mxu0 0
        %9170 = vmatpush.bf16.msra.mxu0 0
        %9171 = vmatpush.bf16.msra.mxu0 0
        %9172 = vmatpush.bf16.msra.mxu0 %v3210
        %9173 = vmatmul.bf16.gmra.mxu0 %v1880
        %v9174 = vpop.f32.mrf.mxu0
        %v9175 = vadd.f32 %v596, %v9174
        %v9176 = vpop.f32.mrf.mxu0
        %9177 = vdwg.mxu0
        %9178 = vmatpush.bf16.msra.mxu0 0
        %9179 = vmatpush.bf16.msra.mxu0 0
        %9180 = vmatpush.bf16.msra.mxu0 0
        %9181 = vmatpush.bf16.msra.mxu0 0
        %9182 = vmatpush.bf16.msra.mxu0 0
        %9183 = vmatpush.bf16.msra.mxu0 0
        %9184 = vmatpush.bf16.msra.mxu0 0
        %9185 = vmatpush.bf16.msra.mxu0 %v3213
        %9186 = vmatmul.bf16.gmra.mxu0 %v1880
        %v9187 = vpop.f32.mrf.mxu0
        %v9188 = vadd.f32 %v596, %v9187
        %v9189 = vpop.f32.mrf.mxu0
        %9190 = vdwg.mxu0
        %9191 = vmatpush.bf16.msra.mxu0 0
        %9192 = vmatpush.bf16.msra.mxu0 0
        %9193 = vmatpush.bf16.msra.mxu0 0
        %9194 = vmatpush.bf16.msra.mxu0 0
        %9195 = vmatpush.bf16.msra.mxu0 0
        %9196 = vmatpush.bf16.msra.mxu0 0
        %9197 = vmatpush.bf16.msra.mxu0 0
        %9198 = vmatpush.bf16.msra.mxu0 %v3216
        %9199 = vmatmul.bf16.gmra.mxu0 %v1880
        %v9200 = vpop.f32.mrf.mxu0
        %v9201 = vadd.f32 %v596, %v9200
        %v9202 = vpop.f32.mrf.mxu0
        %9203 = vdwg.mxu0
        %9204 = vmatpush.bf16.msra.mxu0 0
        %9205 = vmatpush.bf16.msra.mxu0 0
        %9206 = vmatpush.bf16.msra.mxu0 0
        %9207 = vmatpush.bf16.msra.mxu0 0
        %9208 = vmatpush.bf16.msra.mxu0 0
        %9209 = vmatpush.bf16.msra.mxu0 0
        %9210 = vmatpush.bf16.msra.mxu0 0
        %9211 = vmatpush.bf16.msra.mxu0 %v3219
        %9212 = vmatmul.bf16.gmra.mxu0 %v1880
        %v9213 = vpop.f32.mrf.mxu0
        %v9214 = vadd.f32 %v596, %v9213
        %v9215 = vpop.f32.mrf.mxu0
        %9216 = vdwg.mxu0
        %9217 = vmatpush.bf16.msra.mxu0 0
        %9218 = vmatpush.bf16.msra.mxu0 0
        %9219 = vmatpush.bf16.msra.mxu0 0
        %9220 = vmatpush.bf16.msra.mxu0 0
        %9221 = vmatpush.bf16.msra.mxu0 0
        %9222 = vmatpush.bf16.msra.mxu0 0
        %9223 = vmatpush.bf16.msra.mxu0 0
        %9224 = vmatpush.bf16.msra.mxu0 %v3222
        %9225 = vmatmul.bf16.gmra.mxu0 %v1880
        %v9226 = vpop.f32.mrf.mxu0
        %v9227 = vadd.f32 %v596, %v9226
        %v9228 = vpop.f32.mrf.mxu0
        %9229 = vdwg.mxu0
        %9230 = vmatpush.bf16.msra.mxu0 0
        %9231 = vmatpush.bf16.msra.mxu0 0
        %9232 = vmatpush.bf16.msra.mxu0 0
        %9233 = vmatpush.bf16.msra.mxu0 0
        %9234 = vmatpush.bf16.msra.mxu0 0
        %9235 = vmatpush.bf16.msra.mxu0 0
        %9236 = vmatpush.bf16.msra.mxu0 0
        %9237 = vmatpush.bf16.msra.mxu0 %v3225
        %9238 = vmatmul.bf16.gmra.mxu0 %v1880
        %v9239 = vpop.f32.mrf.mxu0
        %v9240 = vadd.f32 %v596, %v9239
        %v9241 = vpop.f32.mrf.mxu0
        %9242 = vdwg.mxu0
        %9243 = vmatpush.bf16.msra.mxu0 0
        %9244 = vmatpush.bf16.msra.mxu0 0
        %9245 = vmatpush.bf16.msra.mxu0 0
        %9246 = vmatpush.bf16.msra.mxu0 0
        %9247 = vmatpush.bf16.msra.mxu0 0
        %9248 = vmatpush.bf16.msra.mxu0 0
        %9249 = vmatpush.bf16.msra.mxu0 0
        %9250 = vmatpush.bf16.msra.mxu0 %v3228
        %9251 = vmatmul.bf16.gmra.mxu0 %v1880
        %v9252 = vpop.f32.mrf.mxu0
        %v9253 = vadd.f32 %v596, %v9252
        %v9254 = vpop.f32.mrf.mxu0
        %9255 = vdwg.mxu0
        %9256 = vmatpush.bf16.msra.mxu0 0
        %9257 = vmatpush.bf16.msra.mxu0 0
        %9258 = vmatpush.bf16.msra.mxu0 0
        %9259 = vmatpush.bf16.msra.mxu0 0
        %9260 = vmatpush.bf16.msra.mxu0 0
        %9261 = vmatpush.bf16.msra.mxu0 0
        %9262 = vmatpush.bf16.msra.mxu0 0
        %9263 = vmatpush.bf16.msra.mxu0 %v3231
        %9264 = vmatmul.bf16.gmra.mxu0 %v1880
        %v9265 = vpop.f32.mrf.mxu0
        %v9266 = vadd.f32 %v596, %v9265
        %v9267 = vpop.f32.mrf.mxu0
        %9268 = vdwg.mxu0
        %9269 = vmatpush.bf16.msra.mxu0 0
        %9270 = vmatpush.bf16.msra.mxu0 0
        %9271 = vmatpush.bf16.msra.mxu0 0
        %9272 = vmatpush.bf16.msra.mxu0 0
        %9273 = vmatpush.bf16.msra.mxu0 0
        %9274 = vmatpush.bf16.msra.mxu0 0
        %9275 = vmatpush.bf16.msra.mxu0 0
        %9276 = vmatpush.bf16.msra.mxu0 %v3234
        %9277 = vmatmul.bf16.gmra.mxu0 %v1880
        %v9278 = vpop.f32.mrf.mxu0
        %v9279 = vadd.f32 %v596, %v9278
        %v9280 = vpop.f32.mrf.mxu0
        %9281 = vdwg.mxu0
        %9282 = vmatpush.bf16.msra.mxu0 0
        %9283 = vmatpush.bf16.msra.mxu0 0
        %9284 = vmatpush.bf16.msra.mxu0 0
        %9285 = vmatpush.bf16.msra.mxu0 0
        %9286 = vmatpush.bf16.msra.mxu0 0
        %9287 = vmatpush.bf16.msra.mxu0 0
        %9288 = vmatpush.bf16.msra.mxu0 0
        %9289 = vmatpush.bf16.msra.mxu0 %v3237
        %9290 = vmatmul.bf16.gmra.mxu0 %v1880
        %v9291 = vpop.f32.mrf.mxu0
        %v9292 = vadd.f32 %v596, %v9291
        %v9293 = vpop.f32.mrf.mxu0
        %9294 = vdwg.mxu0
        %9295 = vmatpush.bf16.msra.mxu0 0
        %9296 = vmatpush.bf16.msra.mxu0 0
        %9297 = vmatpush.bf16.msra.mxu0 0
        %9298 = vmatpush.bf16.msra.mxu0 0
        %9299 = vmatpush.bf16.msra.mxu0 0
        %9300 = vmatpush.bf16.msra.mxu0 0
        %9301 = vmatpush.bf16.msra.mxu0 0
        %9302 = vmatpush.bf16.msra.mxu0 %v3240
        %9303 = vmatmul.bf16.gmra.mxu0 %v1880
        %v9304 = vpop.f32.mrf.mxu0
        %v9305 = vadd.f32 %v596, %v9304
        %v9306 = vpop.f32.mrf.mxu0
        %9307 = vdwg.mxu0
        %9308 = vmatpush.bf16.msra.mxu0 0
        %9309 = vmatpush.bf16.msra.mxu0 0
        %9310 = vmatpush.bf16.msra.mxu0 0
        %9311 = vmatpush.bf16.msra.mxu0 0
        %9312 = vmatpush.bf16.msra.mxu0 0
        %9313 = vmatpush.bf16.msra.mxu0 0
        %9314 = vmatpush.bf16.msra.mxu0 0
        %9315 = vmatpush.bf16.msra.mxu0 %v3243
        %9316 = vmatmul.bf16.gmra.mxu0 %v1880
        %v9317 = vpop.f32.mrf.mxu0
        %v9318 = vadd.f32 %v596, %v9317
        %v9319 = vpop.f32.mrf.mxu0
        %9320 = vdwg.mxu0
        %9321 = vmatpush.bf16.msra.mxu0 0
        %9322 = vmatpush.bf16.msra.mxu0 0
        %9323 = vmatpush.bf16.msra.mxu0 0
        %9324 = vmatpush.bf16.msra.mxu0 0
        %9325 = vmatpush.bf16.msra.mxu0 0
        %9326 = vmatpush.bf16.msra.mxu0 0
        %9327 = vmatpush.bf16.msra.mxu0 0
        %9328 = vmatpush.bf16.msra.mxu0 %v3246
        %9329 = vmatmul.bf16.gmra.mxu0 %v1880
        %v9330 = vpop.f32.mrf.mxu0
        %v9331 = vadd.f32 %v596, %v9330
        %v9332 = vpop.f32.mrf.mxu0
        %9333 = vdwg.mxu0
        %9334 = vmatpush.bf16.msra.mxu0 0
        %9335 = vmatpush.bf16.msra.mxu0 0
        %9336 = vmatpush.bf16.msra.mxu0 0
        %9337 = vmatpush.bf16.msra.mxu0 0
        %9338 = vmatpush.bf16.msra.mxu0 0
        %9339 = vmatpush.bf16.msra.mxu0 0
        %9340 = vmatpush.bf16.msra.mxu0 0
        %9341 = vmatpush.bf16.msra.mxu0 %v3249
        %9342 = vmatmul.bf16.gmra.mxu0 %v1880
        %v9343 = vpop.f32.mrf.mxu0
        %v9344 = vadd.f32 %v596, %v9343
        %v9345 = vpop.f32.mrf.mxu0
        %9346 = vdwg.mxu0
        %9347 = vmatpush.bf16.msra.mxu0 0
        %9348 = vmatpush.bf16.msra.mxu0 0
        %9349 = vmatpush.bf16.msra.mxu0 0
        %9350 = vmatpush.bf16.msra.mxu0 0
        %9351 = vmatpush.bf16.msra.mxu0 0
        %9352 = vmatpush.bf16.msra.mxu0 0
        %9353 = vmatpush.bf16.msra.mxu0 0
        %9354 = vmatpush.bf16.msra.mxu0 %v3252
        %9355 = vmatmul.bf16.gmra.mxu0 %v1880
        %v9356 = vpop.f32.mrf.mxu0
        %v9357 = vadd.f32 %v596, %v9356
        %v9358 = vpop.f32.mrf.mxu0
        %9359 = vdwg.mxu0
        %9360 = vmatpush.bf16.msra.mxu0 0
        %9361 = vmatpush.bf16.msra.mxu0 0
        %9362 = vmatpush.bf16.msra.mxu0 0
        %9363 = vmatpush.bf16.msra.mxu0 0
        %9364 = vmatpush.bf16.msra.mxu0 0
        %9365 = vmatpush.bf16.msra.mxu0 0
        %9366 = vmatpush.bf16.msra.mxu0 0
        %9367 = vmatpush.bf16.msra.mxu0 %v3255
        %9368 = vmatmul.bf16.gmra.mxu0 %v1880
        %v9369 = vpop.f32.mrf.mxu0
        %v9370 = vadd.f32 %v596, %v9369
        %v9371 = vpop.f32.mrf.mxu0
        %9372 = vdwg.mxu0
        %9373 = vmatpush.bf16.msra.mxu0 0
        %9374 = vmatpush.bf16.msra.mxu0 0
        %9375 = vmatpush.bf16.msra.mxu0 0
        %9376 = vmatpush.bf16.msra.mxu0 0
        %9377 = vmatpush.bf16.msra.mxu0 0
        %9378 = vmatpush.bf16.msra.mxu0 0
        %9379 = vmatpush.bf16.msra.mxu0 0
        %9380 = vmatpush.bf16.msra.mxu0 %v3258
        %9381 = vmatmul.bf16.gmra.mxu0 %v1880
        %v9382 = vpop.f32.mrf.mxu0
        %v9383 = vadd.f32 %v596, %v9382
        %v9384 = vpop.f32.mrf.mxu0
        %9385 = vdwg.mxu0
        %9386 = vmatpush.bf16.msra.mxu0 0
        %9387 = vmatpush.bf16.msra.mxu0 0
        %9388 = vmatpush.bf16.msra.mxu0 0
        %9389 = vmatpush.bf16.msra.mxu0 0
        %9390 = vmatpush.bf16.msra.mxu0 0
        %9391 = vmatpush.bf16.msra.mxu0 0
        %9392 = vmatpush.bf16.msra.mxu0 0
        %9393 = vmatpush.bf16.msra.mxu0 %v3261
        %9394 = vmatmul.bf16.gmra.mxu0 %v1880
        %v9395 = vpop.f32.mrf.mxu0
        %v9396 = vadd.f32 %v596, %v9395
        %v9397 = vpop.f32.mrf.mxu0
        %9398 = vdwg.mxu0
        %9399 = vmatpush.bf16.msra.mxu0 0
        %9400 = vmatpush.bf16.msra.mxu0 0
        %9401 = vmatpush.bf16.msra.mxu0 0
        %9402 = vmatpush.bf16.msra.mxu0 0
        %9403 = vmatpush.bf16.msra.mxu0 0
        %9404 = vmatpush.bf16.msra.mxu0 0
        %9405 = vmatpush.bf16.msra.mxu0 0
        %9406 = vmatpush.bf16.msra.mxu0 %v3264
        %9407 = vmatmul.bf16.gmra.mxu0 %v1880
        %v9408 = vpop.f32.mrf.mxu0
        %v9409 = vadd.f32 %v596, %v9408
        %v9410 = vpop.f32.mrf.mxu0
        %9411 = vdwg.mxu0
        %9412 = vmatpush.bf16.msra.mxu0 0
        %9413 = vmatpush.bf16.msra.mxu0 0
        %9414 = vmatpush.bf16.msra.mxu0 0
        %9415 = vmatpush.bf16.msra.mxu0 0
        %9416 = vmatpush.bf16.msra.mxu0 0
        %9417 = vmatpush.bf16.msra.mxu0 0
        %9418 = vmatpush.bf16.msra.mxu0 0
        %9419 = vmatpush.bf16.msra.mxu0 %v3267
        %9420 = vmatmul.bf16.gmra.mxu0 %v1880
        %v9421 = vpop.f32.mrf.mxu0
        %v9422 = vadd.f32 %v596, %v9421
        %v9423 = vpop.f32.mrf.mxu0
        %9424 = vdwg.mxu0
        %9425 = vmatpush.bf16.msra.mxu0 0
        %9426 = vmatpush.bf16.msra.mxu0 0
        %9427 = vmatpush.bf16.msra.mxu0 0
        %9428 = vmatpush.bf16.msra.mxu0 0
        %9429 = vmatpush.bf16.msra.mxu0 0
        %9430 = vmatpush.bf16.msra.mxu0 0
        %9431 = vmatpush.bf16.msra.mxu0 0
        %9432 = vmatpush.bf16.msra.mxu0 %v3270
        %9433 = vmatmul.bf16.gmra.mxu0 %v1880
        %v9434 = vpop.f32.mrf.mxu0
        %v9435 = vadd.f32 %v596, %v9434
        %v9436 = vpop.f32.mrf.mxu0
        %9437 = vdwg.mxu0
        %9438 = vmatpush.bf16.msra.mxu0 0
        %9439 = vmatpush.bf16.msra.mxu0 0
        %9440 = vmatpush.bf16.msra.mxu0 0
        %9441 = vmatpush.bf16.msra.mxu0 0
        %9442 = vmatpush.bf16.msra.mxu0 0
        %9443 = vmatpush.bf16.msra.mxu0 0
        %9444 = vmatpush.bf16.msra.mxu0 0
        %9445 = vmatpush.bf16.msra.mxu0 %v3273
        %9446 = vmatmul.bf16.gmra.mxu0 %v1880
        %v9447 = vpop.f32.mrf.mxu0
        %v9448 = vadd.f32 %v596, %v9447
        %v9449 = vpop.f32.mrf.mxu0
        %9450 = vdwg.mxu0
        %9451 = vmatpush.bf16.msra.mxu0 0
        %9452 = vmatpush.bf16.msra.mxu0 0
        %9453 = vmatpush.bf16.msra.mxu0 0
        %9454 = vmatpush.bf16.msra.mxu0 0
        %9455 = vmatpush.bf16.msra.mxu0 0
        %9456 = vmatpush.bf16.msra.mxu0 0
        %9457 = vmatpush.bf16.msra.mxu0 0
        %9458 = vmatpush.bf16.msra.mxu0 %v3276
        %9459 = vmatmul.bf16.gmra.mxu0 %v1880
        %v9460 = vpop.f32.mrf.mxu0
        %v9461 = vadd.f32 %v596, %v9460
        %v9462 = vpop.f32.mrf.mxu0
        %9463 = vdwg.mxu0
        %9464 = vmatpush.bf16.msra.mxu0 0
        %9465 = vmatpush.bf16.msra.mxu0 0
        %9466 = vmatpush.bf16.msra.mxu0 0
        %9467 = vmatpush.bf16.msra.mxu0 0
        %9468 = vmatpush.bf16.msra.mxu0 0
        %9469 = vmatpush.bf16.msra.mxu0 0
        %9470 = vmatpush.bf16.msra.mxu0 0
        %9471 = vmatpush.bf16.msra.mxu0 %v3279
        %9472 = vmatmul.bf16.gmra.mxu0 %v1880
        %v9473 = vpop.f32.mrf.mxu0
        %v9474 = vadd.f32 %v596, %v9473
        %v9475 = vpop.f32.mrf.mxu0
        %9476 = vdwg.mxu0
        %9477 = vmatpush.bf16.msra.mxu0 0
        %9478 = vmatpush.bf16.msra.mxu0 0
        %9479 = vmatpush.bf16.msra.mxu0 0
        %9480 = vmatpush.bf16.msra.mxu0 0
        %9481 = vmatpush.bf16.msra.mxu0 0
        %9482 = vmatpush.bf16.msra.mxu0 0
        %9483 = vmatpush.bf16.msra.mxu0 0
        %9484 = vmatpush.bf16.msra.mxu0 %v3282
        %9485 = vmatmul.bf16.gmra.mxu0 %v1880
        %v9486 = vpop.f32.mrf.mxu0
        %v9487 = vadd.f32 %v596, %v9486
        %v9488 = vpop.f32.mrf.mxu0
        %9489 = vdwg.mxu0
        %9490 = vmatpush.bf16.msra.mxu0 0
        %9491 = vmatpush.bf16.msra.mxu0 0
        %9492 = vmatpush.bf16.msra.mxu0 0
        %9493 = vmatpush.bf16.msra.mxu0 0
        %9494 = vmatpush.bf16.msra.mxu0 0
        %9495 = vmatpush.bf16.msra.mxu0 0
        %9496 = vmatpush.bf16.msra.mxu0 0
        %9497 = vmatpush.bf16.msra.mxu0 %v3285
        %9498 = vmatmul.bf16.gmra.mxu0 %v1880
        %v9499 = vpop.f32.mrf.mxu0
        %v9500 = vadd.f32 %v596, %v9499
        %v9501 = vpop.f32.mrf.mxu0
        %9502 = vdwg.mxu0
        %9503 = vmatpush.bf16.msra.mxu0 0
        %9504 = vmatpush.bf16.msra.mxu0 0
        %9505 = vmatpush.bf16.msra.mxu0 0
        %9506 = vmatpush.bf16.msra.mxu0 0
        %9507 = vmatpush.bf16.msra.mxu0 0
        %9508 = vmatpush.bf16.msra.mxu0 0
        %9509 = vmatpush.bf16.msra.mxu0 0
        %9510 = vmatpush.bf16.msra.mxu0 %v3288
        %9511 = vmatmul.bf16.gmra.mxu0 %v1880
        %v9512 = vpop.f32.mrf.mxu0
        %v9513 = vadd.f32 %v596, %v9512
        %v9514 = vpop.f32.mrf.mxu0
        %9515 = vdwg.mxu0
        %9516 = vmatpush.bf16.msra.mxu0 0
        %9517 = vmatpush.bf16.msra.mxu0 0
        %9518 = vmatpush.bf16.msra.mxu0 0
        %9519 = vmatpush.bf16.msra.mxu0 0
        %9520 = vmatpush.bf16.msra.mxu0 0
        %9521 = vmatpush.bf16.msra.mxu0 0
        %9522 = vmatpush.bf16.msra.mxu0 0
        %9523 = vmatpush.bf16.msra.mxu0 %v3291
        %9524 = vmatmul.bf16.gmra.mxu0 %v1880
        %v9525 = vpop.f32.mrf.mxu0
        %v9526 = vadd.f32 %v596, %v9525
        %v9527 = vpop.f32.mrf.mxu0
        %9528 = vdwg.mxu0
        %9529 = vmatpush.bf16.msra.mxu0 0
        %9530 = vmatpush.bf16.msra.mxu0 0
        %9531 = vmatpush.bf16.msra.mxu0 0
        %9532 = vmatpush.bf16.msra.mxu0 0
        %9533 = vmatpush.bf16.msra.mxu0 0
        %9534 = vmatpush.bf16.msra.mxu0 0
        %9535 = vmatpush.bf16.msra.mxu0 0
        %9536 = vmatpush.bf16.msra.mxu0 %v3294
        %9537 = vmatmul.bf16.gmra.mxu0 %v1880
        %v9538 = vpop.f32.mrf.mxu0
        %v9539 = vadd.f32 %v596, %v9538
        %v9540 = vpop.f32.mrf.mxu0
        %9541 = vdwg.mxu0
        %9542 = vmatpush.bf16.msra.mxu0 0
        %9543 = vmatpush.bf16.msra.mxu0 0
        %9544 = vmatpush.bf16.msra.mxu0 0
        %9545 = vmatpush.bf16.msra.mxu0 0
        %9546 = vmatpush.bf16.msra.mxu0 0
        %9547 = vmatpush.bf16.msra.mxu0 0
        %9548 = vmatpush.bf16.msra.mxu0 0
        %9549 = vmatpush.bf16.msra.mxu0 %v3297
        %9550 = vmatmul.bf16.gmra.mxu0 %v1880
        %v9551 = vpop.f32.mrf.mxu0
        %v9552 = vadd.f32 %v596, %v9551
        %v9553 = vpop.f32.mrf.mxu0
        %9554 = vdwg.mxu0
        %9555 = vmatpush.bf16.msra.mxu0 0
        %9556 = vmatpush.bf16.msra.mxu0 0
        %9557 = vmatpush.bf16.msra.mxu0 0
        %9558 = vmatpush.bf16.msra.mxu0 0
        %9559 = vmatpush.bf16.msra.mxu0 0
        %9560 = vmatpush.bf16.msra.mxu0 0
        %9561 = vmatpush.bf16.msra.mxu0 0
        %9562 = vmatpush.bf16.msra.mxu0 %v3300
        %9563 = vmatmul.bf16.gmra.mxu0 %v1880
        %v9564 = vpop.f32.mrf.mxu0
        %v9565 = vadd.f32 %v596, %v9564
        %v9566 = vpop.f32.mrf.mxu0
        %9567 = vdwg.mxu0
        %9568 = vmatpush.bf16.msra.mxu0 0
        %9569 = vmatpush.bf16.msra.mxu0 0
        %9570 = vmatpush.bf16.msra.mxu0 0
        %9571 = vmatpush.bf16.msra.mxu0 0
        %9572 = vmatpush.bf16.msra.mxu0 0
        %9573 = vmatpush.bf16.msra.mxu0 0
        %9574 = vmatpush.bf16.msra.mxu0 0
        %9575 = vmatpush.bf16.msra.mxu0 %v3303
        %9576 = vmatmul.bf16.gmra.mxu0 %v1880
        %v9577 = vpop.f32.mrf.mxu0
        %v9578 = vadd.f32 %v596, %v9577
        %v9579 = vpop.f32.mrf.mxu0
        %9580 = vdwg.mxu0
        %9581 = vmatpush.bf16.msra.mxu0 0
        %9582 = vmatpush.bf16.msra.mxu0 0
        %9583 = vmatpush.bf16.msra.mxu0 0
        %9584 = vmatpush.bf16.msra.mxu0 0
        %9585 = vmatpush.bf16.msra.mxu0 0
        %9586 = vmatpush.bf16.msra.mxu0 0
        %9587 = vmatpush.bf16.msra.mxu0 0
        %9588 = vmatpush.bf16.msra.mxu0 %v3306
        %9589 = vmatmul.bf16.gmra.mxu0 %v1880
        %v9590 = vpop.f32.mrf.mxu0
        %v9591 = vadd.f32 %v596, %v9590
        %v9592 = vpop.f32.mrf.mxu0
        %9593 = vdwg.mxu0
        %9594 = vmatpush.bf16.msra.mxu0 0
        %9595 = vmatpush.bf16.msra.mxu0 0
        %9596 = vmatpush.bf16.msra.mxu0 0
        %9597 = vmatpush.bf16.msra.mxu0 0
        %9598 = vmatpush.bf16.msra.mxu0 0
        %9599 = vmatpush.bf16.msra.mxu0 0
        %9600 = vmatpush.bf16.msra.mxu0 0
        %9601 = vmatpush.bf16.msra.mxu0 %v3309
        %9602 = vmatmul.bf16.gmra.mxu0 %v1880
        %v9603 = vpop.f32.mrf.mxu0
        %v9604 = vadd.f32 %v596, %v9603
        %v9605 = vpop.f32.mrf.mxu0
        %9606 = vdwg.mxu0
        %9607 = vmatpush.bf16.msra.mxu0 0
        %9608 = vmatpush.bf16.msra.mxu0 0
        %9609 = vmatpush.bf16.msra.mxu0 0
        %9610 = vmatpush.bf16.msra.mxu0 0
        %9611 = vmatpush.bf16.msra.mxu0 0
        %9612 = vmatpush.bf16.msra.mxu0 0
        %9613 = vmatpush.bf16.msra.mxu0 0
        %9614 = vmatpush.bf16.msra.mxu0 %v3312
        %9615 = vmatmul.bf16.gmra.mxu0 %v1880
        %v9616 = vpop.f32.mrf.mxu0
        %v9617 = vadd.f32 %v596, %v9616
        %v9618 = vpop.f32.mrf.mxu0
        %9619 = vdwg.mxu0
        %9620 = vmatpush.bf16.msra.mxu0 0
        %9621 = vmatpush.bf16.msra.mxu0 0
        %9622 = vmatpush.bf16.msra.mxu0 0
        %9623 = vmatpush.bf16.msra.mxu0 0
        %9624 = vmatpush.bf16.msra.mxu0 0
        %9625 = vmatpush.bf16.msra.mxu0 0
        %9626 = vmatpush.bf16.msra.mxu0 0
        %9627 = vmatpush.bf16.msra.mxu0 %v3315
        %9628 = vmatmul.bf16.gmra.mxu0 %v1880
        %v9629 = vpop.f32.mrf.mxu0
        %v9630 = vadd.f32 %v596, %v9629
        %v9631 = vpop.f32.mrf.mxu0
        %9632 = vdwg.mxu0
        %9633 = vmatpush.bf16.msra.mxu0 0
        %9634 = vmatpush.bf16.msra.mxu0 0
        %9635 = vmatpush.bf16.msra.mxu0 0
        %9636 = vmatpush.bf16.msra.mxu0 0
        %9637 = vmatpush.bf16.msra.mxu0 0
        %9638 = vmatpush.bf16.msra.mxu0 0
        %9639 = vmatpush.bf16.msra.mxu0 0
        %9640 = vmatpush.bf16.msra.mxu0 %v3318
        %9641 = vmatmul.bf16.gmra.mxu0 %v1880
        %v9642 = vpop.f32.mrf.mxu0
        %v9643 = vadd.f32 %v596, %v9642
        %v9644 = vpop.f32.mrf.mxu0
        %9645 = vdwg.mxu0
        %9646 = vmatpush.bf16.msra.mxu0 0
        %9647 = vmatpush.bf16.msra.mxu0 0
        %9648 = vmatpush.bf16.msra.mxu0 0
        %9649 = vmatpush.bf16.msra.mxu0 0
        %9650 = vmatpush.bf16.msra.mxu0 0
        %9651 = vmatpush.bf16.msra.mxu0 0
        %9652 = vmatpush.bf16.msra.mxu0 0
        %9653 = vmatpush.bf16.msra.mxu0 %v3321
        %9654 = vmatmul.bf16.gmra.mxu0 %v1880
        %v9655 = vpop.f32.mrf.mxu0
        %v9656 = vadd.f32 %v596, %v9655
        %v9657 = vpop.f32.mrf.mxu0
        %9658 = vdwg.mxu0
        %9659 = vmatpush.bf16.msra.mxu0 0
        %9660 = vmatpush.bf16.msra.mxu0 0
        %9661 = vmatpush.bf16.msra.mxu0 0
        %9662 = vmatpush.bf16.msra.mxu0 0
        %9663 = vmatpush.bf16.msra.mxu0 0
        %9664 = vmatpush.bf16.msra.mxu0 0
        %9665 = vmatpush.bf16.msra.mxu0 0
        %9666 = vmatpush.bf16.msra.mxu0 %v3324
        %9667 = vmatmul.bf16.gmra.mxu0 %v1880
        %v9668 = vpop.f32.mrf.mxu0
        %v9669 = vadd.f32 %v596, %v9668
        %v9670 = vpop.f32.mrf.mxu0
        %9671 = vdwg.mxu0
        %9672 = vmatpush.bf16.msra.mxu0 0
        %9673 = vmatpush.bf16.msra.mxu0 0
        %9674 = vmatpush.bf16.msra.mxu0 0
        %9675 = vmatpush.bf16.msra.mxu0 0
        %9676 = vmatpush.bf16.msra.mxu0 0
        %9677 = vmatpush.bf16.msra.mxu0 0
        %9678 = vmatpush.bf16.msra.mxu0 0
        %9679 = vmatpush.bf16.msra.mxu0 %v3327
        %9680 = vmatmul.bf16.gmra.mxu0 %v1880
        %v9681 = vpop.f32.mrf.mxu0
        %v9682 = vadd.f32 %v596, %v9681
        %v9683 = vpop.f32.mrf.mxu0
        %9684 = vdwg.mxu0
        %9685 = vmatpush.bf16.msra.mxu0 0
        %9686 = vmatpush.bf16.msra.mxu0 0
        %9687 = vmatpush.bf16.msra.mxu0 0
        %9688 = vmatpush.bf16.msra.mxu0 0
        %9689 = vmatpush.bf16.msra.mxu0 0
        %9690 = vmatpush.bf16.msra.mxu0 0
        %9691 = vmatpush.bf16.msra.mxu0 0
        %9692 = vmatpush.bf16.msra.mxu0 %v3330
        %9693 = vmatmul.bf16.gmra.mxu0 %v1880
        %v9694 = vpop.f32.mrf.mxu0
        %v9695 = vadd.f32 %v596, %v9694
        %v9696 = vpop.f32.mrf.mxu0
        %9697 = vdwg.mxu0
        %9698 = vmatpush.bf16.msra.mxu0 0
        %9699 = vmatpush.bf16.msra.mxu0 0
        %9700 = vmatpush.bf16.msra.mxu0 0
        %9701 = vmatpush.bf16.msra.mxu0 0
        %9702 = vmatpush.bf16.msra.mxu0 0
        %9703 = vmatpush.bf16.msra.mxu0 0
        %9704 = vmatpush.bf16.msra.mxu0 0
        %9705 = vmatpush.bf16.msra.mxu0 %v3333
        %9706 = vmatmul.bf16.gmra.mxu0 %v1880
        %v9707 = vpop.f32.mrf.mxu0
        %v9708 = vadd.f32 %v596, %v9707
        %v9709 = vpop.f32.mrf.mxu0
        %9710 = vdwg.mxu0
        %9711 = vmatpush.bf16.msra.mxu0 0
        %9712 = vmatpush.bf16.msra.mxu0 0
        %9713 = vmatpush.bf16.msra.mxu0 0
        %9714 = vmatpush.bf16.msra.mxu0 0
        %9715 = vmatpush.bf16.msra.mxu0 0
        %9716 = vmatpush.bf16.msra.mxu0 0
        %9717 = vmatpush.bf16.msra.mxu0 0
        %9718 = vmatpush.bf16.msra.mxu0 %v3336
        %9719 = vmatmul.bf16.gmra.mxu0 %v1880
        %v9720 = vpop.f32.mrf.mxu0
        %v9721 = vadd.f32 %v596, %v9720
        %v9722 = vpop.f32.mrf.mxu0
        %9723 = vdwg.mxu0
        %9724 = vmatpush.bf16.msra.mxu0 0
        %9725 = vmatpush.bf16.msra.mxu0 0
        %9726 = vmatpush.bf16.msra.mxu0 0
        %9727 = vmatpush.bf16.msra.mxu0 0
        %9728 = vmatpush.bf16.msra.mxu0 0
        %9729 = vmatpush.bf16.msra.mxu0 0
        %9730 = vmatpush.bf16.msra.mxu0 0
        %9731 = vmatpush.bf16.msra.mxu0 %v3339
        %9732 = vmatmul.bf16.gmra.mxu0 %v1880
        %v9733 = vpop.f32.mrf.mxu0
        %v9734 = vadd.f32 %v596, %v9733
        %v9735 = vpop.f32.mrf.mxu0
        %9736 = vdwg.mxu0
        %9737 = vmatpush.bf16.msra.mxu0 0
        %9738 = vmatpush.bf16.msra.mxu0 0
        %9739 = vmatpush.bf16.msra.mxu0 0
        %9740 = vmatpush.bf16.msra.mxu0 0
        %9741 = vmatpush.bf16.msra.mxu0 0
        %9742 = vmatpush.bf16.msra.mxu0 0
        %9743 = vmatpush.bf16.msra.mxu0 0
        %9744 = vmatpush.bf16.msra.mxu0 %v3342
        %9745 = vmatmul.bf16.gmra.mxu0 %v1880
        %v9746 = vpop.f32.mrf.mxu0
        %v9747 = vadd.f32 %v596, %v9746
        %v9748 = vpop.f32.mrf.mxu0
        %9749 = vdwg.mxu0
        %9750 = vmatpush.bf16.msra.mxu0 0
        %9751 = vmatpush.bf16.msra.mxu0 0
        %9752 = vmatpush.bf16.msra.mxu0 0
        %9753 = vmatpush.bf16.msra.mxu0 0
        %9754 = vmatpush.bf16.msra.mxu0 0
        %9755 = vmatpush.bf16.msra.mxu0 0
        %9756 = vmatpush.bf16.msra.mxu0 0
        %9757 = vmatpush.bf16.msra.mxu0 %v3345
        %9758 = vmatmul.bf16.gmra.mxu0 %v1880
        %v9759 = vpop.f32.mrf.mxu0
        %v9760 = vadd.f32 %v596, %v9759
        %v9761 = vpop.f32.mrf.mxu0
        %9762 = vdwg.mxu0
        %9763 = vmatpush.bf16.msra.mxu0 0
        %9764 = vmatpush.bf16.msra.mxu0 0
        %9765 = vmatpush.bf16.msra.mxu0 0
        %9766 = vmatpush.bf16.msra.mxu0 0
        %9767 = vmatpush.bf16.msra.mxu0 0
        %9768 = vmatpush.bf16.msra.mxu0 0
        %9769 = vmatpush.bf16.msra.mxu0 0
        %9770 = vmatpush.bf16.msra.mxu0 %v3348
        %9771 = vmatmul.bf16.gmra.mxu0 %v1880
        %v9772 = vpop.f32.mrf.mxu0
        %v9773 = vadd.f32 %v596, %v9772
        %v9774 = vpop.f32.mrf.mxu0
        %9775 = vdwg.mxu0
        %9776 = vmatpush.bf16.msra.mxu0 0
        %9777 = vmatpush.bf16.msra.mxu0 0
        %9778 = vmatpush.bf16.msra.mxu0 0
        %9779 = vmatpush.bf16.msra.mxu0 0
        %9780 = vmatpush.bf16.msra.mxu0 0
        %9781 = vmatpush.bf16.msra.mxu0 0
        %9782 = vmatpush.bf16.msra.mxu0 0
        %9783 = vmatpush.bf16.msra.mxu0 %v3351
        %9784 = vmatmul.bf16.gmra.mxu0 %v1880
        %v9785 = vpop.f32.mrf.mxu0
        %v9786 = vadd.f32 %v596, %v9785
        %v9787 = vpop.f32.mrf.mxu0
        %9788 = vdwg.mxu0
        %9789 = vmatpush.bf16.msra.mxu0 0
        %9790 = vmatpush.bf16.msra.mxu0 0
        %9791 = vmatpush.bf16.msra.mxu0 0
        %9792 = vmatpush.bf16.msra.mxu0 0
        %9793 = vmatpush.bf16.msra.mxu0 0
        %9794 = vmatpush.bf16.msra.mxu0 0
        %9795 = vmatpush.bf16.msra.mxu0 0
        %9796 = vmatpush.bf16.msra.mxu0 %v3354
        %9797 = vmatmul.bf16.gmra.mxu0 %v1880
        %v9798 = vpop.f32.mrf.mxu0
        %v9799 = vadd.f32 %v596, %v9798
        %v9800 = vpop.f32.mrf.mxu0
        %9801 = vdwg.mxu0
        %9802 = vmatpush.bf16.msra.mxu0 0
        %9803 = vmatpush.bf16.msra.mxu0 0
        %9804 = vmatpush.bf16.msra.mxu0 0
        %9805 = vmatpush.bf16.msra.mxu0 0
        %9806 = vmatpush.bf16.msra.mxu0 0
        %9807 = vmatpush.bf16.msra.mxu0 0
        %9808 = vmatpush.bf16.msra.mxu0 0
        %9809 = vmatpush.bf16.msra.mxu0 %v3357
        %9810 = vmatmul.bf16.gmra.mxu0 %v1880
        %v9811 = vpop.f32.mrf.mxu0
        %v9812 = vadd.f32 %v596, %v9811
        %v9813 = vpop.f32.mrf.mxu0
        %9814 = vdwg.mxu0
        %9815 = vmatpush.bf16.msra.mxu0 0
        %9816 = vmatpush.bf16.msra.mxu0 0
        %9817 = vmatpush.bf16.msra.mxu0 0
        %9818 = vmatpush.bf16.msra.mxu0 0
        %9819 = vmatpush.bf16.msra.mxu0 0
        %9820 = vmatpush.bf16.msra.mxu0 0
        %9821 = vmatpush.bf16.msra.mxu0 0
        %9822 = vmatpush.bf16.msra.mxu0 %v3360
        %9823 = vmatmul.bf16.gmra.mxu0 %v1880
        %v9824 = vpop.f32.mrf.mxu0
        %v9825 = vadd.f32 %v596, %v9824
        %v9826 = vpop.f32.mrf.mxu0
        %9827 = vdwg.mxu0
        %9828 = vmatpush.bf16.msra.mxu0 0
        %9829 = vmatpush.bf16.msra.mxu0 0
        %9830 = vmatpush.bf16.msra.mxu0 0
        %9831 = vmatpush.bf16.msra.mxu0 0
        %9832 = vmatpush.bf16.msra.mxu0 0
        %9833 = vmatpush.bf16.msra.mxu0 0
        %9834 = vmatpush.bf16.msra.mxu0 0
        %9835 = vmatpush.bf16.msra.mxu0 %v3363
        %9836 = vmatmul.bf16.gmra.mxu0 %v1880
        %v9837 = vpop.f32.mrf.mxu0
        %v9838 = vadd.f32 %v596, %v9837
        %v9839 = vpop.f32.mrf.mxu0
        %9840 = vdwg.mxu0
        %9841 = vmatpush.bf16.msra.mxu0 0
        %9842 = vmatpush.bf16.msra.mxu0 0
        %9843 = vmatpush.bf16.msra.mxu0 0
        %9844 = vmatpush.bf16.msra.mxu0 0
        %9845 = vmatpush.bf16.msra.mxu0 0
        %9846 = vmatpush.bf16.msra.mxu0 0
        %9847 = vmatpush.bf16.msra.mxu0 0
        %9848 = vmatpush.bf16.msra.mxu0 %v3366
        %9849 = vmatmul.bf16.gmra.mxu0 %v1880
        %v9850 = vpop.f32.mrf.mxu0
        %v9851 = vadd.f32 %v596, %v9850
        %v9852 = vpop.f32.mrf.mxu0
        %9853 = vdwg.mxu0
        %9854 = vmatpush.bf16.msra.mxu0 0
        %9855 = vmatpush.bf16.msra.mxu0 0
        %9856 = vmatpush.bf16.msra.mxu0 0
        %9857 = vmatpush.bf16.msra.mxu0 0
        %9858 = vmatpush.bf16.msra.mxu0 0
        %9859 = vmatpush.bf16.msra.mxu0 0
        %9860 = vmatpush.bf16.msra.mxu0 0
        %9861 = vmatpush.bf16.msra.mxu0 %v3369
        %9862 = vmatmul.bf16.gmra.mxu0 %v1880
        %v9863 = vpop.f32.mrf.mxu0
        %v9864 = vadd.f32 %v596, %v9863
        %v9865 = vpop.f32.mrf.mxu0
        %9866 = vdwg.mxu0
        %9867 = vmatpush.bf16.msra.mxu0 0
        %9868 = vmatpush.bf16.msra.mxu0 0
        %9869 = vmatpush.bf16.msra.mxu0 0
        %9870 = vmatpush.bf16.msra.mxu0 0
        %9871 = vmatpush.bf16.msra.mxu0 0
        %9872 = vmatpush.bf16.msra.mxu0 0
        %9873 = vmatpush.bf16.msra.mxu0 0
        %9874 = vmatpush.bf16.msra.mxu0 %v3372
        %9875 = vmatmul.bf16.gmra.mxu0 %v1880
        %v9876 = vpop.f32.mrf.mxu0
        %v9877 = vadd.f32 %v596, %v9876
        %v9878 = vpop.f32.mrf.mxu0
        %9879 = vdwg.mxu0
        %9880 = vmatpush.bf16.msra.mxu0 0
        %9881 = vmatpush.bf16.msra.mxu0 0
        %9882 = vmatpush.bf16.msra.mxu0 0
        %9883 = vmatpush.bf16.msra.mxu0 0
        %9884 = vmatpush.bf16.msra.mxu0 0
        %9885 = vmatpush.bf16.msra.mxu0 0
        %9886 = vmatpush.bf16.msra.mxu0 0
        %9887 = vmatpush.bf16.msra.mxu0 %v3375
        %9888 = vmatmul.bf16.gmra.mxu0 %v1880
        %v9889 = vpop.f32.mrf.mxu0
        %v9890 = vadd.f32 %v596, %v9889
        %v9891 = vpop.f32.mrf.mxu0
        %9892 = vdwg.mxu0
        %9893 = vmatpush.bf16.msra.mxu0 0
        %9894 = vmatpush.bf16.msra.mxu0 0
        %9895 = vmatpush.bf16.msra.mxu0 0
        %9896 = vmatpush.bf16.msra.mxu0 0
        %9897 = vmatpush.bf16.msra.mxu0 0
        %9898 = vmatpush.bf16.msra.mxu0 0
        %9899 = vmatpush.bf16.msra.mxu0 0
        %9900 = vmatpush.bf16.msra.mxu0 %v3378
        %9901 = vmatmul.bf16.gmra.mxu0 %v1880
        %v9902 = vpop.f32.mrf.mxu0
        %v9903 = vadd.f32 %v596, %v9902
        %v9904 = vpop.f32.mrf.mxu0
        %9905 = vdwg.mxu0
        %9906 = vmatpush.bf16.msra.mxu0 0
        %9907 = vmatpush.bf16.msra.mxu0 0
        %9908 = vmatpush.bf16.msra.mxu0 0
        %9909 = vmatpush.bf16.msra.mxu0 0
        %9910 = vmatpush.bf16.msra.mxu0 0
        %9911 = vmatpush.bf16.msra.mxu0 0
        %9912 = vmatpush.bf16.msra.mxu0 0
        %9913 = vmatpush.bf16.msra.mxu0 %v3381
        %9914 = vmatmul.bf16.gmra.mxu0 %v1880
        %v9915 = vpop.f32.mrf.mxu0
        %v9916 = vadd.f32 %v596, %v9915
        %v9917 = vpop.f32.mrf.mxu0
        %9918 = vdwg.mxu0
        %9919 = vmatpush.bf16.msra.mxu0 0
        %9920 = vmatpush.bf16.msra.mxu0 0
        %9921 = vmatpush.bf16.msra.mxu0 0
        %9922 = vmatpush.bf16.msra.mxu0 0
        %9923 = vmatpush.bf16.msra.mxu0 0
        %9924 = vmatpush.bf16.msra.mxu0 0
        %9925 = vmatpush.bf16.msra.mxu0 0
        %9926 = vmatpush.bf16.msra.mxu0 %v3384
        %9927 = vmatmul.bf16.gmra.mxu0 %v1880
        %v9928 = vpop.f32.mrf.mxu0
        %v9929 = vadd.f32 %v596, %v9928
        %v9930 = vpop.f32.mrf.mxu0
        %9931 = vdwg.mxu0
        %9932 = vmatpush.bf16.msra.mxu0 0
        %9933 = vmatpush.bf16.msra.mxu0 0
        %9934 = vmatpush.bf16.msra.mxu0 0
        %9935 = vmatpush.bf16.msra.mxu0 0
        %9936 = vmatpush.bf16.msra.mxu0 0
        %9937 = vmatpush.bf16.msra.mxu0 0
        %9938 = vmatpush.bf16.msra.mxu0 0
        %9939 = vmatpush.bf16.msra.mxu0 %v3387
        %9940 = vmatmul.bf16.gmra.mxu0 %v1880
        %v9941 = vpop.f32.mrf.mxu0
        %v9942 = vadd.f32 %v596, %v9941
        %v9943 = vpop.f32.mrf.mxu0
        %9944 = vdwg.mxu0
        %9945 = vmatpush.bf16.msra.mxu0 0
        %9946 = vmatpush.bf16.msra.mxu0 0
        %9947 = vmatpush.bf16.msra.mxu0 0
        %9948 = vmatpush.bf16.msra.mxu0 0
        %9949 = vmatpush.bf16.msra.mxu0 0
        %9950 = vmatpush.bf16.msra.mxu0 0
        %9951 = vmatpush.bf16.msra.mxu0 0
        %9952 = vmatpush.bf16.msra.mxu0 %v3390
        %9953 = vmatmul.bf16.gmra.mxu0 %v1880
        %v9954 = vpop.f32.mrf.mxu0
        %v9955 = vadd.f32 %v596, %v9954
        %v9956 = vpop.f32.mrf.mxu0
        %9957 = vdwg.mxu0
        %9958 = vmatpush.bf16.msra.mxu0 0
        %9959 = vmatpush.bf16.msra.mxu0 0
        %9960 = vmatpush.bf16.msra.mxu0 0
        %9961 = vmatpush.bf16.msra.mxu0 0
        %9962 = vmatpush.bf16.msra.mxu0 0
        %9963 = vmatpush.bf16.msra.mxu0 0
        %9964 = vmatpush.bf16.msra.mxu0 0
        %9965 = vmatpush.bf16.msra.mxu0 %v3393
        %9966 = vmatmul.bf16.gmra.mxu0 %v1880
        %v9967 = vpop.f32.mrf.mxu0
        %v9968 = vadd.f32 %v596, %v9967
        %v9969 = vpop.f32.mrf.mxu0
        %9970 = vdwg.mxu0
        %9971 = vmatpush.bf16.msra.mxu0 0
        %9972 = vmatpush.bf16.msra.mxu0 0
        %9973 = vmatpush.bf16.msra.mxu0 0
        %9974 = vmatpush.bf16.msra.mxu0 0
        %9975 = vmatpush.bf16.msra.mxu0 0
        %9976 = vmatpush.bf16.msra.mxu0 0
        %9977 = vmatpush.bf16.msra.mxu0 0
        %9978 = vmatpush.bf16.msra.mxu0 %v3396
        %9979 = vmatmul.bf16.gmra.mxu0 %v1880
        %v9980 = vpop.f32.mrf.mxu0
        %v9981 = vadd.f32 %v596, %v9980
        %v9982 = vpop.f32.mrf.mxu0
        %9983 = vdwg.mxu0
        %9984 = vmatpush.bf16.msra.mxu0 0
        %9985 = vmatpush.bf16.msra.mxu0 0
        %9986 = vmatpush.bf16.msra.mxu0 0
        %9987 = vmatpush.bf16.msra.mxu0 0
        %9988 = vmatpush.bf16.msra.mxu0 0
        %9989 = vmatpush.bf16.msra.mxu0 0
        %9990 = vmatpush.bf16.msra.mxu0 0
        %9991 = vmatpush.bf16.msra.mxu0 %v3399
        %9992 = vmatmul.bf16.gmra.mxu0 %v1880
        %v9993 = vpop.f32.mrf.mxu0
        %v9994 = vadd.f32 %v596, %v9993
        %v9995 = vpop.f32.mrf.mxu0
        %9996 = vdwg.mxu0
        %9997 = vmatpush.bf16.msra.mxu0 0
        %9998 = vmatpush.bf16.msra.mxu0 0
        %9999 = vmatpush.bf16.msra.mxu0 0
        %10000 = vmatpush.bf16.msra.mxu0 0
        %10001 = vmatpush.bf16.msra.mxu0 0
        %10002 = vmatpush.bf16.msra.mxu0 0
        %10003 = vmatpush.bf16.msra.mxu0 0
        %10004 = vmatpush.bf16.msra.mxu0 %v3402
        %10005 = vmatmul.bf16.gmra.mxu0 %v1880
        %v10006 = vpop.f32.mrf.mxu0
        %v10007 = vadd.f32 %v596, %v10006
        %v10008 = vpop.f32.mrf.mxu0
        %10009 = vdwg.mxu0
        %10010 = vmatpush.bf16.msra.mxu0 0
        %10011 = vmatpush.bf16.msra.mxu0 0
        %10012 = vmatpush.bf16.msra.mxu0 0
        %10013 = vmatpush.bf16.msra.mxu0 0
        %10014 = vmatpush.bf16.msra.mxu0 0
        %10015 = vmatpush.bf16.msra.mxu0 0
        %10016 = vmatpush.bf16.msra.mxu0 0
        %10017 = vmatpush.bf16.msra.mxu0 %v3405
        %10018 = vmatmul.bf16.gmra.mxu0 %v1880
        %v10019 = vpop.f32.mrf.mxu0
        %v10020 = vadd.f32 %v596, %v10019
        %v10021 = vpop.f32.mrf.mxu0
        %10022 = vdwg.mxu0
        %10023 = vmatpush.bf16.msra.mxu0 0
        %10024 = vmatpush.bf16.msra.mxu0 0
        %10025 = vmatpush.bf16.msra.mxu0 0
        %10026 = vmatpush.bf16.msra.mxu0 0
        %10027 = vmatpush.bf16.msra.mxu0 0
        %10028 = vmatpush.bf16.msra.mxu0 0
        %10029 = vmatpush.bf16.msra.mxu0 0
        %10030 = vmatpush.bf16.msra.mxu0 %v3408
        %10031 = vmatmul.bf16.gmra.mxu0 %v1880
        %v10032 = vpop.f32.mrf.mxu0
        %v10033 = vadd.f32 %v596, %v10032
        %v10034 = vpop.f32.mrf.mxu0
        %10035 = vdwg.mxu0
        %10036 = vmatpush.bf16.msra.mxu0 0
        %10037 = vmatpush.bf16.msra.mxu0 0
        %10038 = vmatpush.bf16.msra.mxu0 0
        %10039 = vmatpush.bf16.msra.mxu0 0
        %10040 = vmatpush.bf16.msra.mxu0 0
        %10041 = vmatpush.bf16.msra.mxu0 0
        %10042 = vmatpush.bf16.msra.mxu0 0
        %10043 = vmatpush.bf16.msra.mxu0 %v3411
        %10044 = vmatmul.bf16.gmra.mxu0 %v1880
        %v10045 = vpop.f32.mrf.mxu0
        %v10046 = vadd.f32 %v596, %v10045
        %v10047 = vpop.f32.mrf.mxu0
        %10048 = vdwg.mxu0
        %10049 = vmatpush.bf16.msra.mxu0 0
        %10050 = vmatpush.bf16.msra.mxu0 0
        %10051 = vmatpush.bf16.msra.mxu0 0
        %10052 = vmatpush.bf16.msra.mxu0 0
        %10053 = vmatpush.bf16.msra.mxu0 0
        %10054 = vmatpush.bf16.msra.mxu0 0
        %10055 = vmatpush.bf16.msra.mxu0 0
        %10056 = vmatpush.bf16.msra.mxu0 %v3414
        %10057 = vmatmul.bf16.gmra.mxu0 %v1880
        %v10058 = vpop.f32.mrf.mxu0
        %v10059 = vadd.f32 %v596, %v10058
        %v10060 = vpop.f32.mrf.mxu0
        %10061 = vdwg.mxu0
        %10062 = vmatpush.bf16.msra.mxu0 0
        %10063 = vmatpush.bf16.msra.mxu0 0
        %10064 = vmatpush.bf16.msra.mxu0 0
        %10065 = vmatpush.bf16.msra.mxu0 0
        %10066 = vmatpush.bf16.msra.mxu0 0
        %10067 = vmatpush.bf16.msra.mxu0 0
        %10068 = vmatpush.bf16.msra.mxu0 0
        %10069 = vmatpush.bf16.msra.mxu0 %v3417
        %10070 = vmatmul.bf16.gmra.mxu0 %v1880
        %v10071 = vpop.f32.mrf.mxu0
        %v10072 = vadd.f32 %v596, %v10071
        %v10073 = vpop.f32.mrf.mxu0
        %10074 = vdwg.mxu0
        %v10075 = vmax.f32 %v3429, 0.0
        %v10076 = vmax.f32 %v3442, 0.0
        %v10077 = vmax.f32 %v3455, 0.0
        %v10078 = vmax.f32 %v3468, 0.0
        %v10079 = vmax.f32 %v3481, 0.0
        %v10080 = vmax.f32 %v3494, 0.0
        %v10081 = vmax.f32 %v3507, 0.0
        %v10082 = vmax.f32 %v3520, 0.0
        %v10083 = vmax.f32 %v3533, 0.0
        %v10084 = vmax.f32 %v3546, 0.0
        %v10085 = vmax.f32 %v3559, 0.0
        %v10086 = vmax.f32 %v3572, 0.0
        %v10087 = vmax.f32 %v3585, 0.0
        %v10088 = vmax.f32 %v3598, 0.0
        %v10089 = vmax.f32 %v3611, 0.0
        %v10090 = vmax.f32 %v3624, 0.0
        %v10091 = vmax.f32 %v3637, 0.0
        %v10092 = vmax.f32 %v3650, 0.0
        %v10093 = vmax.f32 %v3663, 0.0
        %v10094 = vmax.f32 %v3676, 0.0
        %v10095 = vmax.f32 %v3689, 0.0
        %v10096 = vmax.f32 %v3702, 0.0
        %v10097 = vmax.f32 %v3715, 0.0
        %v10098 = vmax.f32 %v3728, 0.0
        %v10099 = vmax.f32 %v3741, 0.0
        %v10100 = vmax.f32 %v3754, 0.0
        %v10101 = vmax.f32 %v3767, 0.0
        %v10102 = vmax.f32 %v3780, 0.0
        %v10103 = vmax.f32 %v3793, 0.0
        %v10104 = vmax.f32 %v3806, 0.0
        %v10105 = vmax.f32 %v3819, 0.0
        %v10106 = vmax.f32 %v3832, 0.0
        %v10107 = vmax.f32 %v3845, 0.0
        %v10108 = vmax.f32 %v3858, 0.0
        %v10109 = vmax.f32 %v3871, 0.0
        %v10110 = vmax.f32 %v3884, 0.0
        %v10111 = vmax.f32 %v3897, 0.0
        %v10112 = vmax.f32 %v3910, 0.0
        %v10113 = vmax.f32 %v3923, 0.0
        %v10114 = vmax.f32 %v3936, 0.0
        %v10115 = vmax.f32 %v3949, 0.0
        %v10116 = vmax.f32 %v3962, 0.0
        %v10117 = vmax.f32 %v3975, 0.0
        %v10118 = vmax.f32 %v3988, 0.0
        %v10119 = vmax.f32 %v4001, 0.0
        %v10120 = vmax.f32 %v4014, 0.0
        %v10121 = vmax.f32 %v4027, 0.0
        %v10122 = vmax.f32 %v4040, 0.0
        %v10123 = vmax.f32 %v4053, 0.0
        %v10124 = vmax.f32 %v4066, 0.0
        %v10125 = vmax.f32 %v4079, 0.0
        %v10126 = vmax.f32 %v4092, 0.0
        %v10127 = vmax.f32 %v4105, 0.0
        %v10128 = vmax.f32 %v4118, 0.0
        %v10129 = vmax.f32 %v4131, 0.0
        %v10130 = vmax.f32 %v4144, 0.0
        %v10131 = vmax.f32 %v4157, 0.0
        %v10132 = vmax.f32 %v4170, 0.0
        %v10133 = vmax.f32 %v4183, 0.0
        %v10134 = vmax.f32 %v4196, 0.0
        %v10135 = vmax.f32 %v4209, 0.0
        %v10136 = vmax.f32 %v4222, 0.0
        %v10137 = vmax.f32 %v4235, 0.0
        %v10138 = vmax.f32 %v4248, 0.0
        %v10139 = vmax.f32 %v4261, 0.0
        %v10140 = vmax.f32 %v4274, 0.0
        %v10141 = vmax.f32 %v4287, 0.0
        %v10142 = vmax.f32 %v4300, 0.0
        %v10143 = vmax.f32 %v4313, 0.0
        %v10144 = vmax.f32 %v4326, 0.0
        %v10145 = vmax.f32 %v4339, 0.0
        %v10146 = vmax.f32 %v4352, 0.0
        %v10147 = vmax.f32 %v4365, 0.0
        %v10148 = vmax.f32 %v4378, 0.0
        %v10149 = vmax.f32 %v4391, 0.0
        %v10150 = vmax.f32 %v4404, 0.0
        %v10151 = vmax.f32 %v4417, 0.0
        %v10152 = vmax.f32 %v4430, 0.0
        %v10153 = vmax.f32 %v4443, 0.0
        %v10154 = vmax.f32 %v4456, 0.0
        %v10155 = vmax.f32 %v4469, 0.0
        %v10156 = vmax.f32 %v4482, 0.0
        %v10157 = vmax.f32 %v4495, 0.0
        %v10158 = vmax.f32 %v4508, 0.0
        %v10159 = vmax.f32 %v4521, 0.0
        %v10160 = vmax.f32 %v4534, 0.0
        %v10161 = vmax.f32 %v4547, 0.0
        %v10162 = vmax.f32 %v4560, 0.0
        %v10163 = vmax.f32 %v4573, 0.0
        %v10164 = vmax.f32 %v4586, 0.0
        %v10165 = vmax.f32 %v4599, 0.0
        %v10166 = vmax.f32 %v4612, 0.0
        %v10167 = vmax.f32 %v4625, 0.0
        %v10168 = vmax.f32 %v4638, 0.0
        %v10169 = vmax.f32 %v4651, 0.0
        %v10170 = vmax.f32 %v4664, 0.0
        %v10171 = vmax.f32 %v4677, 0.0
        %v10172 = vmax.f32 %v4690, 0.0
        %v10173 = vmax.f32 %v4703, 0.0
        %v10174 = vmax.f32 %v4716, 0.0
        %v10175 = vmax.f32 %v4729, 0.0
        %v10176 = vmax.f32 %v4742, 0.0
        %v10177 = vmax.f32 %v4755, 0.0
        %v10178 = vmax.f32 %v4768, 0.0
        %v10179 = vmax.f32 %v4781, 0.0
        %v10180 = vmax.f32 %v4794, 0.0
        %v10181 = vmax.f32 %v4807, 0.0
        %v10182 = vmax.f32 %v4820, 0.0
        %v10183 = vmax.f32 %v4833, 0.0
        %v10184 = vmax.f32 %v4846, 0.0
        %v10185 = vmax.f32 %v4859, 0.0
        %v10186 = vmax.f32 %v4872, 0.0
        %v10187 = vmax.f32 %v4885, 0.0
        %v10188 = vmax.f32 %v4898, 0.0
        %v10189 = vmax.f32 %v4911, 0.0
        %v10190 = vmax.f32 %v4924, 0.0
        %v10191 = vmax.f32 %v4937, 0.0
        %v10192 = vmax.f32 %v4950, 0.0
        %v10193 = vmax.f32 %v4963, 0.0
        %v10194 = vmax.f32 %v4976, 0.0
        %v10195 = vmax.f32 %v4989, 0.0
        %v10196 = vmax.f32 %v5002, 0.0
        %v10197 = vmax.f32 %v5015, 0.0
        %v10198 = vmax.f32 %v5028, 0.0
        %v10199 = vmax.f32 %v5041, 0.0
        %v10200 = vmax.f32 %v5054, 0.0
        %v10201 = vmax.f32 %v5067, 0.0
        %v10202 = vmax.f32 %v5080, 0.0
        %v10203 = vmax.f32 %v5093, 0.0
        %v10204 = vmax.f32 %v5106, 0.0
        %v10205 = vmax.f32 %v5119, 0.0
        %v10206 = vmax.f32 %v5132, 0.0
        %v10207 = vmax.f32 %v5145, 0.0
        %v10208 = vmax.f32 %v5158, 0.0
        %v10209 = vmax.f32 %v5171, 0.0
        %v10210 = vmax.f32 %v5184, 0.0
        %v10211 = vmax.f32 %v5197, 0.0
        %v10212 = vmax.f32 %v5210, 0.0
        %v10213 = vmax.f32 %v5223, 0.0
        %v10214 = vmax.f32 %v5236, 0.0
        %v10215 = vmax.f32 %v5249, 0.0
        %v10216 = vmax.f32 %v5262, 0.0
        %v10217 = vmax.f32 %v5275, 0.0
        %v10218 = vmax.f32 %v5288, 0.0
        %v10219 = vmax.f32 %v5301, 0.0
        %v10220 = vmax.f32 %v5314, 0.0
        %v10221 = vmax.f32 %v5327, 0.0
        %v10222 = vmax.f32 %v5340, 0.0
        %v10223 = vmax.f32 %v5353, 0.0
        %v10224 = vmax.f32 %v5366, 0.0
        %v10225 = vmax.f32 %v5379, 0.0
        %v10226 = vmax.f32 %v5392, 0.0
        %v10227 = vmax.f32 %v5405, 0.0
        %v10228 = vmax.f32 %v5418, 0.0
        %v10229 = vmax.f32 %v5431, 0.0
        %v10230 = vmax.f32 %v5444, 0.0
        %v10231 = vmax.f32 %v5457, 0.0
        %v10232 = vmax.f32 %v5470, 0.0
        %v10233 = vmax.f32 %v5483, 0.0
        %v10234 = vmax.f32 %v5496, 0.0
        %v10235 = vmax.f32 %v5509, 0.0
        %v10236 = vmax.f32 %v5522, 0.0
        %v10237 = vmax.f32 %v5535, 0.0
        %v10238 = vmax.f32 %v5548, 0.0
        %v10239 = vmax.f32 %v5561, 0.0
        %v10240 = vmax.f32 %v5574, 0.0
        %v10241 = vmax.f32 %v5587, 0.0
        %v10242 = vmax.f32 %v5600, 0.0
        %v10243 = vmax.f32 %v5613, 0.0
        %v10244 = vmax.f32 %v5626, 0.0
        %v10245 = vmax.f32 %v5639, 0.0
        %v10246 = vmax.f32 %v5652, 0.0
        %v10247 = vmax.f32 %v5665, 0.0
        %v10248 = vmax.f32 %v5678, 0.0
        %v10249 = vmax.f32 %v5691, 0.0
        %v10250 = vmax.f32 %v5704, 0.0
        %v10251 = vmax.f32 %v5717, 0.0
        %v10252 = vmax.f32 %v5730, 0.0
        %v10253 = vmax.f32 %v5743, 0.0
        %v10254 = vmax.f32 %v5756, 0.0
        %v10255 = vmax.f32 %v5769, 0.0
        %v10256 = vmax.f32 %v5782, 0.0
        %v10257 = vmax.f32 %v5795, 0.0
        %v10258 = vmax.f32 %v5808, 0.0
        %v10259 = vmax.f32 %v5821, 0.0
        %v10260 = vmax.f32 %v5834, 0.0
        %v10261 = vmax.f32 %v5847, 0.0
        %v10262 = vmax.f32 %v5860, 0.0
        %v10263 = vmax.f32 %v5873, 0.0
        %v10264 = vmax.f32 %v5886, 0.0
        %v10265 = vmax.f32 %v5899, 0.0
        %v10266 = vmax.f32 %v5912, 0.0
        %v10267 = vmax.f32 %v5925, 0.0
        %v10268 = vmax.f32 %v5938, 0.0
        %v10269 = vmax.f32 %v5951, 0.0
        %v10270 = vmax.f32 %v5964, 0.0
        %v10271 = vmax.f32 %v5977, 0.0
        %v10272 = vmax.f32 %v5990, 0.0
        %v10273 = vmax.f32 %v6003, 0.0
        %v10274 = vmax.f32 %v6016, 0.0
        %v10275 = vmax.f32 %v6029, 0.0
        %v10276 = vmax.f32 %v6042, 0.0
        %v10277 = vmax.f32 %v6055, 0.0
        %v10278 = vmax.f32 %v6068, 0.0
        %v10279 = vmax.f32 %v6081, 0.0
        %v10280 = vmax.f32 %v6094, 0.0
        %v10281 = vmax.f32 %v6107, 0.0
        %v10282 = vmax.f32 %v6120, 0.0
        %v10283 = vmax.f32 %v6133, 0.0
        %v10284 = vmax.f32 %v6146, 0.0
        %v10285 = vmax.f32 %v6159, 0.0
        %v10286 = vmax.f32 %v6172, 0.0
        %v10287 = vmax.f32 %v6185, 0.0
        %v10288 = vmax.f32 %v6198, 0.0
        %v10289 = vmax.f32 %v6211, 0.0
        %v10290 = vmax.f32 %v6224, 0.0
        %v10291 = vmax.f32 %v6237, 0.0
        %v10292 = vmax.f32 %v6250, 0.0
        %v10293 = vmax.f32 %v6263, 0.0
        %v10294 = vmax.f32 %v6276, 0.0
        %v10295 = vmax.f32 %v6289, 0.0
        %v10296 = vmax.f32 %v6302, 0.0
        %v10297 = vmax.f32 %v6315, 0.0
        %v10298 = vmax.f32 %v6328, 0.0
        %v10299 = vmax.f32 %v6341, 0.0
        %v10300 = vmax.f32 %v6354, 0.0
        %v10301 = vmax.f32 %v6367, 0.0
        %v10302 = vmax.f32 %v6380, 0.0
        %v10303 = vmax.f32 %v6393, 0.0
        %v10304 = vmax.f32 %v6406, 0.0
        %v10305 = vmax.f32 %v6419, 0.0
        %v10306 = vmax.f32 %v6432, 0.0
        %v10307 = vmax.f32 %v6445, 0.0
        %v10308 = vmax.f32 %v6458, 0.0
        %v10309 = vmax.f32 %v6471, 0.0
        %v10310 = vmax.f32 %v6484, 0.0
        %v10311 = vmax.f32 %v6497, 0.0
        %v10312 = vmax.f32 %v6510, 0.0
        %v10313 = vmax.f32 %v6523, 0.0
        %v10314 = vmax.f32 %v6536, 0.0
        %v10315 = vmax.f32 %v6549, 0.0
        %v10316 = vmax.f32 %v6562, 0.0
        %v10317 = vmax.f32 %v6575, 0.0
        %v10318 = vmax.f32 %v6588, 0.0
        %v10319 = vmax.f32 %v6601, 0.0
        %v10320 = vmax.f32 %v6614, 0.0
        %v10321 = vmax.f32 %v6627, 0.0
        %v10322 = vmax.f32 %v6640, 0.0
        %v10323 = vmax.f32 %v6653, 0.0
        %v10324 = vmax.f32 %v6666, 0.0
        %v10325 = vmax.f32 %v6679, 0.0
        %v10326 = vmax.f32 %v6692, 0.0
        %v10327 = vmax.f32 %v6705, 0.0
        %v10328 = vmax.f32 %v6718, 0.0
        %v10329 = vmax.f32 %v6731, 0.0
        %v10330 = vmax.f32 %v6744, 0.0
        %v10331 = vmax.f32 %v6757, 0.0
        %v10332 = vmax.f32 %v6770, 0.0
        %v10333 = vmax.f32 %v6783, 0.0
        %v10334 = vmax.f32 %v6796, 0.0
        %v10335 = vmax.f32 %v6809, 0.0
        %v10336 = vmax.f32 %v6822, 0.0
        %v10337 = vmax.f32 %v6835, 0.0
        %v10338 = vmax.f32 %v6848, 0.0
        %v10339 = vmax.f32 %v6861, 0.0
        %v10340 = vmax.f32 %v6874, 0.0
        %v10341 = vmax.f32 %v6887, 0.0
        %v10342 = vmax.f32 %v6900, 0.0
        %v10343 = vmax.f32 %v6913, 0.0
        %v10344 = vmax.f32 %v6926, 0.0
        %v10345 = vmax.f32 %v6939, 0.0
        %v10346 = vmax.f32 %v6952, 0.0
        %v10347 = vmax.f32 %v6965, 0.0
        %v10348 = vmax.f32 %v6978, 0.0
        %v10349 = vmax.f32 %v6991, 0.0
        %v10350 = vmax.f32 %v7004, 0.0
        %v10351 = vmax.f32 %v7017, 0.0
        %v10352 = vmax.f32 %v7030, 0.0
        %v10353 = vmax.f32 %v7043, 0.0
        %v10354 = vmax.f32 %v7056, 0.0
        %v10355 = vmax.f32 %v7069, 0.0
        %v10356 = vmax.f32 %v7082, 0.0
        %v10357 = vmax.f32 %v7095, 0.0
        %v10358 = vmax.f32 %v7108, 0.0
        %v10359 = vmax.f32 %v7121, 0.0
        %v10360 = vmax.f32 %v7134, 0.0
        %v10361 = vmax.f32 %v7147, 0.0
        %v10362 = vmax.f32 %v7160, 0.0
        %v10363 = vmax.f32 %v7173, 0.0
        %v10364 = vmax.f32 %v7186, 0.0
        %v10365 = vmax.f32 %v7199, 0.0
        %v10366 = vmax.f32 %v7212, 0.0
        %v10367 = vmax.f32 %v7225, 0.0
        %v10368 = vmax.f32 %v7238, 0.0
        %v10369 = vmax.f32 %v7251, 0.0
        %v10370 = vmax.f32 %v7264, 0.0
        %v10371 = vmax.f32 %v7277, 0.0
        %v10372 = vmax.f32 %v7290, 0.0
        %v10373 = vmax.f32 %v7303, 0.0
        %v10374 = vmax.f32 %v7316, 0.0
        %v10375 = vmax.f32 %v7329, 0.0
        %v10376 = vmax.f32 %v7342, 0.0
        %v10377 = vmax.f32 %v7355, 0.0
        %v10378 = vmax.f32 %v7368, 0.0
        %v10379 = vmax.f32 %v7381, 0.0
        %v10380 = vmax.f32 %v7394, 0.0
        %v10381 = vmax.f32 %v7407, 0.0
        %v10382 = vmax.f32 %v7420, 0.0
        %v10383 = vmax.f32 %v7433, 0.0
        %v10384 = vmax.f32 %v7446, 0.0
        %v10385 = vmax.f32 %v7459, 0.0
        %v10386 = vmax.f32 %v7472, 0.0
        %v10387 = vmax.f32 %v7485, 0.0
        %v10388 = vmax.f32 %v7498, 0.0
        %v10389 = vmax.f32 %v7511, 0.0
        %v10390 = vmax.f32 %v7524, 0.0
        %v10391 = vmax.f32 %v7537, 0.0
        %v10392 = vmax.f32 %v7550, 0.0
        %v10393 = vmax.f32 %v7563, 0.0
        %v10394 = vmax.f32 %v7576, 0.0
        %v10395 = vmax.f32 %v7589, 0.0
        %v10396 = vmax.f32 %v7602, 0.0
        %v10397 = vmax.f32 %v7615, 0.0
        %v10398 = vmax.f32 %v7628, 0.0
        %v10399 = vmax.f32 %v7641, 0.0
        %v10400 = vmax.f32 %v7654, 0.0
        %v10401 = vmax.f32 %v7667, 0.0
        %v10402 = vmax.f32 %v7680, 0.0
        %v10403 = vmax.f32 %v7693, 0.0
        %v10404 = vmax.f32 %v7706, 0.0
        %v10405 = vmax.f32 %v7719, 0.0
        %v10406 = vmax.f32 %v7732, 0.0
        %v10407 = vmax.f32 %v7745, 0.0
        %v10408 = vmax.f32 %v7758, 0.0
        %v10409 = vmax.f32 %v7771, 0.0
        %v10410 = vmax.f32 %v7784, 0.0
        %v10411 = vmax.f32 %v7797, 0.0
        %v10412 = vmax.f32 %v7810, 0.0
        %v10413 = vmax.f32 %v7823, 0.0
        %v10414 = vmax.f32 %v7836, 0.0
        %v10415 = vmax.f32 %v7849, 0.0
        %v10416 = vmax.f32 %v7862, 0.0
        %v10417 = vmax.f32 %v7875, 0.0
        %v10418 = vmax.f32 %v7888, 0.0
        %v10419 = vmax.f32 %v7901, 0.0
        %v10420 = vmax.f32 %v7914, 0.0
        %v10421 = vmax.f32 %v7927, 0.0
        %v10422 = vmax.f32 %v7940, 0.0
        %v10423 = vmax.f32 %v7953, 0.0
        %v10424 = vmax.f32 %v7966, 0.0
        %v10425 = vmax.f32 %v7979, 0.0
        %v10426 = vmax.f32 %v7992, 0.0
        %v10427 = vmax.f32 %v8005, 0.0
        %v10428 = vmax.f32 %v8018, 0.0
        %v10429 = vmax.f32 %v8031, 0.0
        %v10430 = vmax.f32 %v8044, 0.0
        %v10431 = vmax.f32 %v8057, 0.0
        %v10432 = vmax.f32 %v8070, 0.0
        %v10433 = vmax.f32 %v8083, 0.0
        %v10434 = vmax.f32 %v8096, 0.0
        %v10435 = vmax.f32 %v8109, 0.0
        %v10436 = vmax.f32 %v8122, 0.0
        %v10437 = vmax.f32 %v8135, 0.0
        %v10438 = vmax.f32 %v8148, 0.0
        %v10439 = vmax.f32 %v8161, 0.0
        %v10440 = vmax.f32 %v8174, 0.0
        %v10441 = vmax.f32 %v8187, 0.0
        %v10442 = vmax.f32 %v8200, 0.0
        %v10443 = vmax.f32 %v8213, 0.0
        %v10444 = vmax.f32 %v8226, 0.0
        %v10445 = vmax.f32 %v8239, 0.0
        %v10446 = vmax.f32 %v8252, 0.0
        %v10447 = vmax.f32 %v8265, 0.0
        %v10448 = vmax.f32 %v8278, 0.0
        %v10449 = vmax.f32 %v8291, 0.0
        %v10450 = vmax.f32 %v8304, 0.0
        %v10451 = vmax.f32 %v8317, 0.0
        %v10452 = vmax.f32 %v8330, 0.0
        %v10453 = vmax.f32 %v8343, 0.0
        %v10454 = vmax.f32 %v8356, 0.0
        %v10455 = vmax.f32 %v8369, 0.0
        %v10456 = vmax.f32 %v8382, 0.0
        %v10457 = vmax.f32 %v8395, 0.0
        %v10458 = vmax.f32 %v8408, 0.0
        %v10459 = vmax.f32 %v8421, 0.0
        %v10460 = vmax.f32 %v8434, 0.0
        %v10461 = vmax.f32 %v8447, 0.0
        %v10462 = vmax.f32 %v8460, 0.0
        %v10463 = vmax.f32 %v8473, 0.0
        %v10464 = vmax.f32 %v8486, 0.0
        %v10465 = vmax.f32 %v8499, 0.0
        %v10466 = vmax.f32 %v8512, 0.0
        %v10467 = vmax.f32 %v8525, 0.0
        %v10468 = vmax.f32 %v8538, 0.0
        %v10469 = vmax.f32 %v8551, 0.0
        %v10470 = vmax.f32 %v8564, 0.0
        %v10471 = vmax.f32 %v8577, 0.0
        %v10472 = vmax.f32 %v8590, 0.0
        %v10473 = vmax.f32 %v8603, 0.0
        %v10474 = vmax.f32 %v8616, 0.0
        %v10475 = vmax.f32 %v8629, 0.0
        %v10476 = vmax.f32 %v8642, 0.0
        %v10477 = vmax.f32 %v8655, 0.0
        %v10478 = vmax.f32 %v8668, 0.0
        %v10479 = vmax.f32 %v8681, 0.0
        %v10480 = vmax.f32 %v8694, 0.0
        %v10481 = vmax.f32 %v8707, 0.0
        %v10482 = vmax.f32 %v8720, 0.0
        %v10483 = vmax.f32 %v8733, 0.0
        %v10484 = vmax.f32 %v8746, 0.0
        %v10485 = vmax.f32 %v8759, 0.0
        %v10486 = vmax.f32 %v8772, 0.0
        %v10487 = vmax.f32 %v8785, 0.0
        %v10488 = vmax.f32 %v8798, 0.0
        %v10489 = vmax.f32 %v8811, 0.0
        %v10490 = vmax.f32 %v8824, 0.0
        %v10491 = vmax.f32 %v8837, 0.0
        %v10492 = vmax.f32 %v8850, 0.0
        %v10493 = vmax.f32 %v8863, 0.0
        %v10494 = vmax.f32 %v8876, 0.0
        %v10495 = vmax.f32 %v8889, 0.0
        %v10496 = vmax.f32 %v8902, 0.0
        %v10497 = vmax.f32 %v8915, 0.0
        %v10498 = vmax.f32 %v8928, 0.0
        %v10499 = vmax.f32 %v8941, 0.0
        %v10500 = vmax.f32 %v8954, 0.0
        %v10501 = vmax.f32 %v8967, 0.0
        %v10502 = vmax.f32 %v8980, 0.0
        %v10503 = vmax.f32 %v8993, 0.0
        %v10504 = vmax.f32 %v9006, 0.0
        %v10505 = vmax.f32 %v9019, 0.0
        %v10506 = vmax.f32 %v9032, 0.0
        %v10507 = vmax.f32 %v9045, 0.0
        %v10508 = vmax.f32 %v9058, 0.0
        %v10509 = vmax.f32 %v9071, 0.0
        %v10510 = vmax.f32 %v9084, 0.0
        %v10511 = vmax.f32 %v9097, 0.0
        %v10512 = vmax.f32 %v9110, 0.0
        %v10513 = vmax.f32 %v9123, 0.0
        %v10514 = vmax.f32 %v9136, 0.0
        %v10515 = vmax.f32 %v9149, 0.0
        %v10516 = vmax.f32 %v9162, 0.0
        %v10517 = vmax.f32 %v9175, 0.0
        %v10518 = vmax.f32 %v9188, 0.0
        %v10519 = vmax.f32 %v9201, 0.0
        %v10520 = vmax.f32 %v9214, 0.0
        %v10521 = vmax.f32 %v9227, 0.0
        %v10522 = vmax.f32 %v9240, 0.0
        %v10523 = vmax.f32 %v9253, 0.0
        %v10524 = vmax.f32 %v9266, 0.0
        %v10525 = vmax.f32 %v9279, 0.0
        %v10526 = vmax.f32 %v9292, 0.0
        %v10527 = vmax.f32 %v9305, 0.0
        %v10528 = vmax.f32 %v9318, 0.0
        %v10529 = vmax.f32 %v9331, 0.0
        %v10530 = vmax.f32 %v9344, 0.0
        %v10531 = vmax.f32 %v9357, 0.0
        %v10532 = vmax.f32 %v9370, 0.0
        %v10533 = vmax.f32 %v9383, 0.0
        %v10534 = vmax.f32 %v9396, 0.0
        %v10535 = vmax.f32 %v9409, 0.0
        %v10536 = vmax.f32 %v9422, 0.0
        %v10537 = vmax.f32 %v9435, 0.0
        %v10538 = vmax.f32 %v9448, 0.0
        %v10539 = vmax.f32 %v9461, 0.0
        %v10540 = vmax.f32 %v9474, 0.0
        %v10541 = vmax.f32 %v9487, 0.0
        %v10542 = vmax.f32 %v9500, 0.0
        %v10543 = vmax.f32 %v9513, 0.0
        %v10544 = vmax.f32 %v9526, 0.0
        %v10545 = vmax.f32 %v9539, 0.0
        %v10546 = vmax.f32 %v9552, 0.0
        %v10547 = vmax.f32 %v9565, 0.0
        %v10548 = vmax.f32 %v9578, 0.0
        %v10549 = vmax.f32 %v9591, 0.0
        %v10550 = vmax.f32 %v9604, 0.0
        %v10551 = vmax.f32 %v9617, 0.0
        %v10552 = vmax.f32 %v9630, 0.0
        %v10553 = vmax.f32 %v9643, 0.0
        %v10554 = vmax.f32 %v9656, 0.0
        %v10555 = vmax.f32 %v9669, 0.0
        %v10556 = vmax.f32 %v9682, 0.0
        %v10557 = vmax.f32 %v9695, 0.0
        %v10558 = vmax.f32 %v9708, 0.0
        %v10559 = vmax.f32 %v9721, 0.0
        %v10560 = vmax.f32 %v9734, 0.0
        %v10561 = vmax.f32 %v9747, 0.0
        %v10562 = vmax.f32 %v9760, 0.0
        %v10563 = vmax.f32 %v9773, 0.0
        %v10564 = vmax.f32 %v9786, 0.0
        %v10565 = vmax.f32 %v9799, 0.0
        %v10566 = vmax.f32 %v9812, 0.0
        %v10567 = vmax.f32 %v9825, 0.0
        %v10568 = vmax.f32 %v9838, 0.0
        %v10569 = vmax.f32 %v9851, 0.0
        %v10570 = vmax.f32 %v9864, 0.0
        %v10571 = vmax.f32 %v9877, 0.0
        %v10572 = vmax.f32 %v9890, 0.0
        %v10573 = vmax.f32 %v9903, 0.0
        %v10574 = vmax.f32 %v9916, 0.0
        %v10575 = vmax.f32 %v9929, 0.0
        %v10576 = vmax.f32 %v9942, 0.0
        %v10577 = vmax.f32 %v9955, 0.0
        %v10578 = vmax.f32 %v9968, 0.0
        %v10579 = vmax.f32 %v9981, 0.0
        %v10580 = vmax.f32 %v9994, 0.0
        %v10581 = vmax.f32 %v10007, 0.0
        %v10582 = vmax.f32 %v10020, 0.0
        %v10583 = vmax.f32 %v10033, 0.0
        %v10584 = vmax.f32 %v10046, 0.0
        %v10585 = vmax.f32 %v10059, 0.0
        %v10586 = vmax.f32 %v10072, 0.0
        %v10587 = vpack.c.bf16 %v10139, %v10075
        %v10588 = vpack.c.bf16 %v10140, %v10076
        %v10589 = vpack.c.bf16 %v10141, %v10077
        %v10590 = vpack.c.bf16 %v10142, %v10078
        %v10591 = vpack.c.bf16 %v10143, %v10079
        %v10592 = vpack.c.bf16 %v10144, %v10080
        %v10593 = vpack.c.bf16 %v10145, %v10081
        %v10594 = vpack.c.bf16 %v10146, %v10082
        %v10595 = vpack.c.bf16 %v10147, %v10083
        %v10596 = vpack.c.bf16 %v10148, %v10084
        %v10597 = vpack.c.bf16 %v10149, %v10085
        %v10598 = vpack.c.bf16 %v10150, %v10086
        %v10599 = vpack.c.bf16 %v10151, %v10087
        %v10600 = vpack.c.bf16 %v10152, %v10088
        %v10601 = vpack.c.bf16 %v10153, %v10089
        %v10602 = vpack.c.bf16 %v10154, %v10090
        %v10603 = vpack.c.bf16 %v10155, %v10091
        %v10604 = vpack.c.bf16 %v10156, %v10092
        %v10605 = vpack.c.bf16 %v10157, %v10093
        %v10606 = vpack.c.bf16 %v10158, %v10094
        %v10607 = vpack.c.bf16 %v10159, %v10095
        %v10608 = vpack.c.bf16 %v10160, %v10096
        %v10609 = vpack.c.bf16 %v10161, %v10097
        %v10610 = vpack.c.bf16 %v10162, %v10098
        %v10611 = vpack.c.bf16 %v10163, %v10099
        %v10612 = vpack.c.bf16 %v10164, %v10100
        %v10613 = vpack.c.bf16 %v10165, %v10101
        %v10614 = vpack.c.bf16 %v10166, %v10102
        %v10615 = vpack.c.bf16 %v10167, %v10103
        %v10616 = vpack.c.bf16 %v10168, %v10104
        %v10617 = vpack.c.bf16 %v10169, %v10105
        %v10618 = vpack.c.bf16 %v10170, %v10106
        %v10619 = vpack.c.bf16 %v10171, %v10107
        %v10620 = vpack.c.bf16 %v10172, %v10108
        %v10621 = vpack.c.bf16 %v10173, %v10109
        %v10622 = vpack.c.bf16 %v10174, %v10110
        %v10623 = vpack.c.bf16 %v10175, %v10111
        %v10624 = vpack.c.bf16 %v10176, %v10112
        %v10625 = vpack.c.bf16 %v10177, %v10113
        %v10626 = vpack.c.bf16 %v10178, %v10114
        %v10627 = vpack.c.bf16 %v10179, %v10115
        %v10628 = vpack.c.bf16 %v10180, %v10116
        %v10629 = vpack.c.bf16 %v10181, %v10117
        %v10630 = vpack.c.bf16 %v10182, %v10118
        %v10631 = vpack.c.bf16 %v10183, %v10119
        %v10632 = vpack.c.bf16 %v10184, %v10120
        %v10633 = vpack.c.bf16 %v10185, %v10121
        %v10634 = vpack.c.bf16 %v10186, %v10122
        %v10635 = vpack.c.bf16 %v10187, %v10123
        %v10636 = vpack.c.bf16 %v10188, %v10124
        %v10637 = vpack.c.bf16 %v10189, %v10125
        %v10638 = vpack.c.bf16 %v10190, %v10126
        %v10639 = vpack.c.bf16 %v10191, %v10127
        %v10640 = vpack.c.bf16 %v10192, %v10128
        %v10641 = vpack.c.bf16 %v10193, %v10129
        %v10642 = vpack.c.bf16 %v10194, %v10130
        %v10643 = vpack.c.bf16 %v10195, %v10131
        %v10644 = vpack.c.bf16 %v10196, %v10132
        %v10645 = vpack.c.bf16 %v10197, %v10133
        %v10646 = vpack.c.bf16 %v10198, %v10134
        %v10647 = vpack.c.bf16 %v10199, %v10135
        %v10648 = vpack.c.bf16 %v10200, %v10136
        %v10649 = vpack.c.bf16 %v10201, %v10137
        %v10650 = vpack.c.bf16 %v10202, %v10138
        %v10651 = vpack.c.bf16 %v10267, %v10203
        %v10652 = vpack.c.bf16 %v10268, %v10204
        %v10653 = vpack.c.bf16 %v10269, %v10205
        %v10654 = vpack.c.bf16 %v10270, %v10206
        %v10655 = vpack.c.bf16 %v10271, %v10207
        %v10656 = vpack.c.bf16 %v10272, %v10208
        %v10657 = vpack.c.bf16 %v10273, %v10209
        %v10658 = vpack.c.bf16 %v10274, %v10210
        %v10659 = vpack.c.bf16 %v10275, %v10211
        %v10660 = vpack.c.bf16 %v10276, %v10212
        %v10661 = vpack.c.bf16 %v10277, %v10213
        %v10662 = vpack.c.bf16 %v10278, %v10214
        %v10663 = vpack.c.bf16 %v10279, %v10215
        %v10664 = vpack.c.bf16 %v10280, %v10216
        %v10665 = vpack.c.bf16 %v10281, %v10217
        %v10666 = vpack.c.bf16 %v10282, %v10218
        %v10667 = vpack.c.bf16 %v10283, %v10219
        %v10668 = vpack.c.bf16 %v10284, %v10220
        %v10669 = vpack.c.bf16 %v10285, %v10221
        %v10670 = vpack.c.bf16 %v10286, %v10222
        %v10671 = vpack.c.bf16 %v10287, %v10223
        %v10672 = vpack.c.bf16 %v10288, %v10224
        %v10673 = vpack.c.bf16 %v10289, %v10225
        %v10674 = vpack.c.bf16 %v10290, %v10226
        %v10675 = vpack.c.bf16 %v10291, %v10227
        %v10676 = vpack.c.bf16 %v10292, %v10228
        %v10677 = vpack.c.bf16 %v10293, %v10229
        %v10678 = vpack.c.bf16 %v10294, %v10230
        %v10679 = vpack.c.bf16 %v10295, %v10231
        %v10680 = vpack.c.bf16 %v10296, %v10232
        %v10681 = vpack.c.bf16 %v10297, %v10233
        %v10682 = vpack.c.bf16 %v10298, %v10234
        %v10683 = vpack.c.bf16 %v10299, %v10235
        %v10684 = vpack.c.bf16 %v10300, %v10236
        %v10685 = vpack.c.bf16 %v10301, %v10237
        %v10686 = vpack.c.bf16 %v10302, %v10238
        %v10687 = vpack.c.bf16 %v10303, %v10239
        %v10688 = vpack.c.bf16 %v10304, %v10240
        %v10689 = vpack.c.bf16 %v10305, %v10241
        %v10690 = vpack.c.bf16 %v10306, %v10242
        %v10691 = vpack.c.bf16 %v10307, %v10243
        %v10692 = vpack.c.bf16 %v10308, %v10244
        %v10693 = vpack.c.bf16 %v10309, %v10245
        %v10694 = vpack.c.bf16 %v10310, %v10246
        %v10695 = vpack.c.bf16 %v10311, %v10247
        %v10696 = vpack.c.bf16 %v10312, %v10248
        %v10697 = vpack.c.bf16 %v10313, %v10249
        %v10698 = vpack.c.bf16 %v10314, %v10250
        %v10699 = vpack.c.bf16 %v10315, %v10251
        %v10700 = vpack.c.bf16 %v10316, %v10252
        %v10701 = vpack.c.bf16 %v10317, %v10253
        %v10702 = vpack.c.bf16 %v10318, %v10254
        %v10703 = vpack.c.bf16 %v10319, %v10255
        %v10704 = vpack.c.bf16 %v10320, %v10256
        %v10705 = vpack.c.bf16 %v10321, %v10257
        %v10706 = vpack.c.bf16 %v10322, %v10258
        %v10707 = vpack.c.bf16 %v10323, %v10259
        %v10708 = vpack.c.bf16 %v10324, %v10260
        %v10709 = vpack.c.bf16 %v10325, %v10261
        %v10710 = vpack.c.bf16 %v10326, %v10262
        %v10711 = vpack.c.bf16 %v10327, %v10263
        %v10712 = vpack.c.bf16 %v10328, %v10264
        %v10713 = vpack.c.bf16 %v10329, %v10265
        %v10714 = vpack.c.bf16 %v10330, %v10266
        %v10715 = vpack.c.bf16 %v10395, %v10331
        %v10716 = vpack.c.bf16 %v10396, %v10332
        %v10717 = vpack.c.bf16 %v10397, %v10333
        %v10718 = vpack.c.bf16 %v10398, %v10334
        %v10719 = vpack.c.bf16 %v10399, %v10335
        %v10720 = vpack.c.bf16 %v10400, %v10336
        %v10721 = vpack.c.bf16 %v10401, %v10337
        %v10722 = vpack.c.bf16 %v10402, %v10338
        %v10723 = vpack.c.bf16 %v10403, %v10339
        %v10724 = vpack.c.bf16 %v10404, %v10340
        %v10725 = vpack.c.bf16 %v10405, %v10341
        %v10726 = vpack.c.bf16 %v10406, %v10342
        %v10727 = vpack.c.bf16 %v10407, %v10343
        %v10728 = vpack.c.bf16 %v10408, %v10344
        %v10729 = vpack.c.bf16 %v10409, %v10345
        %v10730 = vpack.c.bf16 %v10410, %v10346
        %v10731 = vpack.c.bf16 %v10411, %v10347
        %v10732 = vpack.c.bf16 %v10412, %v10348
        %v10733 = vpack.c.bf16 %v10413, %v10349
        %v10734 = vpack.c.bf16 %v10414, %v10350
        %v10735 = vpack.c.bf16 %v10415, %v10351
        %v10736 = vpack.c.bf16 %v10416, %v10352
        %v10737 = vpack.c.bf16 %v10417, %v10353
        %v10738 = vpack.c.bf16 %v10418, %v10354
        %v10739 = vpack.c.bf16 %v10419, %v10355
        %v10740 = vpack.c.bf16 %v10420, %v10356
        %v10741 = vpack.c.bf16 %v10421, %v10357
        %v10742 = vpack.c.bf16 %v10422, %v10358
        %v10743 = vpack.c.bf16 %v10423, %v10359
        %v10744 = vpack.c.bf16 %v10424, %v10360
        %v10745 = vpack.c.bf16 %v10425, %v10361
        %v10746 = vpack.c.bf16 %v10426, %v10362
        %v10747 = vpack.c.bf16 %v10427, %v10363
        %v10748 = vpack.c.bf16 %v10428, %v10364
        %v10749 = vpack.c.bf16 %v10429, %v10365
        %v10750 = vpack.c.bf16 %v10430, %v10366
        %v10751 = vpack.c.bf16 %v10431, %v10367
        %v10752 = vpack.c.bf16 %v10432, %v10368
        %v10753 = vpack.c.bf16 %v10433, %v10369
        %v10754 = vpack.c.bf16 %v10434, %v10370
        %v10755 = vpack.c.bf16 %v10435, %v10371
        %v10756 = vpack.c.bf16 %v10436, %v10372
        %v10757 = vpack.c.bf16 %v10437, %v10373
        %v10758 = vpack.c.bf16 %v10438, %v10374
        %v10759 = vpack.c.bf16 %v10439, %v10375
        %v10760 = vpack.c.bf16 %v10440, %v10376
        %v10761 = vpack.c.bf16 %v10441, %v10377
        %v10762 = vpack.c.bf16 %v10442, %v10378
        %v10763 = vpack.c.bf16 %v10443, %v10379
        %v10764 = vpack.c.bf16 %v10444, %v10380
        %v10765 = vpack.c.bf16 %v10445, %v10381
        %v10766 = vpack.c.bf16 %v10446, %v10382
        %v10767 = vpack.c.bf16 %v10447, %v10383
        %v10768 = vpack.c.bf16 %v10448, %v10384
        %v10769 = vpack.c.bf16 %v10449, %v10385
        %v10770 = vpack.c.bf16 %v10450, %v10386
        %v10771 = vpack.c.bf16 %v10451, %v10387
        %v10772 = vpack.c.bf16 %v10452, %v10388
        %v10773 = vpack.c.bf16 %v10453, %v10389
        %v10774 = vpack.c.bf16 %v10454, %v10390
        %v10775 = vpack.c.bf16 %v10455, %v10391
        %v10776 = vpack.c.bf16 %v10456, %v10392
        %v10777 = vpack.c.bf16 %v10457, %v10393
        %v10778 = vpack.c.bf16 %v10458, %v10394
        %v10779 = vpack.c.bf16 %v10523, %v10459
        %v10780 = vpack.c.bf16 %v10524, %v10460
        %v10781 = vpack.c.bf16 %v10525, %v10461
        %v10782 = vpack.c.bf16 %v10526, %v10462
        %v10783 = vpack.c.bf16 %v10527, %v10463
        %v10784 = vpack.c.bf16 %v10528, %v10464
        %v10785 = vpack.c.bf16 %v10529, %v10465
        %v10786 = vpack.c.bf16 %v10530, %v10466
        %v10787 = vpack.c.bf16 %v10531, %v10467
        %v10788 = vpack.c.bf16 %v10532, %v10468
        %v10789 = vpack.c.bf16 %v10533, %v10469
        %v10790 = vpack.c.bf16 %v10534, %v10470
        %v10791 = vpack.c.bf16 %v10535, %v10471
        %v10792 = vpack.c.bf16 %v10536, %v10472
        %v10793 = vpack.c.bf16 %v10537, %v10473
        %v10794 = vpack.c.bf16 %v10538, %v10474
        %v10795 = vpack.c.bf16 %v10539, %v10475
        %v10796 = vpack.c.bf16 %v10540, %v10476
        %v10797 = vpack.c.bf16 %v10541, %v10477
        %v10798 = vpack.c.bf16 %v10542, %v10478
        %v10799 = vpack.c.bf16 %v10543, %v10479
        %v10800 = vpack.c.bf16 %v10544, %v10480
        %v10801 = vpack.c.bf16 %v10545, %v10481
        %v10802 = vpack.c.bf16 %v10546, %v10482
        %v10803 = vpack.c.bf16 %v10547, %v10483
        %v10804 = vpack.c.bf16 %v10548, %v10484
        %v10805 = vpack.c.bf16 %v10549, %v10485
        %v10806 = vpack.c.bf16 %v10550, %v10486
        %v10807 = vpack.c.bf16 %v10551, %v10487
        %v10808 = vpack.c.bf16 %v10552, %v10488
        %v10809 = vpack.c.bf16 %v10553, %v10489
        %v10810 = vpack.c.bf16 %v10554, %v10490
        %v10811 = vpack.c.bf16 %v10555, %v10491
        %v10812 = vpack.c.bf16 %v10556, %v10492
        %v10813 = vpack.c.bf16 %v10557, %v10493
        %v10814 = vpack.c.bf16 %v10558, %v10494
        %v10815 = vpack.c.bf16 %v10559, %v10495
        %v10816 = vpack.c.bf16 %v10560, %v10496
        %v10817 = vpack.c.bf16 %v10561, %v10497
        %v10818 = vpack.c.bf16 %v10562, %v10498
        %v10819 = vpack.c.bf16 %v10563, %v10499
        %v10820 = vpack.c.bf16 %v10564, %v10500
        %v10821 = vpack.c.bf16 %v10565, %v10501
        %v10822 = vpack.c.bf16 %v10566, %v10502
        %v10823 = vpack.c.bf16 %v10567, %v10503
        %v10824 = vpack.c.bf16 %v10568, %v10504
        %v10825 = vpack.c.bf16 %v10569, %v10505
        %v10826 = vpack.c.bf16 %v10570, %v10506
        %v10827 = vpack.c.bf16 %v10571, %v10507
        %v10828 = vpack.c.bf16 %v10572, %v10508
        %v10829 = vpack.c.bf16 %v10573, %v10509
        %v10830 = vpack.c.bf16 %v10574, %v10510
        %v10831 = vpack.c.bf16 %v10575, %v10511
        %v10832 = vpack.c.bf16 %v10576, %v10512
        %v10833 = vpack.c.bf16 %v10577, %v10513
        %v10834 = vpack.c.bf16 %v10578, %v10514
        %v10835 = vpack.c.bf16 %v10579, %v10515
        %v10836 = vpack.c.bf16 %v10580, %v10516
        %v10837 = vpack.c.bf16 %v10581, %v10517
        %v10838 = vpack.c.bf16 %v10582, %v10518
        %v10839 = vpack.c.bf16 %v10583, %v10519
        %v10840 = vpack.c.bf16 %v10584, %v10520
        %v10841 = vpack.c.bf16 %v10585, %v10521
        %v10842 = vpack.c.bf16 %v10586, %v10522
        %v10843 = vld [vmem:[%s2] sm:$0xf]
        %v10844 = vld [vmem:[%s6] sm:$0xff]
        %10846 = vset.pattern.permute.xlu0 0
        %10847 = vperm.xlu0 %10846, %v10844
        %v10848 = vpop.permute.xlu0 %10847
        %vm10850 = vcmask 523264
        %v10852 = vsel %vm10850, %v10843, 0
        %10854 = vmatpush.bf16.msra.mxu0 0
        %10855 = vmatpush.bf16.msra.mxu0 0
        %10856 = vmatpush.bf16.msra.mxu0 0
        %10857 = vmatpush.bf16.msra.mxu0 0
        %10858 = vmatpush.bf16.msra.mxu0 %v10779
        %10859 = vmatpush.bf16.msra.mxu0 %v10715
        %10860 = vmatpush.bf16.msra.mxu0 %v10651
        %10861 = vmatpush.bf16.msra.mxu0 %v10587
        %10862 = vmatmul.bf16.gmra.mxu0 %v10852
        %v10863 = vpop.f32.mrf.mxu0
        %v10864 = vadd.f32 %v10848, %v10863
        %v10865 = vpop.f32.mrf.mxu0
        %10866 = vdwg.mxu0
        %10867 = vmatpush.bf16.msra.mxu0 0
        %10868 = vmatpush.bf16.msra.mxu0 0
        %10869 = vmatpush.bf16.msra.mxu0 0
        %10870 = vmatpush.bf16.msra.mxu0 0
        %10871 = vmatpush.bf16.msra.mxu0 %v10780
        %10872 = vmatpush.bf16.msra.mxu0 %v10716
        %10873 = vmatpush.bf16.msra.mxu0 %v10652
        %10874 = vmatpush.bf16.msra.mxu0 %v10588
        %10875 = vmatmul.bf16.gmra.mxu0 %v10852
        %v10876 = vpop.f32.mrf.mxu0
        %v10877 = vadd.f32 %v10848, %v10876
        %v10878 = vpop.f32.mrf.mxu0
        %10879 = vdwg.mxu0
        %10880 = vmatpush.bf16.msra.mxu0 0
        %10881 = vmatpush.bf16.msra.mxu0 0
        %10882 = vmatpush.bf16.msra.mxu0 0
        %10883 = vmatpush.bf16.msra.mxu0 0
        %10884 = vmatpush.bf16.msra.mxu0 %v10781
        %10885 = vmatpush.bf16.msra.mxu0 %v10717
        %10886 = vmatpush.bf16.msra.mxu0 %v10653
        %10887 = vmatpush.bf16.msra.mxu0 %v10589
        %10888 = vmatmul.bf16.gmra.mxu0 %v10852
        %v10889 = vpop.f32.mrf.mxu0
        %v10890 = vadd.f32 %v10848, %v10889
        %v10891 = vpop.f32.mrf.mxu0
        %10892 = vdwg.mxu0
        %10893 = vmatpush.bf16.msra.mxu0 0
        %10894 = vmatpush.bf16.msra.mxu0 0
        %10895 = vmatpush.bf16.msra.mxu0 0
        %10896 = vmatpush.bf16.msra.mxu0 0
        %10897 = vmatpush.bf16.msra.mxu0 %v10782
        %10898 = vmatpush.bf16.msra.mxu0 %v10718
        %10899 = vmatpush.bf16.msra.mxu0 %v10654
        %10900 = vmatpush.bf16.msra.mxu0 %v10590
        %10901 = vmatmul.bf16.gmra.mxu0 %v10852
        %v10902 = vpop.f32.mrf.mxu0
        %v10903 = vadd.f32 %v10848, %v10902
        %v10904 = vpop.f32.mrf.mxu0
        %10905 = vdwg.mxu0
        %10906 = vmatpush.bf16.msra.mxu0 0
        %10907 = vmatpush.bf16.msra.mxu0 0
        %10908 = vmatpush.bf16.msra.mxu0 0
        %10909 = vmatpush.bf16.msra.mxu0 0
        %10910 = vmatpush.bf16.msra.mxu0 %v10783
        %10911 = vmatpush.bf16.msra.mxu0 %v10719
        %10912 = vmatpush.bf16.msra.mxu0 %v10655
        %10913 = vmatpush.bf16.msra.mxu0 %v10591
        %10914 = vmatmul.bf16.gmra.mxu0 %v10852
        %v10915 = vpop.f32.mrf.mxu0
        %v10916 = vadd.f32 %v10848, %v10915
        %v10917 = vpop.f32.mrf.mxu0
        %10918 = vdwg.mxu0
        %10919 = vmatpush.bf16.msra.mxu0 0
        %10920 = vmatpush.bf16.msra.mxu0 0
        %10921 = vmatpush.bf16.msra.mxu0 0
        %10922 = vmatpush.bf16.msra.mxu0 0
        %10923 = vmatpush.bf16.msra.mxu0 %v10784
        %10924 = vmatpush.bf16.msra.mxu0 %v10720
        %10925 = vmatpush.bf16.msra.mxu0 %v10656
        %10926 = vmatpush.bf16.msra.mxu0 %v10592
        %10927 = vmatmul.bf16.gmra.mxu0 %v10852
        %v10928 = vpop.f32.mrf.mxu0
        %v10929 = vadd.f32 %v10848, %v10928
        %v10930 = vpop.f32.mrf.mxu0
        %10931 = vdwg.mxu0
        %10932 = vmatpush.bf16.msra.mxu0 0
        %10933 = vmatpush.bf16.msra.mxu0 0
        %10934 = vmatpush.bf16.msra.mxu0 0
        %10935 = vmatpush.bf16.msra.mxu0 0
        %10936 = vmatpush.bf16.msra.mxu0 %v10785
        %10937 = vmatpush.bf16.msra.mxu0 %v10721
        %10938 = vmatpush.bf16.msra.mxu0 %v10657
        %10939 = vmatpush.bf16.msra.mxu0 %v10593
        %10940 = vmatmul.bf16.gmra.mxu0 %v10852
        %v10941 = vpop.f32.mrf.mxu0
        %v10942 = vadd.f32 %v10848, %v10941
        %v10943 = vpop.f32.mrf.mxu0
        %10944 = vdwg.mxu0
        %10945 = vmatpush.bf16.msra.mxu0 0
        %10946 = vmatpush.bf16.msra.mxu0 0
        %10947 = vmatpush.bf16.msra.mxu0 0
        %10948 = vmatpush.bf16.msra.mxu0 0
        %10949 = vmatpush.bf16.msra.mxu0 %v10786
        %10950 = vmatpush.bf16.msra.mxu0 %v10722
        %10951 = vmatpush.bf16.msra.mxu0 %v10658
        %10952 = vmatpush.bf16.msra.mxu0 %v10594
        %10953 = vmatmul.bf16.gmra.mxu0 %v10852
        %v10954 = vpop.f32.mrf.mxu0
        %v10955 = vadd.f32 %v10848, %v10954
        %v10956 = vpop.f32.mrf.mxu0
        %10957 = vdwg.mxu0
        %10958 = vmatpush.bf16.msra.mxu0 0
        %10959 = vmatpush.bf16.msra.mxu0 0
        %10960 = vmatpush.bf16.msra.mxu0 0
        %10961 = vmatpush.bf16.msra.mxu0 0
        %10962 = vmatpush.bf16.msra.mxu0 %v10787
        %10963 = vmatpush.bf16.msra.mxu0 %v10723
        %10964 = vmatpush.bf16.msra.mxu0 %v10659
        %10965 = vmatpush.bf16.msra.mxu0 %v10595
        %10966 = vmatmul.bf16.gmra.mxu0 %v10852
        %v10967 = vpop.f32.mrf.mxu0
        %v10968 = vadd.f32 %v10848, %v10967
        %v10969 = vpop.f32.mrf.mxu0
        %10970 = vdwg.mxu0
        %10971 = vmatpush.bf16.msra.mxu0 0
        %10972 = vmatpush.bf16.msra.mxu0 0
        %10973 = vmatpush.bf16.msra.mxu0 0
        %10974 = vmatpush.bf16.msra.mxu0 0
        %10975 = vmatpush.bf16.msra.mxu0 %v10788
        %10976 = vmatpush.bf16.msra.mxu0 %v10724
        %10977 = vmatpush.bf16.msra.mxu0 %v10660
        %10978 = vmatpush.bf16.msra.mxu0 %v10596
        %10979 = vmatmul.bf16.gmra.mxu0 %v10852
        %v10980 = vpop.f32.mrf.mxu0
        %v10981 = vadd.f32 %v10848, %v10980
        %v10982 = vpop.f32.mrf.mxu0
        %10983 = vdwg.mxu0
        %10984 = vmatpush.bf16.msra.mxu0 0
        %10985 = vmatpush.bf16.msra.mxu0 0
        %10986 = vmatpush.bf16.msra.mxu0 0
        %10987 = vmatpush.bf16.msra.mxu0 0
        %10988 = vmatpush.bf16.msra.mxu0 %v10789
        %10989 = vmatpush.bf16.msra.mxu0 %v10725
        %10990 = vmatpush.bf16.msra.mxu0 %v10661
        %10991 = vmatpush.bf16.msra.mxu0 %v10597
        %10992 = vmatmul.bf16.gmra.mxu0 %v10852
        %v10993 = vpop.f32.mrf.mxu0
        %v10994 = vadd.f32 %v10848, %v10993
        %v10995 = vpop.f32.mrf.mxu0
        %10996 = vdwg.mxu0
        %10997 = vmatpush.bf16.msra.mxu0 0
        %10998 = vmatpush.bf16.msra.mxu0 0
        %10999 = vmatpush.bf16.msra.mxu0 0
        %11000 = vmatpush.bf16.msra.mxu0 0
        %11001 = vmatpush.bf16.msra.mxu0 %v10790
        %11002 = vmatpush.bf16.msra.mxu0 %v10726
        %11003 = vmatpush.bf16.msra.mxu0 %v10662
        %11004 = vmatpush.bf16.msra.mxu0 %v10598
        %11005 = vmatmul.bf16.gmra.mxu0 %v10852
        %v11006 = vpop.f32.mrf.mxu0
        %v11007 = vadd.f32 %v10848, %v11006
        %v11008 = vpop.f32.mrf.mxu0
        %11009 = vdwg.mxu0
        %11010 = vmatpush.bf16.msra.mxu0 0
        %11011 = vmatpush.bf16.msra.mxu0 0
        %11012 = vmatpush.bf16.msra.mxu0 0
        %11013 = vmatpush.bf16.msra.mxu0 0
        %11014 = vmatpush.bf16.msra.mxu0 %v10791
        %11015 = vmatpush.bf16.msra.mxu0 %v10727
        %11016 = vmatpush.bf16.msra.mxu0 %v10663
        %11017 = vmatpush.bf16.msra.mxu0 %v10599
        %11018 = vmatmul.bf16.gmra.mxu0 %v10852
        %v11019 = vpop.f32.mrf.mxu0
        %v11020 = vadd.f32 %v10848, %v11019
        %v11021 = vpop.f32.mrf.mxu0
        %11022 = vdwg.mxu0
        %11023 = vmatpush.bf16.msra.mxu0 0
        %11024 = vmatpush.bf16.msra.mxu0 0
        %11025 = vmatpush.bf16.msra.mxu0 0
        %11026 = vmatpush.bf16.msra.mxu0 0
        %11027 = vmatpush.bf16.msra.mxu0 %v10792
        %11028 = vmatpush.bf16.msra.mxu0 %v10728
        %11029 = vmatpush.bf16.msra.mxu0 %v10664
        %11030 = vmatpush.bf16.msra.mxu0 %v10600
        %11031 = vmatmul.bf16.gmra.mxu0 %v10852
        %v11032 = vpop.f32.mrf.mxu0
        %v11033 = vadd.f32 %v10848, %v11032
        %v11034 = vpop.f32.mrf.mxu0
        %11035 = vdwg.mxu0
        %11036 = vmatpush.bf16.msra.mxu0 0
        %11037 = vmatpush.bf16.msra.mxu0 0
        %11038 = vmatpush.bf16.msra.mxu0 0
        %11039 = vmatpush.bf16.msra.mxu0 0
        %11040 = vmatpush.bf16.msra.mxu0 %v10793
        %11041 = vmatpush.bf16.msra.mxu0 %v10729
        %11042 = vmatpush.bf16.msra.mxu0 %v10665
        %11043 = vmatpush.bf16.msra.mxu0 %v10601
        %11044 = vmatmul.bf16.gmra.mxu0 %v10852
        %v11045 = vpop.f32.mrf.mxu0
        %v11046 = vadd.f32 %v10848, %v11045
        %v11047 = vpop.f32.mrf.mxu0
        %11048 = vdwg.mxu0
        %11049 = vmatpush.bf16.msra.mxu0 0
        %11050 = vmatpush.bf16.msra.mxu0 0
        %11051 = vmatpush.bf16.msra.mxu0 0
        %11052 = vmatpush.bf16.msra.mxu0 0
        %11053 = vmatpush.bf16.msra.mxu0 %v10794
        %11054 = vmatpush.bf16.msra.mxu0 %v10730
        %11055 = vmatpush.bf16.msra.mxu0 %v10666
        %11056 = vmatpush.bf16.msra.mxu0 %v10602
        %11057 = vmatmul.bf16.gmra.mxu0 %v10852
        %v11058 = vpop.f32.mrf.mxu0
        %v11059 = vadd.f32 %v10848, %v11058
        %v11060 = vpop.f32.mrf.mxu0
        %11061 = vdwg.mxu0
        %11062 = vmatpush.bf16.msra.mxu0 0
        %11063 = vmatpush.bf16.msra.mxu0 0
        %11064 = vmatpush.bf16.msra.mxu0 0
        %11065 = vmatpush.bf16.msra.mxu0 0
        %11066 = vmatpush.bf16.msra.mxu0 %v10795
        %11067 = vmatpush.bf16.msra.mxu0 %v10731
        %11068 = vmatpush.bf16.msra.mxu0 %v10667
        %11069 = vmatpush.bf16.msra.mxu0 %v10603
        %11070 = vmatmul.bf16.gmra.mxu0 %v10852
        %v11071 = vpop.f32.mrf.mxu0
        %v11072 = vadd.f32 %v10848, %v11071
        %v11073 = vpop.f32.mrf.mxu0
        %11074 = vdwg.mxu0
        %11075 = vmatpush.bf16.msra.mxu0 0
        %11076 = vmatpush.bf16.msra.mxu0 0
        %11077 = vmatpush.bf16.msra.mxu0 0
        %11078 = vmatpush.bf16.msra.mxu0 0
        %11079 = vmatpush.bf16.msra.mxu0 %v10796
        %11080 = vmatpush.bf16.msra.mxu0 %v10732
        %11081 = vmatpush.bf16.msra.mxu0 %v10668
        %11082 = vmatpush.bf16.msra.mxu0 %v10604
        %11083 = vmatmul.bf16.gmra.mxu0 %v10852
        %v11084 = vpop.f32.mrf.mxu0
        %v11085 = vadd.f32 %v10848, %v11084
        %v11086 = vpop.f32.mrf.mxu0
        %11087 = vdwg.mxu0
        %11088 = vmatpush.bf16.msra.mxu0 0
        %11089 = vmatpush.bf16.msra.mxu0 0
        %11090 = vmatpush.bf16.msra.mxu0 0
        %11091 = vmatpush.bf16.msra.mxu0 0
        %11092 = vmatpush.bf16.msra.mxu0 %v10797
        %11093 = vmatpush.bf16.msra.mxu0 %v10733
        %11094 = vmatpush.bf16.msra.mxu0 %v10669
        %11095 = vmatpush.bf16.msra.mxu0 %v10605
        %11096 = vmatmul.bf16.gmra.mxu0 %v10852
        %v11097 = vpop.f32.mrf.mxu0
        %v11098 = vadd.f32 %v10848, %v11097
        %v11099 = vpop.f32.mrf.mxu0
        %11100 = vdwg.mxu0
        %11101 = vmatpush.bf16.msra.mxu0 0
        %11102 = vmatpush.bf16.msra.mxu0 0
        %11103 = vmatpush.bf16.msra.mxu0 0
        %11104 = vmatpush.bf16.msra.mxu0 0
        %11105 = vmatpush.bf16.msra.mxu0 %v10798
        %11106 = vmatpush.bf16.msra.mxu0 %v10734
        %11107 = vmatpush.bf16.msra.mxu0 %v10670
        %11108 = vmatpush.bf16.msra.mxu0 %v10606
        %11109 = vmatmul.bf16.gmra.mxu0 %v10852
        %v11110 = vpop.f32.mrf.mxu0
        %v11111 = vadd.f32 %v10848, %v11110
        %v11112 = vpop.f32.mrf.mxu0
        %11113 = vdwg.mxu0
        %11114 = vmatpush.bf16.msra.mxu0 0
        %11115 = vmatpush.bf16.msra.mxu0 0
        %11116 = vmatpush.bf16.msra.mxu0 0
        %11117 = vmatpush.bf16.msra.mxu0 0
        %11118 = vmatpush.bf16.msra.mxu0 %v10799
        %11119 = vmatpush.bf16.msra.mxu0 %v10735
        %11120 = vmatpush.bf16.msra.mxu0 %v10671
        %11121 = vmatpush.bf16.msra.mxu0 %v10607
        %11122 = vmatmul.bf16.gmra.mxu0 %v10852
        %v11123 = vpop.f32.mrf.mxu0
        %v11124 = vadd.f32 %v10848, %v11123
        %v11125 = vpop.f32.mrf.mxu0
        %11126 = vdwg.mxu0
        %11127 = vmatpush.bf16.msra.mxu0 0
        %11128 = vmatpush.bf16.msra.mxu0 0
        %11129 = vmatpush.bf16.msra.mxu0 0
        %11130 = vmatpush.bf16.msra.mxu0 0
        %11131 = vmatpush.bf16.msra.mxu0 %v10800
        %11132 = vmatpush.bf16.msra.mxu0 %v10736
        %11133 = vmatpush.bf16.msra.mxu0 %v10672
        %11134 = vmatpush.bf16.msra.mxu0 %v10608
        %11135 = vmatmul.bf16.gmra.mxu0 %v10852
        %v11136 = vpop.f32.mrf.mxu0
        %v11137 = vadd.f32 %v10848, %v11136
        %v11138 = vpop.f32.mrf.mxu0
        %11139 = vdwg.mxu0
        %11140 = vmatpush.bf16.msra.mxu0 0
        %11141 = vmatpush.bf16.msra.mxu0 0
        %11142 = vmatpush.bf16.msra.mxu0 0
        %11143 = vmatpush.bf16.msra.mxu0 0
        %11144 = vmatpush.bf16.msra.mxu0 %v10801
        %11145 = vmatpush.bf16.msra.mxu0 %v10737
        %11146 = vmatpush.bf16.msra.mxu0 %v10673
        %11147 = vmatpush.bf16.msra.mxu0 %v10609
        %11148 = vmatmul.bf16.gmra.mxu0 %v10852
        %v11149 = vpop.f32.mrf.mxu0
        %v11150 = vadd.f32 %v10848, %v11149
        %v11151 = vpop.f32.mrf.mxu0
        %11152 = vdwg.mxu0
        %11153 = vmatpush.bf16.msra.mxu0 0
        %11154 = vmatpush.bf16.msra.mxu0 0
        %11155 = vmatpush.bf16.msra.mxu0 0
        %11156 = vmatpush.bf16.msra.mxu0 0
        %11157 = vmatpush.bf16.msra.mxu0 %v10802
        %11158 = vmatpush.bf16.msra.mxu0 %v10738
        %11159 = vmatpush.bf16.msra.mxu0 %v10674
        %11160 = vmatpush.bf16.msra.mxu0 %v10610
        %11161 = vmatmul.bf16.gmra.mxu0 %v10852
        %v11162 = vpop.f32.mrf.mxu0
        %v11163 = vadd.f32 %v10848, %v11162
        %v11164 = vpop.f32.mrf.mxu0
        %11165 = vdwg.mxu0
        %11166 = vmatpush.bf16.msra.mxu0 0
        %11167 = vmatpush.bf16.msra.mxu0 0
        %11168 = vmatpush.bf16.msra.mxu0 0
        %11169 = vmatpush.bf16.msra.mxu0 0
        %11170 = vmatpush.bf16.msra.mxu0 %v10803
        %11171 = vmatpush.bf16.msra.mxu0 %v10739
        %11172 = vmatpush.bf16.msra.mxu0 %v10675
        %11173 = vmatpush.bf16.msra.mxu0 %v10611
        %11174 = vmatmul.bf16.gmra.mxu0 %v10852
        %v11175 = vpop.f32.mrf.mxu0
        %v11176 = vadd.f32 %v10848, %v11175
        %v11177 = vpop.f32.mrf.mxu0
        %11178 = vdwg.mxu0
        %11179 = vmatpush.bf16.msra.mxu0 0
        %11180 = vmatpush.bf16.msra.mxu0 0
        %11181 = vmatpush.bf16.msra.mxu0 0
        %11182 = vmatpush.bf16.msra.mxu0 0
        %11183 = vmatpush.bf16.msra.mxu0 %v10804
        %11184 = vmatpush.bf16.msra.mxu0 %v10740
        %11185 = vmatpush.bf16.msra.mxu0 %v10676
        %11186 = vmatpush.bf16.msra.mxu0 %v10612
        %11187 = vmatmul.bf16.gmra.mxu0 %v10852
        %v11188 = vpop.f32.mrf.mxu0
        %v11189 = vadd.f32 %v10848, %v11188
        %v11190 = vpop.f32.mrf.mxu0
        %11191 = vdwg.mxu0
        %11192 = vmatpush.bf16.msra.mxu0 0
        %11193 = vmatpush.bf16.msra.mxu0 0
        %11194 = vmatpush.bf16.msra.mxu0 0
        %11195 = vmatpush.bf16.msra.mxu0 0
        %11196 = vmatpush.bf16.msra.mxu0 %v10805
        %11197 = vmatpush.bf16.msra.mxu0 %v10741
        %11198 = vmatpush.bf16.msra.mxu0 %v10677
        %11199 = vmatpush.bf16.msra.mxu0 %v10613
        %11200 = vmatmul.bf16.gmra.mxu0 %v10852
        %v11201 = vpop.f32.mrf.mxu0
        %v11202 = vadd.f32 %v10848, %v11201
        %v11203 = vpop.f32.mrf.mxu0
        %11204 = vdwg.mxu0
        %11205 = vmatpush.bf16.msra.mxu0 0
        %11206 = vmatpush.bf16.msra.mxu0 0
        %11207 = vmatpush.bf16.msra.mxu0 0
        %11208 = vmatpush.bf16.msra.mxu0 0
        %11209 = vmatpush.bf16.msra.mxu0 %v10806
        %11210 = vmatpush.bf16.msra.mxu0 %v10742
        %11211 = vmatpush.bf16.msra.mxu0 %v10678
        %11212 = vmatpush.bf16.msra.mxu0 %v10614
        %11213 = vmatmul.bf16.gmra.mxu0 %v10852
        %v11214 = vpop.f32.mrf.mxu0
        %v11215 = vadd.f32 %v10848, %v11214
        %v11216 = vpop.f32.mrf.mxu0
        %11217 = vdwg.mxu0
        %11218 = vmatpush.bf16.msra.mxu0 0
        %11219 = vmatpush.bf16.msra.mxu0 0
        %11220 = vmatpush.bf16.msra.mxu0 0
        %11221 = vmatpush.bf16.msra.mxu0 0
        %11222 = vmatpush.bf16.msra.mxu0 %v10807
        %11223 = vmatpush.bf16.msra.mxu0 %v10743
        %11224 = vmatpush.bf16.msra.mxu0 %v10679
        %11225 = vmatpush.bf16.msra.mxu0 %v10615
        %11226 = vmatmul.bf16.gmra.mxu0 %v10852
        %v11227 = vpop.f32.mrf.mxu0
        %v11228 = vadd.f32 %v10848, %v11227
        %v11229 = vpop.f32.mrf.mxu0
        %11230 = vdwg.mxu0
        %11231 = vmatpush.bf16.msra.mxu0 0
        %11232 = vmatpush.bf16.msra.mxu0 0
        %11233 = vmatpush.bf16.msra.mxu0 0
        %11234 = vmatpush.bf16.msra.mxu0 0
        %11235 = vmatpush.bf16.msra.mxu0 %v10808
        %11236 = vmatpush.bf16.msra.mxu0 %v10744
        %11237 = vmatpush.bf16.msra.mxu0 %v10680
        %11238 = vmatpush.bf16.msra.mxu0 %v10616
        %11239 = vmatmul.bf16.gmra.mxu0 %v10852
        %v11240 = vpop.f32.mrf.mxu0
        %v11241 = vadd.f32 %v10848, %v11240
        %v11242 = vpop.f32.mrf.mxu0
        %11243 = vdwg.mxu0
        %11244 = vmatpush.bf16.msra.mxu0 0
        %11245 = vmatpush.bf16.msra.mxu0 0
        %11246 = vmatpush.bf16.msra.mxu0 0
        %11247 = vmatpush.bf16.msra.mxu0 0
        %11248 = vmatpush.bf16.msra.mxu0 %v10809
        %11249 = vmatpush.bf16.msra.mxu0 %v10745
        %11250 = vmatpush.bf16.msra.mxu0 %v10681
        %11251 = vmatpush.bf16.msra.mxu0 %v10617
        %11252 = vmatmul.bf16.gmra.mxu0 %v10852
        %v11253 = vpop.f32.mrf.mxu0
        %v11254 = vadd.f32 %v10848, %v11253
        %v11255 = vpop.f32.mrf.mxu0
        %11256 = vdwg.mxu0
        %11257 = vmatpush.bf16.msra.mxu0 0
        %11258 = vmatpush.bf16.msra.mxu0 0
        %11259 = vmatpush.bf16.msra.mxu0 0
        %11260 = vmatpush.bf16.msra.mxu0 0
        %11261 = vmatpush.bf16.msra.mxu0 %v10810
        %11262 = vmatpush.bf16.msra.mxu0 %v10746
        %11263 = vmatpush.bf16.msra.mxu0 %v10682
        %11264 = vmatpush.bf16.msra.mxu0 %v10618
        %11265 = vmatmul.bf16.gmra.mxu0 %v10852
        %v11266 = vpop.f32.mrf.mxu0
        %v11267 = vadd.f32 %v10848, %v11266
        %v11268 = vpop.f32.mrf.mxu0
        %11269 = vdwg.mxu0
        %11270 = vmatpush.bf16.msra.mxu0 0
        %11271 = vmatpush.bf16.msra.mxu0 0
        %11272 = vmatpush.bf16.msra.mxu0 0
        %11273 = vmatpush.bf16.msra.mxu0 0
        %11274 = vmatpush.bf16.msra.mxu0 %v10811
        %11275 = vmatpush.bf16.msra.mxu0 %v10747
        %11276 = vmatpush.bf16.msra.mxu0 %v10683
        %11277 = vmatpush.bf16.msra.mxu0 %v10619
        %11278 = vmatmul.bf16.gmra.mxu0 %v10852
        %v11279 = vpop.f32.mrf.mxu0
        %v11280 = vadd.f32 %v10848, %v11279
        %v11281 = vpop.f32.mrf.mxu0
        %11282 = vdwg.mxu0
        %11283 = vmatpush.bf16.msra.mxu0 0
        %11284 = vmatpush.bf16.msra.mxu0 0
        %11285 = vmatpush.bf16.msra.mxu0 0
        %11286 = vmatpush.bf16.msra.mxu0 0
        %11287 = vmatpush.bf16.msra.mxu0 %v10812
        %11288 = vmatpush.bf16.msra.mxu0 %v10748
        %11289 = vmatpush.bf16.msra.mxu0 %v10684
        %11290 = vmatpush.bf16.msra.mxu0 %v10620
        %11291 = vmatmul.bf16.gmra.mxu0 %v10852
        %v11292 = vpop.f32.mrf.mxu0
        %v11293 = vadd.f32 %v10848, %v11292
        %v11294 = vpop.f32.mrf.mxu0
        %11295 = vdwg.mxu0
        %11296 = vmatpush.bf16.msra.mxu0 0
        %11297 = vmatpush.bf16.msra.mxu0 0
        %11298 = vmatpush.bf16.msra.mxu0 0
        %11299 = vmatpush.bf16.msra.mxu0 0
        %11300 = vmatpush.bf16.msra.mxu0 %v10813
        %11301 = vmatpush.bf16.msra.mxu0 %v10749
        %11302 = vmatpush.bf16.msra.mxu0 %v10685
        %11303 = vmatpush.bf16.msra.mxu0 %v10621
        %11304 = vmatmul.bf16.gmra.mxu0 %v10852
        %v11305 = vpop.f32.mrf.mxu0
        %v11306 = vadd.f32 %v10848, %v11305
        %v11307 = vpop.f32.mrf.mxu0
        %11308 = vdwg.mxu0
        %11309 = vmatpush.bf16.msra.mxu0 0
        %11310 = vmatpush.bf16.msra.mxu0 0
        %11311 = vmatpush.bf16.msra.mxu0 0
        %11312 = vmatpush.bf16.msra.mxu0 0
        %11313 = vmatpush.bf16.msra.mxu0 %v10814
        %11314 = vmatpush.bf16.msra.mxu0 %v10750
        %11315 = vmatpush.bf16.msra.mxu0 %v10686
        %11316 = vmatpush.bf16.msra.mxu0 %v10622
        %11317 = vmatmul.bf16.gmra.mxu0 %v10852
        %v11318 = vpop.f32.mrf.mxu0
        %v11319 = vadd.f32 %v10848, %v11318
        %v11320 = vpop.f32.mrf.mxu0
        %11321 = vdwg.mxu0
        %11322 = vmatpush.bf16.msra.mxu0 0
        %11323 = vmatpush.bf16.msra.mxu0 0
        %11324 = vmatpush.bf16.msra.mxu0 0
        %11325 = vmatpush.bf16.msra.mxu0 0
        %11326 = vmatpush.bf16.msra.mxu0 %v10815
        %11327 = vmatpush.bf16.msra.mxu0 %v10751
        %11328 = vmatpush.bf16.msra.mxu0 %v10687
        %11329 = vmatpush.bf16.msra.mxu0 %v10623
        %11330 = vmatmul.bf16.gmra.mxu0 %v10852
        %v11331 = vpop.f32.mrf.mxu0
        %v11332 = vadd.f32 %v10848, %v11331
        %v11333 = vpop.f32.mrf.mxu0
        %11334 = vdwg.mxu0
        %11335 = vmatpush.bf16.msra.mxu0 0
        %11336 = vmatpush.bf16.msra.mxu0 0
        %11337 = vmatpush.bf16.msra.mxu0 0
        %11338 = vmatpush.bf16.msra.mxu0 0
        %11339 = vmatpush.bf16.msra.mxu0 %v10816
        %11340 = vmatpush.bf16.msra.mxu0 %v10752
        %11341 = vmatpush.bf16.msra.mxu0 %v10688
        %11342 = vmatpush.bf16.msra.mxu0 %v10624
        %11343 = vmatmul.bf16.gmra.mxu0 %v10852
        %v11344 = vpop.f32.mrf.mxu0
        %v11345 = vadd.f32 %v10848, %v11344
        %v11346 = vpop.f32.mrf.mxu0
        %11347 = vdwg.mxu0
        %11348 = vmatpush.bf16.msra.mxu0 0
        %11349 = vmatpush.bf16.msra.mxu0 0
        %11350 = vmatpush.bf16.msra.mxu0 0
        %11351 = vmatpush.bf16.msra.mxu0 0
        %11352 = vmatpush.bf16.msra.mxu0 %v10817
        %11353 = vmatpush.bf16.msra.mxu0 %v10753
        %11354 = vmatpush.bf16.msra.mxu0 %v10689
        %11355 = vmatpush.bf16.msra.mxu0 %v10625
        %11356 = vmatmul.bf16.gmra.mxu0 %v10852
        %v11357 = vpop.f32.mrf.mxu0
        %v11358 = vadd.f32 %v10848, %v11357
        %v11359 = vpop.f32.mrf.mxu0
        %11360 = vdwg.mxu0
        %11361 = vmatpush.bf16.msra.mxu0 0
        %11362 = vmatpush.bf16.msra.mxu0 0
        %11363 = vmatpush.bf16.msra.mxu0 0
        %11364 = vmatpush.bf16.msra.mxu0 0
        %11365 = vmatpush.bf16.msra.mxu0 %v10818
        %11366 = vmatpush.bf16.msra.mxu0 %v10754
        %11367 = vmatpush.bf16.msra.mxu0 %v10690
        %11368 = vmatpush.bf16.msra.mxu0 %v10626
        %11369 = vmatmul.bf16.gmra.mxu0 %v10852
        %v11370 = vpop.f32.mrf.mxu0
        %v11371 = vadd.f32 %v10848, %v11370
        %v11372 = vpop.f32.mrf.mxu0
        %11373 = vdwg.mxu0
        %11374 = vmatpush.bf16.msra.mxu0 0
        %11375 = vmatpush.bf16.msra.mxu0 0
        %11376 = vmatpush.bf16.msra.mxu0 0
        %11377 = vmatpush.bf16.msra.mxu0 0
        %11378 = vmatpush.bf16.msra.mxu0 %v10819
        %11379 = vmatpush.bf16.msra.mxu0 %v10755
        %11380 = vmatpush.bf16.msra.mxu0 %v10691
        %11381 = vmatpush.bf16.msra.mxu0 %v10627
        %11382 = vmatmul.bf16.gmra.mxu0 %v10852
        %v11383 = vpop.f32.mrf.mxu0
        %v11384 = vadd.f32 %v10848, %v11383
        %v11385 = vpop.f32.mrf.mxu0
        %11386 = vdwg.mxu0
        %11387 = vmatpush.bf16.msra.mxu0 0
        %11388 = vmatpush.bf16.msra.mxu0 0
        %11389 = vmatpush.bf16.msra.mxu0 0
        %11390 = vmatpush.bf16.msra.mxu0 0
        %11391 = vmatpush.bf16.msra.mxu0 %v10820
        %11392 = vmatpush.bf16.msra.mxu0 %v10756
        %11393 = vmatpush.bf16.msra.mxu0 %v10692
        %11394 = vmatpush.bf16.msra.mxu0 %v10628
        %11395 = vmatmul.bf16.gmra.mxu0 %v10852
        %v11396 = vpop.f32.mrf.mxu0
        %v11397 = vadd.f32 %v10848, %v11396
        %v11398 = vpop.f32.mrf.mxu0
        %11399 = vdwg.mxu0
        %11400 = vmatpush.bf16.msra.mxu0 0
        %11401 = vmatpush.bf16.msra.mxu0 0
        %11402 = vmatpush.bf16.msra.mxu0 0
        %11403 = vmatpush.bf16.msra.mxu0 0
        %11404 = vmatpush.bf16.msra.mxu0 %v10821
        %11405 = vmatpush.bf16.msra.mxu0 %v10757
        %11406 = vmatpush.bf16.msra.mxu0 %v10693
        %11407 = vmatpush.bf16.msra.mxu0 %v10629
        %11408 = vmatmul.bf16.gmra.mxu0 %v10852
        %v11409 = vpop.f32.mrf.mxu0
        %v11410 = vadd.f32 %v10848, %v11409
        %v11411 = vpop.f32.mrf.mxu0
        %11412 = vdwg.mxu0
        %11413 = vmatpush.bf16.msra.mxu0 0
        %11414 = vmatpush.bf16.msra.mxu0 0
        %11415 = vmatpush.bf16.msra.mxu0 0
        %11416 = vmatpush.bf16.msra.mxu0 0
        %11417 = vmatpush.bf16.msra.mxu0 %v10822
        %11418 = vmatpush.bf16.msra.mxu0 %v10758
        %11419 = vmatpush.bf16.msra.mxu0 %v10694
        %11420 = vmatpush.bf16.msra.mxu0 %v10630
        %11421 = vmatmul.bf16.gmra.mxu0 %v10852
        %v11422 = vpop.f32.mrf.mxu0
        %v11423 = vadd.f32 %v10848, %v11422
        %v11424 = vpop.f32.mrf.mxu0
        %11425 = vdwg.mxu0
        %11426 = vmatpush.bf16.msra.mxu0 0
        %11427 = vmatpush.bf16.msra.mxu0 0
        %11428 = vmatpush.bf16.msra.mxu0 0
        %11429 = vmatpush.bf16.msra.mxu0 0
        %11430 = vmatpush.bf16.msra.mxu0 %v10823
        %11431 = vmatpush.bf16.msra.mxu0 %v10759
        %11432 = vmatpush.bf16.msra.mxu0 %v10695
        %11433 = vmatpush.bf16.msra.mxu0 %v10631
        %11434 = vmatmul.bf16.gmra.mxu0 %v10852
        %v11435 = vpop.f32.mrf.mxu0
        %v11436 = vadd.f32 %v10848, %v11435
        %v11437 = vpop.f32.mrf.mxu0
        %11438 = vdwg.mxu0
        %11439 = vmatpush.bf16.msra.mxu0 0
        %11440 = vmatpush.bf16.msra.mxu0 0
        %11441 = vmatpush.bf16.msra.mxu0 0
        %11442 = vmatpush.bf16.msra.mxu0 0
        %11443 = vmatpush.bf16.msra.mxu0 %v10824
        %11444 = vmatpush.bf16.msra.mxu0 %v10760
        %11445 = vmatpush.bf16.msra.mxu0 %v10696
        %11446 = vmatpush.bf16.msra.mxu0 %v10632
        %11447 = vmatmul.bf16.gmra.mxu0 %v10852
        %v11448 = vpop.f32.mrf.mxu0
        %v11449 = vadd.f32 %v10848, %v11448
        %v11450 = vpop.f32.mrf.mxu0
        %11451 = vdwg.mxu0
        %11452 = vmatpush.bf16.msra.mxu0 0
        %11453 = vmatpush.bf16.msra.mxu0 0
        %11454 = vmatpush.bf16.msra.mxu0 0
        %11455 = vmatpush.bf16.msra.mxu0 0
        %11456 = vmatpush.bf16.msra.mxu0 %v10825
        %11457 = vmatpush.bf16.msra.mxu0 %v10761
        %11458 = vmatpush.bf16.msra.mxu0 %v10697
        %11459 = vmatpush.bf16.msra.mxu0 %v10633
        %11460 = vmatmul.bf16.gmra.mxu0 %v10852
        %v11461 = vpop.f32.mrf.mxu0
        %v11462 = vadd.f32 %v10848, %v11461
        %v11463 = vpop.f32.mrf.mxu0
        %11464 = vdwg.mxu0
        %11465 = vmatpush.bf16.msra.mxu0 0
        %11466 = vmatpush.bf16.msra.mxu0 0
        %11467 = vmatpush.bf16.msra.mxu0 0
        %11468 = vmatpush.bf16.msra.mxu0 0
        %11469 = vmatpush.bf16.msra.mxu0 %v10826
        %11470 = vmatpush.bf16.msra.mxu0 %v10762
        %11471 = vmatpush.bf16.msra.mxu0 %v10698
        %11472 = vmatpush.bf16.msra.mxu0 %v10634
        %11473 = vmatmul.bf16.gmra.mxu0 %v10852
        %v11474 = vpop.f32.mrf.mxu0
        %v11475 = vadd.f32 %v10848, %v11474
        %v11476 = vpop.f32.mrf.mxu0
        %11477 = vdwg.mxu0
        %11478 = vmatpush.bf16.msra.mxu0 0
        %11479 = vmatpush.bf16.msra.mxu0 0
        %11480 = vmatpush.bf16.msra.mxu0 0
        %11481 = vmatpush.bf16.msra.mxu0 0
        %11482 = vmatpush.bf16.msra.mxu0 %v10827
        %11483 = vmatpush.bf16.msra.mxu0 %v10763
        %11484 = vmatpush.bf16.msra.mxu0 %v10699
        %11485 = vmatpush.bf16.msra.mxu0 %v10635
        %11486 = vmatmul.bf16.gmra.mxu0 %v10852
        %v11487 = vpop.f32.mrf.mxu0
        %v11488 = vadd.f32 %v10848, %v11487
        %v11489 = vpop.f32.mrf.mxu0
        %11490 = vdwg.mxu0
        %11491 = vmatpush.bf16.msra.mxu0 0
        %11492 = vmatpush.bf16.msra.mxu0 0
        %11493 = vmatpush.bf16.msra.mxu0 0
        %11494 = vmatpush.bf16.msra.mxu0 0
        %11495 = vmatpush.bf16.msra.mxu0 %v10828
        %11496 = vmatpush.bf16.msra.mxu0 %v10764
        %11497 = vmatpush.bf16.msra.mxu0 %v10700
        %11498 = vmatpush.bf16.msra.mxu0 %v10636
        %11499 = vmatmul.bf16.gmra.mxu0 %v10852
        %v11500 = vpop.f32.mrf.mxu0
        %v11501 = vadd.f32 %v10848, %v11500
        %v11502 = vpop.f32.mrf.mxu0
        %11503 = vdwg.mxu0
        %11504 = vmatpush.bf16.msra.mxu0 0
        %11505 = vmatpush.bf16.msra.mxu0 0
        %11506 = vmatpush.bf16.msra.mxu0 0
        %11507 = vmatpush.bf16.msra.mxu0 0
        %11508 = vmatpush.bf16.msra.mxu0 %v10829
        %11509 = vmatpush.bf16.msra.mxu0 %v10765
        %11510 = vmatpush.bf16.msra.mxu0 %v10701
        %11511 = vmatpush.bf16.msra.mxu0 %v10637
        %11512 = vmatmul.bf16.gmra.mxu0 %v10852
        %v11513 = vpop.f32.mrf.mxu0
        %v11514 = vadd.f32 %v10848, %v11513
        %v11515 = vpop.f32.mrf.mxu0
        %11516 = vdwg.mxu0
        %11517 = vmatpush.bf16.msra.mxu0 0
        %11518 = vmatpush.bf16.msra.mxu0 0
        %11519 = vmatpush.bf16.msra.mxu0 0
        %11520 = vmatpush.bf16.msra.mxu0 0
        %11521 = vmatpush.bf16.msra.mxu0 %v10830
        %11522 = vmatpush.bf16.msra.mxu0 %v10766
        %11523 = vmatpush.bf16.msra.mxu0 %v10702
        %11524 = vmatpush.bf16.msra.mxu0 %v10638
        %11525 = vmatmul.bf16.gmra.mxu0 %v10852
        %v11526 = vpop.f32.mrf.mxu0
        %v11527 = vadd.f32 %v10848, %v11526
        %v11528 = vpop.f32.mrf.mxu0
        %11529 = vdwg.mxu0
        %11530 = vmatpush.bf16.msra.mxu0 0
        %11531 = vmatpush.bf16.msra.mxu0 0
        %11532 = vmatpush.bf16.msra.mxu0 0
        %11533 = vmatpush.bf16.msra.mxu0 0
        %11534 = vmatpush.bf16.msra.mxu0 %v10831
        %11535 = vmatpush.bf16.msra.mxu0 %v10767
        %11536 = vmatpush.bf16.msra.mxu0 %v10703
        %11537 = vmatpush.bf16.msra.mxu0 %v10639
        %11538 = vmatmul.bf16.gmra.mxu0 %v10852
        %v11539 = vpop.f32.mrf.mxu0
        %v11540 = vadd.f32 %v10848, %v11539
        %v11541 = vpop.f32.mrf.mxu0
        %11542 = vdwg.mxu0
        %11543 = vmatpush.bf16.msra.mxu0 0
        %11544 = vmatpush.bf16.msra.mxu0 0
        %11545 = vmatpush.bf16.msra.mxu0 0
        %11546 = vmatpush.bf16.msra.mxu0 0
        %11547 = vmatpush.bf16.msra.mxu0 %v10832
        %11548 = vmatpush.bf16.msra.mxu0 %v10768
        %11549 = vmatpush.bf16.msra.mxu0 %v10704
        %11550 = vmatpush.bf16.msra.mxu0 %v10640
        %11551 = vmatmul.bf16.gmra.mxu0 %v10852
        %v11552 = vpop.f32.mrf.mxu0
        %v11553 = vadd.f32 %v10848, %v11552
        %v11554 = vpop.f32.mrf.mxu0
        %11555 = vdwg.mxu0
        %11556 = vmatpush.bf16.msra.mxu0 0
        %11557 = vmatpush.bf16.msra.mxu0 0
        %11558 = vmatpush.bf16.msra.mxu0 0
        %11559 = vmatpush.bf16.msra.mxu0 0
        %11560 = vmatpush.bf16.msra.mxu0 %v10833
        %11561 = vmatpush.bf16.msra.mxu0 %v10769
        %11562 = vmatpush.bf16.msra.mxu0 %v10705
        %11563 = vmatpush.bf16.msra.mxu0 %v10641
        %11564 = vmatmul.bf16.gmra.mxu0 %v10852
        %v11565 = vpop.f32.mrf.mxu0
        %v11566 = vadd.f32 %v10848, %v11565
        %v11567 = vpop.f32.mrf.mxu0
        %11568 = vdwg.mxu0
        %11569 = vmatpush.bf16.msra.mxu0 0
        %11570 = vmatpush.bf16.msra.mxu0 0
        %11571 = vmatpush.bf16.msra.mxu0 0
        %11572 = vmatpush.bf16.msra.mxu0 0
        %11573 = vmatpush.bf16.msra.mxu0 %v10834
        %11574 = vmatpush.bf16.msra.mxu0 %v10770
        %11575 = vmatpush.bf16.msra.mxu0 %v10706
        %11576 = vmatpush.bf16.msra.mxu0 %v10642
        %11577 = vmatmul.bf16.gmra.mxu0 %v10852
        %v11578 = vpop.f32.mrf.mxu0
        %v11579 = vadd.f32 %v10848, %v11578
        %v11580 = vpop.f32.mrf.mxu0
        %11581 = vdwg.mxu0
        %11582 = vmatpush.bf16.msra.mxu0 0
        %11583 = vmatpush.bf16.msra.mxu0 0
        %11584 = vmatpush.bf16.msra.mxu0 0
        %11585 = vmatpush.bf16.msra.mxu0 0
        %11586 = vmatpush.bf16.msra.mxu0 %v10835
        %11587 = vmatpush.bf16.msra.mxu0 %v10771
        %11588 = vmatpush.bf16.msra.mxu0 %v10707
        %11589 = vmatpush.bf16.msra.mxu0 %v10643
        %11590 = vmatmul.bf16.gmra.mxu0 %v10852
        %v11591 = vpop.f32.mrf.mxu0
        %v11592 = vadd.f32 %v10848, %v11591
        %v11593 = vpop.f32.mrf.mxu0
        %11594 = vdwg.mxu0
        %11595 = vmatpush.bf16.msra.mxu0 0
        %11596 = vmatpush.bf16.msra.mxu0 0
        %11597 = vmatpush.bf16.msra.mxu0 0
        %11598 = vmatpush.bf16.msra.mxu0 0
        %11599 = vmatpush.bf16.msra.mxu0 %v10836
        %11600 = vmatpush.bf16.msra.mxu0 %v10772
        %11601 = vmatpush.bf16.msra.mxu0 %v10708
        %11602 = vmatpush.bf16.msra.mxu0 %v10644
        %11603 = vmatmul.bf16.gmra.mxu0 %v10852
        %v11604 = vpop.f32.mrf.mxu0
        %v11605 = vadd.f32 %v10848, %v11604
        %v11606 = vpop.f32.mrf.mxu0
        %11607 = vdwg.mxu0
        %11608 = vmatpush.bf16.msra.mxu0 0
        %11609 = vmatpush.bf16.msra.mxu0 0
        %11610 = vmatpush.bf16.msra.mxu0 0
        %11611 = vmatpush.bf16.msra.mxu0 0
        %11612 = vmatpush.bf16.msra.mxu0 %v10837
        %11613 = vmatpush.bf16.msra.mxu0 %v10773
        %11614 = vmatpush.bf16.msra.mxu0 %v10709
        %11615 = vmatpush.bf16.msra.mxu0 %v10645
        %11616 = vmatmul.bf16.gmra.mxu0 %v10852
        %v11617 = vpop.f32.mrf.mxu0
        %v11618 = vadd.f32 %v10848, %v11617
        %v11619 = vpop.f32.mrf.mxu0
        %11620 = vdwg.mxu0
        %11621 = vmatpush.bf16.msra.mxu0 0
        %11622 = vmatpush.bf16.msra.mxu0 0
        %11623 = vmatpush.bf16.msra.mxu0 0
        %11624 = vmatpush.bf16.msra.mxu0 0
        %11625 = vmatpush.bf16.msra.mxu0 %v10838
        %11626 = vmatpush.bf16.msra.mxu0 %v10774
        %11627 = vmatpush.bf16.msra.mxu0 %v10710
        %11628 = vmatpush.bf16.msra.mxu0 %v10646
        %11629 = vmatmul.bf16.gmra.mxu0 %v10852
        %v11630 = vpop.f32.mrf.mxu0
        %v11631 = vadd.f32 %v10848, %v11630
        %v11632 = vpop.f32.mrf.mxu0
        %11633 = vdwg.mxu0
        %11634 = vmatpush.bf16.msra.mxu0 0
        %11635 = vmatpush.bf16.msra.mxu0 0
        %11636 = vmatpush.bf16.msra.mxu0 0
        %11637 = vmatpush.bf16.msra.mxu0 0
        %11638 = vmatpush.bf16.msra.mxu0 %v10839
        %11639 = vmatpush.bf16.msra.mxu0 %v10775
        %11640 = vmatpush.bf16.msra.mxu0 %v10711
        %11641 = vmatpush.bf16.msra.mxu0 %v10647
        %11642 = vmatmul.bf16.gmra.mxu0 %v10852
        %v11643 = vpop.f32.mrf.mxu0
        %v11644 = vadd.f32 %v10848, %v11643
        %v11645 = vpop.f32.mrf.mxu0
        %11646 = vdwg.mxu0
        %11647 = vmatpush.bf16.msra.mxu0 0
        %11648 = vmatpush.bf16.msra.mxu0 0
        %11649 = vmatpush.bf16.msra.mxu0 0
        %11650 = vmatpush.bf16.msra.mxu0 0
        %11651 = vmatpush.bf16.msra.mxu0 %v10840
        %11652 = vmatpush.bf16.msra.mxu0 %v10776
        %11653 = vmatpush.bf16.msra.mxu0 %v10712
        %11654 = vmatpush.bf16.msra.mxu0 %v10648
        %11655 = vmatmul.bf16.gmra.mxu0 %v10852
        %v11656 = vpop.f32.mrf.mxu0
        %v11657 = vadd.f32 %v10848, %v11656
        %v11658 = vpop.f32.mrf.mxu0
        %11659 = vdwg.mxu0
        %11660 = vmatpush.bf16.msra.mxu0 0
        %11661 = vmatpush.bf16.msra.mxu0 0
        %11662 = vmatpush.bf16.msra.mxu0 0
        %11663 = vmatpush.bf16.msra.mxu0 0
        %11664 = vmatpush.bf16.msra.mxu0 %v10841
        %11665 = vmatpush.bf16.msra.mxu0 %v10777
        %11666 = vmatpush.bf16.msra.mxu0 %v10713
        %11667 = vmatpush.bf16.msra.mxu0 %v10649
        %11668 = vmatmul.bf16.gmra.mxu0 %v10852
        %v11669 = vpop.f32.mrf.mxu0
        %v11670 = vadd.f32 %v10848, %v11669
        %v11671 = vpop.f32.mrf.mxu0
        %11672 = vdwg.mxu0
        %11673 = vmatpush.bf16.msra.mxu0 0
        %11674 = vmatpush.bf16.msra.mxu0 0
        %11675 = vmatpush.bf16.msra.mxu0 0
        %11676 = vmatpush.bf16.msra.mxu0 0
        %11677 = vmatpush.bf16.msra.mxu0 %v10842
        %11678 = vmatpush.bf16.msra.mxu0 %v10778
        %11679 = vmatpush.bf16.msra.mxu0 %v10714
        %11680 = vmatpush.bf16.msra.mxu0 %v10650
        %11681 = vmatmul.bf16.gmra.mxu0 %v10852
        %v11682 = vpop.f32.mrf.mxu0
        %v11683 = vadd.f32 %v10848, %v11682
        %v11684 = vpop.f32.mrf.mxu0
        %11685 = vdwg.mxu0
        %v11686 = vmax.f32 %v10864, 0.0
        %v11687 = vmax.f32 %v10877, 0.0
        %v11688 = vmax.f32 %v10890, 0.0
        %v11689 = vmax.f32 %v10903, 0.0
        %v11690 = vmax.f32 %v10916, 0.0
        %v11691 = vmax.f32 %v10929, 0.0
        %v11692 = vmax.f32 %v10942, 0.0
        %v11693 = vmax.f32 %v10955, 0.0
        %v11694 = vmax.f32 %v10968, 0.0
        %v11695 = vmax.f32 %v10981, 0.0
        %v11696 = vmax.f32 %v10994, 0.0
        %v11697 = vmax.f32 %v11007, 0.0
        %v11698 = vmax.f32 %v11020, 0.0
        %v11699 = vmax.f32 %v11033, 0.0
        %v11700 = vmax.f32 %v11046, 0.0
        %v11701 = vmax.f32 %v11059, 0.0
        %v11702 = vmax.f32 %v11072, 0.0
        %v11703 = vmax.f32 %v11085, 0.0
        %v11704 = vmax.f32 %v11098, 0.0
        %v11705 = vmax.f32 %v11111, 0.0
        %v11706 = vmax.f32 %v11124, 0.0
        %v11707 = vmax.f32 %v11137, 0.0
        %v11708 = vmax.f32 %v11150, 0.0
        %v11709 = vmax.f32 %v11163, 0.0
        %v11710 = vmax.f32 %v11176, 0.0
        %v11711 = vmax.f32 %v11189, 0.0
        %v11712 = vmax.f32 %v11202, 0.0
        %v11713 = vmax.f32 %v11215, 0.0
        %v11714 = vmax.f32 %v11228, 0.0
        %v11715 = vmax.f32 %v11241, 0.0
        %v11716 = vmax.f32 %v11254, 0.0
        %v11717 = vmax.f32 %v11267, 0.0
        %v11718 = vmax.f32 %v11280, 0.0
        %v11719 = vmax.f32 %v11293, 0.0
        %v11720 = vmax.f32 %v11306, 0.0
        %v11721 = vmax.f32 %v11319, 0.0
        %v11722 = vmax.f32 %v11332, 0.0
        %v11723 = vmax.f32 %v11345, 0.0
        %v11724 = vmax.f32 %v11358, 0.0
        %v11725 = vmax.f32 %v11371, 0.0
        %v11726 = vmax.f32 %v11384, 0.0
        %v11727 = vmax.f32 %v11397, 0.0
        %v11728 = vmax.f32 %v11410, 0.0
        %v11729 = vmax.f32 %v11423, 0.0
        %v11730 = vmax.f32 %v11436, 0.0
        %v11731 = vmax.f32 %v11449, 0.0
        %v11732 = vmax.f32 %v11462, 0.0
        %v11733 = vmax.f32 %v11475, 0.0
        %v11734 = vmax.f32 %v11488, 0.0
        %v11735 = vmax.f32 %v11501, 0.0
        %v11736 = vmax.f32 %v11514, 0.0
        %v11737 = vmax.f32 %v11527, 0.0
        %v11738 = vmax.f32 %v11540, 0.0
        %v11739 = vmax.f32 %v11553, 0.0
        %v11740 = vmax.f32 %v11566, 0.0
        %v11741 = vmax.f32 %v11579, 0.0
        %v11742 = vmax.f32 %v11592, 0.0
        %v11743 = vmax.f32 %v11605, 0.0
        %v11744 = vmax.f32 %v11618, 0.0
        %v11745 = vmax.f32 %v11631, 0.0
        %v11746 = vmax.f32 %v11644, 0.0
        %v11747 = vmax.f32 %v11657, 0.0
        %v11748 = vmax.f32 %v11670, 0.0
        %v11749 = vmax.f32 %v11683, 0.0
        %v11750 = vpack.c.bf16 %v11694, %v11686
        %v11751 = vpack.c.bf16 %v11695, %v11687
        %v11752 = vpack.c.bf16 %v11696, %v11688
        %v11753 = vpack.c.bf16 %v11697, %v11689
        %v11754 = vpack.c.bf16 %v11698, %v11690
        %v11755 = vpack.c.bf16 %v11699, %v11691
        %v11756 = vpack.c.bf16 %v11700, %v11692
        %v11757 = vpack.c.bf16 %v11701, %v11693
        %v11758 = vpack.c.bf16 %v11710, %v11702
        %v11759 = vpack.c.bf16 %v11711, %v11703
        %v11760 = vpack.c.bf16 %v11712, %v11704
        %v11761 = vpack.c.bf16 %v11713, %v11705
        %v11762 = vpack.c.bf16 %v11714, %v11706
        %v11763 = vpack.c.bf16 %v11715, %v11707
        %v11764 = vpack.c.bf16 %v11716, %v11708
        %v11765 = vpack.c.bf16 %v11717, %v11709
        %v11766 = vpack.c.bf16 %v11726, %v11718
        %v11767 = vpack.c.bf16 %v11727, %v11719
        %v11768 = vpack.c.bf16 %v11728, %v11720
        %v11769 = vpack.c.bf16 %v11729, %v11721
        %v11770 = vpack.c.bf16 %v11730, %v11722
        %v11771 = vpack.c.bf16 %v11731, %v11723
        %v11772 = vpack.c.bf16 %v11732, %v11724
        %v11773 = vpack.c.bf16 %v11733, %v11725
        %v11774 = vpack.c.bf16 %v11742, %v11734
        %v11775 = vpack.c.bf16 %v11743, %v11735
        %v11776 = vpack.c.bf16 %v11744, %v11736
        %v11777 = vpack.c.bf16 %v11745, %v11737
        %v11778 = vpack.c.bf16 %v11746, %v11738
        %v11779 = vpack.c.bf16 %v11747, %v11739
        %v11780 = vpack.c.bf16 %v11748, %v11740
        %v11781 = vpack.c.bf16 %v11749, %v11741
        %v11782 = vld [vmem:[%s3] sm:$0xf]
        %v11783 = vld [vmem:[%s7] sm:$0xff]
        %11785 = vset.pattern.permute.xlu0 0
        %11786 = vperm.xlu0 %11785, %v11783
        %v11787 = vpop.permute.xlu0 %11786
        %v11790 = vsel %vm10850, %v11782, 0
        %11792 = vmatpush.bf16.msra.mxu0 0
        %11793 = vmatpush.bf16.msra.mxu0 0
        %11794 = vmatpush.bf16.msra.mxu0 0
        %11795 = vmatpush.bf16.msra.mxu0 0
        %11796 = vmatpush.bf16.msra.mxu0 %v11774
        %11797 = vmatpush.bf16.msra.mxu0 %v11766
        %11798 = vmatpush.bf16.msra.mxu0 %v11758
        %11799 = vmatpush.bf16.msra.mxu0 %v11750
        %11800 = vmatmul.bf16.gmra.mxu0 %v11790
        %v11801 = vpop.f32.mrf.mxu0
        %v11802 = vadd.f32 %v11787, %v11801
        %v11803 = vpop.f32.mrf.mxu0
        %11804 = vdwg.mxu0
        %11805 = vmatpush.bf16.msra.mxu0 0
        %11806 = vmatpush.bf16.msra.mxu0 0
        %11807 = vmatpush.bf16.msra.mxu0 0
        %11808 = vmatpush.bf16.msra.mxu0 0
        %11809 = vmatpush.bf16.msra.mxu0 %v11775
        %11810 = vmatpush.bf16.msra.mxu0 %v11767
        %11811 = vmatpush.bf16.msra.mxu0 %v11759
        %11812 = vmatpush.bf16.msra.mxu0 %v11751
        %11813 = vmatmul.bf16.gmra.mxu0 %v11790
        %v11814 = vpop.f32.mrf.mxu0
        %v11815 = vadd.f32 %v11787, %v11814
        %v11816 = vpop.f32.mrf.mxu0
        %11817 = vdwg.mxu0
        %11818 = vmatpush.bf16.msra.mxu0 0
        %11819 = vmatpush.bf16.msra.mxu0 0
        %11820 = vmatpush.bf16.msra.mxu0 0
        %11821 = vmatpush.bf16.msra.mxu0 0
        %11822 = vmatpush.bf16.msra.mxu0 %v11776
        %11823 = vmatpush.bf16.msra.mxu0 %v11768
        %11824 = vmatpush.bf16.msra.mxu0 %v11760
        %11825 = vmatpush.bf16.msra.mxu0 %v11752
        %11826 = vmatmul.bf16.gmra.mxu0 %v11790
        %v11827 = vpop.f32.mrf.mxu0
        %v11828 = vadd.f32 %v11787, %v11827
        %v11829 = vpop.f32.mrf.mxu0
        %11830 = vdwg.mxu0
        %11831 = vmatpush.bf16.msra.mxu0 0
        %11832 = vmatpush.bf16.msra.mxu0 0
        %11833 = vmatpush.bf16.msra.mxu0 0
        %11834 = vmatpush.bf16.msra.mxu0 0
        %11835 = vmatpush.bf16.msra.mxu0 %v11777
        %11836 = vmatpush.bf16.msra.mxu0 %v11769
        %11837 = vmatpush.bf16.msra.mxu0 %v11761
        %11838 = vmatpush.bf16.msra.mxu0 %v11753
        %11839 = vmatmul.bf16.gmra.mxu0 %v11790
        %v11840 = vpop.f32.mrf.mxu0
        %v11841 = vadd.f32 %v11787, %v11840
        %v11842 = vpop.f32.mrf.mxu0
        %11843 = vdwg.mxu0
        %11844 = vmatpush.bf16.msra.mxu0 0
        %11845 = vmatpush.bf16.msra.mxu0 0
        %11846 = vmatpush.bf16.msra.mxu0 0
        %11847 = vmatpush.bf16.msra.mxu0 0
        %11848 = vmatpush.bf16.msra.mxu0 %v11778
        %11849 = vmatpush.bf16.msra.mxu0 %v11770
        %11850 = vmatpush.bf16.msra.mxu0 %v11762
        %11851 = vmatpush.bf16.msra.mxu0 %v11754
        %11852 = vmatmul.bf16.gmra.mxu0 %v11790
        %v11853 = vpop.f32.mrf.mxu0
        %v11854 = vadd.f32 %v11787, %v11853
        %v11855 = vpop.f32.mrf.mxu0
        %11856 = vdwg.mxu0
        %11857 = vmatpush.bf16.msra.mxu0 0
        %11858 = vmatpush.bf16.msra.mxu0 0
        %11859 = vmatpush.bf16.msra.mxu0 0
        %11860 = vmatpush.bf16.msra.mxu0 0
        %11861 = vmatpush.bf16.msra.mxu0 %v11779
        %11862 = vmatpush.bf16.msra.mxu0 %v11771
        %11863 = vmatpush.bf16.msra.mxu0 %v11763
        %11864 = vmatpush.bf16.msra.mxu0 %v11755
        %11865 = vmatmul.bf16.gmra.mxu0 %v11790
        %v11866 = vpop.f32.mrf.mxu0
        %v11867 = vadd.f32 %v11787, %v11866
        %v11868 = vpop.f32.mrf.mxu0
        %11869 = vdwg.mxu0
        %11870 = vmatpush.bf16.msra.mxu0 0
        %11871 = vmatpush.bf16.msra.mxu0 0
        %11872 = vmatpush.bf16.msra.mxu0 0
        %11873 = vmatpush.bf16.msra.mxu0 0
        %11874 = vmatpush.bf16.msra.mxu0 %v11780
        %11875 = vmatpush.bf16.msra.mxu0 %v11772
        %11876 = vmatpush.bf16.msra.mxu0 %v11764
        %11877 = vmatpush.bf16.msra.mxu0 %v11756
        %11878 = vmatmul.bf16.gmra.mxu0 %v11790
        %v11879 = vpop.f32.mrf.mxu0
        %v11880 = vadd.f32 %v11787, %v11879
        %v11881 = vpop.f32.mrf.mxu0
        %11882 = vdwg.mxu0
        %11883 = vmatpush.bf16.msra.mxu0 0
        %11884 = vmatpush.bf16.msra.mxu0 0
        %11885 = vmatpush.bf16.msra.mxu0 0
        %11886 = vmatpush.bf16.msra.mxu0 0
        %11887 = vmatpush.bf16.msra.mxu0 %v11781
        %11888 = vmatpush.bf16.msra.mxu0 %v11773
        %11889 = vmatpush.bf16.msra.mxu0 %v11765
        %11890 = vmatpush.bf16.msra.mxu0 %v11757
        %11891 = vmatmul.bf16.gmra.mxu0 %v11790
        %v11892 = vpop.f32.mrf.mxu0
        %v11893 = vadd.f32 %v11787, %v11892
        %v11894 = vpop.f32.mrf.mxu0
        %11895 = vdwg.mxu0
        %v11896 = vmax.f32 %v11802, 0.0
        %v11897 = vmax.f32 %v11815, 0.0
        %v11898 = vmax.f32 %v11828, 0.0
        %v11899 = vmax.f32 %v11841, 0.0
        %v11900 = vmax.f32 %v11854, 0.0
        %v11901 = vmax.f32 %v11867, 0.0
        %v11902 = vmax.f32 %v11880, 0.0
        %v11903 = vmax.f32 %v11893, 0.0
        %v11904 = vpack.c.bf16 %v11897, %v11896
        %v11905 = vpack.c.bf16 %v11899, %v11898
        %v11906 = vpack.c.bf16 %v11901, %v11900
        %v11907 = vpack.c.bf16 %v11903, %v11902
        %v11908 = vld [vmem:[%s4] sm:$0x1]
        %v11909 = vstv %s334
        %v11911 = vsel %vm10850, %v11908, 0
        %11913 = vmatpush.bf16.msra.mxu0 0
        %11914 = vmatpush.bf16.msra.mxu0 0
        %11915 = vmatpush.bf16.msra.mxu0 0
        %11916 = vmatpush.bf16.msra.mxu0 0
        %11917 = vmatpush.bf16.msra.mxu0 %v11907
        %11918 = vmatpush.bf16.msra.mxu0 %v11906
        %11919 = vmatpush.bf16.msra.mxu0 %v11905
        %11920 = vmatpush.bf16.msra.mxu0 %v11904
        %11921 = vmatmul.bf16.gmra.mxu0 %v11911
        %v11922 = vpop.f32.mrf.mxu0
        %v11923 = vadd.f32 %v11909, %v11922
        %v11924 = vpop.f32.mrf.mxu0
        %11925 = vdwg.mxu0
        %v11926 = vsub.f32 0.0, %v11923
        %v11927 = vmul.f32 %v11926, 1.442695
        %v11928 = vpow.pop %v11927
        %v11929 = vadd.f32 %v11928, 1.0
        %v11930 = vrcp.pop %v11929
        %v11931 = vmul.f32 %v11929, %v11930
        %v11932 = vsub.f32 1.0, %v11931
        %v11933 = vmul.f32 %v11930, %v11932
        %v11934 = vadd.f32 %v11930, %v11933
        %vm11935 = vweird.f32 %v11929
        %vm11936 = vweird.f32 %v11930
        %vm11937 = vmor %vm11935, %vm11936
        %v11938 = vsel %vm11937, %v11930, %v11934
        %v11939 = vand.u32 2147483647, %v11929
        %vm11940 = vcmp.eq.f32.partialorder %v11939, 8.507059e+37
        %v11941 = vand.u32 %v11929, 2147483648
        %v11942 = vor.u32 1.1754944e-38, %v11941
        %v11943 = vsel %vm11940, %v11942, %v11938
        %v11944 = vmul.f32 1.0, %v11943
        %11945 = vst [vmem:[%s326] sm:$0x1] %v11944
        %s11946 = sand.u32 %s226, 1
        %s11947 = scalar_lea.sflag [#allocation4], %s11946
        %s11948 = sand.u32 %s226, 1
        %s11949 = scalar_lea.vmem [#allocation3], %s11948
        // Predicated region
        $region57: #{ntc_forward_pallas.1} parent=55 // pred_check
          %p11950 = pneg %p236
        $region58: #{ntc_forward_pallas.1} parent=55 // pred_check_branch
          %11952 = sbr.rel (%p11950) target = $region60
        $region59: #{ntc_forward_pallas.1} parent=55 // pred_region
          %11954 = vsyncadd %s11947, 0
          %s11955 = scalar_lea.hbm %s9, %s24
          %s11957 = sshll.u32 %s11949, 4
          %s11958 = int_to_ptr.vmem [resolvable:$true] %s11957
          %s11959 = sshll.u32 %s11955, 4
          %s11960 = int_to_ptr.hbm [resolvable:$true] %s11959
          %11962 = dma.vmem_to_hbm [thread:$0]  %s11958, 16, %s11960, %s11947
        $region60: #{ntc_forward_pallas.1} parent=55 // pred_fallthru
          _
      $region56: #{ntc_forward_pallas.1} parent=5 // pred_fallthru
        _
      %p11963 = scmp.le.s32.totalorder 2, %s19
      // Predicated region
      $region61: #{ntc_forward_pallas.1} parent=5 // pred_check
        %p11964 = pneg %p11963
      $region62: #{ntc_forward_pallas.1} parent=5 // pred_check_branch
        %11966 = sbr.rel (%p11964) target = $region64
      $region63: #{ntc_forward_pallas.1} parent=5 // pred_region
        %s11967 = ssub.s32 %s19, 2
        // Predicated region
        $region65: #{ntc_forward_pallas.1} parent=63 // pred_check
          %p11968 = pneg %p242
        $region66: #{ntc_forward_pallas.1} parent=63 // pred_check_branch
          %11970 = sbr.rel (%p11968) target = $region68
        $region67: #{ntc_forward_pallas.1} parent=63 // pred_region
          %s11971 = sand.u32 %s227, 1
          %s11972 = scalar_lea.sflag [#allocation4], %s11971
          %s11973 = sand.u32 %s227, 1
          %s11974 = scalar_lea.vmem [#allocation3], %s11973
          %11976 = dma.done %s11972, 16
        $region68: #{ntc_forward_pallas.1} parent=63 // pred_fallthru
          _
      $region64: #{ntc_forward_pallas.1} parent=5 // pred_fallthru
        _
    $region6: #{ntc_forward_pallas.1} parent=1 // loop_footer
      %s23 = sadd.s32 1, %s19
    $region7: #{ntc_forward_pallas.1} parent=1 // loop_footer_branch
      %18 = sbr.rel target = $region3
    $region8: #{ntc_forward_pallas.1} parent=1 // loop_exit
      _
    %11977 = vsyncpa [#allocation4], 1
    %s11978 = scalar_lea.sflag [#allocation4], 1
    %11979 = vsyncpa %s11978, 1

</llo_original>
